<compile_context>
chip_gen: v7x
topology: tpu7x:2x2x1
jax: 0.10.0
libtpu: 0.0.40
codegen_flags: <defaults>
</compile_context>

<pallas_src>
import functools

import jax
import jax.numpy as jnp
import numpy as np
from jax.experimental import pallas as pl
from jax.experimental.pallas import tpu as pltpu

EPS = 1e-5
_VMEM_LIMIT = 48 * 1024 * 1024   # scoped-VMEM request; safe on v5e/v6e/v7x


# ---------------------------------------------------------------------------
# Kernel 1: ElevationConv (3x3 img conv + 3x3 elev conv, additive fusion,
# bias) + per-row-band partial BatchNorm statistics.
# One grid step == one band of TH output rows across the whole batch.
# ---------------------------------------------------------------------------
def _elev_conv_kernel(xs_ref, hs_ref, wi_ref, we_ref, bi_ref, be_ref,
                      xo_ref, ho_ref, st_ref):
    n, th, w, co = xo_ref.shape
    cx = xs_ref.shape[-1]
    ce = hs_ref.shape[-1]
    m = n * th * w

    def conv3x3(src_ref, w_ref, c):
        blk = src_ref[...]                              # (n, th+2, w+2, c) bf16
        acc = jnp.zeros((m, co), jnp.float32)
        # 3x3 conv (zero padding already present in the slab) as 9 shifted
        # matmuls: bf16 operands, f32 accumulation on the MXU.
        for dy in range(3):
            for dx in range(3):
                tap = blk[:, dy:dy + th, dx:dx + w, :].reshape(m, c)
                acc = acc + jnp.dot(tap, w_ref[dy * 3 + dx],
                                    preferred_element_type=jnp.float32)
        return acc

    acc_h = conv3x3(hs_ref, we_ref, ce) + be_ref[...]        # elevation branch
    acc_x = conv3x3(xs_ref, wi_ref, cx) + bi_ref[...] + acc_h  # fused img branch

    # Partial BatchNorm statistics (training-mode batch stats) for this band,
    # computed from the f32 accumulators.  The four (1, Co) moment rows are
    # scattered into a (4, Co) tile with iota/where (no sub-tile concat/store).
    s_x1 = jnp.sum(acc_x, axis=0, keepdims=True)
    s_x2 = jnp.sum(acc_x * acc_x, axis=0, keepdims=True)
    s_h1 = jnp.sum(acc_h, axis=0, keepdims=True)
    s_h2 = jnp.sum(acc_h * acc_h, axis=0, keepdims=True)
    row = jax.lax.broadcasted_iota(jnp.int32, (4, co), 0)
    stats = (jnp.where(row == 0, s_x1, 0.0) + jnp.where(row == 1, s_x2, 0.0)
             + jnp.where(row == 2, s_h1, 0.0) + jnp.where(row == 3, s_h2, 0.0))
    st_ref[...] = stats[None].astype(st_ref.dtype)

    # NOTE: with Co < 128 these stores are lane-masked; for the real model
    # (Co >= 64) this is close to lane-dense already.
    xo_ref[...] = acc_x.reshape(n, th, w, co).astype(xo_ref.dtype)
    ho_ref[...] = acc_h.reshape(n, th, w, co).astype(ho_ref.dtype)


def _elev_conv_stage(x_slabs, h_slabs, p, *, n, h, w, th):
    nt = h // th
    cx = x_slabs.shape[-1]
    ce = h_slabs.shape[-1]
    co = p["w_img"].shape[-1]

    def full_spec(shape):
        zeros = (0,) * len(shape)
        return pl.BlockSpec(shape, lambda i: zeros)

    def band_in(c):
        return pl.BlockSpec((n, th + 2, w + 2, c), lambda i: (i, 0, 0, 0))

    band_out = pl.BlockSpec((n, th, w, co), lambda i: (0, i, 0, 0))

    x_pre, h_pre, stats = pl.pallas_call(
        _elev_conv_kernel,
        grid=(nt,),
        in_specs=[band_in(cx), band_in(ce),
                  full_spec((9, cx, co)), full_spec((9, ce, co)),
                  full_spec((1, co)), full_spec((1, co))],
        out_specs=(band_out, band_out,
                   pl.BlockSpec((1, 4, co), lambda i: (i, 0, 0))),
        out_shape=(jax.ShapeDtypeStruct((n, h, w, co), jnp.bfloat16),
                   jax.ShapeDtypeStruct((n, h, w, co), jnp.bfloat16),
                   jax.ShapeDtypeStruct((nt, 4, co), jnp.float32)),
        compiler_params=pltpu.CompilerParams(
            dimension_semantics=("parallel",),
            vmem_limit_bytes=_VMEM_LIMIT),
    )(x_slabs, h_slabs,
      p["w_img"].astype(jnp.bfloat16), p["w_elev"].astype(jnp.bfloat16),
      p["b_img"], p["b_elev"])
    return x_pre, h_pre, jnp.sum(stats, axis=0)          # stats -> (4, Co)


# ---------------------------------------------------------------------------
# Kernel 2: folded BatchNorm (scale/offset) + ReLU finalize for the module
# outputs.  Gridded over the same row bands, "parallel".
# ---------------------------------------------------------------------------
def _bn_relu_kernel(x_ref, h_ref, sx_ref, ox_ref, sh_ref, oh_ref,
                    xout_ref, hout_ref, *, activate):
    x = x_ref[...].astype(jnp.float32) * sx_ref[...] + ox_ref[...]
    h = h_ref[...].astype(jnp.float32) * sh_ref[...] + oh_ref[...]
    if activate:
        x = jnp.maximum(x, 0.0)
        h = jnp.maximum(h, 0.0)
    xout_ref[...] = x.astype(xout_ref.dtype)
    hout_ref[...] = h.astype(hout_ref.dtype)


def _bn_relu_stage(x_pre, h_pre, sx, ox, sh, oh, *, th, activate, out_dtype):
    n, h, w, co = x_pre.shape
    nt = h // th
    band = pl.BlockSpec((n, th, w, co), lambda i: (0, i, 0, 0))
    vec = pl.BlockSpec((1, co), lambda i: (0, 0))
    kern = functools.partial(_bn_relu_kernel, activate=activate)
    return pl.pallas_call(
        kern,
        grid=(nt,),
        in_specs=[band, band, vec, vec, vec, vec],
        out_specs=(band, band),
        out_shape=(jax.ShapeDtypeStruct((n, h, w, co), out_dtype),) * 2,
        compiler_params=pltpu.CompilerParams(
            dimension_semantics=("parallel",),
            vmem_limit_bytes=_VMEM_LIMIT),
    )(x_pre, h_pre, sx, ox, sh, oh)


# ------------------------------- glue --------------------------------------
def _bn_fold(stats2, count, gamma, beta, normalize):
    """Fold batch statistics into per-channel (scale, offset). Identity if off."""
    co = gamma.shape[-1]
    if not normalize:
        return (jnp.ones((1, co), jnp.float32), jnp.zeros((1, co), jnp.float32))
    mean = stats2[0:1] / count                       # (1, Co)
    var = stats2[1:2] / count - mean * mean          # biased variance
    scale = gamma * jax.lax.rsqrt(var + EPS)
    return scale, beta - mean * scale


def _prep_slabs(feat, th, scale=None, offset=None, activate=False):
    """Cast to bf16, optionally apply folded BN + ReLU, zero-pad by 1, and
    stack overlapping row bands so the conv kernel uses plain Blocked tiling
    (no halo BlockSpec needed).  XLA fuses the element-wise work into this
    pad/stack pass, so stage-1's BN+ReLU costs no extra HBM round trip."""
    n, h, w, c = feat.shape
    y = feat.astype(jnp.float32)
    if scale is not None:
        y = y * scale + offset
    if activate:
        y = jnp.maximum(y, 0.0)
    yp = jnp.pad(y.astype(jnp.bfloat16), ((0, 0), (1, 1), (1, 1), (0, 0)))
    nt = h // th
    return jnp.concatenate(
        [yp[:, i * th:i * th + th + 2] for i in range(nt)], axis=0)


def _pick_tile_h(n, h, w, cx, ce, co, budget_bytes=4 * 1024 * 1024):
    """Largest divisor of H whose per-band working set fits a conservative
    VMEM budget (double-buffered in/out + f32 accumulators).  The budget is
    kept small so the same choice is safe on v7x (64 MiB physical VMEM) as
    well as v5e/v6e."""
    row_bytes = (2 * n * (w + 2) * (cx + ce) * 2      # bf16 input slabs (x2 buf)
                 + 2 * 2 * n * w * co * 2             # bf16 outputs (x2 buf)
                 + 2 * n * w * co * 4                 # f32 accumulators
                 + n * w * max(cx, ce) * 4)           # relayout temporaries
    target = max(1, budget_bytes // max(row_bytes, 1))
    th = 1
    for cand in range(1, h + 1):
        if h % cand == 0 and cand <= target:
            th = cand
    return th


# ------------------------------ parameters ---------------------------------
def make_stage_params(key, ci_img, ci_elev, co):
    ks = jax.random.split(key, 8)
    # Conv weights stored as (9, Cin, Cout) with k = dy*3 + dx (equivalent to
    # PyTorch (Cout, Cin, 3, 3) transposed/reshaped).
    return dict(
        w_img=0.1 * jax.random.normal(ks[0], (9, ci_img, co), jnp.float32),
        b_img=0.1 * jax.random.normal(ks[1], (1, co), jnp.float32),
        w_elev=0.1 * jax.random.normal(ks[2], (9, ci_elev, co), jnp.float32),
        b_elev=0.1 * jax.random.normal(ks[3], (1, co), jnp.float32),
        gamma_x=1.0 + 0.1 * jax.random.normal(ks[4], (1, co), jnp.float32),
        beta_x=0.1 * jax.random.normal(ks[5], (1, co), jnp.float32),
        gamma_h=1.0 + 0.1 * jax.random.normal(ks[6], (1, co), jnp.float32),
        beta_h=0.1 * jax.random.normal(ks[7], (1, co), jnp.float32),
    )


def make_double_conv_params(key, img_in_ch, elev_in_ch, out_ch):
    k1, k2 = jax.random.split(key)
    return dict(stage1=make_stage_params(k1, img_in_ch, elev_in_ch, out_ch),
                stage2=make_stage_params(k2, out_ch, out_ch, out_ch))


# ------------------------------- forward -----------------------------------
def double_conv_forward(params, x_nchw, h_nchw, *, normalize=True,
                        activate=True, tile_h=None):
    # NCHW <-> NHWC only at the module boundary (keep NHWC end-to-end when
    # chaining inside the full UNet).
    x = jnp.transpose(x_nchw, (0, 2, 3, 1))
    h = jnp.transpose(h_nchw, (0, 2, 3, 1))
    n, hh, w, cx = x.shape
    ce = h.shape[-1]
    p1, p2 = params["stage1"], params["stage2"]
    co = p1["w_img"].shape[-1]

    if tile_h is None:
        th = _pick_tile_h(n, hh, w, max(cx, co), max(ce, co), co)
    else:
        th = max(1, min(int(tile_h), hh))
        while hh % th:
            th -= 1
    count = float(n * hh * w)

    # ---- stage 1: ElevationConv + partial BN stats (Pallas) ----
    x1, h1, st1 = _elev_conv_stage(_prep_slabs(x, th), _prep_slabs(h, th),
                                   p1, n=n, h=hh, w=w, th=th)
    sx1, ox1 = _bn_fold(st1[0:2], count, p1["gamma_x"], p1["beta_x"], normalize)
    sh1, oh1 = _bn_fold(st1[2:4], count, p1["gamma_h"], p1["beta_h"], normalize)

    # ---- stage 2: stage-1 BN+ReLU fused into the slab prep, then conv ----
    xs2 = _prep_slabs(x1, th, sx1, ox1, activate)
    hs2 = _prep_slabs(h1, th, sh1, oh1, activate)
    x2, h2, st2 = _elev_conv_stage(xs2, hs2, p2, n=n, h=hh, w=w, th=th)
    sx2, ox2 = _bn_fold(st2[0:2], count, p2["gamma_x"], p2["beta_x"], normalize)
    sh2, oh2 = _bn_fold(st2[2:4], count, p2["gamma_h"], p2["beta_h"], normalize)

    # ---- stage-2 BN + ReLU finalize kernel (Pallas) ----
    xo, ho = _bn_relu_stage(x2, h2, sx2, ox2, sh2, oh2, th=th,
                            activate=activate, out_dtype=jnp.float32)
    return (jnp.transpose(xo, (0, 3, 1, 2)),     # back to NCHW
            jnp.transpose(ho, (0, 3, 1, 2)))


# ---------------- pure-JAX reference (correctness check) -------------------
def _ref_stage(x, h, p, normalize, activate):   # NHWC
    wi = p["w_img"].reshape(3, 3, p["w_img"].shape[1], p["w_img"].shape[2])
    we = p["w_elev"].reshape(3, 3, p["w_elev"].shape[1], p["w_elev"].shape[2])
    dn = ("NHWC", "HWIO", "NHWC")
    cx = jax.lax.conv_general_dilated(x, wi, (1, 1), "SAME",
                                      dimension_numbers=dn,
                                      precision=jax.lax.Precision.HIGHEST) + p["b_img"]
    ch = jax.lax.conv_general_dilated(h, we, (1, 1), "SAME",
                                      dimension_numbers=dn,
                                      precision=jax.lax.Precision.HIGHEST) + p["b_elev"]
    fh = ch
    fx = cx + ch

    def post(v, g, b):
        if normalize:
            mu = v.mean(axis=(0, 1, 2), keepdims=True)
            var = ((v - mu) ** 2).mean(axis=(0, 1, 2), keepdims=True)
            v = (v - mu) * jax.lax.rsqrt(var + EPS) * g.reshape(1, 1, 1, -1) \
                + b.reshape(1, 1, 1, -1)
        if activate:
            v = jnp.maximum(v, 0.0)
        return v

    return post(fx, p["gamma_x"], p["beta_x"]), post(fh, p["gamma_h"], p["beta_h"])


def double_conv_ref(params, x_nchw, h_nchw, normalize=True, activate=True):
    x = jnp.transpose(x_nchw, (0, 2, 3, 1))
    h = jnp.transpose(h_nchw, (0, 2, 3, 1))
    x, h = _ref_stage(x, h, params["stage1"], normalize, activate)
    x, h = _ref_stage(x, h, params["stage2"], normalize, activate)
    return jnp.transpose(x, (0, 3, 1, 2)), jnp.transpose(h, (0, 3, 1, 2))


if __name__ == "__main__":
    key = jax.random.PRNGKey(0)
    k_p, k_x, k_h = jax.random.split(key, 3)

    N, img_in_ch, elev_in_ch, out_ch, H, W = 2, 3, 1, 8, 16, 16
    params = make_double_conv_params(k_p, img_in_ch, elev_in_ch, out_ch)

    x = jax.random.normal(k_x, (N, img_in_ch, H, W), jnp.float32)   # NCHW
    h = jax.random.normal(k_h, (N, elev_in_ch, H, W), jnp.float32)  # NCHW

    # tile_h=4 -> 4 row bands: exercises the gridded pipeline and the
    # cross-tile BatchNorm-stat reduction even at this toy size.
    fwd = jax.jit(functools.partial(double_conv_forward, tile_h=4))
    x_out, h_out = fwd(params, x, h)
    jax.block_until_ready((x_out, h_out))

    x_ref, h_ref = double_conv_ref(params, x, h)
    # Tolerance reflects bf16 matmul operands + bf16 inter-stage storage vs the
    # all-f32 reference; semantic errors would be O(1).
    np.testing.assert_allclose(np.asarray(x_out), np.asarray(x_ref),
                               atol=5e-2, rtol=5e-2)
    np.testing.assert_allclose(np.asarray(h_out), np.asarray(h_ref),
                               atol=5e-2, rtol=5e-2)
    assert x_out.shape == (N, out_ch, H, W) and h_out.shape == (N, out_ch, H, W)

    print("KERNEL_OK")
</pallas_src>

<mosaic_0001>
module attributes {stable_mosaic.version = 11 : i64} {
  func.func @_elev_conv_kernel(%arg0: i32, %arg1: memref<2x6x18x3xbf16, #tpu.memory_space<vmem>>, %arg2: memref<2x6x18x1xbf16, #tpu.memory_space<vmem>>, %arg3: memref<9x3x8xbf16, #tpu.memory_space<vmem>>, %arg4: memref<9x1x8xbf16, #tpu.memory_space<vmem>>, %arg5: memref<1x8xf32, #tpu.memory_space<vmem>>, %arg6: memref<1x8xf32, #tpu.memory_space<vmem>>, %arg7: memref<2x4x16x8xbf16, #tpu.memory_space<vmem>>, %arg8: memref<2x4x16x8xbf16, #tpu.memory_space<vmem>>, %arg9: memref<1x4x8xf32, #tpu.memory_space<vmem>>) attributes {dimension_semantics = [#tpu.dimension_semantics<parallel>], iteration_bounds = array<i64: 4>, scalar_prefetch = 0 : i64, scratch_operands = 0 : i64, tpu.core_type = #tpu.core_type<tc>, window_params = [{transform_indices = @transform_0, window_bounds = array<i64: 2, 6, 18, 3>}, {transform_indices = @transform_1, window_bounds = array<i64: 2, 6, 18, 1>}, {pipeline_mode = #tpu.pipeline_mode<synchronous>, transform_indices = @transform_2, window_bounds = array<i64: 9, 3, 8>}, {pipeline_mode = #tpu.pipeline_mode<synchronous>, transform_indices = @transform_3, window_bounds = array<i64: 9, 1, 8>}, {pipeline_mode = #tpu.pipeline_mode<synchronous>, transform_indices = @transform_4, window_bounds = array<i64: 1, 8>}, {pipeline_mode = #tpu.pipeline_mode<synchronous>, transform_indices = @transform_5, window_bounds = array<i64: 1, 8>}, {transform_indices = @transform_6, window_bounds = array<i64: 2, 4, 16, 8>}, {transform_indices = @transform_7, window_bounds = array<i64: 2, 4, 16, 8>}, {transform_indices = @transform_8, window_bounds = array<i64: 1, 4, 8>}]} {
    %c0 = arith.constant 0 : index
    %c0_0 = arith.constant 0 : index
    %c0_1 = arith.constant 0 : index
    %c0_2 = arith.constant 0 : index
    %0 = vector.load %arg2[%c0, %c0_0, %c0_1, %c0_2] : memref<2x6x18x1xbf16, #tpu.memory_space<vmem>>, vector<2x6x18x1xbf16>
    %cst = arith.constant 0.000000e+00 : f32
    %1 = vector.broadcast %cst : f32 to vector<128x8xf32>
    %2 = vector.extract_strided_slice %0 {offsets = [0, 0, 0, 0], sizes = [2, 4, 16, 1], strides = [1, 1, 1, 1]} : vector<2x6x18x1xbf16> to vector<2x4x16x1xbf16>
    %3 = vector.shape_cast %2 : vector<2x4x16x1xbf16> to vector<128x1xbf16>
    %c0_3 = arith.constant 0 : index
    %c0_4 = arith.constant 0 : index
    %c0_5 = arith.constant 0 : index
    %4 = vector.load %arg4[%c0_3, %c0_4, %c0_5] : memref<9x1x8xbf16, #tpu.memory_space<vmem>>, vector<1x1x8xbf16>
    %5 = vector.shape_cast %4 : vector<1x1x8xbf16> to vector<1x8xbf16>
    %cst_6 = arith.constant dense<0.000000e+00> : vector<128x8xf32>
    %6 = tpu.matmul %3, %5, %cst_6 {dimension_numbers = #tpu.dot_dimension_numbers<[1], [0], [0], [1], [0, 0, 1, 1], [], []>} : vector<128x1xbf16>, vector<1x8xbf16>, vector<128x8xf32> -> vector<128x8xf32>
    %7 = arith.addf %1, %6 : vector<128x8xf32>
    %8 = vector.extract_strided_slice %0 {offsets = [0, 0, 1, 0], sizes = [2, 4, 16, 1], strides = [1, 1, 1, 1]} : vector<2x6x18x1xbf16> to vector<2x4x16x1xbf16>
    %9 = vector.shape_cast %8 : vector<2x4x16x1xbf16> to vector<128x1xbf16>
    %c1 = arith.constant 1 : index
    %c0_7 = arith.constant 0 : index
    %c0_8 = arith.constant 0 : index
    %10 = vector.load %arg4[%c1, %c0_7, %c0_8] : memref<9x1x8xbf16, #tpu.memory_space<vmem>>, vector<1x1x8xbf16>
    %11 = vector.shape_cast %10 : vector<1x1x8xbf16> to vector<1x8xbf16>
    %cst_9 = arith.constant dense<0.000000e+00> : vector<128x8xf32>
    %12 = tpu.matmul %9, %11, %cst_9 {dimension_numbers = #tpu.dot_dimension_numbers<[1], [0], [0], [1], [0, 0, 1, 1], [], []>} : vector<128x1xbf16>, vector<1x8xbf16>, vector<128x8xf32> -> vector<128x8xf32>
    %13 = arith.addf %7, %12 : vector<128x8xf32>
    %14 = vector.extract_strided_slice %0 {offsets = [0, 0, 2, 0], sizes = [2, 4, 16, 1], strides = [1, 1, 1, 1]} : vector<2x6x18x1xbf16> to vector<2x4x16x1xbf16>
    %15 = vector.shape_cast %14 : vector<2x4x16x1xbf16> to vector<128x1xbf16>
    %c2 = arith.constant 2 : index
    %c0_10 = arith.constant 0 : index
    %c0_11 = arith.constant 0 : index
    %16 = vector.load %arg4[%c2, %c0_10, %c0_11] : memref<9x1x8xbf16, #tpu.memory_space<vmem>>, vector<1x1x8xbf16>
    %17 = vector.shape_cast %16 : vector<1x1x8xbf16> to vector<1x8xbf16>
    %cst_12 = arith.constant dense<0.000000e+00> : vector<128x8xf32>
    %18 = tpu.matmul %15, %17, %cst_12 {dimension_numbers = #tpu.dot_dimension_numbers<[1], [0], [0], [1], [0, 0, 1, 1], [], []>} : vector<128x1xbf16>, vector<1x8xbf16>, vector<128x8xf32> -> vector<128x8xf32>
    %19 = arith.addf %13, %18 : vector<128x8xf32>
    %20 = vector.extract_strided_slice %0 {offsets = [0, 1, 0, 0], sizes = [2, 4, 16, 1], strides = [1, 1, 1, 1]} : vector<2x6x18x1xbf16> to vector<2x4x16x1xbf16>
    %21 = vector.shape_cast %20 : vector<2x4x16x1xbf16> to vector<128x1xbf16>
    %c3 = arith.constant 3 : index
    %c0_13 = arith.constant 0 : index
    %c0_14 = arith.constant 0 : index
    %22 = vector.load %arg4[%c3, %c0_13, %c0_14] : memref<9x1x8xbf16, #tpu.memory_space<vmem>>, vector<1x1x8xbf16>
    %23 = vector.shape_cast %22 : vector<1x1x8xbf16> to vector<1x8xbf16>
    %cst_15 = arith.constant dense<0.000000e+00> : vector<128x8xf32>
    %24 = tpu.matmul %21, %23, %cst_15 {dimension_numbers = #tpu.dot_dimension_numbers<[1], [0], [0], [1], [0, 0, 1, 1], [], []>} : vector<128x1xbf16>, vector<1x8xbf16>, vector<128x8xf32> -> vector<128x8xf32>
    %25 = arith.addf %19, %24 : vector<128x8xf32>
    %26 = vector.extract_strided_slice %0 {offsets = [0, 1, 1, 0], sizes = [2, 4, 16, 1], strides = [1, 1, 1, 1]} : vector<2x6x18x1xbf16> to vector<2x4x16x1xbf16>
    %27 = vector.shape_cast %26 : vector<2x4x16x1xbf16> to vector<128x1xbf16>
    %c4 = arith.constant 4 : index
    %c0_16 = arith.constant 0 : index
    %c0_17 = arith.constant 0 : index
    %28 = vector.load %arg4[%c4, %c0_16, %c0_17] : memref<9x1x8xbf16, #tpu.memory_space<vmem>>, vector<1x1x8xbf16>
    %29 = vector.shape_cast %28 : vector<1x1x8xbf16> to vector<1x8xbf16>
    %cst_18 = arith.constant dense<0.000000e+00> : vector<128x8xf32>
    %30 = tpu.matmul %27, %29, %cst_18 {dimension_numbers = #tpu.dot_dimension_numbers<[1], [0], [0], [1], [0, 0, 1, 1], [], []>} : vector<128x1xbf16>, vector<1x8xbf16>, vector<128x8xf32> -> vector<128x8xf32>
    %31 = arith.addf %25, %30 : vector<128x8xf32>
    %32 = vector.extract_strided_slice %0 {offsets = [0, 1, 2, 0], sizes = [2, 4, 16, 1], strides = [1, 1, 1, 1]} : vector<2x6x18x1xbf16> to vector<2x4x16x1xbf16>
    %33 = vector.shape_cast %32 : vector<2x4x16x1xbf16> to vector<128x1xbf16>
    %c5 = arith.constant 5 : index
    %c0_19 = arith.constant 0 : index
    %c0_20 = arith.constant 0 : index
    %34 = vector.load %arg4[%c5, %c0_19, %c0_20] : memref<9x1x8xbf16, #tpu.memory_space<vmem>>, vector<1x1x8xbf16>
    %35 = vector.shape_cast %34 : vector<1x1x8xbf16> to vector<1x8xbf16>
    %cst_21 = arith.constant dense<0.000000e+00> : vector<128x8xf32>
    %36 = tpu.matmul %33, %35, %cst_21 {dimension_numbers = #tpu.dot_dimension_numbers<[1], [0], [0], [1], [0, 0, 1, 1], [], []>} : vector<128x1xbf16>, vector<1x8xbf16>, vector<128x8xf32> -> vector<128x8xf32>
    %37 = arith.addf %31, %36 : vector<128x8xf32>
    %38 = vector.extract_strided_slice %0 {offsets = [0, 2, 0, 0], sizes = [2, 4, 16, 1], strides = [1, 1, 1, 1]} : vector<2x6x18x1xbf16> to vector<2x4x16x1xbf16>
    %39 = vector.shape_cast %38 : vector<2x4x16x1xbf16> to vector<128x1xbf16>
    %c6 = arith.constant 6 : index
    %c0_22 = arith.constant 0 : index
    %c0_23 = arith.constant 0 : index
    %40 = vector.load %arg4[%c6, %c0_22, %c0_23] : memref<9x1x8xbf16, #tpu.memory_space<vmem>>, vector<1x1x8xbf16>
    %41 = vector.shape_cast %40 : vector<1x1x8xbf16> to vector<1x8xbf16>
    %cst_24 = arith.constant dense<0.000000e+00> : vector<128x8xf32>
    %42 = tpu.matmul %39, %41, %cst_24 {dimension_numbers = #tpu.dot_dimension_numbers<[1], [0], [0], [1], [0, 0, 1, 1], [], []>} : vector<128x1xbf16>, vector<1x8xbf16>, vector<128x8xf32> -> vector<128x8xf32>
    %43 = arith.addf %37, %42 : vector<128x8xf32>
    %44 = vector.extract_strided_slice %0 {offsets = [0, 2, 1, 0], sizes = [2, 4, 16, 1], strides = [1, 1, 1, 1]} : vector<2x6x18x1xbf16> to vector<2x4x16x1xbf16>
    %45 = vector.shape_cast %44 : vector<2x4x16x1xbf16> to vector<128x1xbf16>
    %c7 = arith.constant 7 : index
    %c0_25 = arith.constant 0 : index
    %c0_26 = arith.constant 0 : index
    %46 = vector.load %arg4[%c7, %c0_25, %c0_26] : memref<9x1x8xbf16, #tpu.memory_space<vmem>>, vector<1x1x8xbf16>
    %47 = vector.shape_cast %46 : vector<1x1x8xbf16> to vector<1x8xbf16>
    %cst_27 = arith.constant dense<0.000000e+00> : vector<128x8xf32>
    %48 = tpu.matmul %45, %47, %cst_27 {dimension_numbers = #tpu.dot_dimension_numbers<[1], [0], [0], [1], [0, 0, 1, 1], [], []>} : vector<128x1xbf16>, vector<1x8xbf16>, vector<128x8xf32> -> vector<128x8xf32>
    %49 = arith.addf %43, %48 : vector<128x8xf32>
    %50 = vector.extract_strided_slice %0 {offsets = [0, 2, 2, 0], sizes = [2, 4, 16, 1], strides = [1, 1, 1, 1]} : vector<2x6x18x1xbf16> to vector<2x4x16x1xbf16>
    %51 = vector.shape_cast %50 : vector<2x4x16x1xbf16> to vector<128x1xbf16>
    %c8 = arith.constant 8 : index
    %c0_28 = arith.constant 0 : index
    %c0_29 = arith.constant 0 : index
    %52 = vector.load %arg4[%c8, %c0_28, %c0_29] : memref<9x1x8xbf16, #tpu.memory_space<vmem>>, vector<1x1x8xbf16>
    %53 = vector.shape_cast %52 : vector<1x1x8xbf16> to vector<1x8xbf16>
    %cst_30 = arith.constant dense<0.000000e+00> : vector<128x8xf32>
    %54 = tpu.matmul %51, %53, %cst_30 {dimension_numbers = #tpu.dot_dimension_numbers<[1], [0], [0], [1], [0, 0, 1, 1], [], []>} : vector<128x1xbf16>, vector<1x8xbf16>, vector<128x8xf32> -> vector<128x8xf32>
    %55 = arith.addf %49, %54 : vector<128x8xf32>
    %c0_31 = arith.constant 0 : index
    %c0_32 = arith.constant 0 : index
    %56 = vector.load %arg6[%c0_31, %c0_32] : memref<1x8xf32, #tpu.memory_space<vmem>>, vector<1x8xf32>
    %57 = vector.broadcast %56 : vector<1x8xf32> to vector<128x8xf32>
    %58 = arith.addf %55, %57 : vector<128x8xf32>
    %c0_33 = arith.constant 0 : index
    %c0_34 = arith.constant 0 : index
    %c0_35 = arith.constant 0 : index
    %c0_36 = arith.constant 0 : index
    %59 = vector.load %arg1[%c0_33, %c0_34, %c0_35, %c0_36] : memref<2x6x18x3xbf16, #tpu.memory_space<vmem>>, vector<2x6x18x3xbf16>
    %cst_37 = arith.constant 0.000000e+00 : f32
    %60 = vector.broadcast %cst_37 : f32 to vector<128x8xf32>
    %61 = vector.extract_strided_slice %59 {offsets = [0, 0, 0, 0], sizes = [2, 4, 16, 3], strides = [1, 1, 1, 1]} : vector<2x6x18x3xbf16> to vector<2x4x16x3xbf16>
    %62 = vector.shape_cast %61 : vector<2x4x16x3xbf16> to vector<128x3xbf16>
    %c0_38 = arith.constant 0 : index
    %c0_39 = arith.constant 0 : index
    %c0_40 = arith.constant 0 : index
    %63 = vector.load %arg3[%c0_38, %c0_39, %c0_40] : memref<9x3x8xbf16, #tpu.memory_space<vmem>>, vector<1x3x8xbf16>
    %64 = vector.shape_cast %63 : vector<1x3x8xbf16> to vector<3x8xbf16>
    %cst_41 = arith.constant dense<0.000000e+00> : vector<128x8xf32>
    %65 = tpu.matmul %62, %64, %cst_41 {dimension_numbers = #tpu.dot_dimension_numbers<[1], [0], [0], [1], [0, 0, 1, 1], [], []>} : vector<128x3xbf16>, vector<3x8xbf16>, vector<128x8xf32> -> vector<128x8xf32>
    %66 = arith.addf %60, %65 : vector<128x8xf32>
    %67 = vector.extract_strided_slice %59 {offsets = [0, 0, 1, 0], sizes = [2, 4, 16, 3], strides = [1, 1, 1, 1]} : vector<2x6x18x3xbf16> to vector<2x4x16x3xbf16>
    %68 = vector.shape_cast %67 : vector<2x4x16x3xbf16> to vector<128x3xbf16>
    %c1_42 = arith.constant 1 : index
    %c0_43 = arith.constant 0 : index
    %c0_44 = arith.constant 0 : index
    %69 = vector.load %arg3[%c1_42, %c0_43, %c0_44] : memref<9x3x8xbf16, #tpu.memory_space<vmem>>, vector<1x3x8xbf16>
    %70 = vector.shape_cast %69 : vector<1x3x8xbf16> to vector<3x8xbf16>
    %cst_45 = arith.constant dense<0.000000e+00> : vector<128x8xf32>
    %71 = tpu.matmul %68, %70, %cst_45 {dimension_numbers = #tpu.dot_dimension_numbers<[1], [0], [0], [1], [0, 0, 1, 1], [], []>} : vector<128x3xbf16>, vector<3x8xbf16>, vector<128x8xf32> -> vector<128x8xf32>
    %72 = arith.addf %66, %71 : vector<128x8xf32>
    %73 = vector.extract_strided_slice %59 {offsets = [0, 0, 2, 0], sizes = [2, 4, 16, 3], strides = [1, 1, 1, 1]} : vector<2x6x18x3xbf16> to vector<2x4x16x3xbf16>
    %74 = vector.shape_cast %73 : vector<2x4x16x3xbf16> to vector<128x3xbf16>
    %c2_46 = arith.constant 2 : index
    %c0_47 = arith.constant 0 : index
    %c0_48 = arith.constant 0 : index
    %75 = vector.load %arg3[%c2_46, %c0_47, %c0_48] : memref<9x3x8xbf16, #tpu.memory_space<vmem>>, vector<1x3x8xbf16>
    %76 = vector.shape_cast %75 : vector<1x3x8xbf16> to vector<3x8xbf16>
    %cst_49 = arith.constant dense<0.000000e+00> : vector<128x8xf32>
    %77 = tpu.matmul %74, %76, %cst_49 {dimension_numbers = #tpu.dot_dimension_numbers<[1], [0], [0], [1], [0, 0, 1, 1], [], []>} : vector<128x3xbf16>, vector<3x8xbf16>, vector<128x8xf32> -> vector<128x8xf32>
    %78 = arith.addf %72, %77 : vector<128x8xf32>
    %79 = vector.extract_strided_slice %59 {offsets = [0, 1, 0, 0], sizes = [2, 4, 16, 3], strides = [1, 1, 1, 1]} : vector<2x6x18x3xbf16> to vector<2x4x16x3xbf16>
    %80 = vector.shape_cast %79 : vector<2x4x16x3xbf16> to vector<128x3xbf16>
    %c3_50 = arith.constant 3 : index
    %c0_51 = arith.constant 0 : index
    %c0_52 = arith.constant 0 : index
    %81 = vector.load %arg3[%c3_50, %c0_51, %c0_52] : memref<9x3x8xbf16, #tpu.memory_space<vmem>>, vector<1x3x8xbf16>
    %82 = vector.shape_cast %81 : vector<1x3x8xbf16> to vector<3x8xbf16>
    %cst_53 = arith.constant dense<0.000000e+00> : vector<128x8xf32>
    %83 = tpu.matmul %80, %82, %cst_53 {dimension_numbers = #tpu.dot_dimension_numbers<[1], [0], [0], [1], [0, 0, 1, 1], [], []>} : vector<128x3xbf16>, vector<3x8xbf16>, vector<128x8xf32> -> vector<128x8xf32>
    %84 = arith.addf %78, %83 : vector<128x8xf32>
    %85 = vector.extract_strided_slice %59 {offsets = [0, 1, 1, 0], sizes = [2, 4, 16, 3], strides = [1, 1, 1, 1]} : vector<2x6x18x3xbf16> to vector<2x4x16x3xbf16>
    %86 = vector.shape_cast %85 : vector<2x4x16x3xbf16> to vector<128x3xbf16>
    %c4_54 = arith.constant 4 : index
    %c0_55 = arith.constant 0 : index
    %c0_56 = arith.constant 0 : index
    %87 = vector.load %arg3[%c4_54, %c0_55, %c0_56] : memref<9x3x8xbf16, #tpu.memory_space<vmem>>, vector<1x3x8xbf16>
    %88 = vector.shape_cast %87 : vector<1x3x8xbf16> to vector<3x8xbf16>
    %cst_57 = arith.constant dense<0.000000e+00> : vector<128x8xf32>
    %89 = tpu.matmul %86, %88, %cst_57 {dimension_numbers = #tpu.dot_dimension_numbers<[1], [0], [0], [1], [0, 0, 1, 1], [], []>} : vector<128x3xbf16>, vector<3x8xbf16>, vector<128x8xf32> -> vector<128x8xf32>
    %90 = arith.addf %84, %89 : vector<128x8xf32>
    %91 = vector.extract_strided_slice %59 {offsets = [0, 1, 2, 0], sizes = [2, 4, 16, 3], strides = [1, 1, 1, 1]} : vector<2x6x18x3xbf16> to vector<2x4x16x3xbf16>
    %92 = vector.shape_cast %91 : vector<2x4x16x3xbf16> to vector<128x3xbf16>
    %c5_58 = arith.constant 5 : index
    %c0_59 = arith.constant 0 : index
    %c0_60 = arith.constant 0 : index
    %93 = vector.load %arg3[%c5_58, %c0_59, %c0_60] : memref<9x3x8xbf16, #tpu.memory_space<vmem>>, vector<1x3x8xbf16>
    %94 = vector.shape_cast %93 : vector<1x3x8xbf16> to vector<3x8xbf16>
    %cst_61 = arith.constant dense<0.000000e+00> : vector<128x8xf32>
    %95 = tpu.matmul %92, %94, %cst_61 {dimension_numbers = #tpu.dot_dimension_numbers<[1], [0], [0], [1], [0, 0, 1, 1], [], []>} : vector<128x3xbf16>, vector<3x8xbf16>, vector<128x8xf32> -> vector<128x8xf32>
    %96 = arith.addf %90, %95 : vector<128x8xf32>
    %97 = vector.extract_strided_slice %59 {offsets = [0, 2, 0, 0], sizes = [2, 4, 16, 3], strides = [1, 1, 1, 1]} : vector<2x6x18x3xbf16> to vector<2x4x16x3xbf16>
    %98 = vector.shape_cast %97 : vector<2x4x16x3xbf16> to vector<128x3xbf16>
    %c6_62 = arith.constant 6 : index
    %c0_63 = arith.constant 0 : index
    %c0_64 = arith.constant 0 : index
    %99 = vector.load %arg3[%c6_62, %c0_63, %c0_64] : memref<9x3x8xbf16, #tpu.memory_space<vmem>>, vector<1x3x8xbf16>
    %100 = vector.shape_cast %99 : vector<1x3x8xbf16> to vector<3x8xbf16>
    %cst_65 = arith.constant dense<0.000000e+00> : vector<128x8xf32>
    %101 = tpu.matmul %98, %100, %cst_65 {dimension_numbers = #tpu.dot_dimension_numbers<[1], [0], [0], [1], [0, 0, 1, 1], [], []>} : vector<128x3xbf16>, vector<3x8xbf16>, vector<128x8xf32> -> vector<128x8xf32>
    %102 = arith.addf %96, %101 : vector<128x8xf32>
    %103 = vector.extract_strided_slice %59 {offsets = [0, 2, 1, 0], sizes = [2, 4, 16, 3], strides = [1, 1, 1, 1]} : vector<2x6x18x3xbf16> to vector<2x4x16x3xbf16>
    %104 = vector.shape_cast %103 : vector<2x4x16x3xbf16> to vector<128x3xbf16>
    %c7_66 = arith.constant 7 : index
    %c0_67 = arith.constant 0 : index
    %c0_68 = arith.constant 0 : index
    %105 = vector.load %arg3[%c7_66, %c0_67, %c0_68] : memref<9x3x8xbf16, #tpu.memory_space<vmem>>, vector<1x3x8xbf16>
    %106 = vector.shape_cast %105 : vector<1x3x8xbf16> to vector<3x8xbf16>
    %cst_69 = arith.constant dense<0.000000e+00> : vector<128x8xf32>
    %107 = tpu.matmul %104, %106, %cst_69 {dimension_numbers = #tpu.dot_dimension_numbers<[1], [0], [0], [1], [0, 0, 1, 1], [], []>} : vector<128x3xbf16>, vector<3x8xbf16>, vector<128x8xf32> -> vector<128x8xf32>
    %108 = arith.addf %102, %107 : vector<128x8xf32>
    %109 = vector.extract_strided_slice %59 {offsets = [0, 2, 2, 0], sizes = [2, 4, 16, 3], strides = [1, 1, 1, 1]} : vector<2x6x18x3xbf16> to vector<2x4x16x3xbf16>
    %110 = vector.shape_cast %109 : vector<2x4x16x3xbf16> to vector<128x3xbf16>
    %c8_70 = arith.constant 8 : index
    %c0_71 = arith.constant 0 : index
    %c0_72 = arith.constant 0 : index
    %111 = vector.load %arg3[%c8_70, %c0_71, %c0_72] : memref<9x3x8xbf16, #tpu.memory_space<vmem>>, vector<1x3x8xbf16>
    %112 = vector.shape_cast %111 : vector<1x3x8xbf16> to vector<3x8xbf16>
    %cst_73 = arith.constant dense<0.000000e+00> : vector<128x8xf32>
    %113 = tpu.matmul %110, %112, %cst_73 {dimension_numbers = #tpu.dot_dimension_numbers<[1], [0], [0], [1], [0, 0, 1, 1], [], []>} : vector<128x3xbf16>, vector<3x8xbf16>, vector<128x8xf32> -> vector<128x8xf32>
    %114 = arith.addf %108, %113 : vector<128x8xf32>
    %c0_74 = arith.constant 0 : index
    %c0_75 = arith.constant 0 : index
    %115 = vector.load %arg5[%c0_74, %c0_75] : memref<1x8xf32, #tpu.memory_space<vmem>>, vector<1x8xf32>
    %116 = vector.broadcast %115 : vector<1x8xf32> to vector<128x8xf32>
    %117 = arith.addf %114, %116 : vector<128x8xf32>
    %118 = arith.addf %117, %58 : vector<128x8xf32>
    %cst_76 = arith.constant dense<0.000000e+00> : vector<8xf32>
    %119 = vector.multi_reduction <add>, %118, %cst_76 [0] : vector<128x8xf32> to vector<8xf32>
    %120 = vector.shape_cast %119 : vector<8xf32> to vector<1x8xf32>
    %121 = arith.mulf %118, %118 : vector<128x8xf32>
    %cst_77 = arith.constant dense<0.000000e+00> : vector<8xf32>
    %122 = vector.multi_reduction <add>, %121, %cst_77 [0] : vector<128x8xf32> to vector<8xf32>
    %123 = vector.shape_cast %122 : vector<8xf32> to vector<1x8xf32>
    %cst_78 = arith.constant dense<0.000000e+00> : vector<8xf32>
    %124 = vector.multi_reduction <add>, %58, %cst_78 [0] : vector<128x8xf32> to vector<8xf32>
    %125 = vector.shape_cast %124 : vector<8xf32> to vector<1x8xf32>
    %126 = arith.mulf %58, %58 : vector<128x8xf32>
    %cst_79 = arith.constant dense<0.000000e+00> : vector<8xf32>
    %127 = vector.multi_reduction <add>, %126, %cst_79 [0] : vector<128x8xf32> to vector<8xf32>
    %128 = vector.shape_cast %127 : vector<8xf32> to vector<1x8xf32>
    %129 = tpu.iota {dimensions = array<i32: 0>} : vector<4x8xi32>
    %c0_i32 = arith.constant 0 : i32
    %130 = vector.broadcast %c0_i32 : i32 to vector<4x8xi32>
    %131 = arith.cmpi eq, %129, %130 : vector<4x8xi32>
    %cst_80 = arith.constant 0.000000e+00 : f32
    %132 = vector.shape_cast %120 : vector<1x8xf32> to vector<1x8xf32>
    %133 = vector.broadcast %132 : vector<1x8xf32> to vector<4x8xf32>
    %134 = vector.broadcast %cst_80 : f32 to vector<4x8xf32>
    %135 = arith.select %131, %133, %134 : vector<4x8xi1>, vector<4x8xf32>
    %c1_i32 = arith.constant 1 : i32
    %136 = vector.broadcast %c1_i32 : i32 to vector<4x8xi32>
    %137 = arith.cmpi eq, %129, %136 : vector<4x8xi32>
    %cst_81 = arith.constant 0.000000e+00 : f32
    %138 = vector.shape_cast %123 : vector<1x8xf32> to vector<1x8xf32>
    %139 = vector.broadcast %138 : vector<1x8xf32> to vector<4x8xf32>
    %140 = vector.broadcast %cst_81 : f32 to vector<4x8xf32>
    %141 = arith.select %137, %139, %140 : vector<4x8xi1>, vector<4x8xf32>
    %142 = arith.addf %135, %141 : vector<4x8xf32>
    %c2_i32 = arith.constant 2 : i32
    %143 = vector.broadcast %c2_i32 : i32 to vector<4x8xi32>
    %144 = arith.cmpi eq, %129, %143 : vector<4x8xi32>
    %cst_82 = arith.constant 0.000000e+00 : f32
    %145 = vector.shape_cast %125 : vector<1x8xf32> to vector<1x8xf32>
    %146 = vector.broadcast %145 : vector<1x8xf32> to vector<4x8xf32>
    %147 = vector.broadcast %cst_82 : f32 to vector<4x8xf32>
    %148 = arith.select %144, %146, %147 : vector<4x8xi1>, vector<4x8xf32>
    %149 = arith.addf %142, %148 : vector<4x8xf32>
    %c3_i32 = arith.constant 3 : i32
    %150 = vector.broadcast %c3_i32 : i32 to vector<4x8xi32>
    %151 = arith.cmpi eq, %129, %150 : vector<4x8xi32>
    %cst_83 = arith.constant 0.000000e+00 : f32
    %152 = vector.shape_cast %128 : vector<1x8xf32> to vector<1x8xf32>
    %153 = vector.broadcast %152 : vector<1x8xf32> to vector<4x8xf32>
    %154 = vector.broadcast %cst_83 : f32 to vector<4x8xf32>
    %155 = arith.select %151, %153, %154 : vector<4x8xi1>, vector<4x8xf32>
    %156 = arith.addf %149, %155 : vector<4x8xf32>
    %157 = vector.shape_cast %156 : vector<4x8xf32> to vector<1x4x8xf32>
    %c0_84 = arith.constant 0 : index
    %c0_85 = arith.constant 0 : index
    %c0_86 = arith.constant 0 : index
    %158 = vector.load %arg9[%c0_84, %c0_85, %c0_86] : memref<1x4x8xf32, #tpu.memory_space<vmem>>, vector<1x4x8xf32>
    tpu.vector_store %arg9[%c0_84, %c0_85, %c0_86], %157 {strides = array<i32>} : memref<1x4x8xf32, #tpu.memory_space<vmem>>, vector<1x4x8xf32>,
    %159 = vector.shape_cast %118 : vector<128x8xf32> to vector<2x4x16x8xf32>
    %160 = arith.truncf %159 : vector<2x4x16x8xf32> to vector<2x4x16x8xbf16>
    %c0_87 = arith.constant 0 : index
    %c0_88 = arith.constant 0 : index
    %c0_89 = arith.constant 0 : index
    %c0_90 = arith.constant 0 : index
    %161 = vector.load %arg7[%c0_87, %c0_88, %c0_89, %c0_90] : memref<2x4x16x8xbf16, #tpu.memory_space<vmem>>, vector<2x4x16x8xbf16>
    tpu.vector_store %arg7[%c0_87, %c0_88, %c0_89, %c0_90], %160 {strides = array<i32>} : memref<2x4x16x8xbf16, #tpu.memory_space<vmem>>, vector<2x4x16x8xbf16>,
    %162 = vector.shape_cast %58 : vector<128x8xf32> to vector<2x4x16x8xf32>
    %163 = arith.truncf %162 : vector<2x4x16x8xf32> to vector<2x4x16x8xbf16>
    %c0_91 = arith.constant 0 : index
    %c0_92 = arith.constant 0 : index
    %c0_93 = arith.constant 0 : index
    %c0_94 = arith.constant 0 : index
    %164 = vector.load %arg8[%c0_91, %c0_92, %c0_93, %c0_94] : memref<2x4x16x8xbf16, #tpu.memory_space<vmem>>, vector<2x4x16x8xbf16>
    tpu.vector_store %arg8[%c0_91, %c0_92, %c0_93, %c0_94], %163 {strides = array<i32>} : memref<2x4x16x8xbf16, #tpu.memory_space<vmem>>, vector<2x4x16x8xbf16>,
    return
  }
  func.func @transform_0(%arg0: i32) -> (i32, i32, i32, i32) {
    %c0_i32 = arith.constant 0 : i32
    %c0_i32_0 = arith.constant 0 : i32
    %c0_i32_1 = arith.constant 0 : i32
    %c0_i32_2 = arith.constant 0 : i32
    return %arg0, %c0_i32, %c0_i32_0, %c0_i32_1 : i32, i32, i32, i32
  }
  func.func @transform_1(%arg0: i32) -> (i32, i32, i32, i32) {
    %c0_i32 = arith.constant 0 : i32
    %c0_i32_0 = arith.constant 0 : i32
    %c0_i32_1 = arith.constant 0 : i32
    %c0_i32_2 = arith.constant 0 : i32
    return %arg0, %c0_i32, %c0_i32_0, %c0_i32_1 : i32, i32, i32, i32
  }
  func.func @transform_2(%arg0: i32) -> (i32, i32, i32) {
    %c0_i32 = arith.constant 0 : i32
    %c0_i32_0 = arith.constant 0 : i32
    %c0_i32_1 = arith.constant 0 : i32
    %c0_i32_2 = arith.constant 0 : i32
    return %c0_i32, %c0_i32_0, %c0_i32_1 : i32, i32, i32
  }
  func.func @transform_3(%arg0: i32) -> (i32, i32, i32) {
    %c0_i32 = arith.constant 0 : i32
    %c0_i32_0 = arith.constant 0 : i32
    %c0_i32_1 = arith.constant 0 : i32
    %c0_i32_2 = arith.constant 0 : i32
    return %c0_i32, %c0_i32_0, %c0_i32_1 : i32, i32, i32
  }
  func.func @transform_4(%arg0: i32) -> (i32, i32) {
    %c0_i32 = arith.constant 0 : i32
    %c0_i32_0 = arith.constant 0 : i32
    %c0_i32_1 = arith.constant 0 : i32
    return %c0_i32, %c0_i32_0 : i32, i32
  }
  func.func @transform_5(%arg0: i32) -> (i32, i32) {
    %c0_i32 = arith.constant 0 : i32
    %c0_i32_0 = arith.constant 0 : i32
    %c0_i32_1 = arith.constant 0 : i32
    return %c0_i32, %c0_i32_0 : i32, i32
  }
  func.func @transform_6(%arg0: i32) -> (i32, i32, i32, i32) {
    %c0_i32 = arith.constant 0 : i32
    %c0_i32_0 = arith.constant 0 : i32
    %c0_i32_1 = arith.constant 0 : i32
    %c0_i32_2 = arith.constant 0 : i32
    return %c0_i32, %arg0, %c0_i32_0, %c0_i32_1 : i32, i32, i32, i32
  }
  func.func @transform_7(%arg0: i32) -> (i32, i32, i32, i32) {
    %c0_i32 = arith.constant 0 : i32
    %c0_i32_0 = arith.constant 0 : i32
    %c0_i32_1 = arith.constant 0 : i32
    %c0_i32_2 = arith.constant 0 : i32
    return %c0_i32, %arg0, %c0_i32_0, %c0_i32_1 : i32, i32, i32, i32
  }
  func.func @transform_8(%arg0: i32) -> (i32, i32, i32) {
    %c0_i32 = arith.constant 0 : i32
    %c0_i32_0 = arith.constant 0 : i32
    %c0_i32_1 = arith.constant 0 : i32
    return %arg0, %c0_i32, %c0_i32_0 : i32, i32, i32
  }
}

module attributes {stable_mosaic.version = 11 : i64} {
  func.func @_elev_conv_kernel(%arg0: i32, %arg1: memref<2x6x18x8xbf16, #tpu.memory_space<vmem>>, %arg2: memref<2x6x18x8xbf16, #tpu.memory_space<vmem>>, %arg3: memref<9x8x8xbf16, #tpu.memory_space<vmem>>, %arg4: memref<9x8x8xbf16, #tpu.memory_space<vmem>>, %arg5: memref<1x8xf32, #tpu.memory_space<vmem>>, %arg6: memref<1x8xf32, #tpu.memory_space<vmem>>, %arg7: memref<2x4x16x8xbf16, #tpu.memory_space<vmem>>, %arg8: memref<2x4x16x8xbf16, #tpu.memory_space<vmem>>, %arg9: memref<1x4x8xf32, #tpu.memory_space<vmem>>) attributes {dimension_semantics = [#tpu.dimension_semantics<parallel>], iteration_bounds = array<i64: 4>, scalar_prefetch = 0 : i64, scratch_operands = 0 : i64, tpu.core_type = #tpu.core_type<tc>, window_params = [{transform_indices = @transform_0, window_bounds = array<i64: 2, 6, 18, 8>}, {transform_indices = @transform_1, window_bounds = array<i64: 2, 6, 18, 8>}, {pipeline_mode = #tpu.pipeline_mode<synchronous>, transform_indices = @transform_2, window_bounds = array<i64: 9, 8, 8>}, {pipeline_mode = #tpu.pipeline_mode<synchronous>, transform_indices = @transform_3, window_bounds = array<i64: 9, 8, 8>}, {pipeline_mode = #tpu.pipeline_mode<synchronous>, transform_indices = @transform_4, window_bounds = array<i64: 1, 8>}, {pipeline_mode = #tpu.pipeline_mode<synchronous>, transform_indices = @transform_5, window_bounds = array<i64: 1, 8>}, {transform_indices = @transform_6, window_bounds = array<i64: 2, 4, 16, 8>}, {transform_indices = @transform_7, window_bounds = array<i64: 2, 4, 16, 8>}, {transform_indices = @transform_8, window_bounds = array<i64: 1, 4, 8>}]} {
    %c0 = arith.constant 0 : index
    %c0_0 = arith.constant 0 : index
    %c0_1 = arith.constant 0 : index
    %c0_2 = arith.constant 0 : index
    %0 = vector.load %arg2[%c0, %c0_0, %c0_1, %c0_2] : memref<2x6x18x8xbf16, #tpu.memory_space<vmem>>, vector<2x6x18x8xbf16>
    %cst = arith.constant 0.000000e+00 : f32
    %1 = vector.broadcast %cst : f32 to vector<128x8xf32>
    %2 = vector.extract_strided_slice %0 {offsets = [0, 0, 0, 0], sizes = [2, 4, 16, 8], strides = [1, 1, 1, 1]} : vector<2x6x18x8xbf16> to vector<2x4x16x8xbf16>
    %3 = vector.shape_cast %2 : vector<2x4x16x8xbf16> to vector<128x8xbf16>
    %c0_3 = arith.constant 0 : index
    %c0_4 = arith.constant 0 : index
    %c0_5 = arith.constant 0 : index
    %4 = vector.load %arg4[%c0_3, %c0_4, %c0_5] : memref<9x8x8xbf16, #tpu.memory_space<vmem>>, vector<1x8x8xbf16>
    %5 = vector.shape_cast %4 : vector<1x8x8xbf16> to vector<8x8xbf16>
    %cst_6 = arith.constant dense<0.000000e+00> : vector<128x8xf32>
    %6 = tpu.matmul %3, %5, %cst_6 {dimension_numbers = #tpu.dot_dimension_numbers<[1], [0], [0], [1], [0, 0, 1, 1], [], []>} : vector<128x8xbf16>, vector<8x8xbf16>, vector<128x8xf32> -> vector<128x8xf32>
    %7 = arith.addf %1, %6 : vector<128x8xf32>
    %8 = vector.extract_strided_slice %0 {offsets = [0, 0, 1, 0], sizes = [2, 4, 16, 8], strides = [1, 1, 1, 1]} : vector<2x6x18x8xbf16> to vector<2x4x16x8xbf16>
    %9 = vector.shape_cast %8 : vector<2x4x16x8xbf16> to vector<128x8xbf16>
    %c1 = arith.constant 1 : index
    %c0_7 = arith.constant 0 : index
    %c0_8 = arith.constant 0 : index
    %10 = vector.load %arg4[%c1, %c0_7, %c0_8] : memref<9x8x8xbf16, #tpu.memory_space<vmem>>, vector<1x8x8xbf16>
    %11 = vector.shape_cast %10 : vector<1x8x8xbf16> to vector<8x8xbf16>
    %cst_9 = arith.constant dense<0.000000e+00> : vector<128x8xf32>
    %12 = tpu.matmul %9, %11, %cst_9 {dimension_numbers = #tpu.dot_dimension_numbers<[1], [0], [0], [1], [0, 0, 1, 1], [], []>} : vector<128x8xbf16>, vector<8x8xbf16>, vector<128x8xf32> -> vector<128x8xf32>
    %13 = arith.addf %7, %12 : vector<128x8xf32>
    %14 = vector.extract_strided_slice %0 {offsets = [0, 0, 2, 0], sizes = [2, 4, 16, 8], strides = [1, 1, 1, 1]} : vector<2x6x18x8xbf16> to vector<2x4x16x8xbf16>
    %15 = vector.shape_cast %14 : vector<2x4x16x8xbf16> to vector<128x8xbf16>
    %c2 = arith.constant 2 : index
    %c0_10 = arith.constant 0 : index
    %c0_11 = arith.constant 0 : index
    %16 = vector.load %arg4[%c2, %c0_10, %c0_11] : memref<9x8x8xbf16, #tpu.memory_space<vmem>>, vector<1x8x8xbf16>
    %17 = vector.shape_cast %16 : vector<1x8x8xbf16> to vector<8x8xbf16>
    %cst_12 = arith.constant dense<0.000000e+00> : vector<128x8xf32>
    %18 = tpu.matmul %15, %17, %cst_12 {dimension_numbers = #tpu.dot_dimension_numbers<[1], [0], [0], [1], [0, 0, 1, 1], [], []>} : vector<128x8xbf16>, vector<8x8xbf16>, vector<128x8xf32> -> vector<128x8xf32>
    %19 = arith.addf %13, %18 : vector<128x8xf32>
    %20 = vector.extract_strided_slice %0 {offsets = [0, 1, 0, 0], sizes = [2, 4, 16, 8], strides = [1, 1, 1, 1]} : vector<2x6x18x8xbf16> to vector<2x4x16x8xbf16>
    %21 = vector.shape_cast %20 : vector<2x4x16x8xbf16> to vector<128x8xbf16>
    %c3 = arith.constant 3 : index
    %c0_13 = arith.constant 0 : index
    %c0_14 = arith.constant 0 : index
    %22 = vector.load %arg4[%c3, %c0_13, %c0_14] : memref<9x8x8xbf16, #tpu.memory_space<vmem>>, vector<1x8x8xbf16>
    %23 = vector.shape_cast %22 : vector<1x8x8xbf16> to vector<8x8xbf16>
    %cst_15 = arith.constant dense<0.000000e+00> : vector<128x8xf32>
    %24 = tpu.matmul %21, %23, %cst_15 {dimension_numbers = #tpu.dot_dimension_numbers<[1], [0], [0], [1], [0, 0, 1, 1], [], []>} : vector<128x8xbf16>, vector<8x8xbf16>, vector<128x8xf32> -> vector<128x8xf32>
    %25 = arith.addf %19, %24 : vector<128x8xf32>
    %26 = vector.extract_strided_slice %0 {offsets = [0, 1, 1, 0], sizes = [2, 4, 16, 8], strides = [1, 1, 1, 1]} : vector<2x6x18x8xbf16> to vector<2x4x16x8xbf16>
    %27 = vector.shape_cast %26 : vector<2x4x16x8xbf16> to vector<128x8xbf16>
    %c4 = arith.constant 4 : index
    %c0_16 = arith.constant 0 : index
    %c0_17 = arith.constant 0 : index
    %28 = vector.load %arg4[%c4, %c0_16, %c0_17] : memref<9x8x8xbf16, #tpu.memory_space<vmem>>, vector<1x8x8xbf16>
    %29 = vector.shape_cast %28 : vector<1x8x8xbf16> to vector<8x8xbf16>
    %cst_18 = arith.constant dense<0.000000e+00> : vector<128x8xf32>
    %30 = tpu.matmul %27, %29, %cst_18 {dimension_numbers = #tpu.dot_dimension_numbers<[1], [0], [0], [1], [0, 0, 1, 1], [], []>} : vector<128x8xbf16>, vector<8x8xbf16>, vector<128x8xf32> -> vector<128x8xf32>
    %31 = arith.addf %25, %30 : vector<128x8xf32>
    %32 = vector.extract_strided_slice %0 {offsets = [0, 1, 2, 0], sizes = [2, 4, 16, 8], strides = [1, 1, 1, 1]} : vector<2x6x18x8xbf16> to vector<2x4x16x8xbf16>
    %33 = vector.shape_cast %32 : vector<2x4x16x8xbf16> to vector<128x8xbf16>
    %c5 = arith.constant 5 : index
    %c0_19 = arith.constant 0 : index
    %c0_20 = arith.constant 0 : index
    %34 = vector.load %arg4[%c5, %c0_19, %c0_20] : memref<9x8x8xbf16, #tpu.memory_space<vmem>>, vector<1x8x8xbf16>
    %35 = vector.shape_cast %34 : vector<1x8x8xbf16> to vector<8x8xbf16>
    %cst_21 = arith.constant dense<0.000000e+00> : vector<128x8xf32>
    %36 = tpu.matmul %33, %35, %cst_21 {dimension_numbers = #tpu.dot_dimension_numbers<[1], [0], [0], [1], [0, 0, 1, 1], [], []>} : vector<128x8xbf16>, vector<8x8xbf16>, vector<128x8xf32> -> vector<128x8xf32>
    %37 = arith.addf %31, %36 : vector<128x8xf32>
    %38 = vector.extract_strided_slice %0 {offsets = [0, 2, 0, 0], sizes = [2, 4, 16, 8], strides = [1, 1, 1, 1]} : vector<2x6x18x8xbf16> to vector<2x4x16x8xbf16>
    %39 = vector.shape_cast %38 : vector<2x4x16x8xbf16> to vector<128x8xbf16>
    %c6 = arith.constant 6 : index
    %c0_22 = arith.constant 0 : index
    %c0_23 = arith.constant 0 : index
    %40 = vector.load %arg4[%c6, %c0_22, %c0_23] : memref<9x8x8xbf16, #tpu.memory_space<vmem>>, vector<1x8x8xbf16>
    %41 = vector.shape_cast %40 : vector<1x8x8xbf16> to vector<8x8xbf16>
    %cst_24 = arith.constant dense<0.000000e+00> : vector<128x8xf32>
    %42 = tpu.matmul %39, %41, %cst_24 {dimension_numbers = #tpu.dot_dimension_numbers<[1], [0], [0], [1], [0, 0, 1, 1], [], []>} : vector<128x8xbf16>, vector<8x8xbf16>, vector<128x8xf32> -> vector<128x8xf32>
    %43 = arith.addf %37, %42 : vector<128x8xf32>
    %44 = vector.extract_strided_slice %0 {offsets = [0, 2, 1, 0], sizes = [2, 4, 16, 8], strides = [1, 1, 1, 1]} : vector<2x6x18x8xbf16> to vector<2x4x16x8xbf16>
    %45 = vector.shape_cast %44 : vector<2x4x16x8xbf16> to vector<128x8xbf16>
    %c7 = arith.constant 7 : index
    %c0_25 = arith.constant 0 : index
    %c0_26 = arith.constant 0 : index
    %46 = vector.load %arg4[%c7, %c0_25, %c0_26] : memref<9x8x8xbf16, #tpu.memory_space<vmem>>, vector<1x8x8xbf16>
    %47 = vector.shape_cast %46 : vector<1x8x8xbf16> to vector<8x8xbf16>
    %cst_27 = arith.constant dense<0.000000e+00> : vector<128x8xf32>
    %48 = tpu.matmul %45, %47, %cst_27 {dimension_numbers = #tpu.dot_dimension_numbers<[1], [0], [0], [1], [0, 0, 1, 1], [], []>} : vector<128x8xbf16>, vector<8x8xbf16>, vector<128x8xf32> -> vector<128x8xf32>
    %49 = arith.addf %43, %48 : vector<128x8xf32>
    %50 = vector.extract_strided_slice %0 {offsets = [0, 2, 2, 0], sizes = [2, 4, 16, 8], strides = [1, 1, 1, 1]} : vector<2x6x18x8xbf16> to vector<2x4x16x8xbf16>
    %51 = vector.shape_cast %50 : vector<2x4x16x8xbf16> to vector<128x8xbf16>
    %c8 = arith.constant 8 : index
    %c0_28 = arith.constant 0 : index
    %c0_29 = arith.constant 0 : index
    %52 = vector.load %arg4[%c8, %c0_28, %c0_29] : memref<9x8x8xbf16, #tpu.memory_space<vmem>>, vector<1x8x8xbf16>
    %53 = vector.shape_cast %52 : vector<1x8x8xbf16> to vector<8x8xbf16>
    %cst_30 = arith.constant dense<0.000000e+00> : vector<128x8xf32>
    %54 = tpu.matmul %51, %53, %cst_30 {dimension_numbers = #tpu.dot_dimension_numbers<[1], [0], [0], [1], [0, 0, 1, 1], [], []>} : vector<128x8xbf16>, vector<8x8xbf16>, vector<128x8xf32> -> vector<128x8xf32>
    %55 = arith.addf %49, %54 : vector<128x8xf32>
    %c0_31 = arith.constant 0 : index
    %c0_32 = arith.constant 0 : index
    %56 = vector.load %arg6[%c0_31, %c0_32] : memref<1x8xf32, #tpu.memory_space<vmem>>, vector<1x8xf32>
    %57 = vector.broadcast %56 : vector<1x8xf32> to vector<128x8xf32>
    %58 = arith.addf %55, %57 : vector<128x8xf32>
    %c0_33 = arith.constant 0 : index
    %c0_34 = arith.constant 0 : index
    %c0_35 = arith.constant 0 : index
    %c0_36 = arith.constant 0 : index
    %59 = vector.load %arg1[%c0_33, %c0_34, %c0_35, %c0_36] : memref<2x6x18x8xbf16, #tpu.memory_space<vmem>>, vector<2x6x18x8xbf16>
    %cst_37 = arith.constant 0.000000e+00 : f32
    %60 = vector.broadcast %cst_37 : f32 to vector<128x8xf32>
    %61 = vector.extract_strided_slice %59 {offsets = [0, 0, 0, 0], sizes = [2, 4, 16, 8], strides = [1, 1, 1, 1]} : vector<2x6x18x8xbf16> to vector<2x4x16x8xbf16>
    %62 = vector.shape_cast %61 : vector<2x4x16x8xbf16> to vector<128x8xbf16>
    %c0_38 = arith.constant 0 : index
    %c0_39 = arith.constant 0 : index
    %c0_40 = arith.constant 0 : index
    %63 = vector.load %arg3[%c0_38, %c0_39, %c0_40] : memref<9x8x8xbf16, #tpu.memory_space<vmem>>, vector<1x8x8xbf16>
    %64 = vector.shape_cast %63 : vector<1x8x8xbf16> to vector<8x8xbf16>
    %cst_41 = arith.constant dense<0.000000e+00> : vector<128x8xf32>
    %65 = tpu.matmul %62, %64, %cst_41 {dimension_numbers = #tpu.dot_dimension_numbers<[1], [0], [0], [1], [0, 0, 1, 1], [], []>} : vector<128x8xbf16>, vector<8x8xbf16>, vector<128x8xf32> -> vector<128x8xf32>
    %66 = arith.addf %60, %65 : vector<128x8xf32>
    %67 = vector.extract_strided_slice %59 {offsets = [0, 0, 1, 0], sizes = [2, 4, 16, 8], strides = [1, 1, 1, 1]} : vector<2x6x18x8xbf16> to vector<2x4x16x8xbf16>
    %68 = vector.shape_cast %67 : vector<2x4x16x8xbf16> to vector<128x8xbf16>
    %c1_42 = arith.constant 1 : index
    %c0_43 = arith.constant 0 : index
    %c0_44 = arith.constant 0 : index
    %69 = vector.load %arg3[%c1_42, %c0_43, %c0_44] : memref<9x8x8xbf16, #tpu.memory_space<vmem>>, vector<1x8x8xbf16>
    %70 = vector.shape_cast %69 : vector<1x8x8xbf16> to vector<8x8xbf16>
    %cst_45 = arith.constant dense<0.000000e+00> : vector<128x8xf32>
    %71 = tpu.matmul %68, %70, %cst_45 {dimension_numbers = #tpu.dot_dimension_numbers<[1], [0], [0], [1], [0, 0, 1, 1], [], []>} : vector<128x8xbf16>, vector<8x8xbf16>, vector<128x8xf32> -> vector<128x8xf32>
    %72 = arith.addf %66, %71 : vector<128x8xf32>
    %73 = vector.extract_strided_slice %59 {offsets = [0, 0, 2, 0], sizes = [2, 4, 16, 8], strides = [1, 1, 1, 1]} : vector<2x6x18x8xbf16> to vector<2x4x16x8xbf16>
    %74 = vector.shape_cast %73 : vector<2x4x16x8xbf16> to vector<128x8xbf16>
    %c2_46 = arith.constant 2 : index
    %c0_47 = arith.constant 0 : index
    %c0_48 = arith.constant 0 : index
    %75 = vector.load %arg3[%c2_46, %c0_47, %c0_48] : memref<9x8x8xbf16, #tpu.memory_space<vmem>>, vector<1x8x8xbf16>
    %76 = vector.shape_cast %75 : vector<1x8x8xbf16> to vector<8x8xbf16>
    %cst_49 = arith.constant dense<0.000000e+00> : vector<128x8xf32>
    %77 = tpu.matmul %74, %76, %cst_49 {dimension_numbers = #tpu.dot_dimension_numbers<[1], [0], [0], [1], [0, 0, 1, 1], [], []>} : vector<128x8xbf16>, vector<8x8xbf16>, vector<128x8xf32> -> vector<128x8xf32>
    %78 = arith.addf %72, %77 : vector<128x8xf32>
    %79 = vector.extract_strided_slice %59 {offsets = [0, 1, 0, 0], sizes = [2, 4, 16, 8], strides = [1, 1, 1, 1]} : vector<2x6x18x8xbf16> to vector<2x4x16x8xbf16>
    %80 = vector.shape_cast %79 : vector<2x4x16x8xbf16> to vector<128x8xbf16>
    %c3_50 = arith.constant 3 : index
    %c0_51 = arith.constant 0 : index
    %c0_52 = arith.constant 0 : index
    %81 = vector.load %arg3[%c3_50, %c0_51, %c0_52] : memref<9x8x8xbf16, #tpu.memory_space<vmem>>, vector<1x8x8xbf16>
    %82 = vector.shape_cast %81 : vector<1x8x8xbf16> to vector<8x8xbf16>
    %cst_53 = arith.constant dense<0.000000e+00> : vector<128x8xf32>
    %83 = tpu.matmul %80, %82, %cst_53 {dimension_numbers = #tpu.dot_dimension_numbers<[1], [0], [0], [1], [0, 0, 1, 1], [], []>} : vector<128x8xbf16>, vector<8x8xbf16>, vector<128x8xf32> -> vector<128x8xf32>
    %84 = arith.addf %78, %83 : vector<128x8xf32>
    %85 = vector.extract_strided_slice %59 {offsets = [0, 1, 1, 0], sizes = [2, 4, 16, 8], strides = [1, 1, 1, 1]} : vector<2x6x18x8xbf16> to vector<2x4x16x8xbf16>
    %86 = vector.shape_cast %85 : vector<2x4x16x8xbf16> to vector<128x8xbf16>
    %c4_54 = arith.constant 4 : index
    %c0_55 = arith.constant 0 : index
    %c0_56 = arith.constant 0 : index
    %87 = vector.load %arg3[%c4_54, %c0_55, %c0_56] : memref<9x8x8xbf16, #tpu.memory_space<vmem>>, vector<1x8x8xbf16>
    %88 = vector.shape_cast %87 : vector<1x8x8xbf16> to vector<8x8xbf16>
    %cst_57 = arith.constant dense<0.000000e+00> : vector<128x8xf32>
    %89 = tpu.matmul %86, %88, %cst_57 {dimension_numbers = #tpu.dot_dimension_numbers<[1], [0], [0], [1], [0, 0, 1, 1], [], []>} : vector<128x8xbf16>, vector<8x8xbf16>, vector<128x8xf32> -> vector<128x8xf32>
    %90 = arith.addf %84, %89 : vector<128x8xf32>
    %91 = vector.extract_strided_slice %59 {offsets = [0, 1, 2, 0], sizes = [2, 4, 16, 8], strides = [1, 1, 1, 1]} : vector<2x6x18x8xbf16> to vector<2x4x16x8xbf16>
    %92 = vector.shape_cast %91 : vector<2x4x16x8xbf16> to vector<128x8xbf16>
    %c5_58 = arith.constant 5 : index
    %c0_59 = arith.constant 0 : index
    %c0_60 = arith.constant 0 : index
    %93 = vector.load %arg3[%c5_58, %c0_59, %c0_60] : memref<9x8x8xbf16, #tpu.memory_space<vmem>>, vector<1x8x8xbf16>
    %94 = vector.shape_cast %93 : vector<1x8x8xbf16> to vector<8x8xbf16>
    %cst_61 = arith.constant dense<0.000000e+00> : vector<128x8xf32>
    %95 = tpu.matmul %92, %94, %cst_61 {dimension_numbers = #tpu.dot_dimension_numbers<[1], [0], [0], [1], [0, 0, 1, 1], [], []>} : vector<128x8xbf16>, vector<8x8xbf16>, vector<128x8xf32> -> vector<128x8xf32>
    %96 = arith.addf %90, %95 : vector<128x8xf32>
    %97 = vector.extract_strided_slice %59 {offsets = [0, 2, 0, 0], sizes = [2, 4, 16, 8], strides = [1, 1, 1, 1]} : vector<2x6x18x8xbf16> to vector<2x4x16x8xbf16>
    %98 = vector.shape_cast %97 : vector<2x4x16x8xbf16> to vector<128x8xbf16>
    %c6_62 = arith.constant 6 : index
    %c0_63 = arith.constant 0 : index
    %c0_64 = arith.constant 0 : index
    %99 = vector.load %arg3[%c6_62, %c0_63, %c0_64] : memref<9x8x8xbf16, #tpu.memory_space<vmem>>, vector<1x8x8xbf16>
    %100 = vector.shape_cast %99 : vector<1x8x8xbf16> to vector<8x8xbf16>
    %cst_65 = arith.constant dense<0.000000e+00> : vector<128x8xf32>
    %101 = tpu.matmul %98, %100, %cst_65 {dimension_numbers = #tpu.dot_dimension_numbers<[1], [0], [0], [1], [0, 0, 1, 1], [], []>} : vector<128x8xbf16>, vector<8x8xbf16>, vector<128x8xf32> -> vector<128x8xf32>
    %102 = arith.addf %96, %101 : vector<128x8xf32>
    %103 = vector.extract_strided_slice %59 {offsets = [0, 2, 1, 0], sizes = [2, 4, 16, 8], strides = [1, 1, 1, 1]} : vector<2x6x18x8xbf16> to vector<2x4x16x8xbf16>
    %104 = vector.shape_cast %103 : vector<2x4x16x8xbf16> to vector<128x8xbf16>
    %c7_66 = arith.constant 7 : index
    %c0_67 = arith.constant 0 : index
    %c0_68 = arith.constant 0 : index
    %105 = vector.load %arg3[%c7_66, %c0_67, %c0_68] : memref<9x8x8xbf16, #tpu.memory_space<vmem>>, vector<1x8x8xbf16>
    %106 = vector.shape_cast %105 : vector<1x8x8xbf16> to vector<8x8xbf16>
    %cst_69 = arith.constant dense<0.000000e+00> : vector<128x8xf32>
    %107 = tpu.matmul %104, %106, %cst_69 {dimension_numbers = #tpu.dot_dimension_numbers<[1], [0], [0], [1], [0, 0, 1, 1], [], []>} : vector<128x8xbf16>, vector<8x8xbf16>, vector<128x8xf32> -> vector<128x8xf32>
    %108 = arith.addf %102, %107 : vector<128x8xf32>
    %109 = vector.extract_strided_slice %59 {offsets = [0, 2, 2, 0], sizes = [2, 4, 16, 8], strides = [1, 1, 1, 1]} : vector<2x6x18x8xbf16> to vector<2x4x16x8xbf16>
    %110 = vector.shape_cast %109 : vector<2x4x16x8xbf16> to vector<128x8xbf16>
    %c8_70 = arith.constant 8 : index
    %c0_71 = arith.constant 0 : index
    %c0_72 = arith.constant 0 : index
    %111 = vector.load %arg3[%c8_70, %c0_71, %c0_72] : memref<9x8x8xbf16, #tpu.memory_space<vmem>>, vector<1x8x8xbf16>
    %112 = vector.shape_cast %111 : vector<1x8x8xbf16> to vector<8x8xbf16>
    %cst_73 = arith.constant dense<0.000000e+00> : vector<128x8xf32>
    %113 = tpu.matmul %110, %112, %cst_73 {dimension_numbers = #tpu.dot_dimension_numbers<[1], [0], [0], [1], [0, 0, 1, 1], [], []>} : vector<128x8xbf16>, vector<8x8xbf16>, vector<128x8xf32> -> vector<128x8xf32>
    %114 = arith.addf %108, %113 : vector<128x8xf32>
    %c0_74 = arith.constant 0 : index
    %c0_75 = arith.constant 0 : index
    %115 = vector.load %arg5[%c0_74, %c0_75] : memref<1x8xf32, #tpu.memory_space<vmem>>, vector<1x8xf32>
    %116 = vector.broadcast %115 : vector<1x8xf32> to vector<128x8xf32>
    %117 = arith.addf %114, %116 : vector<128x8xf32>
    %118 = arith.addf %117, %58 : vector<128x8xf32>
    %cst_76 = arith.constant dense<0.000000e+00> : vector<8xf32>
    %119 = vector.multi_reduction <add>, %118, %cst_76 [0] : vector<128x8xf32> to vector<8xf32>
    %120 = vector.shape_cast %119 : vector<8xf32> to vector<1x8xf32>
    %121 = arith.mulf %118, %118 : vector<128x8xf32>
    %cst_77 = arith.constant dense<0.000000e+00> : vector<8xf32>
    %122 = vector.multi_reduction <add>, %121, %cst_77 [0] : vector<128x8xf32> to vector<8xf32>
    %123 = vector.shape_cast %122 : vector<8xf32> to vector<1x8xf32>
    %cst_78 = arith.constant dense<0.000000e+00> : vector<8xf32>
    %124 = vector.multi_reduction <add>, %58, %cst_78 [0] : vector<128x8xf32> to vector<8xf32>
    %125 = vector.shape_cast %124 : vector<8xf32> to vector<1x8xf32>
    %126 = arith.mulf %58, %58 : vector<128x8xf32>
    %cst_79 = arith.constant dense<0.000000e+00> : vector<8xf32>
    %127 = vector.multi_reduction <add>, %126, %cst_79 [0] : vector<128x8xf32> to vector<8xf32>
    %128 = vector.shape_cast %127 : vector<8xf32> to vector<1x8xf32>
    %129 = tpu.iota {dimensions = array<i32: 0>} : vector<4x8xi32>
    %c0_i32 = arith.constant 0 : i32
    %130 = vector.broadcast %c0_i32 : i32 to vector<4x8xi32>
    %131 = arith.cmpi eq, %129, %130 : vector<4x8xi32>
    %cst_80 = arith.constant 0.000000e+00 : f32
    %132 = vector.shape_cast %120 : vector<1x8xf32> to vector<1x8xf32>
    %133 = vector.broadcast %132 : vector<1x8xf32> to vector<4x8xf32>
    %134 = vector.broadcast %cst_80 : f32 to vector<4x8xf32>
    %135 = arith.select %131, %133, %134 : vector<4x8xi1>, vector<4x8xf32>
    %c1_i32 = arith.constant 1 : i32
    %136 = vector.broadcast %c1_i32 : i32 to vector<4x8xi32>
    %137 = arith.cmpi eq, %129, %136 : vector<4x8xi32>
    %cst_81 = arith.constant 0.000000e+00 : f32
    %138 = vector.shape_cast %123 : vector<1x8xf32> to vector<1x8xf32>
    %139 = vector.broadcast %138 : vector<1x8xf32> to vector<4x8xf32>
    %140 = vector.broadcast %cst_81 : f32 to vector<4x8xf32>
    %141 = arith.select %137, %139, %140 : vector<4x8xi1>, vector<4x8xf32>
    %142 = arith.addf %135, %141 : vector<4x8xf32>
    %c2_i32 = arith.constant 2 : i32
    %143 = vector.broadcast %c2_i32 : i32 to vector<4x8xi32>
    %144 = arith.cmpi eq, %129, %143 : vector<4x8xi32>
    %cst_82 = arith.constant 0.000000e+00 : f32
    %145 = vector.shape_cast %125 : vector<1x8xf32> to vector<1x8xf32>
    %146 = vector.broadcast %145 : vector<1x8xf32> to vector<4x8xf32>
    %147 = vector.broadcast %cst_82 : f32 to vector<4x8xf32>
    %148 = arith.select %144, %146, %147 : vector<4x8xi1>, vector<4x8xf32>
    %149 = arith.addf %142, %148 : vector<4x8xf32>
    %c3_i32 = arith.constant 3 : i32
    %150 = vector.broadcast %c3_i32 : i32 to vector<4x8xi32>
    %151 = arith.cmpi eq, %129, %150 : vector<4x8xi32>
    %cst_83 = arith.constant 0.000000e+00 : f32
    %152 = vector.shape_cast %128 : vector<1x8xf32> to vector<1x8xf32>
    %153 = vector.broadcast %152 : vector<1x8xf32> to vector<4x8xf32>
    %154 = vector.broadcast %cst_83 : f32 to vector<4x8xf32>
    %155 = arith.select %151, %153, %154 : vector<4x8xi1>, vector<4x8xf32>
    %156 = arith.addf %149, %155 : vector<4x8xf32>
    %157 = vector.shape_cast %156 : vector<4x8xf32> to vector<1x4x8xf32>
    %c0_84 = arith.constant 0 : index
    %c0_85 = arith.constant 0 : index
    %c0_86 = arith.constant 0 : index
    %158 = vector.load %arg9[%c0_84, %c0_85, %c0_86] : memref<1x4x8xf32, #tpu.memory_space<vmem>>, vector<1x4x8xf32>
    tpu.vector_store %arg9[%c0_84, %c0_85, %c0_86], %157 {strides = array<i32>} : memref<1x4x8xf32, #tpu.memory_space<vmem>>, vector<1x4x8xf32>,
    %159 = vector.shape_cast %118 : vector<128x8xf32> to vector<2x4x16x8xf32>
    %160 = arith.truncf %159 : vector<2x4x16x8xf32> to vector<2x4x16x8xbf16>
    %c0_87 = arith.constant 0 : index
    %c0_88 = arith.constant 0 : index
    %c0_89 = arith.constant 0 : index
    %c0_90 = arith.constant 0 : index
    %161 = vector.load %arg7[%c0_87, %c0_88, %c0_89, %c0_90] : memref<2x4x16x8xbf16, #tpu.memory_space<vmem>>, vector<2x4x16x8xbf16>
    tpu.vector_store %arg7[%c0_87, %c0_88, %c0_89, %c0_90], %160 {strides = array<i32>} : memref<2x4x16x8xbf16, #tpu.memory_space<vmem>>, vector<2x4x16x8xbf16>,
    %162 = vector.shape_cast %58 : vector<128x8xf32> to vector<2x4x16x8xf32>
    %163 = arith.truncf %162 : vector<2x4x16x8xf32> to vector<2x4x16x8xbf16>
    %c0_91 = arith.constant 0 : index
    %c0_92 = arith.constant 0 : index
    %c0_93 = arith.constant 0 : index
    %c0_94 = arith.constant 0 : index
    %164 = vector.load %arg8[%c0_91, %c0_92, %c0_93, %c0_94] : memref<2x4x16x8xbf16, #tpu.memory_space<vmem>>, vector<2x4x16x8xbf16>
    tpu.vector_store %arg8[%c0_91, %c0_92, %c0_93, %c0_94], %163 {strides = array<i32>} : memref<2x4x16x8xbf16, #tpu.memory_space<vmem>>, vector<2x4x16x8xbf16>,
    return
  }
  func.func @transform_0(%arg0: i32) -> (i32, i32, i32, i32) {
    %c0_i32 = arith.constant 0 : i32
    %c0_i32_0 = arith.constant 0 : i32
    %c0_i32_1 = arith.constant 0 : i32
    %c0_i32_2 = arith.constant 0 : i32
    return %arg0, %c0_i32, %c0_i32_0, %c0_i32_1 : i32, i32, i32, i32
  }
  func.func @transform_1(%arg0: i32) -> (i32, i32, i32, i32) {
    %c0_i32 = arith.constant 0 : i32
    %c0_i32_0 = arith.constant 0 : i32
    %c0_i32_1 = arith.constant 0 : i32
    %c0_i32_2 = arith.constant 0 : i32
    return %arg0, %c0_i32, %c0_i32_0, %c0_i32_1 : i32, i32, i32, i32
  }
  func.func @transform_2(%arg0: i32) -> (i32, i32, i32) {
    %c0_i32 = arith.constant 0 : i32
    %c0_i32_0 = arith.constant 0 : i32
    %c0_i32_1 = arith.constant 0 : i32
    %c0_i32_2 = arith.constant 0 : i32
    return %c0_i32, %c0_i32_0, %c0_i32_1 : i32, i32, i32
  }
  func.func @transform_3(%arg0: i32) -> (i32, i32, i32) {
    %c0_i32 = arith.constant 0 : i32
    %c0_i32_0 = arith.constant 0 : i32
    %c0_i32_1 = arith.constant 0 : i32
    %c0_i32_2 = arith.constant 0 : i32
    return %c0_i32, %c0_i32_0, %c0_i32_1 : i32, i32, i32
  }
  func.func @transform_4(%arg0: i32) -> (i32, i32) {
    %c0_i32 = arith.constant 0 : i32
    %c0_i32_0 = arith.constant 0 : i32
    %c0_i32_1 = arith.constant 0 : i32
    return %c0_i32, %c0_i32_0 : i32, i32
  }
  func.func @transform_5(%arg0: i32) -> (i32, i32) {
    %c0_i32 = arith.constant 0 : i32
    %c0_i32_0 = arith.constant 0 : i32
    %c0_i32_1 = arith.constant 0 : i32
    return %c0_i32, %c0_i32_0 : i32, i32
  }
  func.func @transform_6(%arg0: i32) -> (i32, i32, i32, i32) {
    %c0_i32 = arith.constant 0 : i32
    %c0_i32_0 = arith.constant 0 : i32
    %c0_i32_1 = arith.constant 0 : i32
    %c0_i32_2 = arith.constant 0 : i32
    return %c0_i32, %arg0, %c0_i32_0, %c0_i32_1 : i32, i32, i32, i32
  }
  func.func @transform_7(%arg0: i32) -> (i32, i32, i32, i32) {
    %c0_i32 = arith.constant 0 : i32
    %c0_i32_0 = arith.constant 0 : i32
    %c0_i32_1 = arith.constant 0 : i32
    %c0_i32_2 = arith.constant 0 : i32
    return %c0_i32, %arg0, %c0_i32_0, %c0_i32_1 : i32, i32, i32, i32
  }
  func.func @transform_8(%arg0: i32) -> (i32, i32, i32) {
    %c0_i32 = arith.constant 0 : i32
    %c0_i32_0 = arith.constant 0 : i32
    %c0_i32_1 = arith.constant 0 : i32
    return %arg0, %c0_i32, %c0_i32_0 : i32, i32, i32
  }
}

module attributes {stable_mosaic.version = 11 : i64} {
  func.func @_bn_relu_kernel(%arg0: i32, %arg1: memref<2x4x16x8xbf16, #tpu.memory_space<vmem>>, %arg2: memref<2x4x16x8xbf16, #tpu.memory_space<vmem>>, %arg3: memref<1x8xf32, #tpu.memory_space<vmem>>, %arg4: memref<1x8xf32, #tpu.memory_space<vmem>>, %arg5: memref<1x8xf32, #tpu.memory_space<vmem>>, %arg6: memref<1x8xf32, #tpu.memory_space<vmem>>, %arg7: memref<2x4x16x8xf32, #tpu.memory_space<vmem>>, %arg8: memref<2x4x16x8xf32, #tpu.memory_space<vmem>>) attributes {dimension_semantics = [#tpu.dimension_semantics<parallel>], iteration_bounds = array<i64: 4>, scalar_prefetch = 0 : i64, scratch_operands = 0 : i64, tpu.core_type = #tpu.core_type<tc>, window_params = [{transform_indices = @transform_0, window_bounds = array<i64: 2, 4, 16, 8>}, {transform_indices = @transform_1, window_bounds = array<i64: 2, 4, 16, 8>}, {pipeline_mode = #tpu.pipeline_mode<synchronous>, transform_indices = @transform_2, window_bounds = array<i64: 1, 8>}, {pipeline_mode = #tpu.pipeline_mode<synchronous>, transform_indices = @transform_3, window_bounds = array<i64: 1, 8>}, {pipeline_mode = #tpu.pipeline_mode<synchronous>, transform_indices = @transform_4, window_bounds = array<i64: 1, 8>}, {pipeline_mode = #tpu.pipeline_mode<synchronous>, transform_indices = @transform_5, window_bounds = array<i64: 1, 8>}, {transform_indices = @transform_6, window_bounds = array<i64: 2, 4, 16, 8>}, {transform_indices = @transform_7, window_bounds = array<i64: 2, 4, 16, 8>}]} {
    %c0 = arith.constant 0 : index
    %c0_0 = arith.constant 0 : index
    %c0_1 = arith.constant 0 : index
    %c0_2 = arith.constant 0 : index
    %0 = vector.load %arg1[%c0, %c0_0, %c0_1, %c0_2] : memref<2x4x16x8xbf16, #tpu.memory_space<vmem>>, vector<2x4x16x8xbf16>
    %1 = arith.extf %0 : vector<2x4x16x8xbf16> to vector<2x4x16x8xf32>
    %c0_3 = arith.constant 0 : index
    %c0_4 = arith.constant 0 : index
    %2 = vector.load %arg3[%c0_3, %c0_4] : memref<1x8xf32, #tpu.memory_space<vmem>>, vector<1x8xf32>
    %3 = vector.shape_cast %2 : vector<1x8xf32> to vector<1x1x1x8xf32>
    %4 = vector.broadcast %3 : vector<1x1x1x8xf32> to vector<2x4x16x8xf32>
    %5 = arith.mulf %1, %4 : vector<2x4x16x8xf32>
    %c0_5 = arith.constant 0 : index
    %c0_6 = arith.constant 0 : index
    %6 = vector.load %arg4[%c0_5, %c0_6] : memref<1x8xf32, #tpu.memory_space<vmem>>, vector<1x8xf32>
    %7 = vector.shape_cast %6 : vector<1x8xf32> to vector<1x1x1x8xf32>
    %8 = vector.broadcast %7 : vector<1x1x1x8xf32> to vector<2x4x16x8xf32>
    %9 = arith.addf %5, %8 : vector<2x4x16x8xf32>
    %c0_7 = arith.constant 0 : index
    %c0_8 = arith.constant 0 : index
    %c0_9 = arith.constant 0 : index
    %c0_10 = arith.constant 0 : index
    %10 = vector.load %arg2[%c0_7, %c0_8, %c0_9, %c0_10] : memref<2x4x16x8xbf16, #tpu.memory_space<vmem>>, vector<2x4x16x8xbf16>
    %11 = arith.extf %10 : vector<2x4x16x8xbf16> to vector<2x4x16x8xf32>
    %c0_11 = arith.constant 0 : index
    %c0_12 = arith.constant 0 : index
    %12 = vector.load %arg5[%c0_11, %c0_12] : memref<1x8xf32, #tpu.memory_space<vmem>>, vector<1x8xf32>
    %13 = vector.shape_cast %12 : vector<1x8xf32> to vector<1x1x1x8xf32>
    %14 = vector.broadcast %13 : vector<1x1x1x8xf32> to vector<2x4x16x8xf32>
    %15 = arith.mulf %11, %14 : vector<2x4x16x8xf32>
    %c0_13 = arith.constant 0 : index
    %c0_14 = arith.constant 0 : index
    %16 = vector.load %arg6[%c0_13, %c0_14] : memref<1x8xf32, #tpu.memory_space<vmem>>, vector<1x8xf32>
    %17 = vector.shape_cast %16 : vector<1x8xf32> to vector<1x1x1x8xf32>
    %18 = vector.broadcast %17 : vector<1x1x1x8xf32> to vector<2x4x16x8xf32>
    %19 = arith.addf %15, %18 : vector<2x4x16x8xf32>
    %cst = arith.constant 0.000000e+00 : f32
    %20 = vector.broadcast %cst : f32 to vector<2x4x16x8xf32>
    %21 = arith.maximumf %9, %20 : vector<2x4x16x8xf32>
    %cst_15 = arith.constant 0.000000e+00 : f32
    %22 = vector.broadcast %cst_15 : f32 to vector<2x4x16x8xf32>
    %23 = arith.maximumf %19, %22 : vector<2x4x16x8xf32>
    %c0_16 = arith.constant 0 : index
    %c0_17 = arith.constant 0 : index
    %c0_18 = arith.constant 0 : index
    %c0_19 = arith.constant 0 : index
    %24 = vector.load %arg7[%c0_16, %c0_17, %c0_18, %c0_19] : memref<2x4x16x8xf32, #tpu.memory_space<vmem>>, vector<2x4x16x8xf32>
    tpu.vector_store %arg7[%c0_16, %c0_17, %c0_18, %c0_19], %21 {strides = array<i32>} : memref<2x4x16x8xf32, #tpu.memory_space<vmem>>, vector<2x4x16x8xf32>,
    %c0_20 = arith.constant 0 : index
    %c0_21 = arith.constant 0 : index
    %c0_22 = arith.constant 0 : index
    %c0_23 = arith.constant 0 : index
    %25 = vector.load %arg8[%c0_20, %c0_21, %c0_22, %c0_23] : memref<2x4x16x8xf32, #tpu.memory_space<vmem>>, vector<2x4x16x8xf32>
    tpu.vector_store %arg8[%c0_20, %c0_21, %c0_22, %c0_23], %23 {strides = array<i32>} : memref<2x4x16x8xf32, #tpu.memory_space<vmem>>, vector<2x4x16x8xf32>,
    return
  }
  func.func @transform_0(%arg0: i32) -> (i32, i32, i32, i32) {
    %c0_i32 = arith.constant 0 : i32
    %c0_i32_0 = arith.constant 0 : i32
    %c0_i32_1 = arith.constant 0 : i32
    %c0_i32_2 = arith.constant 0 : i32
    return %c0_i32, %arg0, %c0_i32_0, %c0_i32_1 : i32, i32, i32, i32
  }
  func.func @transform_1(%arg0: i32) -> (i32, i32, i32, i32) {
    %c0_i32 = arith.constant 0 : i32
    %c0_i32_0 = arith.constant 0 : i32
    %c0_i32_1 = arith.constant 0 : i32
    %c0_i32_2 = arith.constant 0 : i32
    return %c0_i32, %arg0, %c0_i32_0, %c0_i32_1 : i32, i32, i32, i32
  }
  func.func @transform_2(%arg0: i32) -> (i32, i32) {
    %c0_i32 = arith.constant 0 : i32
    %c0_i32_0 = arith.constant 0 : i32
    %c0_i32_1 = arith.constant 0 : i32
    return %c0_i32, %c0_i32_0 : i32, i32
  }
  func.func @transform_3(%arg0: i32) -> (i32, i32) {
    %c0_i32 = arith.constant 0 : i32
    %c0_i32_0 = arith.constant 0 : i32
    %c0_i32_1 = arith.constant 0 : i32
    return %c0_i32, %c0_i32_0 : i32, i32
  }
  func.func @transform_4(%arg0: i32) -> (i32, i32) {
    %c0_i32 = arith.constant 0 : i32
    %c0_i32_0 = arith.constant 0 : i32
    %c0_i32_1 = arith.constant 0 : i32
    return %c0_i32, %c0_i32_0 : i32, i32
  }
  func.func @transform_5(%arg0: i32) -> (i32, i32) {
    %c0_i32 = arith.constant 0 : i32
    %c0_i32_0 = arith.constant 0 : i32
    %c0_i32_1 = arith.constant 0 : i32
    return %c0_i32, %c0_i32_0 : i32, i32
  }
  func.func @transform_6(%arg0: i32) -> (i32, i32, i32, i32) {
    %c0_i32 = arith.constant 0 : i32
    %c0_i32_0 = arith.constant 0 : i32
    %c0_i32_1 = arith.constant 0 : i32
    %c0_i32_2 = arith.constant 0 : i32
    return %c0_i32, %arg0, %c0_i32_0, %c0_i32_1 : i32, i32, i32, i32
  }
  func.func @transform_7(%arg0: i32) -> (i32, i32, i32, i32) {
    %c0_i32 = arith.constant 0 : i32
    %c0_i32_0 = arith.constant 0 : i32
    %c0_i32_1 = arith.constant 0 : i32
    %c0_i32_2 = arith.constant 0 : i32
    return %c0_i32, %arg0, %c0_i32_0, %c0_i32_1 : i32, i32, i32, i32
  }
}

</mosaic_0001>

<llo_original>
// kernel: double_conv_forward.5
$region0: #{double_conv_forward.5}
  #allocation0 [shape = 'u32[]', space=smem, size = 0x4, offset = 0x4, fixed_abs, tag = 'smem constant byte address 0x4 - core index']
  #allocation1 [shape = 'u32[144,128]{1,0:T(1,128)}', space=vmem, size = 0x12000, scoped, tag = 'internal scratch']
  %s0 = inlined_call_operand.vmem [shape: bf16[2,16,16,8], index: 0, kind: input, shape index: {}]
  %s1 = inlined_call_operand.vmem [shape: bf16[2,16,16,8], index: 1, kind: input, shape index: {}]
  %s2 = inlined_call_operand.vmem [shape: f32[1,8], index: 2, kind: input, shape index: {}]
  %s3 = inlined_call_operand.vmem [shape: f32[1,8], index: 3, kind: input, shape index: {}]
  %s4 = inlined_call_operand.vmem [shape: f32[1,8], index: 4, kind: input, shape index: {}]
  %s5 = inlined_call_operand.vmem [shape: f32[1,8], index: 5, kind: input, shape index: {}]
  %s6 = inlined_call_operand.vmem [shape: f32[2,16,16,8], index: 6, kind: output, shape index: {0}]
  %s7 = inlined_call_operand.vmem [shape: f32[2,16,16,8], index: 7, kind: output, shape index: {1}]
  %8 = xla_tuple %s6, %s7
  %s9 = sld [smem:[#allocation0]]
  $region215: #{double_conv_forward.5} parent=0
    _
  %s11 = ssub.s32 1, %s9
  %s12 = scalar_select 0, %s11, %s9
  $region1: #{double_conv_forward.5} parent=0
    #allocation2 [shape = 'u8[65536]{0}', space=vmem, size = 0x10000, scoped, tag = 'input window, operand 0']
    #allocation3 [shape = 'u8[65536]{0}', space=vmem, size = 0x10000, scoped, tag = 'input window, operand 1']
    #allocation4 [shape = 'u8[131072]{0}', space=vmem, size = 0x20000, scoped, tag = 'output window, operand 0']
    #allocation5 [shape = 'u8[131072]{0}', space=vmem, size = 0x20000, scoped, tag = 'output window, operand 1']
    loop: start=0, step=1, limit=6
    $region2: #{double_conv_forward.5} parent=1 // loop_pre_header
      _
    $region3: #{double_conv_forward.5} parent=1 // loop_header
      %s14 = sphi 0, %s18
      %p15 = scmp.ge.s32.totalorder %s14, 6
      %s24 = sphi 0, %s26
      %s27 = sphi 0, %s24
      %s28 = sphi 0, %s27
      %s44 = sphi 0, %s28
      %s50 = sphi 0, %s52
      %s53 = sphi 0, %s50
      %s54 = sphi 0, %s53
      %s70 = sphi 0, %s54
      %s74 = sphi 0, %s74
      %s76 = sphi 0, %s74
      %s77 = sphi 0, %s76
      %s91 = sphi 0, %s77
      %s95 = sphi 0, %s95
      %s97 = sphi 0, %s95
      %s98 = sphi 0, %s97
      %s112 = sphi 0, %s98
      %s116 = sphi 0, %s116
      %s118 = sphi 0, %s116
      %s119 = sphi 0, %s118
      %s133 = sphi 0, %s119
      %s137 = sphi 0, %s137
      %s139 = sphi 0, %s137
      %s140 = sphi 0, %s139
      %s154 = sphi 0, %s140
      %s160 = sphi 0, %s162
      %s163 = sphi 0, %s160
      %s164 = sphi 0, %s163
      %s180 = sphi 0, %s164
      %s186 = sphi 0, %s188
      %s189 = sphi 0, %s186
      %s190 = sphi 0, %s189
      %s206 = sphi 0, %s190
    $region4: #{double_conv_forward.5} parent=1 // loop_header_branch
      %17 = sbr.rel (%p15) target = $region8
    $region5: #{double_conv_forward.5} parent=1 // loop_body
      %s19 = ssub.s32 %s14, 1
      %s20 = ssub.s32 %s14, 2
      %s21 = sadd.s32 %s14, 1
      %s22 = ssub.s32 %s14, %s21
      %p23 = scmp.eq.s32.totalorder %s22, 0
      %s25 = sadd.s32 %s24, 1
      %s26 = scalar_select %p23, %s24, %s25
      %p29 = pneg %p23
      %p30 = scmp.eq.s32.totalorder %s14, 3
      %p31 = por %p29, %p30
      %p32 = scmp.ne.s32.totalorder %s24, %s27
      %p33 = scmp.eq.s32.totalorder %s14, 0
      %p34 = por %p32, %p33
      %p35 = scmp.ne.s32.totalorder %s24, %s27
      %p36 = scmp.eq.s32.totalorder %s19, 3
      %p37 = por %p35, %p36
      %p38 = scmp.ne.s32.totalorder %s27, %s28
      %p39 = scmp.eq.s32.totalorder %s19, 0
      %p40 = por %p38, %p39
      %p41 = scmp.ne.s32.totalorder %s27, %s28
      %p42 = scmp.eq.s32.totalorder %s20, 3
      %p43 = por %p41, %p42
      %p45 = scmp.ne.s32.totalorder %s28, %s44
      %p46 = scmp.eq.s32.totalorder %s20, 0
      %p47 = por %p45, %p46
      %s48 = ssub.s32 %s14, %s21
      %p49 = scmp.eq.s32.totalorder %s48, 0
      %s51 = sadd.s32 %s50, 1
      %s52 = scalar_select %p49, %s50, %s51
      %p55 = pneg %p49
      %p56 = scmp.eq.s32.totalorder %s14, 3
      %p57 = por %p55, %p56
      %p58 = scmp.ne.s32.totalorder %s50, %s53
      %p59 = scmp.eq.s32.totalorder %s14, 0
      %p60 = por %p58, %p59
      %p61 = scmp.ne.s32.totalorder %s50, %s53
      %p62 = scmp.eq.s32.totalorder %s19, 3
      %p63 = por %p61, %p62
      %p64 = scmp.ne.s32.totalorder %s53, %s54
      %p65 = scmp.eq.s32.totalorder %s19, 0
      %p66 = por %p64, %p65
      %p67 = scmp.ne.s32.totalorder %s53, %s54
      %p68 = scmp.eq.s32.totalorder %s20, 3
      %p69 = por %p67, %p68
      %p71 = scmp.ne.s32.totalorder %s54, %s70
      %p72 = scmp.eq.s32.totalorder %s20, 0
      %p73 = por %p71, %p72
      %s75 = sadd.s32 %s74, 1
      %p78 = scmp.eq.s32.totalorder %s14, 3
      %p79 = scmp.ne.s32.totalorder %s74, %s76
      %p80 = scmp.eq.s32.totalorder %s14, 0
      %p81 = por %p79, %p80
      %p82 = scmp.ne.s32.totalorder %s74, %s76
      %p83 = scmp.eq.s32.totalorder %s19, 3
      %p84 = por %p82, %p83
      %p85 = scmp.ne.s32.totalorder %s76, %s77
      %p86 = scmp.eq.s32.totalorder %s19, 0
      %p87 = por %p85, %p86
      %p88 = scmp.ne.s32.totalorder %s76, %s77
      %p89 = scmp.eq.s32.totalorder %s20, 3
      %p90 = por %p88, %p89
      %p92 = scmp.ne.s32.totalorder %s77, %s91
      %p93 = scmp.eq.s32.totalorder %s20, 0
      %p94 = por %p92, %p93
      %s96 = sadd.s32 %s95, 1
      %p99 = scmp.eq.s32.totalorder %s14, 3
      %p100 = scmp.ne.s32.totalorder %s95, %s97
      %p101 = scmp.eq.s32.totalorder %s14, 0
      %p102 = por %p100, %p101
      %p103 = scmp.ne.s32.totalorder %s95, %s97
      %p104 = scmp.eq.s32.totalorder %s19, 3
      %p105 = por %p103, %p104
      %p106 = scmp.ne.s32.totalorder %s97, %s98
      %p107 = scmp.eq.s32.totalorder %s19, 0
      %p108 = por %p106, %p107
      %p109 = scmp.ne.s32.totalorder %s97, %s98
      %p110 = scmp.eq.s32.totalorder %s20, 3
      %p111 = por %p109, %p110
      %p113 = scmp.ne.s32.totalorder %s98, %s112
      %p114 = scmp.eq.s32.totalorder %s20, 0
      %p115 = por %p113, %p114
      %s117 = sadd.s32 %s116, 1
      %p120 = scmp.eq.s32.totalorder %s14, 3
      %p121 = scmp.ne.s32.totalorder %s116, %s118
      %p122 = scmp.eq.s32.totalorder %s14, 0
      %p123 = por %p121, %p122
      %p124 = scmp.ne.s32.totalorder %s116, %s118
      %p125 = scmp.eq.s32.totalorder %s19, 3
      %p126 = por %p124, %p125
      %p127 = scmp.ne.s32.totalorder %s118, %s119
      %p128 = scmp.eq.s32.totalorder %s19, 0
      %p129 = por %p127, %p128
      %p130 = scmp.ne.s32.totalorder %s118, %s119
      %p131 = scmp.eq.s32.totalorder %s20, 3
      %p132 = por %p130, %p131
      %p134 = scmp.ne.s32.totalorder %s119, %s133
      %p135 = scmp.eq.s32.totalorder %s20, 0
      %p136 = por %p134, %p135
      %s138 = sadd.s32 %s137, 1
      %p141 = scmp.eq.s32.totalorder %s14, 3
      %p142 = scmp.ne.s32.totalorder %s137, %s139
      %p143 = scmp.eq.s32.totalorder %s14, 0
      %p144 = por %p142, %p143
      %p145 = scmp.ne.s32.totalorder %s137, %s139
      %p146 = scmp.eq.s32.totalorder %s19, 3
      %p147 = por %p145, %p146
      %p148 = scmp.ne.s32.totalorder %s139, %s140
      %p149 = scmp.eq.s32.totalorder %s19, 0
      %p150 = por %p148, %p149
      %p151 = scmp.ne.s32.totalorder %s139, %s140
      %p152 = scmp.eq.s32.totalorder %s20, 3
      %p153 = por %p151, %p152
      %p155 = scmp.ne.s32.totalorder %s140, %s154
      %p156 = scmp.eq.s32.totalorder %s20, 0
      %p157 = por %p155, %p156
      %s158 = ssub.s32 %s14, %s21
      %p159 = scmp.eq.s32.totalorder %s158, 0
      %s161 = sadd.s32 %s160, 1
      %s162 = scalar_select %p159, %s160, %s161
      %p165 = pneg %p159
      %p166 = scmp.eq.s32.totalorder %s14, 3
      %p167 = por %p165, %p166
      %p168 = scmp.ne.s32.totalorder %s160, %s163
      %p169 = scmp.eq.s32.totalorder %s14, 0
      %p170 = por %p168, %p169
      %p171 = scmp.ne.s32.totalorder %s160, %s163
      %p172 = scmp.eq.s32.totalorder %s19, 3
      %p173 = por %p171, %p172
      %p174 = scmp.ne.s32.totalorder %s163, %s164
      %p175 = scmp.eq.s32.totalorder %s19, 0
      %p176 = por %p174, %p175
      %p177 = scmp.ne.s32.totalorder %s163, %s164
      %p178 = scmp.eq.s32.totalorder %s20, 3
      %p179 = por %p177, %p178
      %p181 = scmp.ne.s32.totalorder %s164, %s180
      %p182 = scmp.eq.s32.totalorder %s20, 0
      %p183 = por %p181, %p182
      %s184 = ssub.s32 %s14, %s21
      %p185 = scmp.eq.s32.totalorder %s184, 0
      %s187 = sadd.s32 %s186, 1
      %s188 = scalar_select %p185, %s186, %s187
      %p191 = pneg %p185
      %p192 = scmp.eq.s32.totalorder %s14, 3
      %p193 = por %p191, %p192
      %p194 = scmp.ne.s32.totalorder %s186, %s189
      %p195 = scmp.eq.s32.totalorder %s14, 0
      %p196 = por %p194, %p195
      %p197 = scmp.ne.s32.totalorder %s186, %s189
      %p198 = scmp.eq.s32.totalorder %s19, 3
      %p199 = por %p197, %p198
      %p200 = scmp.ne.s32.totalorder %s189, %s190
      %p201 = scmp.eq.s32.totalorder %s19, 0
      %p202 = por %p200, %p201
      %p203 = scmp.ne.s32.totalorder %s189, %s190
      %p204 = scmp.eq.s32.totalorder %s20, 3
      %p205 = por %p203, %p204
      %p207 = scmp.ne.s32.totalorder %s190, %s206
      %p208 = scmp.eq.s32.totalorder %s20, 0
      %p209 = por %p207, %p208
      %p210 = scmp.le.s32.totalorder 1, %s14
      %p211 = scmp.lt.s32.totalorder %s14, 5
      %p212 = pnand %p210, %p211
      %p213 = pneg %p212
      // Predicated region
      $region9: #{double_conv_forward.5} parent=5 // pred_check
        _
      $region10: #{double_conv_forward.5} parent=5 // pred_check_branch
        %215 = sbr.rel (%p212) target = $region12
      $region11: #{double_conv_forward.5} parent=5 // pred_region
        %s216 = ssub.s32 %s14, 1
        // Predicated region
        $region13: #{double_conv_forward.5} parent=11 // pred_check
          %p217 = pneg %p87
        $region14: #{double_conv_forward.5} parent=11 // pred_check_branch
          %219 = sbr.rel (%p217) target = $region16
        $region15: #{double_conv_forward.5} parent=11 // pred_region
          _
        $region16: #{double_conv_forward.5} parent=11 // pred_fallthru
          _
        // Predicated region
        $region17: #{double_conv_forward.5} parent=11 // pred_check
          %p220 = pneg %p108
        $region18: #{double_conv_forward.5} parent=11 // pred_check_branch
          %222 = sbr.rel (%p220) target = $region20
        $region19: #{double_conv_forward.5} parent=11 // pred_region
          _
        $region20: #{double_conv_forward.5} parent=11 // pred_fallthru
          _
        // Predicated region
        $region21: #{double_conv_forward.5} parent=11 // pred_check
          %p223 = pneg %p129
        $region22: #{double_conv_forward.5} parent=11 // pred_check_branch
          %225 = sbr.rel (%p223) target = $region24
        $region23: #{double_conv_forward.5} parent=11 // pred_region
          _
        $region24: #{double_conv_forward.5} parent=11 // pred_fallthru
          _
        // Predicated region
        $region25: #{double_conv_forward.5} parent=11 // pred_check
          %p226 = pneg %p150
        $region26: #{double_conv_forward.5} parent=11 // pred_check_branch
          %228 = sbr.rel (%p226) target = $region28
        $region27: #{double_conv_forward.5} parent=11 // pred_region
          _
        $region28: #{double_conv_forward.5} parent=11 // pred_fallthru
          _
      $region12: #{double_conv_forward.5} parent=5 // pred_fallthru
        _
      %p229 = scmp.lt.s32.totalorder %s14, 4
      // Predicated region
      $region29: #{double_conv_forward.5} parent=5 // pred_check
        %p230 = pneg %p229
      $region30: #{double_conv_forward.5} parent=5 // pred_check_branch
        %232 = sbr.rel (%p230) target = $region32
      $region31: #{double_conv_forward.5} parent=5 // pred_region
        // Predicated region
        $region33: #{double_conv_forward.5} parent=31 // pred_check
          %p233 = pneg %p34
        $region34: #{double_conv_forward.5} parent=31 // pred_check_branch
          %235 = sbr.rel (%p233) target = $region36
        $region35: #{double_conv_forward.5} parent=31 // pred_region
          %s236 = sand.u32 %s24, 1
          %s237 = sand.u32 %s24, 1
          %s238 = smul.addr %s237, 64
          %s239 = scalar_lea.vmem [#allocation2], %s238
          %s240 = smul.u32 4, %s14
          %s241 = smul.addr %s240, 2
          %s242 = smul.addr %s241, 4
          %s243 = scalar_lea.vmem %s0, %s242
          // Predicated region
          $region37: #{double_conv_forward.5} parent=35 // pred_check
            _
          $region38: #{double_conv_forward.5} parent=35 // pred_check_branch
            %245 = sbr.rel (0) target = $region40
          $region39: #{double_conv_forward.5} parent=35 // pred_region
            // Predicated region
            $region41: #{double_conv_forward.5} parent=39 // pred_check
              _
            $region42: #{double_conv_forward.5} parent=39 // pred_check_branch
              %247 = sbr.rel target = $region44
            $region43: #{double_conv_forward.5} parent=39 // pred_region
              // Predicated region
              $region56: #{double_conv_forward.5} parent=43 // pred_check
                _
              $region57: #{double_conv_forward.5} parent=43 // pred_check_branch
                %292 = sbr.rel (0) target = $region59
              $region58: #{double_conv_forward.5} parent=43 // pred_region
                loop: start=0, step=1, limit=1
                $region60: #{double_conv_forward.5} parent=58 // loop_pre_header
                  _
                $region61: #{double_conv_forward.5} parent=58 // loop_header
                  %s294 = sphi 0, %s298
                  %p295 = scmp.ge.s32.totalorder %s294, 1
                  %s299 = sphi %s243, %s243
                  %s300 = sphi %s239, %s239
                $region62: #{double_conv_forward.5} parent=58 // loop_header_branch
                  %297 = sbr.rel (%p295) target = $region66
                $region63: #{double_conv_forward.5} parent=58 // loop_body
                  _
                $region64: #{double_conv_forward.5} parent=58 // loop_footer
                  %s298 = sadd.s32 1, %s294
                $region65: #{double_conv_forward.5} parent=58 // loop_footer_branch
                  %293 = sbr.rel target = $region61
                $region66: #{double_conv_forward.5} parent=58 // loop_exit
                  _
                loop: start=0, step=1, limit=1
                $region67: #{double_conv_forward.5} parent=58 // loop_pre_header
                  _
                $region68: #{double_conv_forward.5} parent=58 // loop_header
                  %s303 = sphi 0, %s307
                  %p304 = scmp.ge.s32.totalorder %s303, 1
                  %s308 = sphi %s243, %s243
                  %s309 = sphi %s239, %s239
                $region69: #{double_conv_forward.5} parent=58 // loop_header_branch
                  %306 = sbr.rel (%p304) target = $region73
                $region70: #{double_conv_forward.5} parent=58 // loop_body
                  %v310 = vld [vmem:[%s308] sm:$0xf]
                  %311 = vst [vmem:[%s309] sm:$0xf] %v310
                  %v312 = vld [vmem:[%s308 + $0x4] sm:$0xf]
                  %313 = vst [vmem:[%s309 + $0x4] sm:$0xf] %v312
                  %v314 = vld [vmem:[%s308 + $0x8] sm:$0xf]
                  %315 = vst [vmem:[%s309 + $0x8] sm:$0xf] %v314
                  %v316 = vld [vmem:[%s308 + $0xc] sm:$0xf]
                  %317 = vst [vmem:[%s309 + $0xc] sm:$0xf] %v316
                  %v318 = vld [vmem:[%s308 + $0x10] sm:$0xf]
                  %319 = vst [vmem:[%s309 + $0x10] sm:$0xf] %v318
                  %v320 = vld [vmem:[%s308 + $0x14] sm:$0xf]
                  %321 = vst [vmem:[%s309 + $0x14] sm:$0xf] %v320
                  %v322 = vld [vmem:[%s308 + $0x18] sm:$0xf]
                  %323 = vst [vmem:[%s309 + $0x18] sm:$0xf] %v322
                  %v324 = vld [vmem:[%s308 + $0x1c] sm:$0xf]
                  %325 = vst [vmem:[%s309 + $0x1c] sm:$0xf] %v324
                  %v326 = vld [vmem:[%s308 + $0x80] sm:$0xf]
                  %327 = vst [vmem:[%s309 + $0x20] sm:$0xf] %v326
                  %v328 = vld [vmem:[%s308 + $0x84] sm:$0xf]
                  %329 = vst [vmem:[%s309 + $0x24] sm:$0xf] %v328
                  %v330 = vld [vmem:[%s308 + $0x88] sm:$0xf]
                  %331 = vst [vmem:[%s309 + $0x28] sm:$0xf] %v330
                  %v332 = vld [vmem:[%s308 + $0x8c] sm:$0xf]
                  %333 = vst [vmem:[%s309 + $0x2c] sm:$0xf] %v332
                  %v334 = vld [vmem:[%s308 + $0x90] sm:$0xf]
                  %335 = vst [vmem:[%s309 + $0x30] sm:$0xf] %v334
                  %v336 = vld [vmem:[%s308 + $0x94] sm:$0xf]
                  %337 = vst [vmem:[%s309 + $0x34] sm:$0xf] %v336
                  %v338 = vld [vmem:[%s308 + $0x98] sm:$0xf]
                  %339 = vst [vmem:[%s309 + $0x38] sm:$0xf] %v338
                  %v340 = vld [vmem:[%s308 + $0x9c] sm:$0xf]
                  %341 = vst [vmem:[%s309 + $0x3c] sm:$0xf] %v340
                $region71: #{double_conv_forward.5} parent=58 // loop_footer
                  %s307 = sadd.s32 1, %s303
                $region72: #{double_conv_forward.5} parent=58 // loop_footer_branch
                  %302 = sbr.rel target = $region68
                $region73: #{double_conv_forward.5} parent=58 // loop_exit
                  _
              $region59: #{double_conv_forward.5} parent=43 // pred_fallthru
                _
            $region44: #{double_conv_forward.5} parent=39 // pred_fallthru
              _
            // Predicated region
            $region45: #{double_conv_forward.5} parent=39 // pred_check
              _
            $region46: #{double_conv_forward.5} parent=39 // pred_check_branch
              %249 = sbr.rel (0) target = $region48
            $region47: #{double_conv_forward.5} parent=39 // pred_region
              loop: start=0, step=1, limit=1
              $region49: #{double_conv_forward.5} parent=47 // loop_pre_header
                _
              $region50: #{double_conv_forward.5} parent=47 // loop_header
                %s252 = sphi 0, %s256
                %p253 = scmp.ge.s32.totalorder %s252, 1
                %s257 = sphi %s243, %s243
                %s258 = sphi %s239, %s239
              $region51: #{double_conv_forward.5} parent=47 // loop_header_branch
                %255 = sbr.rel (%p253) target = $region55
              $region52: #{double_conv_forward.5} parent=47 // loop_body
                %v259 = vld [vmem:[%s257] sm:$0xf]
                %260 = vst [vmem:[%s258] sm:$0xf] %v259
                %v261 = vld [vmem:[%s257 + $0x4] sm:$0xf]
                %262 = vst [vmem:[%s258 + $0x4] sm:$0xf] %v261
                %v263 = vld [vmem:[%s257 + $0x8] sm:$0xf]
                %264 = vst [vmem:[%s258 + $0x8] sm:$0xf] %v263
                %v265 = vld [vmem:[%s257 + $0xc] sm:$0xf]
                %266 = vst [vmem:[%s258 + $0xc] sm:$0xf] %v265
                %v267 = vld [vmem:[%s257 + $0x10] sm:$0xf]
                %268 = vst [vmem:[%s258 + $0x10] sm:$0xf] %v267
                %v269 = vld [vmem:[%s257 + $0x14] sm:$0xf]
                %270 = vst [vmem:[%s258 + $0x14] sm:$0xf] %v269
                %v271 = vld [vmem:[%s257 + $0x18] sm:$0xf]
                %272 = vst [vmem:[%s258 + $0x18] sm:$0xf] %v271
                %v273 = vld [vmem:[%s257 + $0x1c] sm:$0xf]
                %274 = vst [vmem:[%s258 + $0x1c] sm:$0xf] %v273
                %v275 = vld [vmem:[%s257 + $0x80] sm:$0xf]
                %276 = vst [vmem:[%s258 + $0x20] sm:$0xf] %v275
                %v277 = vld [vmem:[%s257 + $0x84] sm:$0xf]
                %278 = vst [vmem:[%s258 + $0x24] sm:$0xf] %v277
                %v279 = vld [vmem:[%s257 + $0x88] sm:$0xf]
                %280 = vst [vmem:[%s258 + $0x28] sm:$0xf] %v279
                %v281 = vld [vmem:[%s257 + $0x8c] sm:$0xf]
                %282 = vst [vmem:[%s258 + $0x2c] sm:$0xf] %v281
                %v283 = vld [vmem:[%s257 + $0x90] sm:$0xf]
                %284 = vst [vmem:[%s258 + $0x30] sm:$0xf] %v283
                %v285 = vld [vmem:[%s257 + $0x94] sm:$0xf]
                %286 = vst [vmem:[%s258 + $0x34] sm:$0xf] %v285
                %v287 = vld [vmem:[%s257 + $0x98] sm:$0xf]
                %288 = vst [vmem:[%s258 + $0x38] sm:$0xf] %v287
                %v289 = vld [vmem:[%s257 + $0x9c] sm:$0xf]
                %290 = vst [vmem:[%s258 + $0x3c] sm:$0xf] %v289
              $region53: #{double_conv_forward.5} parent=47 // loop_footer
                %s256 = sadd.s32 1, %s252
              $region54: #{double_conv_forward.5} parent=47 // loop_footer_branch
                %251 = sbr.rel target = $region50
              $region55: #{double_conv_forward.5} parent=47 // loop_exit
                _
            $region48: #{double_conv_forward.5} parent=39 // pred_fallthru
              _
          $region40: #{double_conv_forward.5} parent=35 // pred_fallthru
            _
          %342 = vnop
        $region36: #{double_conv_forward.5} parent=31 // pred_fallthru
          _
        // Predicated region
        $region74: #{double_conv_forward.5} parent=31 // pred_check
          %p343 = pneg %p60
        $region75: #{double_conv_forward.5} parent=31 // pred_check_branch
          %345 = sbr.rel (%p343) target = $region77
        $region76: #{double_conv_forward.5} parent=31 // pred_region
          %s346 = sand.u32 %s50, 1
          %s347 = sand.u32 %s50, 1
          %s348 = smul.addr %s347, 64
          %s349 = scalar_lea.vmem [#allocation3], %s348
          %s350 = smul.u32 4, %s14
          %s351 = smul.addr %s350, 2
          %s352 = smul.addr %s351, 4
          %s353 = scalar_lea.vmem %s1, %s352
          // Predicated region
          $region78: #{double_conv_forward.5} parent=76 // pred_check
            _
          $region79: #{double_conv_forward.5} parent=76 // pred_check_branch
            %355 = sbr.rel (0) target = $region81
          $region80: #{double_conv_forward.5} parent=76 // pred_region
            // Predicated region
            $region82: #{double_conv_forward.5} parent=80 // pred_check
              _
            $region83: #{double_conv_forward.5} parent=80 // pred_check_branch
              %357 = sbr.rel target = $region85
            $region84: #{double_conv_forward.5} parent=80 // pred_region
              // Predicated region
              $region97: #{double_conv_forward.5} parent=84 // pred_check
                _
              $region98: #{double_conv_forward.5} parent=84 // pred_check_branch
                %402 = sbr.rel (0) target = $region100
              $region99: #{double_conv_forward.5} parent=84 // pred_region
                loop: start=0, step=1, limit=1
                $region101: #{double_conv_forward.5} parent=99 // loop_pre_header
                  _
                $region102: #{double_conv_forward.5} parent=99 // loop_header
                  %s404 = sphi 0, %s408
                  %p405 = scmp.ge.s32.totalorder %s404, 1
                  %s409 = sphi %s353, %s353
                  %s410 = sphi %s349, %s349
                $region103: #{double_conv_forward.5} parent=99 // loop_header_branch
                  %407 = sbr.rel (%p405) target = $region107
                $region104: #{double_conv_forward.5} parent=99 // loop_body
                  _
                $region105: #{double_conv_forward.5} parent=99 // loop_footer
                  %s408 = sadd.s32 1, %s404
                $region106: #{double_conv_forward.5} parent=99 // loop_footer_branch
                  %403 = sbr.rel target = $region102
                $region107: #{double_conv_forward.5} parent=99 // loop_exit
                  _
                loop: start=0, step=1, limit=1
                $region108: #{double_conv_forward.5} parent=99 // loop_pre_header
                  _
                $region109: #{double_conv_forward.5} parent=99 // loop_header
                  %s413 = sphi 0, %s417
                  %p414 = scmp.ge.s32.totalorder %s413, 1
                  %s418 = sphi %s353, %s353
                  %s419 = sphi %s349, %s349
                $region110: #{double_conv_forward.5} parent=99 // loop_header_branch
                  %416 = sbr.rel (%p414) target = $region114
                $region111: #{double_conv_forward.5} parent=99 // loop_body
                  %v420 = vld [vmem:[%s418] sm:$0xf]
                  %421 = vst [vmem:[%s419] sm:$0xf] %v420
                  %v422 = vld [vmem:[%s418 + $0x4] sm:$0xf]
                  %423 = vst [vmem:[%s419 + $0x4] sm:$0xf] %v422
                  %v424 = vld [vmem:[%s418 + $0x8] sm:$0xf]
                  %425 = vst [vmem:[%s419 + $0x8] sm:$0xf] %v424
                  %v426 = vld [vmem:[%s418 + $0xc] sm:$0xf]
                  %427 = vst [vmem:[%s419 + $0xc] sm:$0xf] %v426
                  %v428 = vld [vmem:[%s418 + $0x10] sm:$0xf]
                  %429 = vst [vmem:[%s419 + $0x10] sm:$0xf] %v428
                  %v430 = vld [vmem:[%s418 + $0x14] sm:$0xf]
                  %431 = vst [vmem:[%s419 + $0x14] sm:$0xf] %v430
                  %v432 = vld [vmem:[%s418 + $0x18] sm:$0xf]
                  %433 = vst [vmem:[%s419 + $0x18] sm:$0xf] %v432
                  %v434 = vld [vmem:[%s418 + $0x1c] sm:$0xf]
                  %435 = vst [vmem:[%s419 + $0x1c] sm:$0xf] %v434
                  %v436 = vld [vmem:[%s418 + $0x80] sm:$0xf]
                  %437 = vst [vmem:[%s419 + $0x20] sm:$0xf] %v436
                  %v438 = vld [vmem:[%s418 + $0x84] sm:$0xf]
                  %439 = vst [vmem:[%s419 + $0x24] sm:$0xf] %v438
                  %v440 = vld [vmem:[%s418 + $0x88] sm:$0xf]
                  %441 = vst [vmem:[%s419 + $0x28] sm:$0xf] %v440
                  %v442 = vld [vmem:[%s418 + $0x8c] sm:$0xf]
                  %443 = vst [vmem:[%s419 + $0x2c] sm:$0xf] %v442
                  %v444 = vld [vmem:[%s418 + $0x90] sm:$0xf]
                  %445 = vst [vmem:[%s419 + $0x30] sm:$0xf] %v444
                  %v446 = vld [vmem:[%s418 + $0x94] sm:$0xf]
                  %447 = vst [vmem:[%s419 + $0x34] sm:$0xf] %v446
                  %v448 = vld [vmem:[%s418 + $0x98] sm:$0xf]
                  %449 = vst [vmem:[%s419 + $0x38] sm:$0xf] %v448
                  %v450 = vld [vmem:[%s418 + $0x9c] sm:$0xf]
                  %451 = vst [vmem:[%s419 + $0x3c] sm:$0xf] %v450
                $region112: #{double_conv_forward.5} parent=99 // loop_footer
                  %s417 = sadd.s32 1, %s413
                $region113: #{double_conv_forward.5} parent=99 // loop_footer_branch
                  %412 = sbr.rel target = $region109
                $region114: #{double_conv_forward.5} parent=99 // loop_exit
                  _
              $region100: #{double_conv_forward.5} parent=84 // pred_fallthru
                _
            $region85: #{double_conv_forward.5} parent=80 // pred_fallthru
              _
            // Predicated region
            $region86: #{double_conv_forward.5} parent=80 // pred_check
              _
            $region87: #{double_conv_forward.5} parent=80 // pred_check_branch
              %359 = sbr.rel (0) target = $region89
            $region88: #{double_conv_forward.5} parent=80 // pred_region
              loop: start=0, step=1, limit=1
              $region90: #{double_conv_forward.5} parent=88 // loop_pre_header
                _
              $region91: #{double_conv_forward.5} parent=88 // loop_header
                %s362 = sphi 0, %s366
                %p363 = scmp.ge.s32.totalorder %s362, 1
                %s367 = sphi %s353, %s353
                %s368 = sphi %s349, %s349
              $region92: #{double_conv_forward.5} parent=88 // loop_header_branch
                %365 = sbr.rel (%p363) target = $region96
              $region93: #{double_conv_forward.5} parent=88 // loop_body
                %v369 = vld [vmem:[%s367] sm:$0xf]
                %370 = vst [vmem:[%s368] sm:$0xf] %v369
                %v371 = vld [vmem:[%s367 + $0x4] sm:$0xf]
                %372 = vst [vmem:[%s368 + $0x4] sm:$0xf] %v371
                %v373 = vld [vmem:[%s367 + $0x8] sm:$0xf]
                %374 = vst [vmem:[%s368 + $0x8] sm:$0xf] %v373
                %v375 = vld [vmem:[%s367 + $0xc] sm:$0xf]
                %376 = vst [vmem:[%s368 + $0xc] sm:$0xf] %v375
                %v377 = vld [vmem:[%s367 + $0x10] sm:$0xf]
                %378 = vst [vmem:[%s368 + $0x10] sm:$0xf] %v377
                %v379 = vld [vmem:[%s367 + $0x14] sm:$0xf]
                %380 = vst [vmem:[%s368 + $0x14] sm:$0xf] %v379
                %v381 = vld [vmem:[%s367 + $0x18] sm:$0xf]
                %382 = vst [vmem:[%s368 + $0x18] sm:$0xf] %v381
                %v383 = vld [vmem:[%s367 + $0x1c] sm:$0xf]
                %384 = vst [vmem:[%s368 + $0x1c] sm:$0xf] %v383
                %v385 = vld [vmem:[%s367 + $0x80] sm:$0xf]
                %386 = vst [vmem:[%s368 + $0x20] sm:$0xf] %v385
                %v387 = vld [vmem:[%s367 + $0x84] sm:$0xf]
                %388 = vst [vmem:[%s368 + $0x24] sm:$0xf] %v387
                %v389 = vld [vmem:[%s367 + $0x88] sm:$0xf]
                %390 = vst [vmem:[%s368 + $0x28] sm:$0xf] %v389
                %v391 = vld [vmem:[%s367 + $0x8c] sm:$0xf]
                %392 = vst [vmem:[%s368 + $0x2c] sm:$0xf] %v391
                %v393 = vld [vmem:[%s367 + $0x90] sm:$0xf]
                %394 = vst [vmem:[%s368 + $0x30] sm:$0xf] %v393
                %v395 = vld [vmem:[%s367 + $0x94] sm:$0xf]
                %396 = vst [vmem:[%s368 + $0x34] sm:$0xf] %v395
                %v397 = vld [vmem:[%s367 + $0x98] sm:$0xf]
                %398 = vst [vmem:[%s368 + $0x38] sm:$0xf] %v397
                %v399 = vld [vmem:[%s367 + $0x9c] sm:$0xf]
                %400 = vst [vmem:[%s368 + $0x3c] sm:$0xf] %v399
              $region94: #{double_conv_forward.5} parent=88 // loop_footer
                %s366 = sadd.s32 1, %s362
              $region95: #{double_conv_forward.5} parent=88 // loop_footer_branch
                %361 = sbr.rel target = $region91
              $region96: #{double_conv_forward.5} parent=88 // loop_exit
                _
            $region89: #{double_conv_forward.5} parent=80 // pred_fallthru
              _
          $region81: #{double_conv_forward.5} parent=76 // pred_fallthru
            _
          %452 = vnop
        $region77: #{double_conv_forward.5} parent=31 // pred_fallthru
          _
      $region32: #{double_conv_forward.5} parent=5 // pred_fallthru
        _
      %p453 = scmp.le.s32.totalorder 1, %s14
      %p454 = scmp.lt.s32.totalorder %s14, 5
      %p455 = pnand %p453, %p454
      %p456 = pneg %p455
      // Predicated region
      $region115: #{double_conv_forward.5} parent=5 // pred_check
        _
      $region116: #{double_conv_forward.5} parent=5 // pred_check_branch
        %458 = sbr.rel (%p455) target = $region118
      $region117: #{double_conv_forward.5} parent=5 // pred_region
        %s459 = ssub.s32 %s14, 1
        %s460 = sand.u32 %s27, 1
        %s461 = sand.u32 %s27, 1
        %s462 = smul.addr %s461, 64
        %s463 = scalar_lea.vmem [#allocation2], %s462
        // Predicated region
        $region119: #{double_conv_forward.5} parent=117 // pred_check
          %p464 = pneg %p40
        $region120: #{double_conv_forward.5} parent=117 // pred_check_branch
          %466 = sbr.rel (%p464) target = $region122
        $region121: #{double_conv_forward.5} parent=117 // pred_region
          _
        $region122: #{double_conv_forward.5} parent=117 // pred_fallthru
          _
        %s467 = sand.u32 %s53, 1
        %s468 = sand.u32 %s53, 1
        %s469 = smul.addr %s468, 64
        %s470 = scalar_lea.vmem [#allocation3], %s469
        // Predicated region
        $region123: #{double_conv_forward.5} parent=117 // pred_check
          %p471 = pneg %p66
        $region124: #{double_conv_forward.5} parent=117 // pred_check_branch
          %473 = sbr.rel (%p471) target = $region126
        $region125: #{double_conv_forward.5} parent=117 // pred_region
          _
        $region126: #{double_conv_forward.5} parent=117 // pred_fallthru
          _
        %s474 = sand.u32 %s27, 1
        %s475 = sand.u32 %s27, 1
        %s476 = smul.addr %s475, 64
        %s477 = scalar_lea.vmem [#allocation2], %s476
        %p478 = pneg %p40
        %p479 = pneg %p37
        %s480 = sand.u32 %s53, 1
        %s481 = sand.u32 %s53, 1
        %s482 = smul.addr %s481, 64
        %s483 = scalar_lea.vmem [#allocation3], %s482
        %p484 = pneg %p66
        %p485 = pneg %p63
        %p486 = pneg %p87
        %p487 = pneg %p84
        %p488 = pneg %p108
        %p489 = pneg %p105
        %p490 = pneg %p129
        %p491 = pneg %p126
        %p492 = pneg %p150
        %p493 = pneg %p147
        %p494 = pneg %p176
        %p495 = pneg %p173
        %s496 = sand.u32 %s163, 1
        %s497 = sand.u32 %s163, 1
        %s498 = smul.addr %s497, 128
        %s499 = scalar_lea.vmem [#allocation4], %s498
        %p500 = pneg %p202
        %p501 = pneg %p199
        %s502 = sand.u32 %s189, 1
        %s503 = sand.u32 %s189, 1
        %s504 = smul.addr %s503, 128
        %s505 = scalar_lea.vmem [#allocation5], %s504
        %s506 = smul.u32 4, %s19
        %s507 = smul.u32 4, %s19
        %s508 = smul.u32 4, %s19
        %s509 = smul.u32 4, %s19
        %v510 = vld [vmem:[%s463] sm:$0xf]
        %v511 = vld [vmem:[%s463 + $0x4] sm:$0xf]
        %v512 = vld [vmem:[%s463 + $0x8] sm:$0xf]
        %v513 = vld [vmem:[%s463 + $0xc] sm:$0xf]
        %v514 = vld [vmem:[%s463 + $0x10] sm:$0xf]
        %v515 = vld [vmem:[%s463 + $0x14] sm:$0xf]
        %v516 = vld [vmem:[%s463 + $0x18] sm:$0xf]
        %v517 = vld [vmem:[%s463 + $0x1c] sm:$0xf]
        %v518 = vld [vmem:[%s463 + $0x20] sm:$0xf]
        %v519 = vld [vmem:[%s463 + $0x24] sm:$0xf]
        %v520 = vld [vmem:[%s463 + $0x28] sm:$0xf]
        %v521 = vld [vmem:[%s463 + $0x2c] sm:$0xf]
        %v522 = vld [vmem:[%s463 + $0x30] sm:$0xf]
        %v523 = vld [vmem:[%s463 + $0x34] sm:$0xf]
        %v524 = vld [vmem:[%s463 + $0x38] sm:$0xf]
        %v525 = vld [vmem:[%s463 + $0x3c] sm:$0xf]
        %v526 = vunpack.c.l.bf16 %v510
        %v527 = vunpack.c.l.bf16 %v511
        %v528 = vunpack.c.l.bf16 %v512
        %v529 = vunpack.c.l.bf16 %v513
        %v530 = vunpack.c.l.bf16 %v514
        %v531 = vunpack.c.l.bf16 %v515
        %v532 = vunpack.c.l.bf16 %v516
        %v533 = vunpack.c.l.bf16 %v517
        %v534 = vunpack.c.l.bf16 %v518
        %v535 = vunpack.c.l.bf16 %v519
        %v536 = vunpack.c.l.bf16 %v520
        %v537 = vunpack.c.l.bf16 %v521
        %v538 = vunpack.c.l.bf16 %v522
        %v539 = vunpack.c.l.bf16 %v523
        %v540 = vunpack.c.l.bf16 %v524
        %v541 = vunpack.c.l.bf16 %v525
        %v542 = vld [vmem:[%s2] sm:$0x1]
        %v544 = vlaneseq
        %v545 = vshrl.u32 %v544, 7
        %v546 = vsub.s32 0, %v545
        %v547 = vrot.slane %v542, %v546
        %v549 = vmul.f32 %v526, %v547
        %v550 = vmul.f32 %v527, %v547
        %v551 = vmul.f32 %v528, %v547
        %v552 = vmul.f32 %v529, %v547
        %v553 = vmul.f32 %v530, %v547
        %v554 = vmul.f32 %v531, %v547
        %v555 = vmul.f32 %v532, %v547
        %v556 = vmul.f32 %v533, %v547
        %v557 = vmul.f32 %v534, %v547
        %v558 = vmul.f32 %v535, %v547
        %v559 = vmul.f32 %v536, %v547
        %v560 = vmul.f32 %v537, %v547
        %v561 = vmul.f32 %v538, %v547
        %v562 = vmul.f32 %v539, %v547
        %v563 = vmul.f32 %v540, %v547
        %v564 = vmul.f32 %v541, %v547
        %v565 = vld [vmem:[%s3] sm:$0x1]
        %v567 = vlaneseq
        %v568 = vshrl.u32 %v567, 7
        %v569 = vsub.s32 0, %v568
        %v570 = vrot.slane %v565, %v569
        %v572 = vadd.f32 %v549, %v570
        %v573 = vadd.f32 %v550, %v570
        %v574 = vadd.f32 %v551, %v570
        %v575 = vadd.f32 %v552, %v570
        %v576 = vadd.f32 %v553, %v570
        %v577 = vadd.f32 %v554, %v570
        %v578 = vadd.f32 %v555, %v570
        %v579 = vadd.f32 %v556, %v570
        %v580 = vadd.f32 %v557, %v570
        %v581 = vadd.f32 %v558, %v570
        %v582 = vadd.f32 %v559, %v570
        %v583 = vadd.f32 %v560, %v570
        %v584 = vadd.f32 %v561, %v570
        %v585 = vadd.f32 %v562, %v570
        %v586 = vadd.f32 %v563, %v570
        %v587 = vadd.f32 %v564, %v570
        %v588 = vld [vmem:[%s470] sm:$0xf]
        %v589 = vld [vmem:[%s470 + $0x4] sm:$0xf]
        %v590 = vld [vmem:[%s470 + $0x8] sm:$0xf]
        %v591 = vld [vmem:[%s470 + $0xc] sm:$0xf]
        %v592 = vld [vmem:[%s470 + $0x10] sm:$0xf]
        %v593 = vld [vmem:[%s470 + $0x14] sm:$0xf]
        %v594 = vld [vmem:[%s470 + $0x18] sm:$0xf]
        %v595 = vld [vmem:[%s470 + $0x1c] sm:$0xf]
        %v596 = vld [vmem:[%s470 + $0x20] sm:$0xf]
        %v597 = vld [vmem:[%s470 + $0x24] sm:$0xf]
        %v598 = vld [vmem:[%s470 + $0x28] sm:$0xf]
        %v599 = vld [vmem:[%s470 + $0x2c] sm:$0xf]
        %v600 = vld [vmem:[%s470 + $0x30] sm:$0xf]
        %v601 = vld [vmem:[%s470 + $0x34] sm:$0xf]
        %v602 = vld [vmem:[%s470 + $0x38] sm:$0xf]
        %v603 = vld [vmem:[%s470 + $0x3c] sm:$0xf]
        %v604 = vunpack.c.l.bf16 %v588
        %v605 = vunpack.c.l.bf16 %v589
        %v606 = vunpack.c.l.bf16 %v590
        %v607 = vunpack.c.l.bf16 %v591
        %v608 = vunpack.c.l.bf16 %v592
        %v609 = vunpack.c.l.bf16 %v593
        %v610 = vunpack.c.l.bf16 %v594
        %v611 = vunpack.c.l.bf16 %v595
        %v612 = vunpack.c.l.bf16 %v596
        %v613 = vunpack.c.l.bf16 %v597
        %v614 = vunpack.c.l.bf16 %v598
        %v615 = vunpack.c.l.bf16 %v599
        %v616 = vunpack.c.l.bf16 %v600
        %v617 = vunpack.c.l.bf16 %v601
        %v618 = vunpack.c.l.bf16 %v602
        %v619 = vunpack.c.l.bf16 %v603
        %v620 = vld [vmem:[%s4] sm:$0x1]
        %v622 = vlaneseq
        %v623 = vshrl.u32 %v622, 7
        %v624 = vsub.s32 0, %v623
        %v625 = vrot.slane %v620, %v624
        %v627 = vmul.f32 %v604, %v625
        %v628 = vmul.f32 %v605, %v625
        %v629 = vmul.f32 %v606, %v625
        %v630 = vmul.f32 %v607, %v625
        %v631 = vmul.f32 %v608, %v625
        %v632 = vmul.f32 %v609, %v625
        %v633 = vmul.f32 %v610, %v625
        %v634 = vmul.f32 %v611, %v625
        %v635 = vmul.f32 %v612, %v625
        %v636 = vmul.f32 %v613, %v625
        %v637 = vmul.f32 %v614, %v625
        %v638 = vmul.f32 %v615, %v625
        %v639 = vmul.f32 %v616, %v625
        %v640 = vmul.f32 %v617, %v625
        %v641 = vmul.f32 %v618, %v625
        %v642 = vmul.f32 %v619, %v625
        %v643 = vld [vmem:[%s5] sm:$0x1]
        %v645 = vlaneseq
        %v646 = vshrl.u32 %v645, 7
        %v647 = vsub.s32 0, %v646
        %v648 = vrot.slane %v643, %v647
        %v650 = vadd.f32 %v627, %v648
        %v651 = vadd.f32 %v628, %v648
        %v652 = vadd.f32 %v629, %v648
        %v653 = vadd.f32 %v630, %v648
        %v654 = vadd.f32 %v631, %v648
        %v655 = vadd.f32 %v632, %v648
        %v656 = vadd.f32 %v633, %v648
        %v657 = vadd.f32 %v634, %v648
        %v658 = vadd.f32 %v635, %v648
        %v659 = vadd.f32 %v636, %v648
        %v660 = vadd.f32 %v637, %v648
        %v661 = vadd.f32 %v638, %v648
        %v662 = vadd.f32 %v639, %v648
        %v663 = vadd.f32 %v640, %v648
        %v664 = vadd.f32 %v641, %v648
        %v665 = vadd.f32 %v642, %v648
        %v666 = vmax.f32 %v572, 0.0
        %v667 = vmax.f32 %v573, 0.0
        %v668 = vmax.f32 %v574, 0.0
        %v669 = vmax.f32 %v575, 0.0
        %v670 = vmax.f32 %v576, 0.0
        %v671 = vmax.f32 %v577, 0.0
        %v672 = vmax.f32 %v578, 0.0
        %v673 = vmax.f32 %v579, 0.0
        %v674 = vmax.f32 %v580, 0.0
        %v675 = vmax.f32 %v581, 0.0
        %v676 = vmax.f32 %v582, 0.0
        %v677 = vmax.f32 %v583, 0.0
        %v678 = vmax.f32 %v584, 0.0
        %v679 = vmax.f32 %v585, 0.0
        %v680 = vmax.f32 %v586, 0.0
        %v681 = vmax.f32 %v587, 0.0
        %v682 = vmax.f32 %v650, 0.0
        %v683 = vmax.f32 %v651, 0.0
        %v684 = vmax.f32 %v652, 0.0
        %v685 = vmax.f32 %v653, 0.0
        %v686 = vmax.f32 %v654, 0.0
        %v687 = vmax.f32 %v655, 0.0
        %v688 = vmax.f32 %v656, 0.0
        %v689 = vmax.f32 %v657, 0.0
        %v690 = vmax.f32 %v658, 0.0
        %v691 = vmax.f32 %v659, 0.0
        %v692 = vmax.f32 %v660, 0.0
        %v693 = vmax.f32 %v661, 0.0
        %v694 = vmax.f32 %v662, 0.0
        %v695 = vmax.f32 %v663, 0.0
        %v696 = vmax.f32 %v664, 0.0
        %v697 = vmax.f32 %v665, 0.0
        %vm698 = vcmask 64512
        %699 = vst.msk [vmem:[%s499] sm:$0xff] %vm698, %v666
        %700 = vst.msk [vmem:[%s499 + $0x8] sm:$0xff] %vm698, %v667
        %701 = vst.msk [vmem:[%s499 + $0x10] sm:$0xff] %vm698, %v668
        %702 = vst.msk [vmem:[%s499 + $0x18] sm:$0xff] %vm698, %v669
        %703 = vst.msk [vmem:[%s499 + $0x20] sm:$0xff] %vm698, %v670
        %704 = vst.msk [vmem:[%s499 + $0x28] sm:$0xff] %vm698, %v671
        %705 = vst.msk [vmem:[%s499 + $0x30] sm:$0xff] %vm698, %v672
        %706 = vst.msk [vmem:[%s499 + $0x38] sm:$0xff] %vm698, %v673
        %707 = vst.msk [vmem:[%s499 + $0x40] sm:$0xff] %vm698, %v674
        %708 = vst.msk [vmem:[%s499 + $0x48] sm:$0xff] %vm698, %v675
        %709 = vst.msk [vmem:[%s499 + $0x50] sm:$0xff] %vm698, %v676
        %710 = vst.msk [vmem:[%s499 + $0x58] sm:$0xff] %vm698, %v677
        %711 = vst.msk [vmem:[%s499 + $0x60] sm:$0xff] %vm698, %v678
        %712 = vst.msk [vmem:[%s499 + $0x68] sm:$0xff] %vm698, %v679
        %713 = vst.msk [vmem:[%s499 + $0x70] sm:$0xff] %vm698, %v680
        %714 = vst.msk [vmem:[%s499 + $0x78] sm:$0xff] %vm698, %v681
        %715 = vst.msk [vmem:[%s505] sm:$0xff] %vm698, %v682
        %716 = vst.msk [vmem:[%s505 + $0x8] sm:$0xff] %vm698, %v683
        %717 = vst.msk [vmem:[%s505 + $0x10] sm:$0xff] %vm698, %v684
        %718 = vst.msk [vmem:[%s505 + $0x18] sm:$0xff] %vm698, %v685
        %719 = vst.msk [vmem:[%s505 + $0x20] sm:$0xff] %vm698, %v686
        %720 = vst.msk [vmem:[%s505 + $0x28] sm:$0xff] %vm698, %v687
        %721 = vst.msk [vmem:[%s505 + $0x30] sm:$0xff] %vm698, %v688
        %722 = vst.msk [vmem:[%s505 + $0x38] sm:$0xff] %vm698, %v689
        %723 = vst.msk [vmem:[%s505 + $0x40] sm:$0xff] %vm698, %v690
        %724 = vst.msk [vmem:[%s505 + $0x48] sm:$0xff] %vm698, %v691
        %725 = vst.msk [vmem:[%s505 + $0x50] sm:$0xff] %vm698, %v692
        %726 = vst.msk [vmem:[%s505 + $0x58] sm:$0xff] %vm698, %v693
        %727 = vst.msk [vmem:[%s505 + $0x60] sm:$0xff] %vm698, %v694
        %728 = vst.msk [vmem:[%s505 + $0x68] sm:$0xff] %vm698, %v695
        %729 = vst.msk [vmem:[%s505 + $0x70] sm:$0xff] %vm698, %v696
        %730 = vst.msk [vmem:[%s505 + $0x78] sm:$0xff] %vm698, %v697
        %s731 = sand.u32 %s163, 1
        %s732 = sand.u32 %s163, 1
        %s733 = smul.addr %s732, 128
        %s734 = scalar_lea.vmem [#allocation4], %s733
        %s735 = sand.u32 %s189, 1
        %s736 = sand.u32 %s189, 1
        %s737 = smul.addr %s736, 128
        %s738 = scalar_lea.vmem [#allocation5], %s737
        // Predicated region
        $region127: #{double_conv_forward.5} parent=117 // pred_check
          %p739 = pneg %p173
        $region128: #{double_conv_forward.5} parent=117 // pred_check_branch
          %741 = sbr.rel (%p739) target = $region130
        $region129: #{double_conv_forward.5} parent=117 // pred_region
          %s742 = smul.u32 4, %s19
          %s743 = smul.addr %s742, 2
          %s744 = smul.addr %s743, 8
          %s745 = scalar_lea.vmem %s6, %s744
          // Predicated region
          $region131: #{double_conv_forward.5} parent=129 // pred_check
            _
          $region132: #{double_conv_forward.5} parent=129 // pred_check_branch
            %747 = sbr.rel (0) target = $region134
          $region133: #{double_conv_forward.5} parent=129 // pred_region
            // Predicated region
            $region135: #{double_conv_forward.5} parent=133 // pred_check
              _
            $region136: #{double_conv_forward.5} parent=133 // pred_check_branch
              %749 = sbr.rel (0) target = $region138
            $region137: #{double_conv_forward.5} parent=133 // pred_region
              // Predicated region
              $region150: #{double_conv_forward.5} parent=137 // pred_check
                _
              $region151: #{double_conv_forward.5} parent=137 // pred_check_branch
                %794 = sbr.rel (0) target = $region153
              $region152: #{double_conv_forward.5} parent=137 // pred_region
                loop: start=0, step=1, limit=1
                $region154: #{double_conv_forward.5} parent=152 // loop_pre_header
                  _
                $region155: #{double_conv_forward.5} parent=152 // loop_header
                  %s796 = sphi 0, %s800
                  %p797 = scmp.ge.s32.totalorder %s796, 1
                  %s801 = sphi %s734, %s734
                  %s802 = sphi %s745, %s745
                $region156: #{double_conv_forward.5} parent=152 // loop_header_branch
                  %799 = sbr.rel (%p797) target = $region160
                $region157: #{double_conv_forward.5} parent=152 // loop_body
                  %v803 = vld [vmem:[%s801] sm:$0xff]
                  %804 = vst [vmem:[%s802] sm:$0xff] %v803
                  %v805 = vld [vmem:[%s801 + $0x8] sm:$0xff]
                  %806 = vst [vmem:[%s802 + $0x8] sm:$0xff] %v805
                  %v807 = vld [vmem:[%s801 + $0x10] sm:$0xff]
                  %808 = vst [vmem:[%s802 + $0x10] sm:$0xff] %v807
                  %v809 = vld [vmem:[%s801 + $0x18] sm:$0xff]
                  %810 = vst [vmem:[%s802 + $0x18] sm:$0xff] %v809
                  %v811 = vld [vmem:[%s801 + $0x20] sm:$0xff]
                  %812 = vst [vmem:[%s802 + $0x20] sm:$0xff] %v811
                  %v813 = vld [vmem:[%s801 + $0x28] sm:$0xff]
                  %814 = vst [vmem:[%s802 + $0x28] sm:$0xff] %v813
                  %v815 = vld [vmem:[%s801 + $0x30] sm:$0xff]
                  %816 = vst [vmem:[%s802 + $0x30] sm:$0xff] %v815
                  %v817 = vld [vmem:[%s801 + $0x38] sm:$0xff]
                  %818 = vst [vmem:[%s802 + $0x38] sm:$0xff] %v817
                  %v819 = vld [vmem:[%s801 + $0x40] sm:$0xff]
                  %820 = vst [vmem:[%s802 + $0x100] sm:$0xff] %v819
                  %v821 = vld [vmem:[%s801 + $0x48] sm:$0xff]
                  %822 = vst [vmem:[%s802 + $0x108] sm:$0xff] %v821
                  %v823 = vld [vmem:[%s801 + $0x50] sm:$0xff]
                  %824 = vst [vmem:[%s802 + $0x110] sm:$0xff] %v823
                  %v825 = vld [vmem:[%s801 + $0x58] sm:$0xff]
                  %826 = vst [vmem:[%s802 + $0x118] sm:$0xff] %v825
                  %v827 = vld [vmem:[%s801 + $0x60] sm:$0xff]
                  %828 = vst [vmem:[%s802 + $0x120] sm:$0xff] %v827
                  %v829 = vld [vmem:[%s801 + $0x68] sm:$0xff]
                  %830 = vst [vmem:[%s802 + $0x128] sm:$0xff] %v829
                  %v831 = vld [vmem:[%s801 + $0x70] sm:$0xff]
                  %832 = vst [vmem:[%s802 + $0x130] sm:$0xff] %v831
                  %v833 = vld [vmem:[%s801 + $0x78] sm:$0xff]
                  %834 = vst [vmem:[%s802 + $0x138] sm:$0xff] %v833
                $region158: #{double_conv_forward.5} parent=152 // loop_footer
                  %s800 = sadd.s32 1, %s796
                $region159: #{double_conv_forward.5} parent=152 // loop_footer_branch
                  %795 = sbr.rel target = $region155
                $region160: #{double_conv_forward.5} parent=152 // loop_exit
                  _
              $region153: #{double_conv_forward.5} parent=137 // pred_fallthru
                _
              // Predicated region
              $region161: #{double_conv_forward.5} parent=137 // pred_check
                _
              $region162: #{double_conv_forward.5} parent=137 // pred_check_branch
                %836 = sbr.rel target = $region164
              $region163: #{double_conv_forward.5} parent=137 // pred_region
                _
              $region164: #{double_conv_forward.5} parent=137 // pred_fallthru
                _
            $region138: #{double_conv_forward.5} parent=133 // pred_fallthru
              _
            // Predicated region
            $region139: #{double_conv_forward.5} parent=133 // pred_check
              _
            $region140: #{double_conv_forward.5} parent=133 // pred_check_branch
              %751 = sbr.rel target = $region142
            $region141: #{double_conv_forward.5} parent=133 // pred_region
              loop: start=0, step=1, limit=1
              $region143: #{double_conv_forward.5} parent=141 // loop_pre_header
                _
              $region144: #{double_conv_forward.5} parent=141 // loop_header
                %s754 = sphi 0, %s758
                %p755 = scmp.ge.s32.totalorder %s754, 1
                %s759 = sphi %s734, %s734
                %s760 = sphi %s745, %s745
              $region145: #{double_conv_forward.5} parent=141 // loop_header_branch
                %757 = sbr.rel (%p755) target = $region149
              $region146: #{double_conv_forward.5} parent=141 // loop_body
                %v761 = vld [vmem:[%s759] sm:$0xff]
                %762 = vst [vmem:[%s760] sm:$0xff] %v761
                %v763 = vld [vmem:[%s759 + $0x8] sm:$0xff]
                %764 = vst [vmem:[%s760 + $0x8] sm:$0xff] %v763
                %v765 = vld [vmem:[%s759 + $0x10] sm:$0xff]
                %766 = vst [vmem:[%s760 + $0x10] sm:$0xff] %v765
                %v767 = vld [vmem:[%s759 + $0x18] sm:$0xff]
                %768 = vst [vmem:[%s760 + $0x18] sm:$0xff] %v767
                %v769 = vld [vmem:[%s759 + $0x20] sm:$0xff]
                %770 = vst [vmem:[%s760 + $0x20] sm:$0xff] %v769
                %v771 = vld [vmem:[%s759 + $0x28] sm:$0xff]
                %772 = vst [vmem:[%s760 + $0x28] sm:$0xff] %v771
                %v773 = vld [vmem:[%s759 + $0x30] sm:$0xff]
                %774 = vst [vmem:[%s760 + $0x30] sm:$0xff] %v773
                %v775 = vld [vmem:[%s759 + $0x38] sm:$0xff]
                %776 = vst [vmem:[%s760 + $0x38] sm:$0xff] %v775
                %v777 = vld [vmem:[%s759 + $0x40] sm:$0xff]
                %778 = vst [vmem:[%s760 + $0x100] sm:$0xff] %v777
                %v779 = vld [vmem:[%s759 + $0x48] sm:$0xff]
                %780 = vst [vmem:[%s760 + $0x108] sm:$0xff] %v779
                %v781 = vld [vmem:[%s759 + $0x50] sm:$0xff]
                %782 = vst [vmem:[%s760 + $0x110] sm:$0xff] %v781
                %v783 = vld [vmem:[%s759 + $0x58] sm:$0xff]
                %784 = vst [vmem:[%s760 + $0x118] sm:$0xff] %v783
                %v785 = vld [vmem:[%s759 + $0x60] sm:$0xff]
                %786 = vst [vmem:[%s760 + $0x120] sm:$0xff] %v785
                %v787 = vld [vmem:[%s759 + $0x68] sm:$0xff]
                %788 = vst [vmem:[%s760 + $0x128] sm:$0xff] %v787
                %v789 = vld [vmem:[%s759 + $0x70] sm:$0xff]
                %790 = vst [vmem:[%s760 + $0x130] sm:$0xff] %v789
                %v791 = vld [vmem:[%s759 + $0x78] sm:$0xff]
                %792 = vst [vmem:[%s760 + $0x138] sm:$0xff] %v791
              $region147: #{double_conv_forward.5} parent=141 // loop_footer
                %s758 = sadd.s32 1, %s754
              $region148: #{double_conv_forward.5} parent=141 // loop_footer_branch
                %753 = sbr.rel target = $region144
              $region149: #{double_conv_forward.5} parent=141 // loop_exit
                _
            $region142: #{double_conv_forward.5} parent=133 // pred_fallthru
              _
          $region134: #{double_conv_forward.5} parent=129 // pred_fallthru
            _
          %837 = vnop
        $region130: #{double_conv_forward.5} parent=117 // pred_fallthru
          _
        // Predicated region
        $region165: #{double_conv_forward.5} parent=117 // pred_check
          %p838 = pneg %p199
        $region166: #{double_conv_forward.5} parent=117 // pred_check_branch
          %840 = sbr.rel (%p838) target = $region168
        $region167: #{double_conv_forward.5} parent=117 // pred_region
          %s841 = smul.u32 4, %s19
          %s842 = smul.addr %s841, 2
          %s843 = smul.addr %s842, 8
          %s844 = scalar_lea.vmem %s7, %s843
          // Predicated region
          $region169: #{double_conv_forward.5} parent=167 // pred_check
            _
          $region170: #{double_conv_forward.5} parent=167 // pred_check_branch
            %846 = sbr.rel (0) target = $region172
          $region171: #{double_conv_forward.5} parent=167 // pred_region
            // Predicated region
            $region173: #{double_conv_forward.5} parent=171 // pred_check
              _
            $region174: #{double_conv_forward.5} parent=171 // pred_check_branch
              %848 = sbr.rel (0) target = $region176
            $region175: #{double_conv_forward.5} parent=171 // pred_region
              // Predicated region
              $region188: #{double_conv_forward.5} parent=175 // pred_check
                _
              $region189: #{double_conv_forward.5} parent=175 // pred_check_branch
                %893 = sbr.rel (0) target = $region191
              $region190: #{double_conv_forward.5} parent=175 // pred_region
                loop: start=0, step=1, limit=1
                $region192: #{double_conv_forward.5} parent=190 // loop_pre_header
                  _
                $region193: #{double_conv_forward.5} parent=190 // loop_header
                  %s895 = sphi 0, %s899
                  %p896 = scmp.ge.s32.totalorder %s895, 1
                  %s900 = sphi %s738, %s738
                  %s901 = sphi %s844, %s844
                $region194: #{double_conv_forward.5} parent=190 // loop_header_branch
                  %898 = sbr.rel (%p896) target = $region198
                $region195: #{double_conv_forward.5} parent=190 // loop_body
                  %v902 = vld [vmem:[%s900] sm:$0xff]
                  %903 = vst [vmem:[%s901] sm:$0xff] %v902
                  %v904 = vld [vmem:[%s900 + $0x8] sm:$0xff]
                  %905 = vst [vmem:[%s901 + $0x8] sm:$0xff] %v904
                  %v906 = vld [vmem:[%s900 + $0x10] sm:$0xff]
                  %907 = vst [vmem:[%s901 + $0x10] sm:$0xff] %v906
                  %v908 = vld [vmem:[%s900 + $0x18] sm:$0xff]
                  %909 = vst [vmem:[%s901 + $0x18] sm:$0xff] %v908
                  %v910 = vld [vmem:[%s900 + $0x20] sm:$0xff]
                  %911 = vst [vmem:[%s901 + $0x20] sm:$0xff] %v910
                  %v912 = vld [vmem:[%s900 + $0x28] sm:$0xff]
                  %913 = vst [vmem:[%s901 + $0x28] sm:$0xff] %v912
                  %v914 = vld [vmem:[%s900 + $0x30] sm:$0xff]
                  %915 = vst [vmem:[%s901 + $0x30] sm:$0xff] %v914
                  %v916 = vld [vmem:[%s900 + $0x38] sm:$0xff]
                  %917 = vst [vmem:[%s901 + $0x38] sm:$0xff] %v916
                  %v918 = vld [vmem:[%s900 + $0x40] sm:$0xff]
                  %919 = vst [vmem:[%s901 + $0x100] sm:$0xff] %v918
                  %v920 = vld [vmem:[%s900 + $0x48] sm:$0xff]
                  %921 = vst [vmem:[%s901 + $0x108] sm:$0xff] %v920
                  %v922 = vld [vmem:[%s900 + $0x50] sm:$0xff]
                  %923 = vst [vmem:[%s901 + $0x110] sm:$0xff] %v922
                  %v924 = vld [vmem:[%s900 + $0x58] sm:$0xff]
                  %925 = vst [vmem:[%s901 + $0x118] sm:$0xff] %v924
                  %v926 = vld [vmem:[%s900 + $0x60] sm:$0xff]
                  %927 = vst [vmem:[%s901 + $0x120] sm:$0xff] %v926
                  %v928 = vld [vmem:[%s900 + $0x68] sm:$0xff]
                  %929 = vst [vmem:[%s901 + $0x128] sm:$0xff] %v928
                  %v930 = vld [vmem:[%s900 + $0x70] sm:$0xff]
                  %931 = vst [vmem:[%s901 + $0x130] sm:$0xff] %v930
                  %v932 = vld [vmem:[%s900 + $0x78] sm:$0xff]
                  %933 = vst [vmem:[%s901 + $0x138] sm:$0xff] %v932
                $region196: #{double_conv_forward.5} parent=190 // loop_footer
                  %s899 = sadd.s32 1, %s895
                $region197: #{double_conv_forward.5} parent=190 // loop_footer_branch
                  %894 = sbr.rel target = $region193
                $region198: #{double_conv_forward.5} parent=190 // loop_exit
                  _
              $region191: #{double_conv_forward.5} parent=175 // pred_fallthru
                _
              // Predicated region
              $region199: #{double_conv_forward.5} parent=175 // pred_check
                _
              $region200: #{double_conv_forward.5} parent=175 // pred_check_branch
                %935 = sbr.rel target = $region202
              $region201: #{double_conv_forward.5} parent=175 // pred_region
                _
              $region202: #{double_conv_forward.5} parent=175 // pred_fallthru
                _
            $region176: #{double_conv_forward.5} parent=171 // pred_fallthru
              _
            // Predicated region
            $region177: #{double_conv_forward.5} parent=171 // pred_check
              _
            $region178: #{double_conv_forward.5} parent=171 // pred_check_branch
              %850 = sbr.rel target = $region180
            $region179: #{double_conv_forward.5} parent=171 // pred_region
              loop: start=0, step=1, limit=1
              $region181: #{double_conv_forward.5} parent=179 // loop_pre_header
                _
              $region182: #{double_conv_forward.5} parent=179 // loop_header
                %s853 = sphi 0, %s857
                %p854 = scmp.ge.s32.totalorder %s853, 1
                %s858 = sphi %s738, %s738
                %s859 = sphi %s844, %s844
              $region183: #{double_conv_forward.5} parent=179 // loop_header_branch
                %856 = sbr.rel (%p854) target = $region187
              $region184: #{double_conv_forward.5} parent=179 // loop_body
                %v860 = vld [vmem:[%s858] sm:$0xff]
                %861 = vst [vmem:[%s859] sm:$0xff] %v860
                %v862 = vld [vmem:[%s858 + $0x8] sm:$0xff]
                %863 = vst [vmem:[%s859 + $0x8] sm:$0xff] %v862
                %v864 = vld [vmem:[%s858 + $0x10] sm:$0xff]
                %865 = vst [vmem:[%s859 + $0x10] sm:$0xff] %v864
                %v866 = vld [vmem:[%s858 + $0x18] sm:$0xff]
                %867 = vst [vmem:[%s859 + $0x18] sm:$0xff] %v866
                %v868 = vld [vmem:[%s858 + $0x20] sm:$0xff]
                %869 = vst [vmem:[%s859 + $0x20] sm:$0xff] %v868
                %v870 = vld [vmem:[%s858 + $0x28] sm:$0xff]
                %871 = vst [vmem:[%s859 + $0x28] sm:$0xff] %v870
                %v872 = vld [vmem:[%s858 + $0x30] sm:$0xff]
                %873 = vst [vmem:[%s859 + $0x30] sm:$0xff] %v872
                %v874 = vld [vmem:[%s858 + $0x38] sm:$0xff]
                %875 = vst [vmem:[%s859 + $0x38] sm:$0xff] %v874
                %v876 = vld [vmem:[%s858 + $0x40] sm:$0xff]
                %877 = vst [vmem:[%s859 + $0x100] sm:$0xff] %v876
                %v878 = vld [vmem:[%s858 + $0x48] sm:$0xff]
                %879 = vst [vmem:[%s859 + $0x108] sm:$0xff] %v878
                %v880 = vld [vmem:[%s858 + $0x50] sm:$0xff]
                %881 = vst [vmem:[%s859 + $0x110] sm:$0xff] %v880
                %v882 = vld [vmem:[%s858 + $0x58] sm:$0xff]
                %883 = vst [vmem:[%s859 + $0x118] sm:$0xff] %v882
                %v884 = vld [vmem:[%s858 + $0x60] sm:$0xff]
                %885 = vst [vmem:[%s859 + $0x120] sm:$0xff] %v884
                %v886 = vld [vmem:[%s858 + $0x68] sm:$0xff]
                %887 = vst [vmem:[%s859 + $0x128] sm:$0xff] %v886
                %v888 = vld [vmem:[%s858 + $0x70] sm:$0xff]
                %889 = vst [vmem:[%s859 + $0x130] sm:$0xff] %v888
                %v890 = vld [vmem:[%s858 + $0x78] sm:$0xff]
                %891 = vst [vmem:[%s859 + $0x138] sm:$0xff] %v890
              $region185: #{double_conv_forward.5} parent=179 // loop_footer
                %s857 = sadd.s32 1, %s853
              $region186: #{double_conv_forward.5} parent=179 // loop_footer_branch
                %852 = sbr.rel target = $region182
              $region187: #{double_conv_forward.5} parent=179 // loop_exit
                _
            $region180: #{double_conv_forward.5} parent=171 // pred_fallthru
              _
          $region172: #{double_conv_forward.5} parent=167 // pred_fallthru
            _
          %936 = vnop
        $region168: #{double_conv_forward.5} parent=117 // pred_fallthru
          _
      $region118: #{double_conv_forward.5} parent=5 // pred_fallthru
        _
      %p937 = scmp.le.s32.totalorder 2, %s14
      // Predicated region
      $region203: #{double_conv_forward.5} parent=5 // pred_check
        %p938 = pneg %p937
      $region204: #{double_conv_forward.5} parent=5 // pred_check_branch
        %940 = sbr.rel (%p938) target = $region206
      $region205: #{double_conv_forward.5} parent=5 // pred_region
        %s941 = ssub.s32 %s14, 2
        // Predicated region
        $region207: #{double_conv_forward.5} parent=205 // pred_check
          %p942 = pneg %p179
        $region208: #{double_conv_forward.5} parent=205 // pred_check_branch
          %944 = sbr.rel (%p942) target = $region210
        $region209: #{double_conv_forward.5} parent=205 // pred_region
          %s945 = sand.u32 %s164, 1
          %s946 = sand.u32 %s164, 1
          %s947 = smul.addr %s946, 128
          %s948 = scalar_lea.vmem [#allocation4], %s947
        $region210: #{double_conv_forward.5} parent=205 // pred_fallthru
          _
        // Predicated region
        $region211: #{double_conv_forward.5} parent=205 // pred_check
          %p949 = pneg %p205
        $region212: #{double_conv_forward.5} parent=205 // pred_check_branch
          %951 = sbr.rel (%p949) target = $region214
        $region213: #{double_conv_forward.5} parent=205 // pred_region
          %s952 = sand.u32 %s190, 1
          %s953 = sand.u32 %s190, 1
          %s954 = smul.addr %s953, 128
          %s955 = scalar_lea.vmem [#allocation5], %s954
        $region214: #{double_conv_forward.5} parent=205 // pred_fallthru
          _
      $region206: #{double_conv_forward.5} parent=5 // pred_fallthru
        _
    $region6: #{double_conv_forward.5} parent=1 // loop_footer
      %s18 = sadd.s32 1, %s14
    $region7: #{double_conv_forward.5} parent=1 // loop_footer_branch
      %13 = sbr.rel target = $region3
    $region8: #{double_conv_forward.5} parent=1 // loop_exit
      _

// kernel: double_conv_forward.3
$region0: #{double_conv_forward.3}
  #allocation0 [shape = 'u32[]', space=smem, size = 0x4, offset = 0x4, fixed_abs, tag = 'smem constant byte address 0x4 - core index']
  #allocation1 [shape = 'u32[144,128]{1,0:T(1,128)}', space=vmem, size = 0x12000, scoped, tag = 'internal scratch']
  %s0 = inlined_call_operand.vmem [shape: bf16[8,6,18,3], index: 0, kind: input, shape index: {}]
  %s1 = inlined_call_operand.vmem [shape: bf16[8,6,18,1], index: 1, kind: input, shape index: {}]
  %s2 = inlined_call_operand.vmem [shape: bf16[9,3,8], index: 2, kind: input, shape index: {}]
  %s3 = inlined_call_operand.vmem [shape: bf16[9,1,8], index: 3, kind: input, shape index: {}]
  %s4 = inlined_call_operand.vmem [shape: f32[1,8], index: 4, kind: input, shape index: {}]
  %s5 = inlined_call_operand.vmem [shape: f32[1,8], index: 5, kind: input, shape index: {}]
  %s6 = inlined_call_operand.vmem [shape: bf16[2,16,16,8], index: 6, kind: output, shape index: {0}]
  %s7 = inlined_call_operand.vmem [shape: bf16[2,16,16,8], index: 7, kind: output, shape index: {1}]
  %s8 = inlined_call_operand.vmem [shape: f32[4,4,8], index: 8, kind: output, shape index: {2}]
  %9 = xla_tuple %s6, %s7, %s8
  %s10 = sld [smem:[#allocation0]]
  $region147: #{double_conv_forward.3} parent=0
    _
  %s12 = ssub.s32 1, %s10
  %s13 = scalar_select 0, %s12, %s10
  $region1: #{double_conv_forward.3} parent=0
    #allocation2 [shape = 'u8[65536]{0}', space=vmem, size = 0x10000, scoped, tag = 'output window, operand 0']
    #allocation3 [shape = 'u8[65536]{0}', space=vmem, size = 0x10000, scoped, tag = 'output window, operand 1']
    loop: start=0, step=1, limit=6
    $region2: #{double_conv_forward.3} parent=1 // loop_pre_header
      _
    $region3: #{double_conv_forward.3} parent=1 // loop_header
      %s15 = sphi 0, %s19
      %p16 = scmp.ge.s32.totalorder %s15, 6
      %s25 = sphi 0, %s27
      %s28 = sphi 0, %s25
      %s29 = sphi 0, %s28
      %s45 = sphi 0, %s29
      %s51 = sphi 0, %s53
      %s54 = sphi 0, %s51
      %s55 = sphi 0, %s54
      %s71 = sphi 0, %s55
      %s75 = sphi 0, %s75
      %s77 = sphi 0, %s75
      %s78 = sphi 0, %s77
      %s92 = sphi 0, %s78
      %s96 = sphi 0, %s96
      %s98 = sphi 0, %s96
      %s99 = sphi 0, %s98
      %s113 = sphi 0, %s99
      %s117 = sphi 0, %s117
      %s119 = sphi 0, %s117
      %s120 = sphi 0, %s119
      %s134 = sphi 0, %s120
      %s138 = sphi 0, %s138
      %s140 = sphi 0, %s138
      %s141 = sphi 0, %s140
      %s155 = sphi 0, %s141
      %s161 = sphi 0, %s163
      %s164 = sphi 0, %s161
      %s165 = sphi 0, %s164
      %s181 = sphi 0, %s165
      %s187 = sphi 0, %s189
      %s190 = sphi 0, %s187
      %s191 = sphi 0, %s190
      %s207 = sphi 0, %s191
      %s213 = sphi 0, %s215
      %s216 = sphi 0, %s213
      %s217 = sphi 0, %s216
      %s233 = sphi 0, %s217
    $region4: #{double_conv_forward.3} parent=1 // loop_header_branch
      %18 = sbr.rel (%p16) target = $region8
    $region5: #{double_conv_forward.3} parent=1 // loop_body
      %s20 = ssub.s32 %s15, 1
      %s21 = ssub.s32 %s15, 2
      %s22 = sadd.s32 %s15, 1
      %s23 = ssub.s32 %s15, %s22
      %p24 = scmp.eq.s32.totalorder %s23, 0
      %s26 = sadd.s32 %s25, 1
      %s27 = scalar_select %p24, %s25, %s26
      %p30 = pneg %p24
      %p31 = scmp.eq.s32.totalorder %s15, 3
      %p32 = por %p30, %p31
      %p33 = scmp.ne.s32.totalorder %s25, %s28
      %p34 = scmp.eq.s32.totalorder %s15, 0
      %p35 = por %p33, %p34
      %p36 = scmp.ne.s32.totalorder %s25, %s28
      %p37 = scmp.eq.s32.totalorder %s20, 3
      %p38 = por %p36, %p37
      %p39 = scmp.ne.s32.totalorder %s28, %s29
      %p40 = scmp.eq.s32.totalorder %s20, 0
      %p41 = por %p39, %p40
      %p42 = scmp.ne.s32.totalorder %s28, %s29
      %p43 = scmp.eq.s32.totalorder %s21, 3
      %p44 = por %p42, %p43
      %p46 = scmp.ne.s32.totalorder %s29, %s45
      %p47 = scmp.eq.s32.totalorder %s21, 0
      %p48 = por %p46, %p47
      %s49 = ssub.s32 %s15, %s22
      %p50 = scmp.eq.s32.totalorder %s49, 0
      %s52 = sadd.s32 %s51, 1
      %s53 = scalar_select %p50, %s51, %s52
      %p56 = pneg %p50
      %p57 = scmp.eq.s32.totalorder %s15, 3
      %p58 = por %p56, %p57
      %p59 = scmp.ne.s32.totalorder %s51, %s54
      %p60 = scmp.eq.s32.totalorder %s15, 0
      %p61 = por %p59, %p60
      %p62 = scmp.ne.s32.totalorder %s51, %s54
      %p63 = scmp.eq.s32.totalorder %s20, 3
      %p64 = por %p62, %p63
      %p65 = scmp.ne.s32.totalorder %s54, %s55
      %p66 = scmp.eq.s32.totalorder %s20, 0
      %p67 = por %p65, %p66
      %p68 = scmp.ne.s32.totalorder %s54, %s55
      %p69 = scmp.eq.s32.totalorder %s21, 3
      %p70 = por %p68, %p69
      %p72 = scmp.ne.s32.totalorder %s55, %s71
      %p73 = scmp.eq.s32.totalorder %s21, 0
      %p74 = por %p72, %p73
      %s76 = sadd.s32 %s75, 1
      %p79 = scmp.eq.s32.totalorder %s15, 3
      %p80 = scmp.ne.s32.totalorder %s75, %s77
      %p81 = scmp.eq.s32.totalorder %s15, 0
      %p82 = por %p80, %p81
      %p83 = scmp.ne.s32.totalorder %s75, %s77
      %p84 = scmp.eq.s32.totalorder %s20, 3
      %p85 = por %p83, %p84
      %p86 = scmp.ne.s32.totalorder %s77, %s78
      %p87 = scmp.eq.s32.totalorder %s20, 0
      %p88 = por %p86, %p87
      %p89 = scmp.ne.s32.totalorder %s77, %s78
      %p90 = scmp.eq.s32.totalorder %s21, 3
      %p91 = por %p89, %p90
      %p93 = scmp.ne.s32.totalorder %s78, %s92
      %p94 = scmp.eq.s32.totalorder %s21, 0
      %p95 = por %p93, %p94
      %s97 = sadd.s32 %s96, 1
      %p100 = scmp.eq.s32.totalorder %s15, 3
      %p101 = scmp.ne.s32.totalorder %s96, %s98
      %p102 = scmp.eq.s32.totalorder %s15, 0
      %p103 = por %p101, %p102
      %p104 = scmp.ne.s32.totalorder %s96, %s98
      %p105 = scmp.eq.s32.totalorder %s20, 3
      %p106 = por %p104, %p105
      %p107 = scmp.ne.s32.totalorder %s98, %s99
      %p108 = scmp.eq.s32.totalorder %s20, 0
      %p109 = por %p107, %p108
      %p110 = scmp.ne.s32.totalorder %s98, %s99
      %p111 = scmp.eq.s32.totalorder %s21, 3
      %p112 = por %p110, %p111
      %p114 = scmp.ne.s32.totalorder %s99, %s113
      %p115 = scmp.eq.s32.totalorder %s21, 0
      %p116 = por %p114, %p115
      %s118 = sadd.s32 %s117, 1
      %p121 = scmp.eq.s32.totalorder %s15, 3
      %p122 = scmp.ne.s32.totalorder %s117, %s119
      %p123 = scmp.eq.s32.totalorder %s15, 0
      %p124 = por %p122, %p123
      %p125 = scmp.ne.s32.totalorder %s117, %s119
      %p126 = scmp.eq.s32.totalorder %s20, 3
      %p127 = por %p125, %p126
      %p128 = scmp.ne.s32.totalorder %s119, %s120
      %p129 = scmp.eq.s32.totalorder %s20, 0
      %p130 = por %p128, %p129
      %p131 = scmp.ne.s32.totalorder %s119, %s120
      %p132 = scmp.eq.s32.totalorder %s21, 3
      %p133 = por %p131, %p132
      %p135 = scmp.ne.s32.totalorder %s120, %s134
      %p136 = scmp.eq.s32.totalorder %s21, 0
      %p137 = por %p135, %p136
      %s139 = sadd.s32 %s138, 1
      %p142 = scmp.eq.s32.totalorder %s15, 3
      %p143 = scmp.ne.s32.totalorder %s138, %s140
      %p144 = scmp.eq.s32.totalorder %s15, 0
      %p145 = por %p143, %p144
      %p146 = scmp.ne.s32.totalorder %s138, %s140
      %p147 = scmp.eq.s32.totalorder %s20, 3
      %p148 = por %p146, %p147
      %p149 = scmp.ne.s32.totalorder %s140, %s141
      %p150 = scmp.eq.s32.totalorder %s20, 0
      %p151 = por %p149, %p150
      %p152 = scmp.ne.s32.totalorder %s140, %s141
      %p153 = scmp.eq.s32.totalorder %s21, 3
      %p154 = por %p152, %p153
      %p156 = scmp.ne.s32.totalorder %s141, %s155
      %p157 = scmp.eq.s32.totalorder %s21, 0
      %p158 = por %p156, %p157
      %s159 = ssub.s32 %s15, %s22
      %p160 = scmp.eq.s32.totalorder %s159, 0
      %s162 = sadd.s32 %s161, 1
      %s163 = scalar_select %p160, %s161, %s162
      %p166 = pneg %p160
      %p167 = scmp.eq.s32.totalorder %s15, 3
      %p168 = por %p166, %p167
      %p169 = scmp.ne.s32.totalorder %s161, %s164
      %p170 = scmp.eq.s32.totalorder %s15, 0
      %p171 = por %p169, %p170
      %p172 = scmp.ne.s32.totalorder %s161, %s164
      %p173 = scmp.eq.s32.totalorder %s20, 3
      %p174 = por %p172, %p173
      %p175 = scmp.ne.s32.totalorder %s164, %s165
      %p176 = scmp.eq.s32.totalorder %s20, 0
      %p177 = por %p175, %p176
      %p178 = scmp.ne.s32.totalorder %s164, %s165
      %p179 = scmp.eq.s32.totalorder %s21, 3
      %p180 = por %p178, %p179
      %p182 = scmp.ne.s32.totalorder %s165, %s181
      %p183 = scmp.eq.s32.totalorder %s21, 0
      %p184 = por %p182, %p183
      %s185 = ssub.s32 %s15, %s22
      %p186 = scmp.eq.s32.totalorder %s185, 0
      %s188 = sadd.s32 %s187, 1
      %s189 = scalar_select %p186, %s187, %s188
      %p192 = pneg %p186
      %p193 = scmp.eq.s32.totalorder %s15, 3
      %p194 = por %p192, %p193
      %p195 = scmp.ne.s32.totalorder %s187, %s190
      %p196 = scmp.eq.s32.totalorder %s15, 0
      %p197 = por %p195, %p196
      %p198 = scmp.ne.s32.totalorder %s187, %s190
      %p199 = scmp.eq.s32.totalorder %s20, 3
      %p200 = por %p198, %p199
      %p201 = scmp.ne.s32.totalorder %s190, %s191
      %p202 = scmp.eq.s32.totalorder %s20, 0
      %p203 = por %p201, %p202
      %p204 = scmp.ne.s32.totalorder %s190, %s191
      %p205 = scmp.eq.s32.totalorder %s21, 3
      %p206 = por %p204, %p205
      %p208 = scmp.ne.s32.totalorder %s191, %s207
      %p209 = scmp.eq.s32.totalorder %s21, 0
      %p210 = por %p208, %p209
      %s211 = ssub.s32 %s15, %s22
      %p212 = scmp.eq.s32.totalorder %s211, 0
      %s214 = sadd.s32 %s213, 1
      %s215 = scalar_select %p212, %s213, %s214
      %p218 = pneg %p212
      %p219 = scmp.eq.s32.totalorder %s15, 3
      %p220 = por %p218, %p219
      %p221 = scmp.ne.s32.totalorder %s213, %s216
      %p222 = scmp.eq.s32.totalorder %s15, 0
      %p223 = por %p221, %p222
      %p224 = scmp.ne.s32.totalorder %s213, %s216
      %p225 = scmp.eq.s32.totalorder %s20, 3
      %p226 = por %p224, %p225
      %p227 = scmp.ne.s32.totalorder %s216, %s217
      %p228 = scmp.eq.s32.totalorder %s20, 0
      %p229 = por %p227, %p228
      %p230 = scmp.ne.s32.totalorder %s216, %s217
      %p231 = scmp.eq.s32.totalorder %s21, 3
      %p232 = por %p230, %p231
      %p234 = scmp.ne.s32.totalorder %s217, %s233
      %p235 = scmp.eq.s32.totalorder %s21, 0
      %p236 = por %p234, %p235
      %p237 = scmp.le.s32.totalorder 1, %s15
      %p238 = scmp.lt.s32.totalorder %s15, 5
      %p239 = pnand %p237, %p238
      %p240 = pneg %p239
      // Predicated region
      $region9: #{double_conv_forward.3} parent=5 // pred_check
        _
      $region10: #{double_conv_forward.3} parent=5 // pred_check_branch
        %242 = sbr.rel (%p239) target = $region12
      $region11: #{double_conv_forward.3} parent=5 // pred_region
        %s243 = ssub.s32 %s15, 1
        // Predicated region
        $region13: #{double_conv_forward.3} parent=11 // pred_check
          %p244 = pneg %p88
        $region14: #{double_conv_forward.3} parent=11 // pred_check_branch
          %246 = sbr.rel (%p244) target = $region16
        $region15: #{double_conv_forward.3} parent=11 // pred_region
          _
        $region16: #{double_conv_forward.3} parent=11 // pred_fallthru
          _
        // Predicated region
        $region17: #{double_conv_forward.3} parent=11 // pred_check
          %p247 = pneg %p109
        $region18: #{double_conv_forward.3} parent=11 // pred_check_branch
          %249 = sbr.rel (%p247) target = $region20
        $region19: #{double_conv_forward.3} parent=11 // pred_region
          _
        $region20: #{double_conv_forward.3} parent=11 // pred_fallthru
          _
        // Predicated region
        $region21: #{double_conv_forward.3} parent=11 // pred_check
          %p250 = pneg %p130
        $region22: #{double_conv_forward.3} parent=11 // pred_check_branch
          %252 = sbr.rel (%p250) target = $region24
        $region23: #{double_conv_forward.3} parent=11 // pred_region
          _
        $region24: #{double_conv_forward.3} parent=11 // pred_fallthru
          _
        // Predicated region
        $region25: #{double_conv_forward.3} parent=11 // pred_check
          %p253 = pneg %p151
        $region26: #{double_conv_forward.3} parent=11 // pred_check_branch
          %255 = sbr.rel (%p253) target = $region28
        $region27: #{double_conv_forward.3} parent=11 // pred_region
          _
        $region28: #{double_conv_forward.3} parent=11 // pred_fallthru
          _
      $region12: #{double_conv_forward.3} parent=5 // pred_fallthru
        _
      %p256 = scmp.lt.s32.totalorder %s15, 4
      // Predicated region
      $region29: #{double_conv_forward.3} parent=5 // pred_check
        %p257 = pneg %p256
      $region30: #{double_conv_forward.3} parent=5 // pred_check_branch
        %259 = sbr.rel (%p257) target = $region32
      $region31: #{double_conv_forward.3} parent=5 // pred_region
        // Predicated region
        $region33: #{double_conv_forward.3} parent=31 // pred_check
          %p260 = pneg %p35
        $region34: #{double_conv_forward.3} parent=31 // pred_check_branch
          %262 = sbr.rel (%p260) target = $region36
        $region35: #{double_conv_forward.3} parent=31 // pred_region
          %s263 = smul.u32 2, %s15
          %p264 = scmp.lt.s32.totalorder %s263, 7
          %s265 = scalar_select %p264, %s263, 7
          %s266 = smul.addr %s265, 18
          %s267 = smul.addr %s266, 4
          %s268 = scalar_lea.vmem %s0, %s267
          %s269 = smul.u32 2, %s15
        $region36: #{double_conv_forward.3} parent=31 // pred_fallthru
          _
        // Predicated region
        $region37: #{double_conv_forward.3} parent=31 // pred_check
          %p270 = pneg %p61
        $region38: #{double_conv_forward.3} parent=31 // pred_check_branch
          %272 = sbr.rel (%p270) target = $region40
        $region39: #{double_conv_forward.3} parent=31 // pred_region
          %s273 = smul.u32 2, %s15
          %p274 = scmp.lt.s32.totalorder %s273, 7
          %s275 = scalar_select %p274, %s273, 7
          %s276 = smul.addr %s275, 18
          %s277 = smul.addr %s276, 4
          %s278 = scalar_lea.vmem %s1, %s277
          %s279 = smul.u32 2, %s15
        $region40: #{double_conv_forward.3} parent=31 // pred_fallthru
          _
      $region32: #{double_conv_forward.3} parent=5 // pred_fallthru
        _
      %p280 = scmp.le.s32.totalorder 1, %s15
      %p281 = scmp.lt.s32.totalorder %s15, 5
      %p282 = pnand %p280, %p281
      %p283 = pneg %p282
      // Predicated region
      $region41: #{double_conv_forward.3} parent=5 // pred_check
        _
      $region42: #{double_conv_forward.3} parent=5 // pred_check_branch
        %285 = sbr.rel (%p282) target = $region44
      $region43: #{double_conv_forward.3} parent=5 // pred_region
        %s286 = ssub.s32 %s15, 1
        %s287 = smul.u32 2, %s20
        %p288 = scmp.lt.s32.totalorder %s287, 7
        %s289 = scalar_select %p288, %s287, 7
        %s290 = smul.addr %s289, 18
        %s291 = smul.addr %s290, 4
        %s292 = scalar_lea.vmem %s0, %s291
        %p293 = pneg %p41
        %p294 = pneg %p38
        %s295 = smul.u32 2, %s20
        %p296 = scmp.lt.s32.totalorder %s295, 7
        %s297 = scalar_select %p296, %s295, 7
        %s298 = smul.addr %s297, 18
        %s299 = smul.addr %s298, 4
        %s300 = scalar_lea.vmem %s1, %s299
        %p301 = pneg %p67
        %p302 = pneg %p64
        %p303 = pneg %p88
        %p304 = pneg %p85
        %p305 = pneg %p109
        %p306 = pneg %p106
        %p307 = pneg %p130
        %p308 = pneg %p127
        %p309 = pneg %p151
        %p310 = pneg %p148
        %p311 = pneg %p177
        %p312 = pneg %p174
        %s313 = sand.u32 %s164, 1
        %s314 = sand.u32 %s164, 1
        %s315 = smul.addr %s314, 64
        %s316 = scalar_lea.vmem [#allocation2], %s315
        %p317 = pneg %p203
        %p318 = pneg %p200
        %s319 = sand.u32 %s190, 1
        %s320 = sand.u32 %s190, 1
        %s321 = smul.addr %s320, 64
        %s322 = scalar_lea.vmem [#allocation3], %s321
        %p323 = pneg %p229
        %p324 = pneg %p226
        %p325 = scmp.lt.s32.totalorder %s20, 3
        %s326 = scalar_select %p325, %s20, 3
        %s327 = smul.addr %s326, 4
        %s328 = scalar_lea.vmem %s8, %s327
        %s329 = smul.u32 2, %s20
        %p330 = scmp.lt.s32.totalorder %s329, 7
        %s331 = scalar_select %p330, %s329, 7
        %s332 = smul.addr %s331, 18
        %s333 = smul.addr %s332, 4
        %s334 = scalar_lea.vmem %s0, %s333
        %s335 = smul.u32 2, %s20
        %s336 = smul.u32 2, %s20
        %p337 = scmp.lt.s32.totalorder %s336, 7
        %s338 = scalar_select %p337, %s336, 7
        %s339 = smul.addr %s338, 18
        %s340 = smul.addr %s339, 4
        %s341 = scalar_lea.vmem %s1, %s340
        %s342 = smul.u32 2, %s20
        %s343 = smul.u32 4, %s20
        %s344 = smul.u32 4, %s20
        %p345 = scmp.lt.s32.totalorder %s20, 3
        %s346 = scalar_select %p345, %s20, 3
        %s347 = smul.addr %s346, 4
        %s348 = scalar_lea.vmem %s8, %s347
        %v350 = vld [vmem:[%s341] sm:$0xf]
        %v351 = vld [vmem:[%s341 + $0x4] sm:$0xf]
        %v352 = vld [vmem:[%s341 + $0x8] sm:$0x1]
        %v353 = vld [vmem:[%s341 + $0xc] sm:$0xf]
        %v354 = vld [vmem:[%s341 + $0x10] sm:$0xf]
        %v355 = vld [vmem:[%s341 + $0x14] sm:$0x1]
        %v356 = vld [vmem:[%s341 + $0x18] sm:$0xf]
        %v357 = vld [vmem:[%s341 + $0x1c] sm:$0xf]
        %v358 = vld [vmem:[%s341 + $0x20] sm:$0x1]
        %v359 = vld [vmem:[%s341 + $0x24] sm:$0xf]
        %v360 = vld [vmem:[%s341 + $0x28] sm:$0xf]
        %v361 = vld [vmem:[%s341 + $0x2c] sm:$0x1]
        %v362 = vld [vmem:[%s341 + $0x30] sm:$0xf]
        %v363 = vld [vmem:[%s341 + $0x34] sm:$0xf]
        %v364 = vld [vmem:[%s341 + $0x38] sm:$0x1]
        %v365 = vld [vmem:[%s341 + $0x3c] sm:$0xf]
        %v366 = vld [vmem:[%s341 + $0x40] sm:$0xf]
        %v367 = vld [vmem:[%s341 + $0x44] sm:$0x1]
        %v368 = vld [vmem:[%s341 + $0x48] sm:$0xf]
        %v369 = vld [vmem:[%s341 + $0x4c] sm:$0xf]
        %v370 = vld [vmem:[%s341 + $0x50] sm:$0x1]
        %v371 = vld [vmem:[%s341 + $0x54] sm:$0xf]
        %v372 = vld [vmem:[%s341 + $0x58] sm:$0xf]
        %v373 = vld [vmem:[%s341 + $0x5c] sm:$0x1]
        %v374 = vld [vmem:[%s341 + $0x60] sm:$0xf]
        %v375 = vld [vmem:[%s341 + $0x64] sm:$0xf]
        %v376 = vld [vmem:[%s341 + $0x68] sm:$0x1]
        %v377 = vld [vmem:[%s341 + $0x6c] sm:$0xf]
        %v378 = vld [vmem:[%s341 + $0x70] sm:$0xf]
        %v379 = vld [vmem:[%s341 + $0x74] sm:$0x1]
        %v380 = vld [vmem:[%s341 + $0x78] sm:$0xf]
        %v381 = vld [vmem:[%s341 + $0x7c] sm:$0xf]
        %v382 = vld [vmem:[%s341 + $0x80] sm:$0x1]
        %v383 = vld [vmem:[%s341 + $0x84] sm:$0xf]
        %v384 = vld [vmem:[%s341 + $0x88] sm:$0xf]
        %v385 = vld [vmem:[%s341 + $0x8c] sm:$0x1]
        %v386 = vld [vmem:[%s3] sm:$0x1]
        %vm387 = vsmask.f32 3328
        %vm388 = vsmask.f32 7440
        %vm389 = vmor %vm387, %vm388
        %v391 = vshrl.u32 %v350, 16
        %v393 = vrot.slane %v391, 4
        %v394 = vshll.u32 %v350, 16
        %v396 = vrot.slane %v394, 5
        %v397 = vor.u32 %v393, %v396
        %v398 = vrot.slane %v397, 4
        %v400 = vshll.u32 %v351, 16
        %v402 = vrot.slane %v400, 5
        %v403 = vsel %vm389, %v398, %v402
        %v404 = vshrl.u32 %v351, 16
        %v406 = vrot.slane %v404, 4
        %v407 = vor.u32 %v406, %v402
        %v408 = vrot.slane %v407, 4
        %v410 = vshll.u32 %v352, 16
        %v412 = vrot.slane %v410, 5
        %v413 = vsel %vm389, %v408, %v412
        %v415 = vshrl.u32 %v353, 16
        %v417 = vrot.slane %v415, 4
        %v418 = vshll.u32 %v353, 16
        %v420 = vrot.slane %v418, 5
        %v421 = vor.u32 %v417, %v420
        %v422 = vrot.slane %v421, 4
        %v424 = vshll.u32 %v354, 16
        %v426 = vrot.slane %v424, 5
        %v427 = vsel %vm389, %v422, %v426
        %v428 = vshrl.u32 %v354, 16
        %v430 = vrot.slane %v428, 4
        %v431 = vor.u32 %v430, %v426
        %v432 = vrot.slane %v431, 4
        %v434 = vshll.u32 %v355, 16
        %v436 = vrot.slane %v434, 5
        %v437 = vsel %vm389, %v432, %v436
        %v439 = vshrl.u32 %v356, 16
        %v441 = vrot.slane %v439, 4
        %v442 = vshll.u32 %v356, 16
        %v444 = vrot.slane %v442, 5
        %v445 = vor.u32 %v441, %v444
        %v446 = vrot.slane %v445, 4
        %v448 = vshll.u32 %v357, 16
        %v450 = vrot.slane %v448, 5
        %v451 = vsel %vm389, %v446, %v450
        %v452 = vshrl.u32 %v357, 16
        %v454 = vrot.slane %v452, 4
        %v455 = vor.u32 %v454, %v450
        %v456 = vrot.slane %v455, 4
        %v458 = vshll.u32 %v358, 16
        %v460 = vrot.slane %v458, 5
        %v461 = vsel %vm389, %v456, %v460
        %v463 = vshrl.u32 %v359, 16
        %v465 = vrot.slane %v463, 4
        %v466 = vshll.u32 %v359, 16
        %v468 = vrot.slane %v466, 5
        %v469 = vor.u32 %v465, %v468
        %v470 = vrot.slane %v469, 4
        %v472 = vshll.u32 %v360, 16
        %v474 = vrot.slane %v472, 5
        %v475 = vsel %vm389, %v470, %v474
        %v476 = vshrl.u32 %v360, 16
        %v478 = vrot.slane %v476, 4
        %v479 = vor.u32 %v478, %v474
        %v480 = vrot.slane %v479, 4
        %v482 = vshll.u32 %v361, 16
        %v484 = vrot.slane %v482, 5
        %v485 = vsel %vm389, %v480, %v484
        %v487 = vshrl.u32 %v368, 16
        %v489 = vrot.slane %v487, 4
        %v490 = vshll.u32 %v368, 16
        %v492 = vrot.slane %v490, 5
        %v493 = vor.u32 %v489, %v492
        %v494 = vrot.slane %v493, 4
        %v496 = vshll.u32 %v369, 16
        %v498 = vrot.slane %v496, 5
        %v499 = vsel %vm389, %v494, %v498
        %v500 = vshrl.u32 %v369, 16
        %v502 = vrot.slane %v500, 4
        %v503 = vor.u32 %v502, %v498
        %v504 = vrot.slane %v503, 4
        %v506 = vshll.u32 %v370, 16
        %v508 = vrot.slane %v506, 5
        %v509 = vsel %vm389, %v504, %v508
        %v511 = vshrl.u32 %v371, 16
        %v513 = vrot.slane %v511, 4
        %v514 = vshll.u32 %v371, 16
        %v516 = vrot.slane %v514, 5
        %v517 = vor.u32 %v513, %v516
        %v518 = vrot.slane %v517, 4
        %v520 = vshll.u32 %v372, 16
        %v522 = vrot.slane %v520, 5
        %v523 = vsel %vm389, %v518, %v522
        %v524 = vshrl.u32 %v372, 16
        %v526 = vrot.slane %v524, 4
        %v527 = vor.u32 %v526, %v522
        %v528 = vrot.slane %v527, 4
        %v530 = vshll.u32 %v373, 16
        %v532 = vrot.slane %v530, 5
        %v533 = vsel %vm389, %v528, %v532
        %v535 = vshrl.u32 %v374, 16
        %v537 = vrot.slane %v535, 4
        %v538 = vshll.u32 %v374, 16
        %v540 = vrot.slane %v538, 5
        %v541 = vor.u32 %v537, %v540
        %v542 = vrot.slane %v541, 4
        %v544 = vshll.u32 %v375, 16
        %v546 = vrot.slane %v544, 5
        %v547 = vsel %vm389, %v542, %v546
        %v548 = vshrl.u32 %v375, 16
        %v550 = vrot.slane %v548, 4
        %v551 = vor.u32 %v550, %v546
        %v552 = vrot.slane %v551, 4
        %v554 = vshll.u32 %v376, 16
        %v556 = vrot.slane %v554, 5
        %v557 = vsel %vm389, %v552, %v556
        %v559 = vshrl.u32 %v377, 16
        %v561 = vrot.slane %v559, 4
        %v562 = vshll.u32 %v377, 16
        %v564 = vrot.slane %v562, 5
        %v565 = vor.u32 %v561, %v564
        %v566 = vrot.slane %v565, 4
        %v568 = vshll.u32 %v378, 16
        %v570 = vrot.slane %v568, 5
        %v571 = vsel %vm389, %v566, %v570
        %v572 = vshrl.u32 %v378, 16
        %v574 = vrot.slane %v572, 4
        %v575 = vor.u32 %v574, %v570
        %v576 = vrot.slane %v575, 4
        %v578 = vshll.u32 %v379, 16
        %v580 = vrot.slane %v578, 5
        %v581 = vsel %vm389, %v576, %v580
        %s582 = scalar_lea.vmem %s3, 1
        %v583 = vld [vmem:[%s582] sm:$0x1]
        %v584 = vunpack.c.l.b16 %v403
        %v585 = vunpack.c.l.b16 %v413
        %v586 = vunpack.c.l.b16 %v427
        %v587 = vunpack.c.l.b16 %v437
        %v588 = vunpack.c.l.b16 %v451
        %v589 = vunpack.c.l.b16 %v461
        %v590 = vunpack.c.l.b16 %v475
        %v591 = vunpack.c.l.b16 %v485
        %v592 = vunpack.c.l.b16 %v499
        %v593 = vunpack.c.l.b16 %v509
        %v594 = vunpack.c.l.b16 %v523
        %v595 = vunpack.c.l.b16 %v533
        %v596 = vunpack.c.l.b16 %v547
        %v597 = vunpack.c.l.b16 %v557
        %v598 = vunpack.c.l.b16 %v571
        %v599 = vunpack.c.l.b16 %v581
        %v600 = vpack.c.b16 %v585, %v584
        %v601 = vpack.c.b16 %v587, %v586
        %v602 = vpack.c.b16 %v589, %v588
        %v603 = vpack.c.b16 %v591, %v590
        %v604 = vpack.c.b16 %v593, %v592
        %v605 = vpack.c.b16 %v595, %v594
        %v606 = vpack.c.b16 %v597, %v596
        %v607 = vpack.c.b16 %v599, %v598
        %vm608 = vcmask 7168
        %v610 = vsel %vm608, %v600, 0
        %v613 = vsel %vm608, %v601, 0
        %v616 = vsel %vm608, %v602, 0
        %v619 = vsel %vm608, %v603, 0
        %v622 = vsel %vm608, %v604, 0
        %v625 = vsel %vm608, %v605, 0
        %v628 = vsel %vm608, %v606, 0
        %v631 = vsel %vm608, %v607, 0
        %vm633 = vcmask 1040384
        %v634 = vsel 0, 4294967295, 65535
        %v635 = vsel %vm633, %v634, 0
        %v637 = vand.u32 %v583, %v635
        %639 = vmatprep.subr.bf16.mxu0 0
        %640 = vmatpush1.bf16.msra.mxu0 %v637
        %641 = vmatprep.subr.bf16.mxu0 0
        %642 = vmatpush1.bf16.msra.mxu0 0
        %643 = vmatprep.subr.bf16.mxu0 0
        %644 = vmatpush1.bf16.msra.mxu0 0
        %645 = vmatprep.subr.bf16.mxu0 0
        %646 = vmatpush1.bf16.msra.mxu0 0
        %647 = vmatprep.subr.bf16.mxu0 0
        %648 = vmatpush1.bf16.msra.mxu0 0
        %649 = vmatprep.subr.bf16.mxu0 0
        %650 = vmatpush1.bf16.msra.mxu0 0
        %651 = vmatprep.subr.bf16.mxu0 0
        %652 = vmatpush1.bf16.msra.mxu0 0
        %653 = vmatprep.subr.bf16.mxu0 0
        %654 = vmatpush1.bf16.msra.mxu0 0
        %655 = vmatprep.subr.bf16.mxu0 0
        %656 = vmatpush1.bf16.msra.mxu0 0
        %657 = vmatprep.subr.bf16.mxu0 0
        %658 = vmatpush1.bf16.msra.mxu0 0
        %659 = vmatprep.subr.bf16.mxu0 0
        %660 = vmatpush1.bf16.msra.mxu0 0
        %661 = vmatprep.subr.bf16.mxu0 0
        %662 = vmatpush1.bf16.msra.mxu0 0
        %663 = vmatprep.subr.bf16.mxu0 0
        %664 = vmatpush1.bf16.msra.mxu0 0
        %665 = vmatprep.subr.bf16.mxu0 0
        %666 = vmatpush1.bf16.msra.mxu0 0
        %667 = vmatprep.subr.bf16.mxu0 0
        %668 = vmatpush1.bf16.msra.mxu0 0
        %669 = vmatprep.subr.bf16.mxu0 0
        %670 = vmatpush1.bf16.msra.mxu0 0
        %671 = vmatprep.mubr.bf16.mxu0 0
        %672 = vmatmul.mubr.bf16.gmra.mrb[0].mxu0 %v610
        %v673 = vpop.f32.mrb[0].mxu0
        %v674 = vadd.f32 0.0, %v673
        %v675 = vpop.f32.mrb[0].mxu0
        %v676 = vpop.f32.mrb[0].mxu0
        %v677 = vadd.f32 0.0, %v676
        %v678 = vpop.f32.mrb[0].mxu0
        %679 = vmatprep.mubr.bf16.mxu0 0
        %680 = vmatmul.mubr.bf16.gmra.mrb[0].mxu0 %v613
        %v681 = vpop.f32.mrb[0].mxu0
        %v682 = vadd.f32 0.0, %v681
        %v683 = vpop.f32.mrb[0].mxu0
        %v684 = vpop.f32.mrb[0].mxu0
        %v685 = vadd.f32 0.0, %v684
        %v686 = vpop.f32.mrb[0].mxu0
        %687 = vmatprep.mubr.bf16.mxu0 0
        %688 = vmatmul.mubr.bf16.gmra.mrb[0].mxu0 %v616
        %v689 = vpop.f32.mrb[0].mxu0
        %v690 = vadd.f32 0.0, %v689
        %v691 = vpop.f32.mrb[0].mxu0
        %v692 = vpop.f32.mrb[0].mxu0
        %v693 = vadd.f32 0.0, %v692
        %v694 = vpop.f32.mrb[0].mxu0
        %695 = vmatprep.mubr.bf16.mxu0 0
        %696 = vmatmul.mubr.bf16.gmra.mrb[0].mxu0 %v619
        %v697 = vpop.f32.mrb[0].mxu0
        %v698 = vadd.f32 0.0, %v697
        %v699 = vpop.f32.mrb[0].mxu0
        %v700 = vpop.f32.mrb[0].mxu0
        %v701 = vadd.f32 0.0, %v700
        %v702 = vpop.f32.mrb[0].mxu0
        %703 = vmatprep.mubr.bf16.mxu0 0
        %704 = vmatmul.mubr.bf16.gmra.mrb[0].mxu0 %v622
        %v705 = vpop.f32.mrb[0].mxu0
        %v706 = vadd.f32 0.0, %v705
        %v707 = vpop.f32.mrb[0].mxu0
        %v708 = vpop.f32.mrb[0].mxu0
        %v709 = vadd.f32 0.0, %v708
        %v710 = vpop.f32.mrb[0].mxu0
        %711 = vmatprep.mubr.bf16.mxu0 0
        %712 = vmatmul.mubr.bf16.gmra.mrb[0].mxu0 %v625
        %v713 = vpop.f32.mrb[0].mxu0
        %v714 = vadd.f32 0.0, %v713
        %v715 = vpop.f32.mrb[0].mxu0
        %v716 = vpop.f32.mrb[0].mxu0
        %v717 = vadd.f32 0.0, %v716
        %v718 = vpop.f32.mrb[0].mxu0
        %719 = vmatprep.mubr.bf16.mxu0 0
        %720 = vmatmul.mubr.bf16.gmra.mrb[0].mxu0 %v628
        %v721 = vpop.f32.mrb[0].mxu0
        %v722 = vadd.f32 0.0, %v721
        %v723 = vpop.f32.mrb[0].mxu0
        %v724 = vpop.f32.mrb[0].mxu0
        %v725 = vadd.f32 0.0, %v724
        %v726 = vpop.f32.mrb[0].mxu0
        %727 = vmatprep.mubr.bf16.mxu0 0
        %728 = vmatmul.mubr.bf16.gmra.mrb[0].mxu0 %v631
        %v729 = vpop.f32.mrb[0].mxu0
        %v730 = vadd.f32 0.0, %v729
        %v731 = vpop.f32.mrb[0].mxu0
        %v732 = vpop.f32.mrb[0].mxu0
        %v733 = vadd.f32 0.0, %v732
        %v734 = vpop.f32.mrb[0].mxu0
        %735 = vdwg.mxu0
        %v752 = vunpack.c.l.b16 %v350
        %v753 = vunpack.c.l.b16 %v351
        %v754 = vunpack.c.l.b16 %v353
        %v755 = vunpack.c.l.b16 %v354
        %v756 = vunpack.c.l.b16 %v356
        %v757 = vunpack.c.l.b16 %v357
        %v758 = vunpack.c.l.b16 %v359
        %v759 = vunpack.c.l.b16 %v360
        %v760 = vunpack.c.l.b16 %v368
        %v761 = vunpack.c.l.b16 %v369
        %v762 = vunpack.c.l.b16 %v371
        %v763 = vunpack.c.l.b16 %v372
        %v764 = vunpack.c.l.b16 %v374
        %v765 = vunpack.c.l.b16 %v375
        %v766 = vunpack.c.l.b16 %v377
        %v767 = vunpack.c.l.b16 %v378
        %v768 = vpack.c.b16 %v753, %v752
        %v769 = vpack.c.b16 %v755, %v754
        %v770 = vpack.c.b16 %v757, %v756
        %v771 = vpack.c.b16 %v759, %v758
        %v772 = vpack.c.b16 %v761, %v760
        %v773 = vpack.c.b16 %v763, %v762
        %v774 = vpack.c.b16 %v765, %v764
        %v775 = vpack.c.b16 %v767, %v766
        %v777 = vsel %vm608, %v768, 0
        %v780 = vsel %vm608, %v769, 0
        %v783 = vsel %vm608, %v770, 0
        %v786 = vsel %vm608, %v771, 0
        %v789 = vsel %vm608, %v772, 0
        %v792 = vsel %vm608, %v773, 0
        %v795 = vsel %vm608, %v774, 0
        %v798 = vsel %vm608, %v775, 0
        %v801 = vand.u32 %v386, %v635
        %803 = vmatprep.subr.bf16.mxu0 0
        %804 = vmatpush1.bf16.msra.mxu0 %v801
        %805 = vmatprep.subr.bf16.mxu0 0
        %806 = vmatpush1.bf16.msra.mxu0 0
        %807 = vmatprep.subr.bf16.mxu0 0
        %808 = vmatpush1.bf16.msra.mxu0 0
        %809 = vmatprep.subr.bf16.mxu0 0
        %810 = vmatpush1.bf16.msra.mxu0 0
        %811 = vmatprep.subr.bf16.mxu0 0
        %812 = vmatpush1.bf16.msra.mxu0 0
        %813 = vmatprep.subr.bf16.mxu0 0
        %814 = vmatpush1.bf16.msra.mxu0 0
        %815 = vmatprep.subr.bf16.mxu0 0
        %816 = vmatpush1.bf16.msra.mxu0 0
        %817 = vmatprep.subr.bf16.mxu0 0
        %818 = vmatpush1.bf16.msra.mxu0 0
        %819 = vmatprep.subr.bf16.mxu0 0
        %820 = vmatpush1.bf16.msra.mxu0 0
        %821 = vmatprep.subr.bf16.mxu0 0
        %822 = vmatpush1.bf16.msra.mxu0 0
        %823 = vmatprep.subr.bf16.mxu0 0
        %824 = vmatpush1.bf16.msra.mxu0 0
        %825 = vmatprep.subr.bf16.mxu0 0
        %826 = vmatpush1.bf16.msra.mxu0 0
        %827 = vmatprep.subr.bf16.mxu0 0
        %828 = vmatpush1.bf16.msra.mxu0 0
        %829 = vmatprep.subr.bf16.mxu0 0
        %830 = vmatpush1.bf16.msra.mxu0 0
        %831 = vmatprep.subr.bf16.mxu0 0
        %832 = vmatpush1.bf16.msra.mxu0 0
        %833 = vmatprep.subr.bf16.mxu0 0
        %834 = vmatpush1.bf16.msra.mxu0 0
        %835 = vmatprep.mubr.bf16.mxu0 0
        %836 = vmatmul.mubr.bf16.gmra.mrb[0].mxu0 %v777
        %v837 = vpop.f32.mrb[0].mxu0
        %v838 = vadd.f32 %v674, %v837
        %v839 = vpop.f32.mrb[0].mxu0
        %v840 = vpop.f32.mrb[0].mxu0
        %v841 = vadd.f32 %v677, %v840
        %v842 = vpop.f32.mrb[0].mxu0
        %843 = vmatprep.mubr.bf16.mxu0 0
        %844 = vmatmul.mubr.bf16.gmra.mrb[0].mxu0 %v780
        %v845 = vpop.f32.mrb[0].mxu0
        %v846 = vadd.f32 %v682, %v845
        %v847 = vpop.f32.mrb[0].mxu0
        %v848 = vpop.f32.mrb[0].mxu0
        %v849 = vadd.f32 %v685, %v848
        %v850 = vpop.f32.mrb[0].mxu0
        %851 = vmatprep.mubr.bf16.mxu0 0
        %852 = vmatmul.mubr.bf16.gmra.mrb[0].mxu0 %v783
        %v853 = vpop.f32.mrb[0].mxu0
        %v854 = vadd.f32 %v690, %v853
        %v855 = vpop.f32.mrb[0].mxu0
        %v856 = vpop.f32.mrb[0].mxu0
        %v857 = vadd.f32 %v693, %v856
        %v858 = vpop.f32.mrb[0].mxu0
        %859 = vmatprep.mubr.bf16.mxu0 0
        %860 = vmatmul.mubr.bf16.gmra.mrb[0].mxu0 %v786
        %v861 = vpop.f32.mrb[0].mxu0
        %v862 = vadd.f32 %v698, %v861
        %v863 = vpop.f32.mrb[0].mxu0
        %v864 = vpop.f32.mrb[0].mxu0
        %v865 = vadd.f32 %v701, %v864
        %v866 = vpop.f32.mrb[0].mxu0
        %867 = vmatprep.mubr.bf16.mxu0 0
        %868 = vmatmul.mubr.bf16.gmra.mrb[0].mxu0 %v789
        %v869 = vpop.f32.mrb[0].mxu0
        %v870 = vadd.f32 %v706, %v869
        %v871 = vpop.f32.mrb[0].mxu0
        %v872 = vpop.f32.mrb[0].mxu0
        %v873 = vadd.f32 %v709, %v872
        %v874 = vpop.f32.mrb[0].mxu0
        %875 = vmatprep.mubr.bf16.mxu0 0
        %876 = vmatmul.mubr.bf16.gmra.mrb[0].mxu0 %v792
        %v877 = vpop.f32.mrb[0].mxu0
        %v878 = vadd.f32 %v714, %v877
        %v879 = vpop.f32.mrb[0].mxu0
        %v880 = vpop.f32.mrb[0].mxu0
        %v881 = vadd.f32 %v717, %v880
        %v882 = vpop.f32.mrb[0].mxu0
        %883 = vmatprep.mubr.bf16.mxu0 0
        %884 = vmatmul.mubr.bf16.gmra.mrb[0].mxu0 %v795
        %v885 = vpop.f32.mrb[0].mxu0
        %v886 = vadd.f32 %v722, %v885
        %v887 = vpop.f32.mrb[0].mxu0
        %v888 = vpop.f32.mrb[0].mxu0
        %v889 = vadd.f32 %v725, %v888
        %v890 = vpop.f32.mrb[0].mxu0
        %891 = vmatprep.mubr.bf16.mxu0 0
        %892 = vmatmul.mubr.bf16.gmra.mrb[0].mxu0 %v798
        %v893 = vpop.f32.mrb[0].mxu0
        %v894 = vadd.f32 %v730, %v893
        %v895 = vpop.f32.mrb[0].mxu0
        %v896 = vpop.f32.mrb[0].mxu0
        %v897 = vadd.f32 %v733, %v896
        %v898 = vpop.f32.mrb[0].mxu0
        %899 = vdwg.mxu0
        %vm908 = vcmask 1042432
        %vm909 = vcmask 1046532
        %vm910 = vmor %vm908, %vm909
        %v911 = vrot.slane %v350, 5
        %v912 = vrot.slane %v911, 4
        %v913 = vrot.slane %v351, 5
        %v914 = vsel %vm910, %v912, %v913
        %v915 = vrot.slane %v913, 4
        %v916 = vrot.slane %v352, 5
        %v917 = vsel %vm910, %v915, %v916
        %v918 = vrot.slane %v353, 5
        %v919 = vrot.slane %v918, 4
        %v920 = vrot.slane %v354, 5
        %v921 = vsel %vm910, %v919, %v920
        %v922 = vrot.slane %v920, 4
        %v923 = vrot.slane %v355, 5
        %v924 = vsel %vm910, %v922, %v923
        %v925 = vrot.slane %v356, 5
        %v926 = vrot.slane %v925, 4
        %v927 = vrot.slane %v357, 5
        %v928 = vsel %vm910, %v926, %v927
        %v929 = vrot.slane %v927, 4
        %v930 = vrot.slane %v358, 5
        %v931 = vsel %vm910, %v929, %v930
        %v932 = vrot.slane %v359, 5
        %v933 = vrot.slane %v932, 4
        %v934 = vrot.slane %v360, 5
        %v935 = vsel %vm910, %v933, %v934
        %v936 = vrot.slane %v934, 4
        %v937 = vrot.slane %v361, 5
        %v938 = vsel %vm910, %v936, %v937
        %v939 = vrot.slane %v368, 5
        %v940 = vrot.slane %v939, 4
        %v941 = vrot.slane %v369, 5
        %v942 = vsel %vm910, %v940, %v941
        %v943 = vrot.slane %v941, 4
        %v944 = vrot.slane %v370, 5
        %v945 = vsel %vm910, %v943, %v944
        %v946 = vrot.slane %v371, 5
        %v947 = vrot.slane %v946, 4
        %v948 = vrot.slane %v372, 5
        %v949 = vsel %vm910, %v947, %v948
        %v950 = vrot.slane %v948, 4
        %v951 = vrot.slane %v373, 5
        %v952 = vsel %vm910, %v950, %v951
        %v953 = vrot.slane %v374, 5
        %v954 = vrot.slane %v953, 4
        %v955 = vrot.slane %v375, 5
        %v956 = vsel %vm910, %v954, %v955
        %v957 = vrot.slane %v955, 4
        %v958 = vrot.slane %v376, 5
        %v959 = vsel %vm910, %v957, %v958
        %v960 = vrot.slane %v377, 5
        %v961 = vrot.slane %v960, 4
        %v962 = vrot.slane %v378, 5
        %v963 = vsel %vm910, %v961, %v962
        %v964 = vrot.slane %v962, 4
        %v965 = vrot.slane %v379, 5
        %v966 = vsel %vm910, %v964, %v965
        %s967 = scalar_lea.vmem %s3, 2
        %v968 = vld [vmem:[%s967] sm:$0x1]
        %v969 = vunpack.c.l.b16 %v914
        %v970 = vunpack.c.l.b16 %v917
        %v971 = vunpack.c.l.b16 %v921
        %v972 = vunpack.c.l.b16 %v924
        %v973 = vunpack.c.l.b16 %v928
        %v974 = vunpack.c.l.b16 %v931
        %v975 = vunpack.c.l.b16 %v935
        %v976 = vunpack.c.l.b16 %v938
        %v977 = vunpack.c.l.b16 %v942
        %v978 = vunpack.c.l.b16 %v945
        %v979 = vunpack.c.l.b16 %v949
        %v980 = vunpack.c.l.b16 %v952
        %v981 = vunpack.c.l.b16 %v956
        %v982 = vunpack.c.l.b16 %v959
        %v983 = vunpack.c.l.b16 %v963
        %v984 = vunpack.c.l.b16 %v966
        %v985 = vpack.c.b16 %v970, %v969
        %v986 = vpack.c.b16 %v972, %v971
        %v987 = vpack.c.b16 %v974, %v973
        %v988 = vpack.c.b16 %v976, %v975
        %v989 = vpack.c.b16 %v978, %v977
        %v990 = vpack.c.b16 %v980, %v979
        %v991 = vpack.c.b16 %v982, %v981
        %v992 = vpack.c.b16 %v984, %v983
        %v994 = vsel %vm608, %v985, 0
        %v997 = vsel %vm608, %v986, 0
        %v1000 = vsel %vm608, %v987, 0
        %v1003 = vsel %vm608, %v988, 0
        %v1006 = vsel %vm608, %v989, 0
        %v1009 = vsel %vm608, %v990, 0
        %v1012 = vsel %vm608, %v991, 0
        %v1015 = vsel %vm608, %v992, 0
        %v1018 = vand.u32 %v968, %v635
        %1020 = vmatprep.subr.bf16.mxu0 0
        %1021 = vmatpush1.bf16.msra.mxu0 %v1018
        %1022 = vmatprep.subr.bf16.mxu0 0
        %1023 = vmatpush1.bf16.msra.mxu0 0
        %1024 = vmatprep.subr.bf16.mxu0 0
        %1025 = vmatpush1.bf16.msra.mxu0 0
        %1026 = vmatprep.subr.bf16.mxu0 0
        %1027 = vmatpush1.bf16.msra.mxu0 0
        %1028 = vmatprep.subr.bf16.mxu0 0
        %1029 = vmatpush1.bf16.msra.mxu0 0
        %1030 = vmatprep.subr.bf16.mxu0 0
        %1031 = vmatpush1.bf16.msra.mxu0 0
        %1032 = vmatprep.subr.bf16.mxu0 0
        %1033 = vmatpush1.bf16.msra.mxu0 0
        %1034 = vmatprep.subr.bf16.mxu0 0
        %1035 = vmatpush1.bf16.msra.mxu0 0
        %1036 = vmatprep.subr.bf16.mxu0 0
        %1037 = vmatpush1.bf16.msra.mxu0 0
        %1038 = vmatprep.subr.bf16.mxu0 0
        %1039 = vmatpush1.bf16.msra.mxu0 0
        %1040 = vmatprep.subr.bf16.mxu0 0
        %1041 = vmatpush1.bf16.msra.mxu0 0
        %1042 = vmatprep.subr.bf16.mxu0 0
        %1043 = vmatpush1.bf16.msra.mxu0 0
        %1044 = vmatprep.subr.bf16.mxu0 0
        %1045 = vmatpush1.bf16.msra.mxu0 0
        %1046 = vmatprep.subr.bf16.mxu0 0
        %1047 = vmatpush1.bf16.msra.mxu0 0
        %1048 = vmatprep.subr.bf16.mxu0 0
        %1049 = vmatpush1.bf16.msra.mxu0 0
        %1050 = vmatprep.subr.bf16.mxu0 0
        %1051 = vmatpush1.bf16.msra.mxu0 0
        %1052 = vmatprep.mubr.bf16.mxu0 0
        %1053 = vmatmul.mubr.bf16.gmra.mrb[0].mxu0 %v994
        %v1054 = vpop.f32.mrb[0].mxu0
        %v1055 = vadd.f32 0.0, %v1054
        %v1056 = vpop.f32.mrb[0].mxu0
        %v1057 = vpop.f32.mrb[0].mxu0
        %v1058 = vadd.f32 0.0, %v1057
        %v1059 = vpop.f32.mrb[0].mxu0
        %1060 = vmatprep.mubr.bf16.mxu0 0
        %1061 = vmatmul.mubr.bf16.gmra.mrb[0].mxu0 %v997
        %v1062 = vpop.f32.mrb[0].mxu0
        %v1063 = vadd.f32 0.0, %v1062
        %v1064 = vpop.f32.mrb[0].mxu0
        %v1065 = vpop.f32.mrb[0].mxu0
        %v1066 = vadd.f32 0.0, %v1065
        %v1067 = vpop.f32.mrb[0].mxu0
        %1068 = vmatprep.mubr.bf16.mxu0 0
        %1069 = vmatmul.mubr.bf16.gmra.mrb[0].mxu0 %v1000
        %v1070 = vpop.f32.mrb[0].mxu0
        %v1071 = vadd.f32 0.0, %v1070
        %v1072 = vpop.f32.mrb[0].mxu0
        %v1073 = vpop.f32.mrb[0].mxu0
        %v1074 = vadd.f32 0.0, %v1073
        %v1075 = vpop.f32.mrb[0].mxu0
        %1076 = vmatprep.mubr.bf16.mxu0 0
        %1077 = vmatmul.mubr.bf16.gmra.mrb[0].mxu0 %v1003
        %v1078 = vpop.f32.mrb[0].mxu0
        %v1079 = vadd.f32 0.0, %v1078
        %v1080 = vpop.f32.mrb[0].mxu0
        %v1081 = vpop.f32.mrb[0].mxu0
        %v1082 = vadd.f32 0.0, %v1081
        %v1083 = vpop.f32.mrb[0].mxu0
        %1084 = vmatprep.mubr.bf16.mxu0 0
        %1085 = vmatmul.mubr.bf16.gmra.mrb[0].mxu0 %v1006
        %v1086 = vpop.f32.mrb[0].mxu0
        %v1087 = vadd.f32 0.0, %v1086
        %v1088 = vpop.f32.mrb[0].mxu0
        %v1089 = vpop.f32.mrb[0].mxu0
        %v1090 = vadd.f32 0.0, %v1089
        %v1091 = vpop.f32.mrb[0].mxu0
        %1092 = vmatprep.mubr.bf16.mxu0 0
        %1093 = vmatmul.mubr.bf16.gmra.mrb[0].mxu0 %v1009
        %v1094 = vpop.f32.mrb[0].mxu0
        %v1095 = vadd.f32 0.0, %v1094
        %v1096 = vpop.f32.mrb[0].mxu0
        %v1097 = vpop.f32.mrb[0].mxu0
        %v1098 = vadd.f32 0.0, %v1097
        %v1099 = vpop.f32.mrb[0].mxu0
        %1100 = vmatprep.mubr.bf16.mxu0 0
        %1101 = vmatmul.mubr.bf16.gmra.mrb[0].mxu0 %v1012
        %v1102 = vpop.f32.mrb[0].mxu0
        %v1103 = vadd.f32 0.0, %v1102
        %v1104 = vpop.f32.mrb[0].mxu0
        %v1105 = vpop.f32.mrb[0].mxu0
        %v1106 = vadd.f32 0.0, %v1105
        %v1107 = vpop.f32.mrb[0].mxu0
        %1108 = vmatprep.mubr.bf16.mxu0 0
        %1109 = vmatmul.mubr.bf16.gmra.mrb[0].mxu0 %v1015
        %v1110 = vpop.f32.mrb[0].mxu0
        %v1111 = vadd.f32 0.0, %v1110
        %v1112 = vpop.f32.mrb[0].mxu0
        %v1113 = vpop.f32.mrb[0].mxu0
        %v1114 = vadd.f32 0.0, %v1113
        %v1115 = vpop.f32.mrb[0].mxu0
        %1116 = vdwg.mxu0
        %v1117 = vadd.f32 %v838, %v1055
        %v1118 = vadd.f32 %v841, %v1058
        %v1119 = vadd.f32 %v846, %v1063
        %v1120 = vadd.f32 %v849, %v1066
        %v1121 = vadd.f32 %v854, %v1071
        %v1122 = vadd.f32 %v857, %v1074
        %v1123 = vadd.f32 %v862, %v1079
        %v1124 = vadd.f32 %v865, %v1082
        %v1125 = vadd.f32 %v870, %v1087
        %v1126 = vadd.f32 %v873, %v1090
        %v1127 = vadd.f32 %v878, %v1095
        %v1128 = vadd.f32 %v881, %v1098
        %v1129 = vadd.f32 %v886, %v1103
        %v1130 = vadd.f32 %v889, %v1106
        %v1131 = vadd.f32 %v894, %v1111
        %v1132 = vadd.f32 %v897, %v1114
        %s1133 = scalar_lea.vmem %s3, 3
        %v1134 = vld [vmem:[%s1133] sm:$0x1]
        %v1139 = vunpack.c.l.b16 %v362
        %v1140 = vunpack.c.l.b16 %v363
        %v1141 = vunpack.c.l.b16 %v380
        %v1142 = vunpack.c.l.b16 %v381
        %v1143 = vpack.c.b16 %v1140, %v1139
        %v1144 = vpack.c.b16 %v1142, %v1141
        %v1146 = vsel %vm608, %v1143, 0
        %v1149 = vsel %vm608, %v1144, 0
        %v1152 = vand.u32 %v1134, %v635
        %1154 = vmatprep.subr.bf16.mxu0 0
        %1155 = vmatpush1.bf16.msra.mxu0 %v1152
        %1156 = vmatprep.subr.bf16.mxu0 0
        %1157 = vmatpush1.bf16.msra.mxu0 0
        %1158 = vmatprep.subr.bf16.mxu0 0
        %1159 = vmatpush1.bf16.msra.mxu0 0
        %1160 = vmatprep.subr.bf16.mxu0 0
        %1161 = vmatpush1.bf16.msra.mxu0 0
        %1162 = vmatprep.subr.bf16.mxu0 0
        %1163 = vmatpush1.bf16.msra.mxu0 0
        %1164 = vmatprep.subr.bf16.mxu0 0
        %1165 = vmatpush1.bf16.msra.mxu0 0
        %1166 = vmatprep.subr.bf16.mxu0 0
        %1167 = vmatpush1.bf16.msra.mxu0 0
        %1168 = vmatprep.subr.bf16.mxu0 0
        %1169 = vmatpush1.bf16.msra.mxu0 0
        %1170 = vmatprep.subr.bf16.mxu0 0
        %1171 = vmatpush1.bf16.msra.mxu0 0
        %1172 = vmatprep.subr.bf16.mxu0 0
        %1173 = vmatpush1.bf16.msra.mxu0 0
        %1174 = vmatprep.subr.bf16.mxu0 0
        %1175 = vmatpush1.bf16.msra.mxu0 0
        %1176 = vmatprep.subr.bf16.mxu0 0
        %1177 = vmatpush1.bf16.msra.mxu0 0
        %1178 = vmatprep.subr.bf16.mxu0 0
        %1179 = vmatpush1.bf16.msra.mxu0 0
        %1180 = vmatprep.subr.bf16.mxu0 0
        %1181 = vmatpush1.bf16.msra.mxu0 0
        %1182 = vmatprep.subr.bf16.mxu0 0
        %1183 = vmatpush1.bf16.msra.mxu0 0
        %1184 = vmatprep.subr.bf16.mxu0 0
        %1185 = vmatpush1.bf16.msra.mxu0 0
        %1186 = vmatprep.mubr.bf16.mxu0 0
        %1187 = vmatmul.mubr.bf16.gmra.mrb[0].mxu0 %v780
        %v1188 = vpop.f32.mrb[0].mxu0
        %v1189 = vadd.f32 0.0, %v1188
        %v1190 = vpop.f32.mrb[0].mxu0
        %v1191 = vpop.f32.mrb[0].mxu0
        %v1192 = vadd.f32 0.0, %v1191
        %v1193 = vpop.f32.mrb[0].mxu0
        %1194 = vmatprep.mubr.bf16.mxu0 0
        %1195 = vmatmul.mubr.bf16.gmra.mrb[0].mxu0 %v783
        %v1196 = vpop.f32.mrb[0].mxu0
        %v1197 = vadd.f32 0.0, %v1196
        %v1198 = vpop.f32.mrb[0].mxu0
        %v1199 = vpop.f32.mrb[0].mxu0
        %v1200 = vadd.f32 0.0, %v1199
        %v1201 = vpop.f32.mrb[0].mxu0
        %1202 = vmatprep.mubr.bf16.mxu0 0
        %1203 = vmatmul.mubr.bf16.gmra.mrb[0].mxu0 %v786
        %v1204 = vpop.f32.mrb[0].mxu0
        %v1205 = vadd.f32 0.0, %v1204
        %v1206 = vpop.f32.mrb[0].mxu0
        %v1207 = vpop.f32.mrb[0].mxu0
        %v1208 = vadd.f32 0.0, %v1207
        %v1209 = vpop.f32.mrb[0].mxu0
        %1210 = vmatprep.mubr.bf16.mxu0 0
        %1211 = vmatmul.mubr.bf16.gmra.mrb[0].mxu0 %v1146
        %v1212 = vpop.f32.mrb[0].mxu0
        %v1213 = vadd.f32 0.0, %v1212
        %v1214 = vpop.f32.mrb[0].mxu0
        %v1215 = vpop.f32.mrb[0].mxu0
        %v1216 = vadd.f32 0.0, %v1215
        %v1217 = vpop.f32.mrb[0].mxu0
        %1218 = vmatprep.mubr.bf16.mxu0 0
        %1219 = vmatmul.mubr.bf16.gmra.mrb[0].mxu0 %v792
        %v1220 = vpop.f32.mrb[0].mxu0
        %v1221 = vadd.f32 0.0, %v1220
        %v1222 = vpop.f32.mrb[0].mxu0
        %v1223 = vpop.f32.mrb[0].mxu0
        %v1224 = vadd.f32 0.0, %v1223
        %v1225 = vpop.f32.mrb[0].mxu0
        %1226 = vmatprep.mubr.bf16.mxu0 0
        %1227 = vmatmul.mubr.bf16.gmra.mrb[0].mxu0 %v795
        %v1228 = vpop.f32.mrb[0].mxu0
        %v1229 = vadd.f32 0.0, %v1228
        %v1230 = vpop.f32.mrb[0].mxu0
        %v1231 = vpop.f32.mrb[0].mxu0
        %v1232 = vadd.f32 0.0, %v1231
        %v1233 = vpop.f32.mrb[0].mxu0
        %1234 = vmatprep.mubr.bf16.mxu0 0
        %1235 = vmatmul.mubr.bf16.gmra.mrb[0].mxu0 %v798
        %v1236 = vpop.f32.mrb[0].mxu0
        %v1237 = vadd.f32 0.0, %v1236
        %v1238 = vpop.f32.mrb[0].mxu0
        %v1239 = vpop.f32.mrb[0].mxu0
        %v1240 = vadd.f32 0.0, %v1239
        %v1241 = vpop.f32.mrb[0].mxu0
        %1242 = vmatprep.mubr.bf16.mxu0 0
        %1243 = vmatmul.mubr.bf16.gmra.mrb[0].mxu0 %v1149
        %v1244 = vpop.f32.mrb[0].mxu0
        %v1245 = vadd.f32 0.0, %v1244
        %v1246 = vpop.f32.mrb[0].mxu0
        %v1247 = vpop.f32.mrb[0].mxu0
        %v1248 = vadd.f32 0.0, %v1247
        %v1249 = vpop.f32.mrb[0].mxu0
        %1250 = vdwg.mxu0
        %v1251 = vadd.f32 %v1117, %v1189
        %v1252 = vadd.f32 %v1118, %v1192
        %v1253 = vadd.f32 %v1119, %v1197
        %v1254 = vadd.f32 %v1120, %v1200
        %v1255 = vadd.f32 %v1121, %v1205
        %v1256 = vadd.f32 %v1122, %v1208
        %v1257 = vadd.f32 %v1123, %v1213
        %v1258 = vadd.f32 %v1124, %v1216
        %v1259 = vadd.f32 %v1125, %v1221
        %v1260 = vadd.f32 %v1126, %v1224
        %v1261 = vadd.f32 %v1127, %v1229
        %v1262 = vadd.f32 %v1128, %v1232
        %v1263 = vadd.f32 %v1129, %v1237
        %v1264 = vadd.f32 %v1130, %v1240
        %v1265 = vadd.f32 %v1131, %v1245
        %v1266 = vadd.f32 %v1132, %v1248
        %v1268 = vshrl.u32 %v362, 16
        %v1270 = vrot.slane %v1268, 4
        %v1271 = vshll.u32 %v362, 16
        %v1273 = vrot.slane %v1271, 5
        %v1274 = vor.u32 %v1270, %v1273
        %v1275 = vrot.slane %v1274, 4
        %v1277 = vshll.u32 %v363, 16
        %v1279 = vrot.slane %v1277, 5
        %v1280 = vsel %vm389, %v1275, %v1279
        %v1281 = vshrl.u32 %v363, 16
        %v1283 = vrot.slane %v1281, 4
        %v1284 = vor.u32 %v1283, %v1279
        %v1285 = vrot.slane %v1284, 4
        %v1287 = vshll.u32 %v364, 16
        %v1289 = vrot.slane %v1287, 5
        %v1290 = vsel %vm389, %v1285, %v1289
        %v1292 = vshrl.u32 %v380, 16
        %v1294 = vrot.slane %v1292, 4
        %v1295 = vshll.u32 %v380, 16
        %v1297 = vrot.slane %v1295, 5
        %v1298 = vor.u32 %v1294, %v1297
        %v1299 = vrot.slane %v1298, 4
        %v1301 = vshll.u32 %v381, 16
        %v1303 = vrot.slane %v1301, 5
        %v1304 = vsel %vm389, %v1299, %v1303
        %v1305 = vshrl.u32 %v381, 16
        %v1307 = vrot.slane %v1305, 4
        %v1308 = vor.u32 %v1307, %v1303
        %v1309 = vrot.slane %v1308, 4
        %v1311 = vshll.u32 %v382, 16
        %v1313 = vrot.slane %v1311, 5
        %v1314 = vsel %vm389, %v1309, %v1313
        %s1315 = scalar_lea.vmem %s3, 4
        %v1316 = vld [vmem:[%s1315] sm:$0x1]
        %v1317 = vunpack.c.l.b16 %v1280
        %v1318 = vunpack.c.l.b16 %v1290
        %v1319 = vunpack.c.l.b16 %v1304
        %v1320 = vunpack.c.l.b16 %v1314
        %v1321 = vpack.c.b16 %v1318, %v1317
        %v1322 = vpack.c.b16 %v1320, %v1319
        %v1324 = vsel %vm608, %v1321, 0
        %v1327 = vsel %vm608, %v1322, 0
        %v1330 = vand.u32 %v1316, %v635
        %1332 = vmatprep.subr.bf16.mxu0 0
        %1333 = vmatpush1.bf16.msra.mxu0 %v1330
        %1334 = vmatprep.subr.bf16.mxu0 0
        %1335 = vmatpush1.bf16.msra.mxu0 0
        %1336 = vmatprep.subr.bf16.mxu0 0
        %1337 = vmatpush1.bf16.msra.mxu0 0
        %1338 = vmatprep.subr.bf16.mxu0 0
        %1339 = vmatpush1.bf16.msra.mxu0 0
        %1340 = vmatprep.subr.bf16.mxu0 0
        %1341 = vmatpush1.bf16.msra.mxu0 0
        %1342 = vmatprep.subr.bf16.mxu0 0
        %1343 = vmatpush1.bf16.msra.mxu0 0
        %1344 = vmatprep.subr.bf16.mxu0 0
        %1345 = vmatpush1.bf16.msra.mxu0 0
        %1346 = vmatprep.subr.bf16.mxu0 0
        %1347 = vmatpush1.bf16.msra.mxu0 0
        %1348 = vmatprep.subr.bf16.mxu0 0
        %1349 = vmatpush1.bf16.msra.mxu0 0
        %1350 = vmatprep.subr.bf16.mxu0 0
        %1351 = vmatpush1.bf16.msra.mxu0 0
        %1352 = vmatprep.subr.bf16.mxu0 0
        %1353 = vmatpush1.bf16.msra.mxu0 0
        %1354 = vmatprep.subr.bf16.mxu0 0
        %1355 = vmatpush1.bf16.msra.mxu0 0
        %1356 = vmatprep.subr.bf16.mxu0 0
        %1357 = vmatpush1.bf16.msra.mxu0 0
        %1358 = vmatprep.subr.bf16.mxu0 0
        %1359 = vmatpush1.bf16.msra.mxu0 0
        %1360 = vmatprep.subr.bf16.mxu0 0
        %1361 = vmatpush1.bf16.msra.mxu0 0
        %1362 = vmatprep.subr.bf16.mxu0 0
        %1363 = vmatpush1.bf16.msra.mxu0 0
        %1364 = vmatprep.mubr.bf16.mxu0 0
        %1365 = vmatmul.mubr.bf16.gmra.mrb[0].mxu0 %v613
        %v1366 = vpop.f32.mrb[0].mxu0
        %v1367 = vadd.f32 0.0, %v1366
        %v1368 = vpop.f32.mrb[0].mxu0
        %v1369 = vpop.f32.mrb[0].mxu0
        %v1370 = vadd.f32 0.0, %v1369
        %v1371 = vpop.f32.mrb[0].mxu0
        %1372 = vmatprep.mubr.bf16.mxu0 0
        %1373 = vmatmul.mubr.bf16.gmra.mrb[0].mxu0 %v616
        %v1374 = vpop.f32.mrb[0].mxu0
        %v1375 = vadd.f32 0.0, %v1374
        %v1376 = vpop.f32.mrb[0].mxu0
        %v1377 = vpop.f32.mrb[0].mxu0
        %v1378 = vadd.f32 0.0, %v1377
        %v1379 = vpop.f32.mrb[0].mxu0
        %1380 = vmatprep.mubr.bf16.mxu0 0
        %1381 = vmatmul.mubr.bf16.gmra.mrb[0].mxu0 %v619
        %v1382 = vpop.f32.mrb[0].mxu0
        %v1383 = vadd.f32 0.0, %v1382
        %v1384 = vpop.f32.mrb[0].mxu0
        %v1385 = vpop.f32.mrb[0].mxu0
        %v1386 = vadd.f32 0.0, %v1385
        %v1387 = vpop.f32.mrb[0].mxu0
        %1388 = vmatprep.mubr.bf16.mxu0 0
        %1389 = vmatmul.mubr.bf16.gmra.mrb[0].mxu0 %v1324
        %v1390 = vpop.f32.mrb[0].mxu0
        %v1391 = vadd.f32 0.0, %v1390
        %v1392 = vpop.f32.mrb[0].mxu0
        %v1393 = vpop.f32.mrb[0].mxu0
        %v1394 = vadd.f32 0.0, %v1393
        %v1395 = vpop.f32.mrb[0].mxu0
        %1396 = vmatprep.mubr.bf16.mxu0 0
        %1397 = vmatmul.mubr.bf16.gmra.mrb[0].mxu0 %v625
        %v1398 = vpop.f32.mrb[0].mxu0
        %v1399 = vadd.f32 0.0, %v1398
        %v1400 = vpop.f32.mrb[0].mxu0
        %v1401 = vpop.f32.mrb[0].mxu0
        %v1402 = vadd.f32 0.0, %v1401
        %v1403 = vpop.f32.mrb[0].mxu0
        %1404 = vmatprep.mubr.bf16.mxu0 0
        %1405 = vmatmul.mubr.bf16.gmra.mrb[0].mxu0 %v628
        %v1406 = vpop.f32.mrb[0].mxu0
        %v1407 = vadd.f32 0.0, %v1406
        %v1408 = vpop.f32.mrb[0].mxu0
        %v1409 = vpop.f32.mrb[0].mxu0
        %v1410 = vadd.f32 0.0, %v1409
        %v1411 = vpop.f32.mrb[0].mxu0
        %1412 = vmatprep.mubr.bf16.mxu0 0
        %1413 = vmatmul.mubr.bf16.gmra.mrb[0].mxu0 %v631
        %v1414 = vpop.f32.mrb[0].mxu0
        %v1415 = vadd.f32 0.0, %v1414
        %v1416 = vpop.f32.mrb[0].mxu0
        %v1417 = vpop.f32.mrb[0].mxu0
        %v1418 = vadd.f32 0.0, %v1417
        %v1419 = vpop.f32.mrb[0].mxu0
        %1420 = vmatprep.mubr.bf16.mxu0 0
        %1421 = vmatmul.mubr.bf16.gmra.mrb[0].mxu0 %v1327
        %v1422 = vpop.f32.mrb[0].mxu0
        %v1423 = vadd.f32 0.0, %v1422
        %v1424 = vpop.f32.mrb[0].mxu0
        %v1425 = vpop.f32.mrb[0].mxu0
        %v1426 = vadd.f32 0.0, %v1425
        %v1427 = vpop.f32.mrb[0].mxu0
        %1428 = vdwg.mxu0
        %v1429 = vadd.f32 %v1251, %v1367
        %v1430 = vadd.f32 %v1252, %v1370
        %v1431 = vadd.f32 %v1253, %v1375
        %v1432 = vadd.f32 %v1254, %v1378
        %v1433 = vadd.f32 %v1255, %v1383
        %v1434 = vadd.f32 %v1256, %v1386
        %v1435 = vadd.f32 %v1257, %v1391
        %v1436 = vadd.f32 %v1258, %v1394
        %v1437 = vadd.f32 %v1259, %v1399
        %v1438 = vadd.f32 %v1260, %v1402
        %v1439 = vadd.f32 %v1261, %v1407
        %v1440 = vadd.f32 %v1262, %v1410
        %v1441 = vadd.f32 %v1263, %v1415
        %v1442 = vadd.f32 %v1264, %v1418
        %v1443 = vadd.f32 %v1265, %v1423
        %v1444 = vadd.f32 %v1266, %v1426
        %v1447 = vrot.slane %v362, 5
        %v1448 = vrot.slane %v1447, 4
        %v1449 = vrot.slane %v363, 5
        %v1450 = vsel %vm910, %v1448, %v1449
        %v1451 = vrot.slane %v1449, 4
        %v1452 = vrot.slane %v364, 5
        %v1453 = vsel %vm910, %v1451, %v1452
        %v1454 = vrot.slane %v380, 5
        %v1455 = vrot.slane %v1454, 4
        %v1456 = vrot.slane %v381, 5
        %v1457 = vsel %vm910, %v1455, %v1456
        %v1458 = vrot.slane %v1456, 4
        %v1459 = vrot.slane %v382, 5
        %v1460 = vsel %vm910, %v1458, %v1459
        %s1461 = scalar_lea.vmem %s3, 5
        %v1462 = vld [vmem:[%s1461] sm:$0x1]
        %v1463 = vunpack.c.l.b16 %v1450
        %v1464 = vunpack.c.l.b16 %v1453
        %v1465 = vunpack.c.l.b16 %v1457
        %v1466 = vunpack.c.l.b16 %v1460
        %v1467 = vpack.c.b16 %v1464, %v1463
        %v1468 = vpack.c.b16 %v1466, %v1465
        %v1470 = vsel %vm608, %v1467, 0
        %v1473 = vsel %vm608, %v1468, 0
        %v1476 = vand.u32 %v1462, %v635
        %1478 = vmatprep.subr.bf16.mxu0 0
        %1479 = vmatpush1.bf16.msra.mxu0 %v1476
        %1480 = vmatprep.subr.bf16.mxu0 0
        %1481 = vmatpush1.bf16.msra.mxu0 0
        %1482 = vmatprep.subr.bf16.mxu0 0
        %1483 = vmatpush1.bf16.msra.mxu0 0
        %1484 = vmatprep.subr.bf16.mxu0 0
        %1485 = vmatpush1.bf16.msra.mxu0 0
        %1486 = vmatprep.subr.bf16.mxu0 0
        %1487 = vmatpush1.bf16.msra.mxu0 0
        %1488 = vmatprep.subr.bf16.mxu0 0
        %1489 = vmatpush1.bf16.msra.mxu0 0
        %1490 = vmatprep.subr.bf16.mxu0 0
        %1491 = vmatpush1.bf16.msra.mxu0 0
        %1492 = vmatprep.subr.bf16.mxu0 0
        %1493 = vmatpush1.bf16.msra.mxu0 0
        %1494 = vmatprep.subr.bf16.mxu0 0
        %1495 = vmatpush1.bf16.msra.mxu0 0
        %1496 = vmatprep.subr.bf16.mxu0 0
        %1497 = vmatpush1.bf16.msra.mxu0 0
        %1498 = vmatprep.subr.bf16.mxu0 0
        %1499 = vmatpush1.bf16.msra.mxu0 0
        %1500 = vmatprep.subr.bf16.mxu0 0
        %1501 = vmatpush1.bf16.msra.mxu0 0
        %1502 = vmatprep.subr.bf16.mxu0 0
        %1503 = vmatpush1.bf16.msra.mxu0 0
        %1504 = vmatprep.subr.bf16.mxu0 0
        %1505 = vmatpush1.bf16.msra.mxu0 0
        %1506 = vmatprep.subr.bf16.mxu0 0
        %1507 = vmatpush1.bf16.msra.mxu0 0
        %1508 = vmatprep.subr.bf16.mxu0 0
        %1509 = vmatpush1.bf16.msra.mxu0 0
        %1510 = vmatprep.mubr.bf16.mxu0 0
        %1511 = vmatmul.mubr.bf16.gmra.mrb[0].mxu0 %v997
        %v1512 = vpop.f32.mrb[0].mxu0
        %v1513 = vadd.f32 0.0, %v1512
        %v1514 = vpop.f32.mrb[0].mxu0
        %v1515 = vpop.f32.mrb[0].mxu0
        %v1516 = vadd.f32 0.0, %v1515
        %v1517 = vpop.f32.mrb[0].mxu0
        %1518 = vmatprep.mubr.bf16.mxu0 0
        %1519 = vmatmul.mubr.bf16.gmra.mrb[0].mxu0 %v1000
        %v1520 = vpop.f32.mrb[0].mxu0
        %v1521 = vadd.f32 0.0, %v1520
        %v1522 = vpop.f32.mrb[0].mxu0
        %v1523 = vpop.f32.mrb[0].mxu0
        %v1524 = vadd.f32 0.0, %v1523
        %v1525 = vpop.f32.mrb[0].mxu0
        %1526 = vmatprep.mubr.bf16.mxu0 0
        %1527 = vmatmul.mubr.bf16.gmra.mrb[0].mxu0 %v1003
        %v1528 = vpop.f32.mrb[0].mxu0
        %v1529 = vadd.f32 0.0, %v1528
        %v1530 = vpop.f32.mrb[0].mxu0
        %v1531 = vpop.f32.mrb[0].mxu0
        %v1532 = vadd.f32 0.0, %v1531
        %v1533 = vpop.f32.mrb[0].mxu0
        %1534 = vmatprep.mubr.bf16.mxu0 0
        %1535 = vmatmul.mubr.bf16.gmra.mrb[0].mxu0 %v1470
        %v1536 = vpop.f32.mrb[0].mxu0
        %v1537 = vadd.f32 0.0, %v1536
        %v1538 = vpop.f32.mrb[0].mxu0
        %v1539 = vpop.f32.mrb[0].mxu0
        %v1540 = vadd.f32 0.0, %v1539
        %v1541 = vpop.f32.mrb[0].mxu0
        %1542 = vmatprep.mubr.bf16.mxu0 0
        %1543 = vmatmul.mubr.bf16.gmra.mrb[0].mxu0 %v1009
        %v1544 = vpop.f32.mrb[0].mxu0
        %v1545 = vadd.f32 0.0, %v1544
        %v1546 = vpop.f32.mrb[0].mxu0
        %v1547 = vpop.f32.mrb[0].mxu0
        %v1548 = vadd.f32 0.0, %v1547
        %v1549 = vpop.f32.mrb[0].mxu0
        %1550 = vmatprep.mubr.bf16.mxu0 0
        %1551 = vmatmul.mubr.bf16.gmra.mrb[0].mxu0 %v1012
        %v1552 = vpop.f32.mrb[0].mxu0
        %v1553 = vadd.f32 0.0, %v1552
        %v1554 = vpop.f32.mrb[0].mxu0
        %v1555 = vpop.f32.mrb[0].mxu0
        %v1556 = vadd.f32 0.0, %v1555
        %v1557 = vpop.f32.mrb[0].mxu0
        %1558 = vmatprep.mubr.bf16.mxu0 0
        %1559 = vmatmul.mubr.bf16.gmra.mrb[0].mxu0 %v1015
        %v1560 = vpop.f32.mrb[0].mxu0
        %v1561 = vadd.f32 0.0, %v1560
        %v1562 = vpop.f32.mrb[0].mxu0
        %v1563 = vpop.f32.mrb[0].mxu0
        %v1564 = vadd.f32 0.0, %v1563
        %v1565 = vpop.f32.mrb[0].mxu0
        %1566 = vmatprep.mubr.bf16.mxu0 0
        %1567 = vmatmul.mubr.bf16.gmra.mrb[0].mxu0 %v1473
        %v1568 = vpop.f32.mrb[0].mxu0
        %v1569 = vadd.f32 0.0, %v1568
        %v1570 = vpop.f32.mrb[0].mxu0
        %v1571 = vpop.f32.mrb[0].mxu0
        %v1572 = vadd.f32 0.0, %v1571
        %v1573 = vpop.f32.mrb[0].mxu0
        %1574 = vdwg.mxu0
        %v1575 = vadd.f32 %v1429, %v1513
        %v1576 = vadd.f32 %v1430, %v1516
        %v1577 = vadd.f32 %v1431, %v1521
        %v1578 = vadd.f32 %v1432, %v1524
        %v1579 = vadd.f32 %v1433, %v1529
        %v1580 = vadd.f32 %v1434, %v1532
        %v1581 = vadd.f32 %v1435, %v1537
        %v1582 = vadd.f32 %v1436, %v1540
        %v1583 = vadd.f32 %v1437, %v1545
        %v1584 = vadd.f32 %v1438, %v1548
        %v1585 = vadd.f32 %v1439, %v1553
        %v1586 = vadd.f32 %v1440, %v1556
        %v1587 = vadd.f32 %v1441, %v1561
        %v1588 = vadd.f32 %v1442, %v1564
        %v1589 = vadd.f32 %v1443, %v1569
        %v1590 = vadd.f32 %v1444, %v1572
        %s1591 = scalar_lea.vmem %s3, 6
        %v1592 = vld [vmem:[%s1591] sm:$0x1]
        %v1597 = vunpack.c.l.b16 %v365
        %v1598 = vunpack.c.l.b16 %v366
        %v1599 = vunpack.c.l.b16 %v383
        %v1600 = vunpack.c.l.b16 %v384
        %v1601 = vpack.c.b16 %v1598, %v1597
        %v1602 = vpack.c.b16 %v1600, %v1599
        %v1604 = vsel %vm608, %v1601, 0
        %v1607 = vsel %vm608, %v1602, 0
        %v1610 = vand.u32 %v1592, %v635
        %1612 = vmatprep.subr.bf16.mxu0 0
        %1613 = vmatpush1.bf16.msra.mxu0 %v1610
        %1614 = vmatprep.subr.bf16.mxu0 0
        %1615 = vmatpush1.bf16.msra.mxu0 0
        %1616 = vmatprep.subr.bf16.mxu0 0
        %1617 = vmatpush1.bf16.msra.mxu0 0
        %1618 = vmatprep.subr.bf16.mxu0 0
        %1619 = vmatpush1.bf16.msra.mxu0 0
        %1620 = vmatprep.subr.bf16.mxu0 0
        %1621 = vmatpush1.bf16.msra.mxu0 0
        %1622 = vmatprep.subr.bf16.mxu0 0
        %1623 = vmatpush1.bf16.msra.mxu0 0
        %1624 = vmatprep.subr.bf16.mxu0 0
        %1625 = vmatpush1.bf16.msra.mxu0 0
        %1626 = vmatprep.subr.bf16.mxu0 0
        %1627 = vmatpush1.bf16.msra.mxu0 0
        %1628 = vmatprep.subr.bf16.mxu0 0
        %1629 = vmatpush1.bf16.msra.mxu0 0
        %1630 = vmatprep.subr.bf16.mxu0 0
        %1631 = vmatpush1.bf16.msra.mxu0 0
        %1632 = vmatprep.subr.bf16.mxu0 0
        %1633 = vmatpush1.bf16.msra.mxu0 0
        %1634 = vmatprep.subr.bf16.mxu0 0
        %1635 = vmatpush1.bf16.msra.mxu0 0
        %1636 = vmatprep.subr.bf16.mxu0 0
        %1637 = vmatpush1.bf16.msra.mxu0 0
        %1638 = vmatprep.subr.bf16.mxu0 0
        %1639 = vmatpush1.bf16.msra.mxu0 0
        %1640 = vmatprep.subr.bf16.mxu0 0
        %1641 = vmatpush1.bf16.msra.mxu0 0
        %1642 = vmatprep.subr.bf16.mxu0 0
        %1643 = vmatpush1.bf16.msra.mxu0 0
        %1644 = vmatprep.mubr.bf16.mxu0 0
        %1645 = vmatmul.mubr.bf16.gmra.mrb[0].mxu0 %v783
        %v1646 = vpop.f32.mrb[0].mxu0
        %v1647 = vadd.f32 0.0, %v1646
        %v1648 = vpop.f32.mrb[0].mxu0
        %v1649 = vpop.f32.mrb[0].mxu0
        %v1650 = vadd.f32 0.0, %v1649
        %v1651 = vpop.f32.mrb[0].mxu0
        %1652 = vmatprep.mubr.bf16.mxu0 0
        %1653 = vmatmul.mubr.bf16.gmra.mrb[0].mxu0 %v786
        %v1654 = vpop.f32.mrb[0].mxu0
        %v1655 = vadd.f32 0.0, %v1654
        %v1656 = vpop.f32.mrb[0].mxu0
        %v1657 = vpop.f32.mrb[0].mxu0
        %v1658 = vadd.f32 0.0, %v1657
        %v1659 = vpop.f32.mrb[0].mxu0
        %1660 = vmatprep.mubr.bf16.mxu0 0
        %1661 = vmatmul.mubr.bf16.gmra.mrb[0].mxu0 %v1146
        %v1662 = vpop.f32.mrb[0].mxu0
        %v1663 = vadd.f32 0.0, %v1662
        %v1664 = vpop.f32.mrb[0].mxu0
        %v1665 = vpop.f32.mrb[0].mxu0
        %v1666 = vadd.f32 0.0, %v1665
        %v1667 = vpop.f32.mrb[0].mxu0
        %1668 = vmatprep.mubr.bf16.mxu0 0
        %1669 = vmatmul.mubr.bf16.gmra.mrb[0].mxu0 %v1604
        %v1670 = vpop.f32.mrb[0].mxu0
        %v1671 = vadd.f32 0.0, %v1670
        %v1672 = vpop.f32.mrb[0].mxu0
        %v1673 = vpop.f32.mrb[0].mxu0
        %v1674 = vadd.f32 0.0, %v1673
        %v1675 = vpop.f32.mrb[0].mxu0
        %1676 = vmatprep.mubr.bf16.mxu0 0
        %1677 = vmatmul.mubr.bf16.gmra.mrb[0].mxu0 %v795
        %v1678 = vpop.f32.mrb[0].mxu0
        %v1679 = vadd.f32 0.0, %v1678
        %v1680 = vpop.f32.mrb[0].mxu0
        %v1681 = vpop.f32.mrb[0].mxu0
        %v1682 = vadd.f32 0.0, %v1681
        %v1683 = vpop.f32.mrb[0].mxu0
        %1684 = vmatprep.mubr.bf16.mxu0 0
        %1685 = vmatmul.mubr.bf16.gmra.mrb[0].mxu0 %v798
        %v1686 = vpop.f32.mrb[0].mxu0
        %v1687 = vadd.f32 0.0, %v1686
        %v1688 = vpop.f32.mrb[0].mxu0
        %v1689 = vpop.f32.mrb[0].mxu0
        %v1690 = vadd.f32 0.0, %v1689
        %v1691 = vpop.f32.mrb[0].mxu0
        %1692 = vmatprep.mubr.bf16.mxu0 0
        %1693 = vmatmul.mubr.bf16.gmra.mrb[0].mxu0 %v1149
        %v1694 = vpop.f32.mrb[0].mxu0
        %v1695 = vadd.f32 0.0, %v1694
        %v1696 = vpop.f32.mrb[0].mxu0
        %v1697 = vpop.f32.mrb[0].mxu0
        %v1698 = vadd.f32 0.0, %v1697
        %v1699 = vpop.f32.mrb[0].mxu0
        %1700 = vmatprep.mubr.bf16.mxu0 0
        %1701 = vmatmul.mubr.bf16.gmra.mrb[0].mxu0 %v1607
        %v1702 = vpop.f32.mrb[0].mxu0
        %v1703 = vadd.f32 0.0, %v1702
        %v1704 = vpop.f32.mrb[0].mxu0
        %v1705 = vpop.f32.mrb[0].mxu0
        %v1706 = vadd.f32 0.0, %v1705
        %v1707 = vpop.f32.mrb[0].mxu0
        %1708 = vdwg.mxu0
        %v1709 = vadd.f32 %v1575, %v1647
        %v1710 = vadd.f32 %v1576, %v1650
        %v1711 = vadd.f32 %v1577, %v1655
        %v1712 = vadd.f32 %v1578, %v1658
        %v1713 = vadd.f32 %v1579, %v1663
        %v1714 = vadd.f32 %v1580, %v1666
        %v1715 = vadd.f32 %v1581, %v1671
        %v1716 = vadd.f32 %v1582, %v1674
        %v1717 = vadd.f32 %v1583, %v1679
        %v1718 = vadd.f32 %v1584, %v1682
        %v1719 = vadd.f32 %v1585, %v1687
        %v1720 = vadd.f32 %v1586, %v1690
        %v1721 = vadd.f32 %v1587, %v1695
        %v1722 = vadd.f32 %v1588, %v1698
        %v1723 = vadd.f32 %v1589, %v1703
        %v1724 = vadd.f32 %v1590, %v1706
        %v1726 = vshrl.u32 %v365, 16
        %v1728 = vrot.slane %v1726, 4
        %v1729 = vshll.u32 %v365, 16
        %v1731 = vrot.slane %v1729, 5
        %v1732 = vor.u32 %v1728, %v1731
        %v1733 = vrot.slane %v1732, 4
        %v1735 = vshll.u32 %v366, 16
        %v1737 = vrot.slane %v1735, 5
        %v1738 = vsel %vm389, %v1733, %v1737
        %v1739 = vshrl.u32 %v366, 16
        %v1741 = vrot.slane %v1739, 4
        %v1742 = vor.u32 %v1741, %v1737
        %v1743 = vrot.slane %v1742, 4
        %v1745 = vshll.u32 %v367, 16
        %v1747 = vrot.slane %v1745, 5
        %v1748 = vsel %vm389, %v1743, %v1747
        %v1750 = vshrl.u32 %v383, 16
        %v1752 = vrot.slane %v1750, 4
        %v1753 = vshll.u32 %v383, 16
        %v1755 = vrot.slane %v1753, 5
        %v1756 = vor.u32 %v1752, %v1755
        %v1757 = vrot.slane %v1756, 4
        %v1759 = vshll.u32 %v384, 16
        %v1761 = vrot.slane %v1759, 5
        %v1762 = vsel %vm389, %v1757, %v1761
        %v1763 = vshrl.u32 %v384, 16
        %v1765 = vrot.slane %v1763, 4
        %v1766 = vor.u32 %v1765, %v1761
        %v1767 = vrot.slane %v1766, 4
        %v1769 = vshll.u32 %v385, 16
        %v1771 = vrot.slane %v1769, 5
        %v1772 = vsel %vm389, %v1767, %v1771
        %s1773 = scalar_lea.vmem %s3, 7
        %v1774 = vld [vmem:[%s1773] sm:$0x1]
        %v1775 = vunpack.c.l.b16 %v1738
        %v1776 = vunpack.c.l.b16 %v1748
        %v1777 = vunpack.c.l.b16 %v1762
        %v1778 = vunpack.c.l.b16 %v1772
        %v1779 = vpack.c.b16 %v1776, %v1775
        %v1780 = vpack.c.b16 %v1778, %v1777
        %v1782 = vsel %vm608, %v1779, 0
        %v1785 = vsel %vm608, %v1780, 0
        %v1788 = vand.u32 %v1774, %v635
        %1790 = vmatprep.subr.bf16.mxu0 0
        %1791 = vmatpush1.bf16.msra.mxu0 %v1788
        %1792 = vmatprep.subr.bf16.mxu0 0
        %1793 = vmatpush1.bf16.msra.mxu0 0
        %1794 = vmatprep.subr.bf16.mxu0 0
        %1795 = vmatpush1.bf16.msra.mxu0 0
        %1796 = vmatprep.subr.bf16.mxu0 0
        %1797 = vmatpush1.bf16.msra.mxu0 0
        %1798 = vmatprep.subr.bf16.mxu0 0
        %1799 = vmatpush1.bf16.msra.mxu0 0
        %1800 = vmatprep.subr.bf16.mxu0 0
        %1801 = vmatpush1.bf16.msra.mxu0 0
        %1802 = vmatprep.subr.bf16.mxu0 0
        %1803 = vmatpush1.bf16.msra.mxu0 0
        %1804 = vmatprep.subr.bf16.mxu0 0
        %1805 = vmatpush1.bf16.msra.mxu0 0
        %1806 = vmatprep.subr.bf16.mxu0 0
        %1807 = vmatpush1.bf16.msra.mxu0 0
        %1808 = vmatprep.subr.bf16.mxu0 0
        %1809 = vmatpush1.bf16.msra.mxu0 0
        %1810 = vmatprep.subr.bf16.mxu0 0
        %1811 = vmatpush1.bf16.msra.mxu0 0
        %1812 = vmatprep.subr.bf16.mxu0 0
        %1813 = vmatpush1.bf16.msra.mxu0 0
        %1814 = vmatprep.subr.bf16.mxu0 0
        %1815 = vmatpush1.bf16.msra.mxu0 0
        %1816 = vmatprep.subr.bf16.mxu0 0
        %1817 = vmatpush1.bf16.msra.mxu0 0
        %1818 = vmatprep.subr.bf16.mxu0 0
        %1819 = vmatpush1.bf16.msra.mxu0 0
        %1820 = vmatprep.subr.bf16.mxu0 0
        %1821 = vmatpush1.bf16.msra.mxu0 0
        %1822 = vmatprep.mubr.bf16.mxu0 0
        %1823 = vmatmul.mubr.bf16.gmra.mrb[0].mxu0 %v616
        %v1824 = vpop.f32.mrb[0].mxu0
        %v1825 = vadd.f32 0.0, %v1824
        %v1826 = vpop.f32.mrb[0].mxu0
        %v1827 = vpop.f32.mrb[0].mxu0
        %v1828 = vadd.f32 0.0, %v1827
        %v1829 = vpop.f32.mrb[0].mxu0
        %1830 = vmatprep.mubr.bf16.mxu0 0
        %1831 = vmatmul.mubr.bf16.gmra.mrb[0].mxu0 %v619
        %v1832 = vpop.f32.mrb[0].mxu0
        %v1833 = vadd.f32 0.0, %v1832
        %v1834 = vpop.f32.mrb[0].mxu0
        %v1835 = vpop.f32.mrb[0].mxu0
        %v1836 = vadd.f32 0.0, %v1835
        %v1837 = vpop.f32.mrb[0].mxu0
        %1838 = vmatprep.mubr.bf16.mxu0 0
        %1839 = vmatmul.mubr.bf16.gmra.mrb[0].mxu0 %v1324
        %v1840 = vpop.f32.mrb[0].mxu0
        %v1841 = vadd.f32 0.0, %v1840
        %v1842 = vpop.f32.mrb[0].mxu0
        %v1843 = vpop.f32.mrb[0].mxu0
        %v1844 = vadd.f32 0.0, %v1843
        %v1845 = vpop.f32.mrb[0].mxu0
        %1846 = vmatprep.mubr.bf16.mxu0 0
        %1847 = vmatmul.mubr.bf16.gmra.mrb[0].mxu0 %v1782
        %v1848 = vpop.f32.mrb[0].mxu0
        %v1849 = vadd.f32 0.0, %v1848
        %v1850 = vpop.f32.mrb[0].mxu0
        %v1851 = vpop.f32.mrb[0].mxu0
        %v1852 = vadd.f32 0.0, %v1851
        %v1853 = vpop.f32.mrb[0].mxu0
        %1854 = vmatprep.mubr.bf16.mxu0 0
        %1855 = vmatmul.mubr.bf16.gmra.mrb[0].mxu0 %v628
        %v1856 = vpop.f32.mrb[0].mxu0
        %v1857 = vadd.f32 0.0, %v1856
        %v1858 = vpop.f32.mrb[0].mxu0
        %v1859 = vpop.f32.mrb[0].mxu0
        %v1860 = vadd.f32 0.0, %v1859
        %v1861 = vpop.f32.mrb[0].mxu0
        %1862 = vmatprep.mubr.bf16.mxu0 0
        %1863 = vmatmul.mubr.bf16.gmra.mrb[0].mxu0 %v631
        %v1864 = vpop.f32.mrb[0].mxu0
        %v1865 = vadd.f32 0.0, %v1864
        %v1866 = vpop.f32.mrb[0].mxu0
        %v1867 = vpop.f32.mrb[0].mxu0
        %v1868 = vadd.f32 0.0, %v1867
        %v1869 = vpop.f32.mrb[0].mxu0
        %1870 = vmatprep.mubr.bf16.mxu0 0
        %1871 = vmatmul.mubr.bf16.gmra.mrb[0].mxu0 %v1327
        %v1872 = vpop.f32.mrb[0].mxu0
        %v1873 = vadd.f32 0.0, %v1872
        %v1874 = vpop.f32.mrb[0].mxu0
        %v1875 = vpop.f32.mrb[0].mxu0
        %v1876 = vadd.f32 0.0, %v1875
        %v1877 = vpop.f32.mrb[0].mxu0
        %1878 = vmatprep.mubr.bf16.mxu0 0
        %1879 = vmatmul.mubr.bf16.gmra.mrb[0].mxu0 %v1785
        %v1880 = vpop.f32.mrb[0].mxu0
        %v1881 = vadd.f32 0.0, %v1880
        %v1882 = vpop.f32.mrb[0].mxu0
        %v1883 = vpop.f32.mrb[0].mxu0
        %v1884 = vadd.f32 0.0, %v1883
        %v1885 = vpop.f32.mrb[0].mxu0
        %1886 = vdwg.mxu0
        %v1887 = vadd.f32 %v1709, %v1825
        %v1888 = vadd.f32 %v1710, %v1828
        %v1889 = vadd.f32 %v1711, %v1833
        %v1890 = vadd.f32 %v1712, %v1836
        %v1891 = vadd.f32 %v1713, %v1841
        %v1892 = vadd.f32 %v1714, %v1844
        %v1893 = vadd.f32 %v1715, %v1849
        %v1894 = vadd.f32 %v1716, %v1852
        %v1895 = vadd.f32 %v1717, %v1857
        %v1896 = vadd.f32 %v1718, %v1860
        %v1897 = vadd.f32 %v1719, %v1865
        %v1898 = vadd.f32 %v1720, %v1868
        %v1899 = vadd.f32 %v1721, %v1873
        %v1900 = vadd.f32 %v1722, %v1876
        %v1901 = vadd.f32 %v1723, %v1881
        %v1902 = vadd.f32 %v1724, %v1884
        %v1905 = vrot.slane %v365, 5
        %v1906 = vrot.slane %v1905, 4
        %v1907 = vrot.slane %v366, 5
        %v1908 = vsel %vm910, %v1906, %v1907
        %v1909 = vrot.slane %v1907, 4
        %v1910 = vrot.slane %v367, 5
        %v1911 = vsel %vm910, %v1909, %v1910
        %v1912 = vrot.slane %v383, 5
        %v1913 = vrot.slane %v1912, 4
        %v1914 = vrot.slane %v384, 5
        %v1915 = vsel %vm910, %v1913, %v1914
        %v1916 = vrot.slane %v1914, 4
        %v1917 = vrot.slane %v385, 5
        %v1918 = vsel %vm910, %v1916, %v1917
        %s1919 = scalar_lea.vmem %s3, 8
        %v1920 = vld [vmem:[%s1919] sm:$0x1]
        %v1921 = vunpack.c.l.b16 %v1908
        %v1922 = vunpack.c.l.b16 %v1911
        %v1923 = vunpack.c.l.b16 %v1915
        %v1924 = vunpack.c.l.b16 %v1918
        %v1925 = vpack.c.b16 %v1922, %v1921
        %v1926 = vpack.c.b16 %v1924, %v1923
        %v1928 = vsel %vm608, %v1925, 0
        %v1931 = vsel %vm608, %v1926, 0
        %v1934 = vand.u32 %v1920, %v635
        %1936 = vmatprep.subr.bf16.mxu0 0
        %1937 = vmatpush1.bf16.msra.mxu0 %v1934
        %1938 = vmatprep.subr.bf16.mxu0 0
        %1939 = vmatpush1.bf16.msra.mxu0 0
        %1940 = vmatprep.subr.bf16.mxu0 0
        %1941 = vmatpush1.bf16.msra.mxu0 0
        %1942 = vmatprep.subr.bf16.mxu0 0
        %1943 = vmatpush1.bf16.msra.mxu0 0
        %1944 = vmatprep.subr.bf16.mxu0 0
        %1945 = vmatpush1.bf16.msra.mxu0 0
        %1946 = vmatprep.subr.bf16.mxu0 0
        %1947 = vmatpush1.bf16.msra.mxu0 0
        %1948 = vmatprep.subr.bf16.mxu0 0
        %1949 = vmatpush1.bf16.msra.mxu0 0
        %1950 = vmatprep.subr.bf16.mxu0 0
        %1951 = vmatpush1.bf16.msra.mxu0 0
        %1952 = vmatprep.subr.bf16.mxu0 0
        %1953 = vmatpush1.bf16.msra.mxu0 0
        %1954 = vmatprep.subr.bf16.mxu0 0
        %1955 = vmatpush1.bf16.msra.mxu0 0
        %1956 = vmatprep.subr.bf16.mxu0 0
        %1957 = vmatpush1.bf16.msra.mxu0 0
        %1958 = vmatprep.subr.bf16.mxu0 0
        %1959 = vmatpush1.bf16.msra.mxu0 0
        %1960 = vmatprep.subr.bf16.mxu0 0
        %1961 = vmatpush1.bf16.msra.mxu0 0
        %1962 = vmatprep.subr.bf16.mxu0 0
        %1963 = vmatpush1.bf16.msra.mxu0 0
        %1964 = vmatprep.subr.bf16.mxu0 0
        %1965 = vmatpush1.bf16.msra.mxu0 0
        %1966 = vmatprep.subr.bf16.mxu0 0
        %1967 = vmatpush1.bf16.msra.mxu0 0
        %1968 = vmatprep.mubr.bf16.mxu0 0
        %1969 = vmatmul.mubr.bf16.gmra.mrb[0].mxu0 %v1000
        %v1970 = vpop.f32.mrb[0].mxu0
        %v1971 = vadd.f32 0.0, %v1970
        %v1972 = vpop.f32.mrb[0].mxu0
        %v1973 = vpop.f32.mrb[0].mxu0
        %v1974 = vadd.f32 0.0, %v1973
        %v1975 = vpop.f32.mrb[0].mxu0
        %1976 = vmatprep.mubr.bf16.mxu0 0
        %1977 = vmatmul.mubr.bf16.gmra.mrb[0].mxu0 %v1003
        %v1978 = vpop.f32.mrb[0].mxu0
        %v1979 = vadd.f32 0.0, %v1978
        %v1980 = vpop.f32.mrb[0].mxu0
        %v1981 = vpop.f32.mrb[0].mxu0
        %v1982 = vadd.f32 0.0, %v1981
        %v1983 = vpop.f32.mrb[0].mxu0
        %1984 = vmatprep.mubr.bf16.mxu0 0
        %1985 = vmatmul.mubr.bf16.gmra.mrb[0].mxu0 %v1470
        %v1986 = vpop.f32.mrb[0].mxu0
        %v1987 = vadd.f32 0.0, %v1986
        %v1988 = vpop.f32.mrb[0].mxu0
        %v1989 = vpop.f32.mrb[0].mxu0
        %v1990 = vadd.f32 0.0, %v1989
        %v1991 = vpop.f32.mrb[0].mxu0
        %1992 = vmatprep.mubr.bf16.mxu0 0
        %1993 = vmatmul.mubr.bf16.gmra.mrb[0].mxu0 %v1928
        %v1994 = vpop.f32.mrb[0].mxu0
        %v1995 = vadd.f32 0.0, %v1994
        %v1996 = vpop.f32.mrb[0].mxu0
        %v1997 = vpop.f32.mrb[0].mxu0
        %v1998 = vadd.f32 0.0, %v1997
        %v1999 = vpop.f32.mrb[0].mxu0
        %2000 = vmatprep.mubr.bf16.mxu0 0
        %2001 = vmatmul.mubr.bf16.gmra.mrb[0].mxu0 %v1012
        %v2002 = vpop.f32.mrb[0].mxu0
        %v2003 = vadd.f32 0.0, %v2002
        %v2004 = vpop.f32.mrb[0].mxu0
        %v2005 = vpop.f32.mrb[0].mxu0
        %v2006 = vadd.f32 0.0, %v2005
        %v2007 = vpop.f32.mrb[0].mxu0
        %2008 = vmatprep.mubr.bf16.mxu0 0
        %2009 = vmatmul.mubr.bf16.gmra.mrb[0].mxu0 %v1015
        %v2010 = vpop.f32.mrb[0].mxu0
        %v2011 = vadd.f32 0.0, %v2010
        %v2012 = vpop.f32.mrb[0].mxu0
        %v2013 = vpop.f32.mrb[0].mxu0
        %v2014 = vadd.f32 0.0, %v2013
        %v2015 = vpop.f32.mrb[0].mxu0
        %2016 = vmatprep.mubr.bf16.mxu0 0
        %2017 = vmatmul.mubr.bf16.gmra.mrb[0].mxu0 %v1473
        %v2018 = vpop.f32.mrb[0].mxu0
        %v2019 = vadd.f32 0.0, %v2018
        %v2020 = vpop.f32.mrb[0].mxu0
        %v2021 = vpop.f32.mrb[0].mxu0
        %v2022 = vadd.f32 0.0, %v2021
        %v2023 = vpop.f32.mrb[0].mxu0
        %2024 = vmatprep.mubr.bf16.mxu0 0
        %2025 = vmatmul.mubr.bf16.gmra.mrb[0].mxu0 %v1931
        %v2026 = vpop.f32.mrb[0].mxu0
        %v2027 = vadd.f32 0.0, %v2026
        %v2028 = vpop.f32.mrb[0].mxu0
        %v2029 = vpop.f32.mrb[0].mxu0
        %v2030 = vadd.f32 0.0, %v2029
        %v2031 = vpop.f32.mrb[0].mxu0
        %2032 = vdwg.mxu0
        %v2033 = vadd.f32 %v1887, %v1971
        %v2034 = vadd.f32 %v1888, %v1974
        %v2035 = vadd.f32 %v1889, %v1979
        %v2036 = vadd.f32 %v1890, %v1982
        %v2037 = vadd.f32 %v1891, %v1987
        %v2038 = vadd.f32 %v1892, %v1990
        %v2039 = vadd.f32 %v1893, %v1995
        %v2040 = vadd.f32 %v1894, %v1998
        %v2041 = vadd.f32 %v1895, %v2003
        %v2042 = vadd.f32 %v1896, %v2006
        %v2043 = vadd.f32 %v1897, %v2011
        %v2044 = vadd.f32 %v1898, %v2014
        %v2045 = vadd.f32 %v1899, %v2019
        %v2046 = vadd.f32 %v1900, %v2022
        %v2047 = vadd.f32 %v1901, %v2027
        %v2048 = vadd.f32 %v1902, %v2030
        %v2049 = vld [vmem:[%s5] sm:$0x1]
        %v2051 = vlaneseq
        %v2052 = vshrl.u32 %v2051, 7
        %v2053 = vsub.s32 0, %v2052
        %v2054 = vrot.slane %v2049, %v2053
        %v2056 = vadd.f32 %v2033, %v2054
        %v2057 = vadd.f32 %v2034, %v2054
        %v2058 = vadd.f32 %v2035, %v2054
        %v2059 = vadd.f32 %v2036, %v2054
        %v2060 = vadd.f32 %v2037, %v2054
        %v2061 = vadd.f32 %v2038, %v2054
        %v2062 = vadd.f32 %v2039, %v2054
        %v2063 = vadd.f32 %v2040, %v2054
        %v2064 = vadd.f32 %v2041, %v2054
        %v2065 = vadd.f32 %v2042, %v2054
        %v2066 = vadd.f32 %v2043, %v2054
        %v2067 = vadd.f32 %v2044, %v2054
        %v2068 = vadd.f32 %v2045, %v2054
        %v2069 = vadd.f32 %v2046, %v2054
        %v2070 = vadd.f32 %v2047, %v2054
        %v2071 = vadd.f32 %v2048, %v2054
        %v2072 = vld [vmem:[%s334] sm:$0xf]
        %v2073 = vld [vmem:[%s334 + $0x4] sm:$0xf]
        %v2074 = vld [vmem:[%s334 + $0x8] sm:$0x1]
        %v2075 = vld [vmem:[%s334 + $0xc] sm:$0xf]
        %v2076 = vld [vmem:[%s334 + $0x10] sm:$0xf]
        %v2077 = vld [vmem:[%s334 + $0x14] sm:$0x1]
        %v2078 = vld [vmem:[%s334 + $0x18] sm:$0xf]
        %v2079 = vld [vmem:[%s334 + $0x1c] sm:$0xf]
        %v2080 = vld [vmem:[%s334 + $0x20] sm:$0x1]
        %v2081 = vld [vmem:[%s334 + $0x24] sm:$0xf]
        %v2082 = vld [vmem:[%s334 + $0x28] sm:$0xf]
        %v2083 = vld [vmem:[%s334 + $0x2c] sm:$0x1]
        %v2084 = vld [vmem:[%s334 + $0x30] sm:$0xf]
        %v2085 = vld [vmem:[%s334 + $0x34] sm:$0xf]
        %v2086 = vld [vmem:[%s334 + $0x38] sm:$0x1]
        %v2087 = vld [vmem:[%s334 + $0x3c] sm:$0xf]
        %v2088 = vld [vmem:[%s334 + $0x40] sm:$0xf]
        %v2089 = vld [vmem:[%s334 + $0x44] sm:$0x1]
        %v2090 = vld [vmem:[%s334 + $0x48] sm:$0xf]
        %v2091 = vld [vmem:[%s334 + $0x4c] sm:$0xf]
        %v2092 = vld [vmem:[%s334 + $0x50] sm:$0x1]
        %v2093 = vld [vmem:[%s334 + $0x54] sm:$0xf]
        %v2094 = vld [vmem:[%s334 + $0x58] sm:$0xf]
        %v2095 = vld [vmem:[%s334 + $0x5c] sm:$0x1]
        %v2096 = vld [vmem:[%s334 + $0x60] sm:$0xf]
        %v2097 = vld [vmem:[%s334 + $0x64] sm:$0xf]
        %v2098 = vld [vmem:[%s334 + $0x68] sm:$0x1]
        %v2099 = vld [vmem:[%s334 + $0x6c] sm:$0xf]
        %v2100 = vld [vmem:[%s334 + $0x70] sm:$0xf]
        %v2101 = vld [vmem:[%s334 + $0x74] sm:$0x1]
        %v2102 = vld [vmem:[%s334 + $0x78] sm:$0xf]
        %v2103 = vld [vmem:[%s334 + $0x7c] sm:$0xf]
        %v2104 = vld [vmem:[%s334 + $0x80] sm:$0x1]
        %v2105 = vld [vmem:[%s334 + $0x84] sm:$0xf]
        %v2106 = vld [vmem:[%s334 + $0x88] sm:$0xf]
        %v2107 = vld [vmem:[%s334 + $0x8c] sm:$0x1]
        %v2108 = vld [vmem:[%s2] sm:$0x3]
        %v2110 = vshrl.u32 %v2072, 16
        %v2112 = vrot.slane %v2110, 4
        %v2113 = vshll.u32 %v2072, 16
        %v2115 = vrot.slane %v2113, 5
        %v2116 = vor.u32 %v2112, %v2115
        %v2117 = vrot.slane %v2116, 4
        %v2119 = vshll.u32 %v2073, 16
        %v2121 = vrot.slane %v2119, 5
        %v2122 = vsel %vm389, %v2117, %v2121
        %v2123 = vshrl.u32 %v2073, 16
        %v2125 = vrot.slane %v2123, 4
        %v2126 = vor.u32 %v2125, %v2121
        %v2127 = vrot.slane %v2126, 4
        %v2129 = vshll.u32 %v2074, 16
        %v2131 = vrot.slane %v2129, 5
        %v2132 = vsel %vm389, %v2127, %v2131
        %v2134 = vshrl.u32 %v2075, 16
        %v2136 = vrot.slane %v2134, 4
        %v2137 = vshll.u32 %v2075, 16
        %v2139 = vrot.slane %v2137, 5
        %v2140 = vor.u32 %v2136, %v2139
        %v2141 = vrot.slane %v2140, 4
        %v2143 = vshll.u32 %v2076, 16
        %v2145 = vrot.slane %v2143, 5
        %v2146 = vsel %vm389, %v2141, %v2145
        %v2147 = vshrl.u32 %v2076, 16
        %v2149 = vrot.slane %v2147, 4
        %v2150 = vor.u32 %v2149, %v2145
        %v2151 = vrot.slane %v2150, 4
        %v2153 = vshll.u32 %v2077, 16
        %v2155 = vrot.slane %v2153, 5
        %v2156 = vsel %vm389, %v2151, %v2155
        %v2158 = vshrl.u32 %v2078, 16
        %v2160 = vrot.slane %v2158, 4
        %v2161 = vshll.u32 %v2078, 16
        %v2163 = vrot.slane %v2161, 5
        %v2164 = vor.u32 %v2160, %v2163
        %v2165 = vrot.slane %v2164, 4
        %v2167 = vshll.u32 %v2079, 16
        %v2169 = vrot.slane %v2167, 5
        %v2170 = vsel %vm389, %v2165, %v2169
        %v2171 = vshrl.u32 %v2079, 16
        %v2173 = vrot.slane %v2171, 4
        %v2174 = vor.u32 %v2173, %v2169
        %v2175 = vrot.slane %v2174, 4
        %v2177 = vshll.u32 %v2080, 16
        %v2179 = vrot.slane %v2177, 5
        %v2180 = vsel %vm389, %v2175, %v2179
        %v2182 = vshrl.u32 %v2081, 16
        %v2184 = vrot.slane %v2182, 4
        %v2185 = vshll.u32 %v2081, 16
        %v2187 = vrot.slane %v2185, 5
        %v2188 = vor.u32 %v2184, %v2187
        %v2189 = vrot.slane %v2188, 4
        %v2191 = vshll.u32 %v2082, 16
        %v2193 = vrot.slane %v2191, 5
        %v2194 = vsel %vm389, %v2189, %v2193
        %v2195 = vshrl.u32 %v2082, 16
        %v2197 = vrot.slane %v2195, 4
        %v2198 = vor.u32 %v2197, %v2193
        %v2199 = vrot.slane %v2198, 4
        %v2201 = vshll.u32 %v2083, 16
        %v2203 = vrot.slane %v2201, 5
        %v2204 = vsel %vm389, %v2199, %v2203
        %v2206 = vshrl.u32 %v2090, 16
        %v2208 = vrot.slane %v2206, 4
        %v2209 = vshll.u32 %v2090, 16
        %v2211 = vrot.slane %v2209, 5
        %v2212 = vor.u32 %v2208, %v2211
        %v2213 = vrot.slane %v2212, 4
        %v2215 = vshll.u32 %v2091, 16
        %v2217 = vrot.slane %v2215, 5
        %v2218 = vsel %vm389, %v2213, %v2217
        %v2219 = vshrl.u32 %v2091, 16
        %v2221 = vrot.slane %v2219, 4
        %v2222 = vor.u32 %v2221, %v2217
        %v2223 = vrot.slane %v2222, 4
        %v2225 = vshll.u32 %v2092, 16
        %v2227 = vrot.slane %v2225, 5
        %v2228 = vsel %vm389, %v2223, %v2227
        %v2230 = vshrl.u32 %v2093, 16
        %v2232 = vrot.slane %v2230, 4
        %v2233 = vshll.u32 %v2093, 16
        %v2235 = vrot.slane %v2233, 5
        %v2236 = vor.u32 %v2232, %v2235
        %v2237 = vrot.slane %v2236, 4
        %v2239 = vshll.u32 %v2094, 16
        %v2241 = vrot.slane %v2239, 5
        %v2242 = vsel %vm389, %v2237, %v2241
        %v2243 = vshrl.u32 %v2094, 16
        %v2245 = vrot.slane %v2243, 4
        %v2246 = vor.u32 %v2245, %v2241
        %v2247 = vrot.slane %v2246, 4
        %v2249 = vshll.u32 %v2095, 16
        %v2251 = vrot.slane %v2249, 5
        %v2252 = vsel %vm389, %v2247, %v2251
        %v2254 = vshrl.u32 %v2096, 16
        %v2256 = vrot.slane %v2254, 4
        %v2257 = vshll.u32 %v2096, 16
        %v2259 = vrot.slane %v2257, 5
        %v2260 = vor.u32 %v2256, %v2259
        %v2261 = vrot.slane %v2260, 4
        %v2263 = vshll.u32 %v2097, 16
        %v2265 = vrot.slane %v2263, 5
        %v2266 = vsel %vm389, %v2261, %v2265
        %v2267 = vshrl.u32 %v2097, 16
        %v2269 = vrot.slane %v2267, 4
        %v2270 = vor.u32 %v2269, %v2265
        %v2271 = vrot.slane %v2270, 4
        %v2273 = vshll.u32 %v2098, 16
        %v2275 = vrot.slane %v2273, 5
        %v2276 = vsel %vm389, %v2271, %v2275
        %v2278 = vshrl.u32 %v2099, 16
        %v2280 = vrot.slane %v2278, 4
        %v2281 = vshll.u32 %v2099, 16
        %v2283 = vrot.slane %v2281, 5
        %v2284 = vor.u32 %v2280, %v2283
        %v2285 = vrot.slane %v2284, 4
        %v2287 = vshll.u32 %v2100, 16
        %v2289 = vrot.slane %v2287, 5
        %v2290 = vsel %vm389, %v2285, %v2289
        %v2291 = vshrl.u32 %v2100, 16
        %v2293 = vrot.slane %v2291, 4
        %v2294 = vor.u32 %v2293, %v2289
        %v2295 = vrot.slane %v2294, 4
        %v2297 = vshll.u32 %v2101, 16
        %v2299 = vrot.slane %v2297, 5
        %v2300 = vsel %vm389, %v2295, %v2299
        %s2301 = scalar_lea.vmem %s2, 2
        %v2302 = vld [vmem:[%s2301] sm:$0x3]
        %v2303 = vunpack.c.l.b16 %v2122
        %v2304 = vunpack.c.l.b16 %v2132
        %v2305 = vunpack.c.l.b16 %v2146
        %v2306 = vunpack.c.l.b16 %v2156
        %v2307 = vunpack.c.l.b16 %v2170
        %v2308 = vunpack.c.l.b16 %v2180
        %v2309 = vunpack.c.l.b16 %v2194
        %v2310 = vunpack.c.l.b16 %v2204
        %v2311 = vunpack.c.l.b16 %v2218
        %v2312 = vunpack.c.l.b16 %v2228
        %v2313 = vunpack.c.l.b16 %v2242
        %v2314 = vunpack.c.l.b16 %v2252
        %v2315 = vunpack.c.l.b16 %v2266
        %v2316 = vunpack.c.l.b16 %v2276
        %v2317 = vunpack.c.l.b16 %v2290
        %v2318 = vunpack.c.l.b16 %v2300
        %v2319 = vpack.c.b16 %v2304, %v2303
        %v2320 = vpack.c.b16 %v2306, %v2305
        %v2321 = vpack.c.b16 %v2308, %v2307
        %v2322 = vpack.c.b16 %v2310, %v2309
        %v2323 = vpack.c.b16 %v2312, %v2311
        %v2324 = vpack.c.b16 %v2314, %v2313
        %v2325 = vpack.c.b16 %v2316, %v2315
        %v2326 = vpack.c.b16 %v2318, %v2317
        %vm2327 = vcmask 23552
        %v2329 = vsel %vm2327, %v2319, 0
        %v2332 = vsel %vm2327, %v2320, 0
        %v2335 = vsel %vm2327, %v2321, 0
        %v2338 = vsel %vm2327, %v2322, 0
        %v2341 = vsel %vm2327, %v2323, 0
        %v2344 = vsel %vm2327, %v2324, 0
        %v2347 = vsel %vm2327, %v2325, 0
        %v2350 = vsel %vm2327, %v2326, 0
        %vm2352 = vcmask 1041408
        %v2353 = vsel %vm633, 4294967295, 65535
        %v2354 = vsel %vm2352, %v2353, 0
        %v2356 = vand.u32 %v2302, %v2354
        %2358 = vmatprep.subr.bf16.mxu0 0
        %2359 = vmatpush1.bf16.msra.mxu0 %v2356
        %2360 = vmatprep.subr.bf16.mxu0 0
        %2361 = vmatpush1.bf16.msra.mxu0 0
        %2362 = vmatprep.subr.bf16.mxu0 0
        %2363 = vmatpush1.bf16.msra.mxu0 0
        %2364 = vmatprep.subr.bf16.mxu0 0
        %2365 = vmatpush1.bf16.msra.mxu0 0
        %2366 = vmatprep.subr.bf16.mxu0 0
        %2367 = vmatpush1.bf16.msra.mxu0 0
        %2368 = vmatprep.subr.bf16.mxu0 0
        %2369 = vmatpush1.bf16.msra.mxu0 0
        %2370 = vmatprep.subr.bf16.mxu0 0
        %2371 = vmatpush1.bf16.msra.mxu0 0
        %2372 = vmatprep.subr.bf16.mxu0 0
        %2373 = vmatpush1.bf16.msra.mxu0 0
        %2374 = vmatprep.subr.bf16.mxu0 0
        %2375 = vmatpush1.bf16.msra.mxu0 0
        %2376 = vmatprep.subr.bf16.mxu0 0
        %2377 = vmatpush1.bf16.msra.mxu0 0
        %2378 = vmatprep.subr.bf16.mxu0 0
        %2379 = vmatpush1.bf16.msra.mxu0 0
        %2380 = vmatprep.subr.bf16.mxu0 0
        %2381 = vmatpush1.bf16.msra.mxu0 0
        %2382 = vmatprep.subr.bf16.mxu0 0
        %2383 = vmatpush1.bf16.msra.mxu0 0
        %2384 = vmatprep.subr.bf16.mxu0 0
        %2385 = vmatpush1.bf16.msra.mxu0 0
        %2386 = vmatprep.subr.bf16.mxu0 0
        %2387 = vmatpush1.bf16.msra.mxu0 0
        %2388 = vmatprep.subr.bf16.mxu0 0
        %2389 = vmatpush1.bf16.msra.mxu0 0
        %2390 = vmatprep.mubr.bf16.mxu0 0
        %2391 = vmatmul.mubr.bf16.gmra.mrb[0].mxu0 %v2329
        %v2392 = vpop.f32.mrb[0].mxu0
        %v2393 = vadd.f32 0.0, %v2392
        %v2394 = vpop.f32.mrb[0].mxu0
        %v2395 = vpop.f32.mrb[0].mxu0
        %v2396 = vadd.f32 0.0, %v2395
        %v2397 = vpop.f32.mrb[0].mxu0
        %2398 = vmatprep.mubr.bf16.mxu0 0
        %2399 = vmatmul.mubr.bf16.gmra.mrb[0].mxu0 %v2332
        %v2400 = vpop.f32.mrb[0].mxu0
        %v2401 = vadd.f32 0.0, %v2400
        %v2402 = vpop.f32.mrb[0].mxu0
        %v2403 = vpop.f32.mrb[0].mxu0
        %v2404 = vadd.f32 0.0, %v2403
        %v2405 = vpop.f32.mrb[0].mxu0
        %2406 = vmatprep.mubr.bf16.mxu0 0
        %2407 = vmatmul.mubr.bf16.gmra.mrb[0].mxu0 %v2335
        %v2408 = vpop.f32.mrb[0].mxu0
        %v2409 = vadd.f32 0.0, %v2408
        %v2410 = vpop.f32.mrb[0].mxu0
        %v2411 = vpop.f32.mrb[0].mxu0
        %v2412 = vadd.f32 0.0, %v2411
        %v2413 = vpop.f32.mrb[0].mxu0
        %2414 = vmatprep.mubr.bf16.mxu0 0
        %2415 = vmatmul.mubr.bf16.gmra.mrb[0].mxu0 %v2338
        %v2416 = vpop.f32.mrb[0].mxu0
        %v2417 = vadd.f32 0.0, %v2416
        %v2418 = vpop.f32.mrb[0].mxu0
        %v2419 = vpop.f32.mrb[0].mxu0
        %v2420 = vadd.f32 0.0, %v2419
        %v2421 = vpop.f32.mrb[0].mxu0
        %2422 = vmatprep.mubr.bf16.mxu0 0
        %2423 = vmatmul.mubr.bf16.gmra.mrb[0].mxu0 %v2341
        %v2424 = vpop.f32.mrb[0].mxu0
        %v2425 = vadd.f32 0.0, %v2424
        %v2426 = vpop.f32.mrb[0].mxu0
        %v2427 = vpop.f32.mrb[0].mxu0
        %v2428 = vadd.f32 0.0, %v2427
        %v2429 = vpop.f32.mrb[0].mxu0
        %2430 = vmatprep.mubr.bf16.mxu0 0
        %2431 = vmatmul.mubr.bf16.gmra.mrb[0].mxu0 %v2344
        %v2432 = vpop.f32.mrb[0].mxu0
        %v2433 = vadd.f32 0.0, %v2432
        %v2434 = vpop.f32.mrb[0].mxu0
        %v2435 = vpop.f32.mrb[0].mxu0
        %v2436 = vadd.f32 0.0, %v2435
        %v2437 = vpop.f32.mrb[0].mxu0
        %2438 = vmatprep.mubr.bf16.mxu0 0
        %2439 = vmatmul.mubr.bf16.gmra.mrb[0].mxu0 %v2347
        %v2440 = vpop.f32.mrb[0].mxu0
        %v2441 = vadd.f32 0.0, %v2440
        %v2442 = vpop.f32.mrb[0].mxu0
        %v2443 = vpop.f32.mrb[0].mxu0
        %v2444 = vadd.f32 0.0, %v2443
        %v2445 = vpop.f32.mrb[0].mxu0
        %2446 = vmatprep.mubr.bf16.mxu0 0
        %2447 = vmatmul.mubr.bf16.gmra.mrb[0].mxu0 %v2350
        %v2448 = vpop.f32.mrb[0].mxu0
        %v2449 = vadd.f32 0.0, %v2448
        %v2450 = vpop.f32.mrb[0].mxu0
        %v2451 = vpop.f32.mrb[0].mxu0
        %v2452 = vadd.f32 0.0, %v2451
        %v2453 = vpop.f32.mrb[0].mxu0
        %2454 = vdwg.mxu0
        %v2471 = vunpack.c.l.b16 %v2072
        %v2472 = vunpack.c.l.b16 %v2073
        %v2473 = vunpack.c.l.b16 %v2075
        %v2474 = vunpack.c.l.b16 %v2076
        %v2475 = vunpack.c.l.b16 %v2078
        %v2476 = vunpack.c.l.b16 %v2079
        %v2477 = vunpack.c.l.b16 %v2081
        %v2478 = vunpack.c.l.b16 %v2082
        %v2479 = vunpack.c.l.b16 %v2090
        %v2480 = vunpack.c.l.b16 %v2091
        %v2481 = vunpack.c.l.b16 %v2093
        %v2482 = vunpack.c.l.b16 %v2094
        %v2483 = vunpack.c.l.b16 %v2096
        %v2484 = vunpack.c.l.b16 %v2097
        %v2485 = vunpack.c.l.b16 %v2099
        %v2486 = vunpack.c.l.b16 %v2100
        %v2487 = vpack.c.b16 %v2472, %v2471
        %v2488 = vpack.c.b16 %v2474, %v2473
        %v2489 = vpack.c.b16 %v2476, %v2475
        %v2490 = vpack.c.b16 %v2478, %v2477
        %v2491 = vpack.c.b16 %v2480, %v2479
        %v2492 = vpack.c.b16 %v2482, %v2481
        %v2493 = vpack.c.b16 %v2484, %v2483
        %v2494 = vpack.c.b16 %v2486, %v2485
        %v2496 = vsel %vm2327, %v2487, 0
        %v2499 = vsel %vm2327, %v2488, 0
        %v2502 = vsel %vm2327, %v2489, 0
        %v2505 = vsel %vm2327, %v2490, 0
        %v2508 = vsel %vm2327, %v2491, 0
        %v2511 = vsel %vm2327, %v2492, 0
        %v2514 = vsel %vm2327, %v2493, 0
        %v2517 = vsel %vm2327, %v2494, 0
        %v2520 = vand.u32 %v2108, %v2354
        %2522 = vmatprep.subr.bf16.mxu0 0
        %2523 = vmatpush1.bf16.msra.mxu0 %v2520
        %2524 = vmatprep.subr.bf16.mxu0 0
        %2525 = vmatpush1.bf16.msra.mxu0 0
        %2526 = vmatprep.subr.bf16.mxu0 0
        %2527 = vmatpush1.bf16.msra.mxu0 0
        %2528 = vmatprep.subr.bf16.mxu0 0
        %2529 = vmatpush1.bf16.msra.mxu0 0
        %2530 = vmatprep.subr.bf16.mxu0 0
        %2531 = vmatpush1.bf16.msra.mxu0 0
        %2532 = vmatprep.subr.bf16.mxu0 0
        %2533 = vmatpush1.bf16.msra.mxu0 0
        %2534 = vmatprep.subr.bf16.mxu0 0
        %2535 = vmatpush1.bf16.msra.mxu0 0
        %2536 = vmatprep.subr.bf16.mxu0 0
        %2537 = vmatpush1.bf16.msra.mxu0 0
        %2538 = vmatprep.subr.bf16.mxu0 0
        %2539 = vmatpush1.bf16.msra.mxu0 0
        %2540 = vmatprep.subr.bf16.mxu0 0
        %2541 = vmatpush1.bf16.msra.mxu0 0
        %2542 = vmatprep.subr.bf16.mxu0 0
        %2543 = vmatpush1.bf16.msra.mxu0 0
        %2544 = vmatprep.subr.bf16.mxu0 0
        %2545 = vmatpush1.bf16.msra.mxu0 0
        %2546 = vmatprep.subr.bf16.mxu0 0
        %2547 = vmatpush1.bf16.msra.mxu0 0
        %2548 = vmatprep.subr.bf16.mxu0 0
        %2549 = vmatpush1.bf16.msra.mxu0 0
        %2550 = vmatprep.subr.bf16.mxu0 0
        %2551 = vmatpush1.bf16.msra.mxu0 0
        %2552 = vmatprep.subr.bf16.mxu0 0
        %2553 = vmatpush1.bf16.msra.mxu0 0
        %2554 = vmatprep.mubr.bf16.mxu0 0
        %2555 = vmatmul.mubr.bf16.gmra.mrb[0].mxu0 %v2496
        %v2556 = vpop.f32.mrb[0].mxu0
        %v2557 = vadd.f32 %v2393, %v2556
        %v2558 = vpop.f32.mrb[0].mxu0
        %v2559 = vpop.f32.mrb[0].mxu0
        %v2560 = vadd.f32 %v2396, %v2559
        %v2561 = vpop.f32.mrb[0].mxu0
        %2562 = vmatprep.mubr.bf16.mxu0 0
        %2563 = vmatmul.mubr.bf16.gmra.mrb[0].mxu0 %v2499
        %v2564 = vpop.f32.mrb[0].mxu0
        %v2565 = vadd.f32 %v2401, %v2564
        %v2566 = vpop.f32.mrb[0].mxu0
        %v2567 = vpop.f32.mrb[0].mxu0
        %v2568 = vadd.f32 %v2404, %v2567
        %v2569 = vpop.f32.mrb[0].mxu0
        %2570 = vmatprep.mubr.bf16.mxu0 0
        %2571 = vmatmul.mubr.bf16.gmra.mrb[0].mxu0 %v2502
        %v2572 = vpop.f32.mrb[0].mxu0
        %v2573 = vadd.f32 %v2409, %v2572
        %v2574 = vpop.f32.mrb[0].mxu0
        %v2575 = vpop.f32.mrb[0].mxu0
        %v2576 = vadd.f32 %v2412, %v2575
        %v2577 = vpop.f32.mrb[0].mxu0
        %2578 = vmatprep.mubr.bf16.mxu0 0
        %2579 = vmatmul.mubr.bf16.gmra.mrb[0].mxu0 %v2505
        %v2580 = vpop.f32.mrb[0].mxu0
        %v2581 = vadd.f32 %v2417, %v2580
        %v2582 = vpop.f32.mrb[0].mxu0
        %v2583 = vpop.f32.mrb[0].mxu0
        %v2584 = vadd.f32 %v2420, %v2583
        %v2585 = vpop.f32.mrb[0].mxu0
        %2586 = vmatprep.mubr.bf16.mxu0 0
        %2587 = vmatmul.mubr.bf16.gmra.mrb[0].mxu0 %v2508
        %v2588 = vpop.f32.mrb[0].mxu0
        %v2589 = vadd.f32 %v2425, %v2588
        %v2590 = vpop.f32.mrb[0].mxu0
        %v2591 = vpop.f32.mrb[0].mxu0
        %v2592 = vadd.f32 %v2428, %v2591
        %v2593 = vpop.f32.mrb[0].mxu0
        %2594 = vmatprep.mubr.bf16.mxu0 0
        %2595 = vmatmul.mubr.bf16.gmra.mrb[0].mxu0 %v2511
        %v2596 = vpop.f32.mrb[0].mxu0
        %v2597 = vadd.f32 %v2433, %v2596
        %v2598 = vpop.f32.mrb[0].mxu0
        %v2599 = vpop.f32.mrb[0].mxu0
        %v2600 = vadd.f32 %v2436, %v2599
        %v2601 = vpop.f32.mrb[0].mxu0
        %2602 = vmatprep.mubr.bf16.mxu0 0
        %2603 = vmatmul.mubr.bf16.gmra.mrb[0].mxu0 %v2514
        %v2604 = vpop.f32.mrb[0].mxu0
        %v2605 = vadd.f32 %v2441, %v2604
        %v2606 = vpop.f32.mrb[0].mxu0
        %v2607 = vpop.f32.mrb[0].mxu0
        %v2608 = vadd.f32 %v2444, %v2607
        %v2609 = vpop.f32.mrb[0].mxu0
        %2610 = vmatprep.mubr.bf16.mxu0 0
        %2611 = vmatmul.mubr.bf16.gmra.mrb[0].mxu0 %v2517
        %v2612 = vpop.f32.mrb[0].mxu0
        %v2613 = vadd.f32 %v2449, %v2612
        %v2614 = vpop.f32.mrb[0].mxu0
        %v2615 = vpop.f32.mrb[0].mxu0
        %v2616 = vadd.f32 %v2452, %v2615
        %v2617 = vpop.f32.mrb[0].mxu0
        %2618 = vdwg.mxu0
        %v2627 = vrot.slane %v2072, 5
        %v2628 = vrot.slane %v2627, 4
        %v2629 = vrot.slane %v2073, 5
        %v2630 = vsel %vm910, %v2628, %v2629
        %v2631 = vrot.slane %v2629, 4
        %v2632 = vrot.slane %v2074, 5
        %v2633 = vsel %vm910, %v2631, %v2632
        %v2634 = vrot.slane %v2075, 5
        %v2635 = vrot.slane %v2634, 4
        %v2636 = vrot.slane %v2076, 5
        %v2637 = vsel %vm910, %v2635, %v2636
        %v2638 = vrot.slane %v2636, 4
        %v2639 = vrot.slane %v2077, 5
        %v2640 = vsel %vm910, %v2638, %v2639
        %v2641 = vrot.slane %v2078, 5
        %v2642 = vrot.slane %v2641, 4
        %v2643 = vrot.slane %v2079, 5
        %v2644 = vsel %vm910, %v2642, %v2643
        %v2645 = vrot.slane %v2643, 4
        %v2646 = vrot.slane %v2080, 5
        %v2647 = vsel %vm910, %v2645, %v2646
        %v2648 = vrot.slane %v2081, 5
        %v2649 = vrot.slane %v2648, 4
        %v2650 = vrot.slane %v2082, 5
        %v2651 = vsel %vm910, %v2649, %v2650
        %v2652 = vrot.slane %v2650, 4
        %v2653 = vrot.slane %v2083, 5
        %v2654 = vsel %vm910, %v2652, %v2653
        %v2655 = vrot.slane %v2090, 5
        %v2656 = vrot.slane %v2655, 4
        %v2657 = vrot.slane %v2091, 5
        %v2658 = vsel %vm910, %v2656, %v2657
        %v2659 = vrot.slane %v2657, 4
        %v2660 = vrot.slane %v2092, 5
        %v2661 = vsel %vm910, %v2659, %v2660
        %v2662 = vrot.slane %v2093, 5
        %v2663 = vrot.slane %v2662, 4
        %v2664 = vrot.slane %v2094, 5
        %v2665 = vsel %vm910, %v2663, %v2664
        %v2666 = vrot.slane %v2664, 4
        %v2667 = vrot.slane %v2095, 5
        %v2668 = vsel %vm910, %v2666, %v2667
        %v2669 = vrot.slane %v2096, 5
        %v2670 = vrot.slane %v2669, 4
        %v2671 = vrot.slane %v2097, 5
        %v2672 = vsel %vm910, %v2670, %v2671
        %v2673 = vrot.slane %v2671, 4
        %v2674 = vrot.slane %v2098, 5
        %v2675 = vsel %vm910, %v2673, %v2674
        %v2676 = vrot.slane %v2099, 5
        %v2677 = vrot.slane %v2676, 4
        %v2678 = vrot.slane %v2100, 5
        %v2679 = vsel %vm910, %v2677, %v2678
        %v2680 = vrot.slane %v2678, 4
        %v2681 = vrot.slane %v2101, 5
        %v2682 = vsel %vm910, %v2680, %v2681
        %s2683 = scalar_lea.vmem %s2, 4
        %v2684 = vld [vmem:[%s2683] sm:$0x3]
        %v2685 = vunpack.c.l.b16 %v2630
        %v2686 = vunpack.c.l.b16 %v2633
        %v2687 = vunpack.c.l.b16 %v2637
        %v2688 = vunpack.c.l.b16 %v2640
        %v2689 = vunpack.c.l.b16 %v2644
        %v2690 = vunpack.c.l.b16 %v2647
        %v2691 = vunpack.c.l.b16 %v2651
        %v2692 = vunpack.c.l.b16 %v2654
        %v2693 = vunpack.c.l.b16 %v2658
        %v2694 = vunpack.c.l.b16 %v2661
        %v2695 = vunpack.c.l.b16 %v2665
        %v2696 = vunpack.c.l.b16 %v2668
        %v2697 = vunpack.c.l.b16 %v2672
        %v2698 = vunpack.c.l.b16 %v2675
        %v2699 = vunpack.c.l.b16 %v2679
        %v2700 = vunpack.c.l.b16 %v2682
        %v2701 = vpack.c.b16 %v2686, %v2685
        %v2702 = vpack.c.b16 %v2688, %v2687
        %v2703 = vpack.c.b16 %v2690, %v2689
        %v2704 = vpack.c.b16 %v2692, %v2691
        %v2705 = vpack.c.b16 %v2694, %v2693
        %v2706 = vpack.c.b16 %v2696, %v2695
        %v2707 = vpack.c.b16 %v2698, %v2697
        %v2708 = vpack.c.b16 %v2700, %v2699
        %v2710 = vsel %vm2327, %v2701, 0
        %v2713 = vsel %vm2327, %v2702, 0
        %v2716 = vsel %vm2327, %v2703, 0
        %v2719 = vsel %vm2327, %v2704, 0
        %v2722 = vsel %vm2327, %v2705, 0
        %v2725 = vsel %vm2327, %v2706, 0
        %v2728 = vsel %vm2327, %v2707, 0
        %v2731 = vsel %vm2327, %v2708, 0
        %v2734 = vand.u32 %v2684, %v2354
        %2736 = vmatprep.subr.bf16.mxu0 0
        %2737 = vmatpush1.bf16.msra.mxu0 %v2734
        %2738 = vmatprep.subr.bf16.mxu0 0
        %2739 = vmatpush1.bf16.msra.mxu0 0
        %2740 = vmatprep.subr.bf16.mxu0 0
        %2741 = vmatpush1.bf16.msra.mxu0 0
        %2742 = vmatprep.subr.bf16.mxu0 0
        %2743 = vmatpush1.bf16.msra.mxu0 0
        %2744 = vmatprep.subr.bf16.mxu0 0
        %2745 = vmatpush1.bf16.msra.mxu0 0
        %2746 = vmatprep.subr.bf16.mxu0 0
        %2747 = vmatpush1.bf16.msra.mxu0 0
        %2748 = vmatprep.subr.bf16.mxu0 0
        %2749 = vmatpush1.bf16.msra.mxu0 0
        %2750 = vmatprep.subr.bf16.mxu0 0
        %2751 = vmatpush1.bf16.msra.mxu0 0
        %2752 = vmatprep.subr.bf16.mxu0 0
        %2753 = vmatpush1.bf16.msra.mxu0 0
        %2754 = vmatprep.subr.bf16.mxu0 0
        %2755 = vmatpush1.bf16.msra.mxu0 0
        %2756 = vmatprep.subr.bf16.mxu0 0
        %2757 = vmatpush1.bf16.msra.mxu0 0
        %2758 = vmatprep.subr.bf16.mxu0 0
        %2759 = vmatpush1.bf16.msra.mxu0 0
        %2760 = vmatprep.subr.bf16.mxu0 0
        %2761 = vmatpush1.bf16.msra.mxu0 0
        %2762 = vmatprep.subr.bf16.mxu0 0
        %2763 = vmatpush1.bf16.msra.mxu0 0
        %2764 = vmatprep.subr.bf16.mxu0 0
        %2765 = vmatpush1.bf16.msra.mxu0 0
        %2766 = vmatprep.subr.bf16.mxu0 0
        %2767 = vmatpush1.bf16.msra.mxu0 0
        %2768 = vmatprep.mubr.bf16.mxu0 0
        %2769 = vmatmul.mubr.bf16.gmra.mrb[0].mxu0 %v2710
        %v2770 = vpop.f32.mrb[0].mxu0
        %v2771 = vadd.f32 0.0, %v2770
        %v2772 = vpop.f32.mrb[0].mxu0
        %v2773 = vpop.f32.mrb[0].mxu0
        %v2774 = vadd.f32 0.0, %v2773
        %v2775 = vpop.f32.mrb[0].mxu0
        %2776 = vmatprep.mubr.bf16.mxu0 0
        %2777 = vmatmul.mubr.bf16.gmra.mrb[0].mxu0 %v2713
        %v2778 = vpop.f32.mrb[0].mxu0
        %v2779 = vadd.f32 0.0, %v2778
        %v2780 = vpop.f32.mrb[0].mxu0
        %v2781 = vpop.f32.mrb[0].mxu0
        %v2782 = vadd.f32 0.0, %v2781
        %v2783 = vpop.f32.mrb[0].mxu0
        %2784 = vmatprep.mubr.bf16.mxu0 0
        %2785 = vmatmul.mubr.bf16.gmra.mrb[0].mxu0 %v2716
        %v2786 = vpop.f32.mrb[0].mxu0
        %v2787 = vadd.f32 0.0, %v2786
        %v2788 = vpop.f32.mrb[0].mxu0
        %v2789 = vpop.f32.mrb[0].mxu0
        %v2790 = vadd.f32 0.0, %v2789
        %v2791 = vpop.f32.mrb[0].mxu0
        %2792 = vmatprep.mubr.bf16.mxu0 0
        %2793 = vmatmul.mubr.bf16.gmra.mrb[0].mxu0 %v2719
        %v2794 = vpop.f32.mrb[0].mxu0
        %v2795 = vadd.f32 0.0, %v2794
        %v2796 = vpop.f32.mrb[0].mxu0
        %v2797 = vpop.f32.mrb[0].mxu0
        %v2798 = vadd.f32 0.0, %v2797
        %v2799 = vpop.f32.mrb[0].mxu0
        %2800 = vmatprep.mubr.bf16.mxu0 0
        %2801 = vmatmul.mubr.bf16.gmra.mrb[0].mxu0 %v2722
        %v2802 = vpop.f32.mrb[0].mxu0
        %v2803 = vadd.f32 0.0, %v2802
        %v2804 = vpop.f32.mrb[0].mxu0
        %v2805 = vpop.f32.mrb[0].mxu0
        %v2806 = vadd.f32 0.0, %v2805
        %v2807 = vpop.f32.mrb[0].mxu0
        %2808 = vmatprep.mubr.bf16.mxu0 0
        %2809 = vmatmul.mubr.bf16.gmra.mrb[0].mxu0 %v2725
        %v2810 = vpop.f32.mrb[0].mxu0
        %v2811 = vadd.f32 0.0, %v2810
        %v2812 = vpop.f32.mrb[0].mxu0
        %v2813 = vpop.f32.mrb[0].mxu0
        %v2814 = vadd.f32 0.0, %v2813
        %v2815 = vpop.f32.mrb[0].mxu0
        %2816 = vmatprep.mubr.bf16.mxu0 0
        %2817 = vmatmul.mubr.bf16.gmra.mrb[0].mxu0 %v2728
        %v2818 = vpop.f32.mrb[0].mxu0
        %v2819 = vadd.f32 0.0, %v2818
        %v2820 = vpop.f32.mrb[0].mxu0
        %v2821 = vpop.f32.mrb[0].mxu0
        %v2822 = vadd.f32 0.0, %v2821
        %v2823 = vpop.f32.mrb[0].mxu0
        %2824 = vmatprep.mubr.bf16.mxu0 0
        %2825 = vmatmul.mubr.bf16.gmra.mrb[0].mxu0 %v2731
        %v2826 = vpop.f32.mrb[0].mxu0
        %v2827 = vadd.f32 0.0, %v2826
        %v2828 = vpop.f32.mrb[0].mxu0
        %v2829 = vpop.f32.mrb[0].mxu0
        %v2830 = vadd.f32 0.0, %v2829
        %v2831 = vpop.f32.mrb[0].mxu0
        %2832 = vdwg.mxu0
        %v2833 = vadd.f32 %v2557, %v2771
        %v2834 = vadd.f32 %v2560, %v2774
        %v2835 = vadd.f32 %v2565, %v2779
        %v2836 = vadd.f32 %v2568, %v2782
        %v2837 = vadd.f32 %v2573, %v2787
        %v2838 = vadd.f32 %v2576, %v2790
        %v2839 = vadd.f32 %v2581, %v2795
        %v2840 = vadd.f32 %v2584, %v2798
        %v2841 = vadd.f32 %v2589, %v2803
        %v2842 = vadd.f32 %v2592, %v2806
        %v2843 = vadd.f32 %v2597, %v2811
        %v2844 = vadd.f32 %v2600, %v2814
        %v2845 = vadd.f32 %v2605, %v2819
        %v2846 = vadd.f32 %v2608, %v2822
        %v2847 = vadd.f32 %v2613, %v2827
        %v2848 = vadd.f32 %v2616, %v2830
        %s2849 = scalar_lea.vmem %s2, 6
        %v2850 = vld [vmem:[%s2849] sm:$0x3]
        %v2855 = vunpack.c.l.b16 %v2084
        %v2856 = vunpack.c.l.b16 %v2085
        %v2857 = vunpack.c.l.b16 %v2102
        %v2858 = vunpack.c.l.b16 %v2103
        %v2859 = vpack.c.b16 %v2856, %v2855
        %v2860 = vpack.c.b16 %v2858, %v2857
        %v2862 = vsel %vm2327, %v2859, 0
        %v2865 = vsel %vm2327, %v2860, 0
        %v2868 = vand.u32 %v2850, %v2354
        %2870 = vmatprep.subr.bf16.mxu0 0
        %2871 = vmatpush1.bf16.msra.mxu0 %v2868
        %2872 = vmatprep.subr.bf16.mxu0 0
        %2873 = vmatpush1.bf16.msra.mxu0 0
        %2874 = vmatprep.subr.bf16.mxu0 0
        %2875 = vmatpush1.bf16.msra.mxu0 0
        %2876 = vmatprep.subr.bf16.mxu0 0
        %2877 = vmatpush1.bf16.msra.mxu0 0
        %2878 = vmatprep.subr.bf16.mxu0 0
        %2879 = vmatpush1.bf16.msra.mxu0 0
        %2880 = vmatprep.subr.bf16.mxu0 0
        %2881 = vmatpush1.bf16.msra.mxu0 0
        %2882 = vmatprep.subr.bf16.mxu0 0
        %2883 = vmatpush1.bf16.msra.mxu0 0
        %2884 = vmatprep.subr.bf16.mxu0 0
        %2885 = vmatpush1.bf16.msra.mxu0 0
        %2886 = vmatprep.subr.bf16.mxu0 0
        %2887 = vmatpush1.bf16.msra.mxu0 0
        %2888 = vmatprep.subr.bf16.mxu0 0
        %2889 = vmatpush1.bf16.msra.mxu0 0
        %2890 = vmatprep.subr.bf16.mxu0 0
        %2891 = vmatpush1.bf16.msra.mxu0 0
        %2892 = vmatprep.subr.bf16.mxu0 0
        %2893 = vmatpush1.bf16.msra.mxu0 0
        %2894 = vmatprep.subr.bf16.mxu0 0
        %2895 = vmatpush1.bf16.msra.mxu0 0
        %2896 = vmatprep.subr.bf16.mxu0 0
        %2897 = vmatpush1.bf16.msra.mxu0 0
        %2898 = vmatprep.subr.bf16.mxu0 0
        %2899 = vmatpush1.bf16.msra.mxu0 0
        %2900 = vmatprep.subr.bf16.mxu0 0
        %2901 = vmatpush1.bf16.msra.mxu0 0
        %2902 = vmatprep.mubr.bf16.mxu0 0
        %2903 = vmatmul.mubr.bf16.gmra.mrb[0].mxu0 %v2499
        %v2904 = vpop.f32.mrb[0].mxu0
        %v2905 = vadd.f32 0.0, %v2904
        %v2906 = vpop.f32.mrb[0].mxu0
        %v2907 = vpop.f32.mrb[0].mxu0
        %v2908 = vadd.f32 0.0, %v2907
        %v2909 = vpop.f32.mrb[0].mxu0
        %2910 = vmatprep.mubr.bf16.mxu0 0
        %2911 = vmatmul.mubr.bf16.gmra.mrb[0].mxu0 %v2502
        %v2912 = vpop.f32.mrb[0].mxu0
        %v2913 = vadd.f32 0.0, %v2912
        %v2914 = vpop.f32.mrb[0].mxu0
        %v2915 = vpop.f32.mrb[0].mxu0
        %v2916 = vadd.f32 0.0, %v2915
        %v2917 = vpop.f32.mrb[0].mxu0
        %2918 = vmatprep.mubr.bf16.mxu0 0
        %2919 = vmatmul.mubr.bf16.gmra.mrb[0].mxu0 %v2505
        %v2920 = vpop.f32.mrb[0].mxu0
        %v2921 = vadd.f32 0.0, %v2920
        %v2922 = vpop.f32.mrb[0].mxu0
        %v2923 = vpop.f32.mrb[0].mxu0
        %v2924 = vadd.f32 0.0, %v2923
        %v2925 = vpop.f32.mrb[0].mxu0
        %2926 = vmatprep.mubr.bf16.mxu0 0
        %2927 = vmatmul.mubr.bf16.gmra.mrb[0].mxu0 %v2862
        %v2928 = vpop.f32.mrb[0].mxu0
        %v2929 = vadd.f32 0.0, %v2928
        %v2930 = vpop.f32.mrb[0].mxu0
        %v2931 = vpop.f32.mrb[0].mxu0
        %v2932 = vadd.f32 0.0, %v2931
        %v2933 = vpop.f32.mrb[0].mxu0
        %2934 = vmatprep.mubr.bf16.mxu0 0
        %2935 = vmatmul.mubr.bf16.gmra.mrb[0].mxu0 %v2511
        %v2936 = vpop.f32.mrb[0].mxu0
        %v2937 = vadd.f32 0.0, %v2936
        %v2938 = vpop.f32.mrb[0].mxu0
        %v2939 = vpop.f32.mrb[0].mxu0
        %v2940 = vadd.f32 0.0, %v2939
        %v2941 = vpop.f32.mrb[0].mxu0
        %2942 = vmatprep.mubr.bf16.mxu0 0
        %2943 = vmatmul.mubr.bf16.gmra.mrb[0].mxu0 %v2514
        %v2944 = vpop.f32.mrb[0].mxu0
        %v2945 = vadd.f32 0.0, %v2944
        %v2946 = vpop.f32.mrb[0].mxu0
        %v2947 = vpop.f32.mrb[0].mxu0
        %v2948 = vadd.f32 0.0, %v2947
        %v2949 = vpop.f32.mrb[0].mxu0
        %2950 = vmatprep.mubr.bf16.mxu0 0
        %2951 = vmatmul.mubr.bf16.gmra.mrb[0].mxu0 %v2517
        %v2952 = vpop.f32.mrb[0].mxu0
        %v2953 = vadd.f32 0.0, %v2952
        %v2954 = vpop.f32.mrb[0].mxu0
        %v2955 = vpop.f32.mrb[0].mxu0
        %v2956 = vadd.f32 0.0, %v2955
        %v2957 = vpop.f32.mrb[0].mxu0
        %2958 = vmatprep.mubr.bf16.mxu0 0
        %2959 = vmatmul.mubr.bf16.gmra.mrb[0].mxu0 %v2865
        %v2960 = vpop.f32.mrb[0].mxu0
        %v2961 = vadd.f32 0.0, %v2960
        %v2962 = vpop.f32.mrb[0].mxu0
        %v2963 = vpop.f32.mrb[0].mxu0
        %v2964 = vadd.f32 0.0, %v2963
        %v2965 = vpop.f32.mrb[0].mxu0
        %2966 = vdwg.mxu0
        %v2967 = vadd.f32 %v2833, %v2905
        %v2968 = vadd.f32 %v2834, %v2908
        %v2969 = vadd.f32 %v2835, %v2913
        %v2970 = vadd.f32 %v2836, %v2916
        %v2971 = vadd.f32 %v2837, %v2921
        %v2972 = vadd.f32 %v2838, %v2924
        %v2973 = vadd.f32 %v2839, %v2929
        %v2974 = vadd.f32 %v2840, %v2932
        %v2975 = vadd.f32 %v2841, %v2937
        %v2976 = vadd.f32 %v2842, %v2940
        %v2977 = vadd.f32 %v2843, %v2945
        %v2978 = vadd.f32 %v2844, %v2948
        %v2979 = vadd.f32 %v2845, %v2953
        %v2980 = vadd.f32 %v2846, %v2956
        %v2981 = vadd.f32 %v2847, %v2961
        %v2982 = vadd.f32 %v2848, %v2964
        %v2984 = vshrl.u32 %v2084, 16
        %v2986 = vrot.slane %v2984, 4
        %v2987 = vshll.u32 %v2084, 16
        %v2989 = vrot.slane %v2987, 5
        %v2990 = vor.u32 %v2986, %v2989
        %v2991 = vrot.slane %v2990, 4
        %v2993 = vshll.u32 %v2085, 16
        %v2995 = vrot.slane %v2993, 5
        %v2996 = vsel %vm389, %v2991, %v2995
        %v2997 = vshrl.u32 %v2085, 16
        %v2999 = vrot.slane %v2997, 4
        %v3000 = vor.u32 %v2999, %v2995
        %v3001 = vrot.slane %v3000, 4
        %v3003 = vshll.u32 %v2086, 16
        %v3005 = vrot.slane %v3003, 5
        %v3006 = vsel %vm389, %v3001, %v3005
        %v3008 = vshrl.u32 %v2102, 16
        %v3010 = vrot.slane %v3008, 4
        %v3011 = vshll.u32 %v2102, 16
        %v3013 = vrot.slane %v3011, 5
        %v3014 = vor.u32 %v3010, %v3013
        %v3015 = vrot.slane %v3014, 4
        %v3017 = vshll.u32 %v2103, 16
        %v3019 = vrot.slane %v3017, 5
        %v3020 = vsel %vm389, %v3015, %v3019
        %v3021 = vshrl.u32 %v2103, 16
        %v3023 = vrot.slane %v3021, 4
        %v3024 = vor.u32 %v3023, %v3019
        %v3025 = vrot.slane %v3024, 4
        %v3027 = vshll.u32 %v2104, 16
        %v3029 = vrot.slane %v3027, 5
        %v3030 = vsel %vm389, %v3025, %v3029
        %s3031 = scalar_lea.vmem %s2, 8
        %v3032 = vld [vmem:[%s3031] sm:$0x3]
        %v3033 = vunpack.c.l.b16 %v2996
        %v3034 = vunpack.c.l.b16 %v3006
        %v3035 = vunpack.c.l.b16 %v3020
        %v3036 = vunpack.c.l.b16 %v3030
        %v3037 = vpack.c.b16 %v3034, %v3033
        %v3038 = vpack.c.b16 %v3036, %v3035
        %v3040 = vsel %vm2327, %v3037, 0
        %v3043 = vsel %vm2327, %v3038, 0
        %v3046 = vand.u32 %v3032, %v2354
        %3048 = vmatprep.subr.bf16.mxu0 0
        %3049 = vmatpush1.bf16.msra.mxu0 %v3046
        %3050 = vmatprep.subr.bf16.mxu0 0
        %3051 = vmatpush1.bf16.msra.mxu0 0
        %3052 = vmatprep.subr.bf16.mxu0 0
        %3053 = vmatpush1.bf16.msra.mxu0 0
        %3054 = vmatprep.subr.bf16.mxu0 0
        %3055 = vmatpush1.bf16.msra.mxu0 0
        %3056 = vmatprep.subr.bf16.mxu0 0
        %3057 = vmatpush1.bf16.msra.mxu0 0
        %3058 = vmatprep.subr.bf16.mxu0 0
        %3059 = vmatpush1.bf16.msra.mxu0 0
        %3060 = vmatprep.subr.bf16.mxu0 0
        %3061 = vmatpush1.bf16.msra.mxu0 0
        %3062 = vmatprep.subr.bf16.mxu0 0
        %3063 = vmatpush1.bf16.msra.mxu0 0
        %3064 = vmatprep.subr.bf16.mxu0 0
        %3065 = vmatpush1.bf16.msra.mxu0 0
        %3066 = vmatprep.subr.bf16.mxu0 0
        %3067 = vmatpush1.bf16.msra.mxu0 0
        %3068 = vmatprep.subr.bf16.mxu0 0
        %3069 = vmatpush1.bf16.msra.mxu0 0
        %3070 = vmatprep.subr.bf16.mxu0 0
        %3071 = vmatpush1.bf16.msra.mxu0 0
        %3072 = vmatprep.subr.bf16.mxu0 0
        %3073 = vmatpush1.bf16.msra.mxu0 0
        %3074 = vmatprep.subr.bf16.mxu0 0
        %3075 = vmatpush1.bf16.msra.mxu0 0
        %3076 = vmatprep.subr.bf16.mxu0 0
        %3077 = vmatpush1.bf16.msra.mxu0 0
        %3078 = vmatprep.subr.bf16.mxu0 0
        %3079 = vmatpush1.bf16.msra.mxu0 0
        %3080 = vmatprep.mubr.bf16.mxu0 0
        %3081 = vmatmul.mubr.bf16.gmra.mrb[0].mxu0 %v2332
        %v3082 = vpop.f32.mrb[0].mxu0
        %v3083 = vadd.f32 0.0, %v3082
        %v3084 = vpop.f32.mrb[0].mxu0
        %v3085 = vpop.f32.mrb[0].mxu0
        %v3086 = vadd.f32 0.0, %v3085
        %v3087 = vpop.f32.mrb[0].mxu0
        %3088 = vmatprep.mubr.bf16.mxu0 0
        %3089 = vmatmul.mubr.bf16.gmra.mrb[0].mxu0 %v2335
        %v3090 = vpop.f32.mrb[0].mxu0
        %v3091 = vadd.f32 0.0, %v3090
        %v3092 = vpop.f32.mrb[0].mxu0
        %v3093 = vpop.f32.mrb[0].mxu0
        %v3094 = vadd.f32 0.0, %v3093
        %v3095 = vpop.f32.mrb[0].mxu0
        %3096 = vmatprep.mubr.bf16.mxu0 0
        %3097 = vmatmul.mubr.bf16.gmra.mrb[0].mxu0 %v2338
        %v3098 = vpop.f32.mrb[0].mxu0
        %v3099 = vadd.f32 0.0, %v3098
        %v3100 = vpop.f32.mrb[0].mxu0
        %v3101 = vpop.f32.mrb[0].mxu0
        %v3102 = vadd.f32 0.0, %v3101
        %v3103 = vpop.f32.mrb[0].mxu0
        %3104 = vmatprep.mubr.bf16.mxu0 0
        %3105 = vmatmul.mubr.bf16.gmra.mrb[0].mxu0 %v3040
        %v3106 = vpop.f32.mrb[0].mxu0
        %v3107 = vadd.f32 0.0, %v3106
        %v3108 = vpop.f32.mrb[0].mxu0
        %v3109 = vpop.f32.mrb[0].mxu0
        %v3110 = vadd.f32 0.0, %v3109
        %v3111 = vpop.f32.mrb[0].mxu0
        %3112 = vmatprep.mubr.bf16.mxu0 0
        %3113 = vmatmul.mubr.bf16.gmra.mrb[0].mxu0 %v2344
        %v3114 = vpop.f32.mrb[0].mxu0
        %v3115 = vadd.f32 0.0, %v3114
        %v3116 = vpop.f32.mrb[0].mxu0
        %v3117 = vpop.f32.mrb[0].mxu0
        %v3118 = vadd.f32 0.0, %v3117
        %v3119 = vpop.f32.mrb[0].mxu0
        %3120 = vmatprep.mubr.bf16.mxu0 0
        %3121 = vmatmul.mubr.bf16.gmra.mrb[0].mxu0 %v2347
        %v3122 = vpop.f32.mrb[0].mxu0
        %v3123 = vadd.f32 0.0, %v3122
        %v3124 = vpop.f32.mrb[0].mxu0
        %v3125 = vpop.f32.mrb[0].mxu0
        %v3126 = vadd.f32 0.0, %v3125
        %v3127 = vpop.f32.mrb[0].mxu0
        %3128 = vmatprep.mubr.bf16.mxu0 0
        %3129 = vmatmul.mubr.bf16.gmra.mrb[0].mxu0 %v2350
        %v3130 = vpop.f32.mrb[0].mxu0
        %v3131 = vadd.f32 0.0, %v3130
        %v3132 = vpop.f32.mrb[0].mxu0
        %v3133 = vpop.f32.mrb[0].mxu0
        %v3134 = vadd.f32 0.0, %v3133
        %v3135 = vpop.f32.mrb[0].mxu0
        %3136 = vmatprep.mubr.bf16.mxu0 0
        %3137 = vmatmul.mubr.bf16.gmra.mrb[0].mxu0 %v3043
        %v3138 = vpop.f32.mrb[0].mxu0
        %v3139 = vadd.f32 0.0, %v3138
        %v3140 = vpop.f32.mrb[0].mxu0
        %v3141 = vpop.f32.mrb[0].mxu0
        %v3142 = vadd.f32 0.0, %v3141
        %v3143 = vpop.f32.mrb[0].mxu0
        %3144 = vdwg.mxu0
        %v3145 = vadd.f32 %v2967, %v3083
        %v3146 = vadd.f32 %v2968, %v3086
        %v3147 = vadd.f32 %v2969, %v3091
        %v3148 = vadd.f32 %v2970, %v3094
        %v3149 = vadd.f32 %v2971, %v3099
        %v3150 = vadd.f32 %v2972, %v3102
        %v3151 = vadd.f32 %v2973, %v3107
        %v3152 = vadd.f32 %v2974, %v3110
        %v3153 = vadd.f32 %v2975, %v3115
        %v3154 = vadd.f32 %v2976, %v3118
        %v3155 = vadd.f32 %v2977, %v3123
        %v3156 = vadd.f32 %v2978, %v3126
        %v3157 = vadd.f32 %v2979, %v3131
        %v3158 = vadd.f32 %v2980, %v3134
        %v3159 = vadd.f32 %v2981, %v3139
        %v3160 = vadd.f32 %v2982, %v3142
        %v3163 = vrot.slane %v2084, 5
        %v3164 = vrot.slane %v3163, 4
        %v3165 = vrot.slane %v2085, 5
        %v3166 = vsel %vm910, %v3164, %v3165
        %v3167 = vrot.slane %v3165, 4
        %v3168 = vrot.slane %v2086, 5
        %v3169 = vsel %vm910, %v3167, %v3168
        %v3170 = vrot.slane %v2102, 5
        %v3171 = vrot.slane %v3170, 4
        %v3172 = vrot.slane %v2103, 5
        %v3173 = vsel %vm910, %v3171, %v3172
        %v3174 = vrot.slane %v3172, 4
        %v3175 = vrot.slane %v2104, 5
        %v3176 = vsel %vm910, %v3174, %v3175
        %s3177 = scalar_lea.vmem %s2, 10
        %v3178 = vld [vmem:[%s3177] sm:$0x3]
        %v3179 = vunpack.c.l.b16 %v3166
        %v3180 = vunpack.c.l.b16 %v3169
        %v3181 = vunpack.c.l.b16 %v3173
        %v3182 = vunpack.c.l.b16 %v3176
        %v3183 = vpack.c.b16 %v3180, %v3179
        %v3184 = vpack.c.b16 %v3182, %v3181
        %v3186 = vsel %vm2327, %v3183, 0
        %v3189 = vsel %vm2327, %v3184, 0
        %v3192 = vand.u32 %v3178, %v2354
        %3194 = vmatprep.subr.bf16.mxu0 0
        %3195 = vmatpush1.bf16.msra.mxu0 %v3192
        %3196 = vmatprep.subr.bf16.mxu0 0
        %3197 = vmatpush1.bf16.msra.mxu0 0
        %3198 = vmatprep.subr.bf16.mxu0 0
        %3199 = vmatpush1.bf16.msra.mxu0 0
        %3200 = vmatprep.subr.bf16.mxu0 0
        %3201 = vmatpush1.bf16.msra.mxu0 0
        %3202 = vmatprep.subr.bf16.mxu0 0
        %3203 = vmatpush1.bf16.msra.mxu0 0
        %3204 = vmatprep.subr.bf16.mxu0 0
        %3205 = vmatpush1.bf16.msra.mxu0 0
        %3206 = vmatprep.subr.bf16.mxu0 0
        %3207 = vmatpush1.bf16.msra.mxu0 0
        %3208 = vmatprep.subr.bf16.mxu0 0
        %3209 = vmatpush1.bf16.msra.mxu0 0
        %3210 = vmatprep.subr.bf16.mxu0 0
        %3211 = vmatpush1.bf16.msra.mxu0 0
        %3212 = vmatprep.subr.bf16.mxu0 0
        %3213 = vmatpush1.bf16.msra.mxu0 0
        %3214 = vmatprep.subr.bf16.mxu0 0
        %3215 = vmatpush1.bf16.msra.mxu0 0
        %3216 = vmatprep.subr.bf16.mxu0 0
        %3217 = vmatpush1.bf16.msra.mxu0 0
        %3218 = vmatprep.subr.bf16.mxu0 0
        %3219 = vmatpush1.bf16.msra.mxu0 0
        %3220 = vmatprep.subr.bf16.mxu0 0
        %3221 = vmatpush1.bf16.msra.mxu0 0
        %3222 = vmatprep.subr.bf16.mxu0 0
        %3223 = vmatpush1.bf16.msra.mxu0 0
        %3224 = vmatprep.subr.bf16.mxu0 0
        %3225 = vmatpush1.bf16.msra.mxu0 0
        %3226 = vmatprep.mubr.bf16.mxu0 0
        %3227 = vmatmul.mubr.bf16.gmra.mrb[0].mxu0 %v2713
        %v3228 = vpop.f32.mrb[0].mxu0
        %v3229 = vadd.f32 0.0, %v3228
        %v3230 = vpop.f32.mrb[0].mxu0
        %v3231 = vpop.f32.mrb[0].mxu0
        %v3232 = vadd.f32 0.0, %v3231
        %v3233 = vpop.f32.mrb[0].mxu0
        %3234 = vmatprep.mubr.bf16.mxu0 0
        %3235 = vmatmul.mubr.bf16.gmra.mrb[0].mxu0 %v2716
        %v3236 = vpop.f32.mrb[0].mxu0
        %v3237 = vadd.f32 0.0, %v3236
        %v3238 = vpop.f32.mrb[0].mxu0
        %v3239 = vpop.f32.mrb[0].mxu0
        %v3240 = vadd.f32 0.0, %v3239
        %v3241 = vpop.f32.mrb[0].mxu0
        %3242 = vmatprep.mubr.bf16.mxu0 0
        %3243 = vmatmul.mubr.bf16.gmra.mrb[0].mxu0 %v2719
        %v3244 = vpop.f32.mrb[0].mxu0
        %v3245 = vadd.f32 0.0, %v3244
        %v3246 = vpop.f32.mrb[0].mxu0
        %v3247 = vpop.f32.mrb[0].mxu0
        %v3248 = vadd.f32 0.0, %v3247
        %v3249 = vpop.f32.mrb[0].mxu0
        %3250 = vmatprep.mubr.bf16.mxu0 0
        %3251 = vmatmul.mubr.bf16.gmra.mrb[0].mxu0 %v3186
        %v3252 = vpop.f32.mrb[0].mxu0
        %v3253 = vadd.f32 0.0, %v3252
        %v3254 = vpop.f32.mrb[0].mxu0
        %v3255 = vpop.f32.mrb[0].mxu0
        %v3256 = vadd.f32 0.0, %v3255
        %v3257 = vpop.f32.mrb[0].mxu0
        %3258 = vmatprep.mubr.bf16.mxu0 0
        %3259 = vmatmul.mubr.bf16.gmra.mrb[0].mxu0 %v2725
        %v3260 = vpop.f32.mrb[0].mxu0
        %v3261 = vadd.f32 0.0, %v3260
        %v3262 = vpop.f32.mrb[0].mxu0
        %v3263 = vpop.f32.mrb[0].mxu0
        %v3264 = vadd.f32 0.0, %v3263
        %v3265 = vpop.f32.mrb[0].mxu0
        %3266 = vmatprep.mubr.bf16.mxu0 0
        %3267 = vmatmul.mubr.bf16.gmra.mrb[0].mxu0 %v2728
        %v3268 = vpop.f32.mrb[0].mxu0
        %v3269 = vadd.f32 0.0, %v3268
        %v3270 = vpop.f32.mrb[0].mxu0
        %v3271 = vpop.f32.mrb[0].mxu0
        %v3272 = vadd.f32 0.0, %v3271
        %v3273 = vpop.f32.mrb[0].mxu0
        %3274 = vmatprep.mubr.bf16.mxu0 0
        %3275 = vmatmul.mubr.bf16.gmra.mrb[0].mxu0 %v2731
        %v3276 = vpop.f32.mrb[0].mxu0
        %v3277 = vadd.f32 0.0, %v3276
        %v3278 = vpop.f32.mrb[0].mxu0
        %v3279 = vpop.f32.mrb[0].mxu0
        %v3280 = vadd.f32 0.0, %v3279
        %v3281 = vpop.f32.mrb[0].mxu0
        %3282 = vmatprep.mubr.bf16.mxu0 0
        %3283 = vmatmul.mubr.bf16.gmra.mrb[0].mxu0 %v3189
        %v3284 = vpop.f32.mrb[0].mxu0
        %v3285 = vadd.f32 0.0, %v3284
        %v3286 = vpop.f32.mrb[0].mxu0
        %v3287 = vpop.f32.mrb[0].mxu0
        %v3288 = vadd.f32 0.0, %v3287
        %v3289 = vpop.f32.mrb[0].mxu0
        %3290 = vdwg.mxu0
        %v3291 = vadd.f32 %v3145, %v3229
        %v3292 = vadd.f32 %v3146, %v3232
        %v3293 = vadd.f32 %v3147, %v3237
        %v3294 = vadd.f32 %v3148, %v3240
        %v3295 = vadd.f32 %v3149, %v3245
        %v3296 = vadd.f32 %v3150, %v3248
        %v3297 = vadd.f32 %v3151, %v3253
        %v3298 = vadd.f32 %v3152, %v3256
        %v3299 = vadd.f32 %v3153, %v3261
        %v3300 = vadd.f32 %v3154, %v3264
        %v3301 = vadd.f32 %v3155, %v3269
        %v3302 = vadd.f32 %v3156, %v3272
        %v3303 = vadd.f32 %v3157, %v3277
        %v3304 = vadd.f32 %v3158, %v3280
        %v3305 = vadd.f32 %v3159, %v3285
        %v3306 = vadd.f32 %v3160, %v3288
        %s3307 = scalar_lea.vmem %s2, 12
        %v3308 = vld [vmem:[%s3307] sm:$0x3]
        %v3313 = vunpack.c.l.b16 %v2087
        %v3314 = vunpack.c.l.b16 %v2088
        %v3315 = vunpack.c.l.b16 %v2105
        %v3316 = vunpack.c.l.b16 %v2106
        %v3317 = vpack.c.b16 %v3314, %v3313
        %v3318 = vpack.c.b16 %v3316, %v3315
        %v3320 = vsel %vm2327, %v3317, 0
        %v3323 = vsel %vm2327, %v3318, 0
        %v3326 = vand.u32 %v3308, %v2354
        %3328 = vmatprep.subr.bf16.mxu0 0
        %3329 = vmatpush1.bf16.msra.mxu0 %v3326
        %3330 = vmatprep.subr.bf16.mxu0 0
        %3331 = vmatpush1.bf16.msra.mxu0 0
        %3332 = vmatprep.subr.bf16.mxu0 0
        %3333 = vmatpush1.bf16.msra.mxu0 0
        %3334 = vmatprep.subr.bf16.mxu0 0
        %3335 = vmatpush1.bf16.msra.mxu0 0
        %3336 = vmatprep.subr.bf16.mxu0 0
        %3337 = vmatpush1.bf16.msra.mxu0 0
        %3338 = vmatprep.subr.bf16.mxu0 0
        %3339 = vmatpush1.bf16.msra.mxu0 0
        %3340 = vmatprep.subr.bf16.mxu0 0
        %3341 = vmatpush1.bf16.msra.mxu0 0
        %3342 = vmatprep.subr.bf16.mxu0 0
        %3343 = vmatpush1.bf16.msra.mxu0 0
        %3344 = vmatprep.subr.bf16.mxu0 0
        %3345 = vmatpush1.bf16.msra.mxu0 0
        %3346 = vmatprep.subr.bf16.mxu0 0
        %3347 = vmatpush1.bf16.msra.mxu0 0
        %3348 = vmatprep.subr.bf16.mxu0 0
        %3349 = vmatpush1.bf16.msra.mxu0 0
        %3350 = vmatprep.subr.bf16.mxu0 0
        %3351 = vmatpush1.bf16.msra.mxu0 0
        %3352 = vmatprep.subr.bf16.mxu0 0
        %3353 = vmatpush1.bf16.msra.mxu0 0
        %3354 = vmatprep.subr.bf16.mxu0 0
        %3355 = vmatpush1.bf16.msra.mxu0 0
        %3356 = vmatprep.subr.bf16.mxu0 0
        %3357 = vmatpush1.bf16.msra.mxu0 0
        %3358 = vmatprep.subr.bf16.mxu0 0
        %3359 = vmatpush1.bf16.msra.mxu0 0
        %3360 = vmatprep.mubr.bf16.mxu0 0
        %3361 = vmatmul.mubr.bf16.gmra.mrb[0].mxu0 %v2502
        %v3362 = vpop.f32.mrb[0].mxu0
        %v3363 = vadd.f32 0.0, %v3362
        %v3364 = vpop.f32.mrb[0].mxu0
        %v3365 = vpop.f32.mrb[0].mxu0
        %v3366 = vadd.f32 0.0, %v3365
        %v3367 = vpop.f32.mrb[0].mxu0
        %3368 = vmatprep.mubr.bf16.mxu0 0
        %3369 = vmatmul.mubr.bf16.gmra.mrb[0].mxu0 %v2505
        %v3370 = vpop.f32.mrb[0].mxu0
        %v3371 = vadd.f32 0.0, %v3370
        %v3372 = vpop.f32.mrb[0].mxu0
        %v3373 = vpop.f32.mrb[0].mxu0
        %v3374 = vadd.f32 0.0, %v3373
        %v3375 = vpop.f32.mrb[0].mxu0
        %3376 = vmatprep.mubr.bf16.mxu0 0
        %3377 = vmatmul.mubr.bf16.gmra.mrb[0].mxu0 %v2862
        %v3378 = vpop.f32.mrb[0].mxu0
        %v3379 = vadd.f32 0.0, %v3378
        %v3380 = vpop.f32.mrb[0].mxu0
        %v3381 = vpop.f32.mrb[0].mxu0
        %v3382 = vadd.f32 0.0, %v3381
        %v3383 = vpop.f32.mrb[0].mxu0
        %3384 = vmatprep.mubr.bf16.mxu0 0
        %3385 = vmatmul.mubr.bf16.gmra.mrb[0].mxu0 %v3320
        %v3386 = vpop.f32.mrb[0].mxu0
        %v3387 = vadd.f32 0.0, %v3386
        %v3388 = vpop.f32.mrb[0].mxu0
        %v3389 = vpop.f32.mrb[0].mxu0
        %v3390 = vadd.f32 0.0, %v3389
        %v3391 = vpop.f32.mrb[0].mxu0
        %3392 = vmatprep.mubr.bf16.mxu0 0
        %3393 = vmatmul.mubr.bf16.gmra.mrb[0].mxu0 %v2514
        %v3394 = vpop.f32.mrb[0].mxu0
        %v3395 = vadd.f32 0.0, %v3394
        %v3396 = vpop.f32.mrb[0].mxu0
        %v3397 = vpop.f32.mrb[0].mxu0
        %v3398 = vadd.f32 0.0, %v3397
        %v3399 = vpop.f32.mrb[0].mxu0
        %3400 = vmatprep.mubr.bf16.mxu0 0
        %3401 = vmatmul.mubr.bf16.gmra.mrb[0].mxu0 %v2517
        %v3402 = vpop.f32.mrb[0].mxu0
        %v3403 = vadd.f32 0.0, %v3402
        %v3404 = vpop.f32.mrb[0].mxu0
        %v3405 = vpop.f32.mrb[0].mxu0
        %v3406 = vadd.f32 0.0, %v3405
        %v3407 = vpop.f32.mrb[0].mxu0
        %3408 = vmatprep.mubr.bf16.mxu0 0
        %3409 = vmatmul.mubr.bf16.gmra.mrb[0].mxu0 %v2865
        %v3410 = vpop.f32.mrb[0].mxu0
        %v3411 = vadd.f32 0.0, %v3410
        %v3412 = vpop.f32.mrb[0].mxu0
        %v3413 = vpop.f32.mrb[0].mxu0
        %v3414 = vadd.f32 0.0, %v3413
        %v3415 = vpop.f32.mrb[0].mxu0
        %3416 = vmatprep.mubr.bf16.mxu0 0
        %3417 = vmatmul.mubr.bf16.gmra.mrb[0].mxu0 %v3323
        %v3418 = vpop.f32.mrb[0].mxu0
        %v3419 = vadd.f32 0.0, %v3418
        %v3420 = vpop.f32.mrb[0].mxu0
        %v3421 = vpop.f32.mrb[0].mxu0
        %v3422 = vadd.f32 0.0, %v3421
        %v3423 = vpop.f32.mrb[0].mxu0
        %3424 = vdwg.mxu0
        %v3425 = vadd.f32 %v3291, %v3363
        %v3426 = vadd.f32 %v3292, %v3366
        %v3427 = vadd.f32 %v3293, %v3371
        %v3428 = vadd.f32 %v3294, %v3374
        %v3429 = vadd.f32 %v3295, %v3379
        %v3430 = vadd.f32 %v3296, %v3382
        %v3431 = vadd.f32 %v3297, %v3387
        %v3432 = vadd.f32 %v3298, %v3390
        %v3433 = vadd.f32 %v3299, %v3395
        %v3434 = vadd.f32 %v3300, %v3398
        %v3435 = vadd.f32 %v3301, %v3403
        %v3436 = vadd.f32 %v3302, %v3406
        %v3437 = vadd.f32 %v3303, %v3411
        %v3438 = vadd.f32 %v3304, %v3414
        %v3439 = vadd.f32 %v3305, %v3419
        %v3440 = vadd.f32 %v3306, %v3422
        %v3442 = vshrl.u32 %v2087, 16
        %v3444 = vrot.slane %v3442, 4
        %v3445 = vshll.u32 %v2087, 16
        %v3447 = vrot.slane %v3445, 5
        %v3448 = vor.u32 %v3444, %v3447
        %v3449 = vrot.slane %v3448, 4
        %v3451 = vshll.u32 %v2088, 16
        %v3453 = vrot.slane %v3451, 5
        %v3454 = vsel %vm389, %v3449, %v3453
        %v3455 = vshrl.u32 %v2088, 16
        %v3457 = vrot.slane %v3455, 4
        %v3458 = vor.u32 %v3457, %v3453
        %v3459 = vrot.slane %v3458, 4
        %v3461 = vshll.u32 %v2089, 16
        %v3463 = vrot.slane %v3461, 5
        %v3464 = vsel %vm389, %v3459, %v3463
        %v3466 = vshrl.u32 %v2105, 16
        %v3468 = vrot.slane %v3466, 4
        %v3469 = vshll.u32 %v2105, 16
        %v3471 = vrot.slane %v3469, 5
        %v3472 = vor.u32 %v3468, %v3471
        %v3473 = vrot.slane %v3472, 4
        %v3475 = vshll.u32 %v2106, 16
        %v3477 = vrot.slane %v3475, 5
        %v3478 = vsel %vm389, %v3473, %v3477
        %v3479 = vshrl.u32 %v2106, 16
        %v3481 = vrot.slane %v3479, 4
        %v3482 = vor.u32 %v3481, %v3477
        %v3483 = vrot.slane %v3482, 4
        %v3485 = vshll.u32 %v2107, 16
        %v3487 = vrot.slane %v3485, 5
        %v3488 = vsel %vm389, %v3483, %v3487
        %s3489 = scalar_lea.vmem %s2, 14
        %v3490 = vld [vmem:[%s3489] sm:$0x3]
        %v3491 = vunpack.c.l.b16 %v3454
        %v3492 = vunpack.c.l.b16 %v3464
        %v3493 = vunpack.c.l.b16 %v3478
        %v3494 = vunpack.c.l.b16 %v3488
        %v3495 = vpack.c.b16 %v3492, %v3491
        %v3496 = vpack.c.b16 %v3494, %v3493
        %v3498 = vsel %vm2327, %v3495, 0
        %v3501 = vsel %vm2327, %v3496, 0
        %v3504 = vand.u32 %v3490, %v2354
        %3506 = vmatprep.subr.bf16.mxu0 0
        %3507 = vmatpush1.bf16.msra.mxu0 %v3504
        %3508 = vmatprep.subr.bf16.mxu0 0
        %3509 = vmatpush1.bf16.msra.mxu0 0
        %3510 = vmatprep.subr.bf16.mxu0 0
        %3511 = vmatpush1.bf16.msra.mxu0 0
        %3512 = vmatprep.subr.bf16.mxu0 0
        %3513 = vmatpush1.bf16.msra.mxu0 0
        %3514 = vmatprep.subr.bf16.mxu0 0
        %3515 = vmatpush1.bf16.msra.mxu0 0
        %3516 = vmatprep.subr.bf16.mxu0 0
        %3517 = vmatpush1.bf16.msra.mxu0 0
        %3518 = vmatprep.subr.bf16.mxu0 0
        %3519 = vmatpush1.bf16.msra.mxu0 0
        %3520 = vmatprep.subr.bf16.mxu0 0
        %3521 = vmatpush1.bf16.msra.mxu0 0
        %3522 = vmatprep.subr.bf16.mxu0 0
        %3523 = vmatpush1.bf16.msra.mxu0 0
        %3524 = vmatprep.subr.bf16.mxu0 0
        %3525 = vmatpush1.bf16.msra.mxu0 0
        %3526 = vmatprep.subr.bf16.mxu0 0
        %3527 = vmatpush1.bf16.msra.mxu0 0
        %3528 = vmatprep.subr.bf16.mxu0 0
        %3529 = vmatpush1.bf16.msra.mxu0 0
        %3530 = vmatprep.subr.bf16.mxu0 0
        %3531 = vmatpush1.bf16.msra.mxu0 0
        %3532 = vmatprep.subr.bf16.mxu0 0
        %3533 = vmatpush1.bf16.msra.mxu0 0
        %3534 = vmatprep.subr.bf16.mxu0 0
        %3535 = vmatpush1.bf16.msra.mxu0 0
        %3536 = vmatprep.subr.bf16.mxu0 0
        %3537 = vmatpush1.bf16.msra.mxu0 0
        %3538 = vmatprep.mubr.bf16.mxu0 0
        %3539 = vmatmul.mubr.bf16.gmra.mrb[0].mxu0 %v2335
        %v3540 = vpop.f32.mrb[0].mxu0
        %v3541 = vadd.f32 0.0, %v3540
        %v3542 = vpop.f32.mrb[0].mxu0
        %v3543 = vpop.f32.mrb[0].mxu0
        %v3544 = vadd.f32 0.0, %v3543
        %v3545 = vpop.f32.mrb[0].mxu0
        %3546 = vmatprep.mubr.bf16.mxu0 0
        %3547 = vmatmul.mubr.bf16.gmra.mrb[0].mxu0 %v2338
        %v3548 = vpop.f32.mrb[0].mxu0
        %v3549 = vadd.f32 0.0, %v3548
        %v3550 = vpop.f32.mrb[0].mxu0
        %v3551 = vpop.f32.mrb[0].mxu0
        %v3552 = vadd.f32 0.0, %v3551
        %v3553 = vpop.f32.mrb[0].mxu0
        %3554 = vmatprep.mubr.bf16.mxu0 0
        %3555 = vmatmul.mubr.bf16.gmra.mrb[0].mxu0 %v3040
        %v3556 = vpop.f32.mrb[0].mxu0
        %v3557 = vadd.f32 0.0, %v3556
        %v3558 = vpop.f32.mrb[0].mxu0
        %v3559 = vpop.f32.mrb[0].mxu0
        %v3560 = vadd.f32 0.0, %v3559
        %v3561 = vpop.f32.mrb[0].mxu0
        %3562 = vmatprep.mubr.bf16.mxu0 0
        %3563 = vmatmul.mubr.bf16.gmra.mrb[0].mxu0 %v3498
        %v3564 = vpop.f32.mrb[0].mxu0
        %v3565 = vadd.f32 0.0, %v3564
        %v3566 = vpop.f32.mrb[0].mxu0
        %v3567 = vpop.f32.mrb[0].mxu0
        %v3568 = vadd.f32 0.0, %v3567
        %v3569 = vpop.f32.mrb[0].mxu0
        %3570 = vmatprep.mubr.bf16.mxu0 0
        %3571 = vmatmul.mubr.bf16.gmra.mrb[0].mxu0 %v2347
        %v3572 = vpop.f32.mrb[0].mxu0
        %v3573 = vadd.f32 0.0, %v3572
        %v3574 = vpop.f32.mrb[0].mxu0
        %v3575 = vpop.f32.mrb[0].mxu0
        %v3576 = vadd.f32 0.0, %v3575
        %v3577 = vpop.f32.mrb[0].mxu0
        %3578 = vmatprep.mubr.bf16.mxu0 0
        %3579 = vmatmul.mubr.bf16.gmra.mrb[0].mxu0 %v2350
        %v3580 = vpop.f32.mrb[0].mxu0
        %v3581 = vadd.f32 0.0, %v3580
        %v3582 = vpop.f32.mrb[0].mxu0
        %v3583 = vpop.f32.mrb[0].mxu0
        %v3584 = vadd.f32 0.0, %v3583
        %v3585 = vpop.f32.mrb[0].mxu0
        %3586 = vmatprep.mubr.bf16.mxu0 0
        %3587 = vmatmul.mubr.bf16.gmra.mrb[0].mxu0 %v3043
        %v3588 = vpop.f32.mrb[0].mxu0
        %v3589 = vadd.f32 0.0, %v3588
        %v3590 = vpop.f32.mrb[0].mxu0
        %v3591 = vpop.f32.mrb[0].mxu0
        %v3592 = vadd.f32 0.0, %v3591
        %v3593 = vpop.f32.mrb[0].mxu0
        %3594 = vmatprep.mubr.bf16.mxu0 0
        %3595 = vmatmul.mubr.bf16.gmra.mrb[0].mxu0 %v3501
        %v3596 = vpop.f32.mrb[0].mxu0
        %v3597 = vadd.f32 0.0, %v3596
        %v3598 = vpop.f32.mrb[0].mxu0
        %v3599 = vpop.f32.mrb[0].mxu0
        %v3600 = vadd.f32 0.0, %v3599
        %v3601 = vpop.f32.mrb[0].mxu0
        %3602 = vdwg.mxu0
        %v3603 = vadd.f32 %v3425, %v3541
        %v3604 = vadd.f32 %v3426, %v3544
        %v3605 = vadd.f32 %v3427, %v3549
        %v3606 = vadd.f32 %v3428, %v3552
        %v3607 = vadd.f32 %v3429, %v3557
        %v3608 = vadd.f32 %v3430, %v3560
        %v3609 = vadd.f32 %v3431, %v3565
        %v3610 = vadd.f32 %v3432, %v3568
        %v3611 = vadd.f32 %v3433, %v3573
        %v3612 = vadd.f32 %v3434, %v3576
        %v3613 = vadd.f32 %v3435, %v3581
        %v3614 = vadd.f32 %v3436, %v3584
        %v3615 = vadd.f32 %v3437, %v3589
        %v3616 = vadd.f32 %v3438, %v3592
        %v3617 = vadd.f32 %v3439, %v3597
        %v3618 = vadd.f32 %v3440, %v3600
        %v3621 = vrot.slane %v2087, 5
        %v3622 = vrot.slane %v3621, 4
        %v3623 = vrot.slane %v2088, 5
        %v3624 = vsel %vm910, %v3622, %v3623
        %v3625 = vrot.slane %v3623, 4
        %v3626 = vrot.slane %v2089, 5
        %v3627 = vsel %vm910, %v3625, %v3626
        %v3628 = vrot.slane %v2105, 5
        %v3629 = vrot.slane %v3628, 4
        %v3630 = vrot.slane %v2106, 5
        %v3631 = vsel %vm910, %v3629, %v3630
        %v3632 = vrot.slane %v3630, 4
        %v3633 = vrot.slane %v2107, 5
        %v3634 = vsel %vm910, %v3632, %v3633
        %s3635 = scalar_lea.vmem %s2, 16
        %v3636 = vld [vmem:[%s3635] sm:$0x3]
        %v3637 = vunpack.c.l.b16 %v3624
        %v3638 = vunpack.c.l.b16 %v3627
        %v3639 = vunpack.c.l.b16 %v3631
        %v3640 = vunpack.c.l.b16 %v3634
        %v3641 = vpack.c.b16 %v3638, %v3637
        %v3642 = vpack.c.b16 %v3640, %v3639
        %v3644 = vsel %vm2327, %v3641, 0
        %v3647 = vsel %vm2327, %v3642, 0
        %v3650 = vand.u32 %v3636, %v2354
        %3652 = vmatprep.subr.bf16.mxu0 0
        %3653 = vmatpush1.bf16.msra.mxu0 %v3650
        %3654 = vmatprep.subr.bf16.mxu0 0
        %3655 = vmatpush1.bf16.msra.mxu0 0
        %3656 = vmatprep.subr.bf16.mxu0 0
        %3657 = vmatpush1.bf16.msra.mxu0 0
        %3658 = vmatprep.subr.bf16.mxu0 0
        %3659 = vmatpush1.bf16.msra.mxu0 0
        %3660 = vmatprep.subr.bf16.mxu0 0
        %3661 = vmatpush1.bf16.msra.mxu0 0
        %3662 = vmatprep.subr.bf16.mxu0 0
        %3663 = vmatpush1.bf16.msra.mxu0 0
        %3664 = vmatprep.subr.bf16.mxu0 0
        %3665 = vmatpush1.bf16.msra.mxu0 0
        %3666 = vmatprep.subr.bf16.mxu0 0
        %3667 = vmatpush1.bf16.msra.mxu0 0
        %3668 = vmatprep.subr.bf16.mxu0 0
        %3669 = vmatpush1.bf16.msra.mxu0 0
        %3670 = vmatprep.subr.bf16.mxu0 0
        %3671 = vmatpush1.bf16.msra.mxu0 0
        %3672 = vmatprep.subr.bf16.mxu0 0
        %3673 = vmatpush1.bf16.msra.mxu0 0
        %3674 = vmatprep.subr.bf16.mxu0 0
        %3675 = vmatpush1.bf16.msra.mxu0 0
        %3676 = vmatprep.subr.bf16.mxu0 0
        %3677 = vmatpush1.bf16.msra.mxu0 0
        %3678 = vmatprep.subr.bf16.mxu0 0
        %3679 = vmatpush1.bf16.msra.mxu0 0
        %3680 = vmatprep.subr.bf16.mxu0 0
        %3681 = vmatpush1.bf16.msra.mxu0 0
        %3682 = vmatprep.subr.bf16.mxu0 0
        %3683 = vmatpush1.bf16.msra.mxu0 0
        %3684 = vmatprep.mubr.bf16.mxu0 0
        %3685 = vmatmul.mubr.bf16.gmra.mrb[0].mxu0 %v2716
        %v3686 = vpop.f32.mrb[0].mxu0
        %v3687 = vadd.f32 0.0, %v3686
        %v3688 = vpop.f32.mrb[0].mxu0
        %v3689 = vpop.f32.mrb[0].mxu0
        %v3690 = vadd.f32 0.0, %v3689
        %v3691 = vpop.f32.mrb[0].mxu0
        %3692 = vmatprep.mubr.bf16.mxu0 0
        %3693 = vmatmul.mubr.bf16.gmra.mrb[0].mxu0 %v2719
        %v3694 = vpop.f32.mrb[0].mxu0
        %v3695 = vadd.f32 0.0, %v3694
        %v3696 = vpop.f32.mrb[0].mxu0
        %v3697 = vpop.f32.mrb[0].mxu0
        %v3698 = vadd.f32 0.0, %v3697
        %v3699 = vpop.f32.mrb[0].mxu0
        %3700 = vmatprep.mubr.bf16.mxu0 0
        %3701 = vmatmul.mubr.bf16.gmra.mrb[0].mxu0 %v3186
        %v3702 = vpop.f32.mrb[0].mxu0
        %v3703 = vadd.f32 0.0, %v3702
        %v3704 = vpop.f32.mrb[0].mxu0
        %v3705 = vpop.f32.mrb[0].mxu0
        %v3706 = vadd.f32 0.0, %v3705
        %v3707 = vpop.f32.mrb[0].mxu0
        %3708 = vmatprep.mubr.bf16.mxu0 0
        %3709 = vmatmul.mubr.bf16.gmra.mrb[0].mxu0 %v3644
        %v3710 = vpop.f32.mrb[0].mxu0
        %v3711 = vadd.f32 0.0, %v3710
        %v3712 = vpop.f32.mrb[0].mxu0
        %v3713 = vpop.f32.mrb[0].mxu0
        %v3714 = vadd.f32 0.0, %v3713
        %v3715 = vpop.f32.mrb[0].mxu0
        %3716 = vmatprep.mubr.bf16.mxu0 0
        %3717 = vmatmul.mubr.bf16.gmra.mrb[0].mxu0 %v2728
        %v3718 = vpop.f32.mrb[0].mxu0
        %v3719 = vadd.f32 0.0, %v3718
        %v3720 = vpop.f32.mrb[0].mxu0
        %v3721 = vpop.f32.mrb[0].mxu0
        %v3722 = vadd.f32 0.0, %v3721
        %v3723 = vpop.f32.mrb[0].mxu0
        %3724 = vmatprep.mubr.bf16.mxu0 0
        %3725 = vmatmul.mubr.bf16.gmra.mrb[0].mxu0 %v2731
        %v3726 = vpop.f32.mrb[0].mxu0
        %v3727 = vadd.f32 0.0, %v3726
        %v3728 = vpop.f32.mrb[0].mxu0
        %v3729 = vpop.f32.mrb[0].mxu0
        %v3730 = vadd.f32 0.0, %v3729
        %v3731 = vpop.f32.mrb[0].mxu0
        %3732 = vmatprep.mubr.bf16.mxu0 0
        %3733 = vmatmul.mubr.bf16.gmra.mrb[0].mxu0 %v3189
        %v3734 = vpop.f32.mrb[0].mxu0
        %v3735 = vadd.f32 0.0, %v3734
        %v3736 = vpop.f32.mrb[0].mxu0
        %v3737 = vpop.f32.mrb[0].mxu0
        %v3738 = vadd.f32 0.0, %v3737
        %v3739 = vpop.f32.mrb[0].mxu0
        %3740 = vmatprep.mubr.bf16.mxu0 0
        %3741 = vmatmul.mubr.bf16.gmra.mrb[0].mxu0 %v3647
        %v3742 = vpop.f32.mrb[0].mxu0
        %v3743 = vadd.f32 0.0, %v3742
        %v3744 = vpop.f32.mrb[0].mxu0
        %v3745 = vpop.f32.mrb[0].mxu0
        %v3746 = vadd.f32 0.0, %v3745
        %v3747 = vpop.f32.mrb[0].mxu0
        %3748 = vdwg.mxu0
        %v3749 = vadd.f32 %v3603, %v3687
        %v3750 = vadd.f32 %v3604, %v3690
        %v3751 = vadd.f32 %v3605, %v3695
        %v3752 = vadd.f32 %v3606, %v3698
        %v3753 = vadd.f32 %v3607, %v3703
        %v3754 = vadd.f32 %v3608, %v3706
        %v3755 = vadd.f32 %v3609, %v3711
        %v3756 = vadd.f32 %v3610, %v3714
        %v3757 = vadd.f32 %v3611, %v3719
        %v3758 = vadd.f32 %v3612, %v3722
        %v3759 = vadd.f32 %v3613, %v3727
        %v3760 = vadd.f32 %v3614, %v3730
        %v3761 = vadd.f32 %v3615, %v3735
        %v3762 = vadd.f32 %v3616, %v3738
        %v3763 = vadd.f32 %v3617, %v3743
        %v3764 = vadd.f32 %v3618, %v3746
        %v3765 = vld [vmem:[%s4] sm:$0x1]
        %v3767 = vlaneseq
        %v3768 = vshrl.u32 %v3767, 7
        %v3769 = vsub.s32 0, %v3768
        %v3770 = vrot.slane %v3765, %v3769
        %v3772 = vadd.f32 %v3749, %v3770
        %v3773 = vadd.f32 %v3750, %v3770
        %v3774 = vadd.f32 %v3751, %v3770
        %v3775 = vadd.f32 %v3752, %v3770
        %v3776 = vadd.f32 %v3753, %v3770
        %v3777 = vadd.f32 %v3754, %v3770
        %v3778 = vadd.f32 %v3755, %v3770
        %v3779 = vadd.f32 %v3756, %v3770
        %v3780 = vadd.f32 %v3757, %v3770
        %v3781 = vadd.f32 %v3758, %v3770
        %v3782 = vadd.f32 %v3759, %v3770
        %v3783 = vadd.f32 %v3760, %v3770
        %v3784 = vadd.f32 %v3761, %v3770
        %v3785 = vadd.f32 %v3762, %v3770
        %v3786 = vadd.f32 %v3763, %v3770
        %v3787 = vadd.f32 %v3764, %v3770
        %v3788 = vadd.f32 %v3772, %v2056
        %v3789 = vadd.f32 %v3773, %v2057
        %v3790 = vadd.f32 %v3774, %v2058
        %v3791 = vadd.f32 %v3775, %v2059
        %v3792 = vadd.f32 %v3776, %v2060
        %v3793 = vadd.f32 %v3777, %v2061
        %v3794 = vadd.f32 %v3778, %v2062
        %v3795 = vadd.f32 %v3779, %v2063
        %v3796 = vadd.f32 %v3780, %v2064
        %v3797 = vadd.f32 %v3781, %v2065
        %v3798 = vadd.f32 %v3782, %v2066
        %v3799 = vadd.f32 %v3783, %v2067
        %v3800 = vadd.f32 %v3784, %v2068
        %v3801 = vadd.f32 %v3785, %v2069
        %v3802 = vadd.f32 %v3786, %v2070
        %v3803 = vadd.f32 %v3787, %v2071
        %vm3804 = vcmask 64512
        %v3805 = vsel %vm3804, %v3788, 0.0
        %v3806 = vsel %vm3804, %v3789, 0.0
        %v3807 = vadd.f32 %v3805, %v3806
        %v3808 = vsel %vm3804, %v3790, 0.0
        %v3809 = vadd.f32 %v3807, %v3808
        %v3810 = vsel %vm3804, %v3791, 0.0
        %v3811 = vadd.f32 %v3809, %v3810
        %v3812 = vsel %vm3804, %v3792, 0.0
        %v3813 = vadd.f32 %v3811, %v3812
        %v3814 = vsel %vm3804, %v3793, 0.0
        %v3815 = vadd.f32 %v3813, %v3814
        %v3816 = vsel %vm3804, %v3794, 0.0
        %v3817 = vadd.f32 %v3815, %v3816
        %v3818 = vsel %vm3804, %v3795, 0.0
        %v3819 = vadd.f32 %v3817, %v3818
        %v3820 = vsel %vm3804, %v3796, 0.0
        %v3821 = vadd.f32 %v3819, %v3820
        %v3822 = vsel %vm3804, %v3797, 0.0
        %v3823 = vadd.f32 %v3821, %v3822
        %v3824 = vsel %vm3804, %v3798, 0.0
        %v3825 = vadd.f32 %v3823, %v3824
        %v3826 = vsel %vm3804, %v3799, 0.0
        %v3827 = vadd.f32 %v3825, %v3826
        %v3828 = vsel %vm3804, %v3800, 0.0
        %v3829 = vadd.f32 %v3827, %v3828
        %v3830 = vsel %vm3804, %v3801, 0.0
        %v3831 = vadd.f32 %v3829, %v3830
        %v3832 = vsel %vm3804, %v3802, 0.0
        %v3833 = vadd.f32 %v3831, %v3832
        %v3834 = vsel %vm3804, %v3803, 0.0
        %v3835 = vadd.f32 %v3833, %v3834
        %v3836 = vrot.slane %v3835, 4
        %v3837 = vadd.f32 %v3835, %v3836
        %v3838 = vrot.slane %v3837, 2
        %v3839 = vadd.f32 %v3837, %v3838
        %v3840 = vrot.slane %v3839, 1
        %v3841 = vadd.f32 %v3839, %v3840
        %v3842 = vmul.f32 %v3788, %v3788
        %v3843 = vmul.f32 %v3789, %v3789
        %v3844 = vmul.f32 %v3790, %v3790
        %v3845 = vmul.f32 %v3791, %v3791
        %v3846 = vmul.f32 %v3792, %v3792
        %v3847 = vmul.f32 %v3793, %v3793
        %v3848 = vmul.f32 %v3794, %v3794
        %v3849 = vmul.f32 %v3795, %v3795
        %v3850 = vmul.f32 %v3796, %v3796
        %v3851 = vmul.f32 %v3797, %v3797
        %v3852 = vmul.f32 %v3798, %v3798
        %v3853 = vmul.f32 %v3799, %v3799
        %v3854 = vmul.f32 %v3800, %v3800
        %v3855 = vmul.f32 %v3801, %v3801
        %v3856 = vmul.f32 %v3802, %v3802
        %v3857 = vmul.f32 %v3803, %v3803
        %v3858 = vsel %vm3804, %v3842, 0.0
        %v3859 = vsel %vm3804, %v3843, 0.0
        %v3860 = vadd.f32 %v3858, %v3859
        %v3861 = vsel %vm3804, %v3844, 0.0
        %v3862 = vadd.f32 %v3860, %v3861
        %v3863 = vsel %vm3804, %v3845, 0.0
        %v3864 = vadd.f32 %v3862, %v3863
        %v3865 = vsel %vm3804, %v3846, 0.0
        %v3866 = vadd.f32 %v3864, %v3865
        %v3867 = vsel %vm3804, %v3847, 0.0
        %v3868 = vadd.f32 %v3866, %v3867
        %v3869 = vsel %vm3804, %v3848, 0.0
        %v3870 = vadd.f32 %v3868, %v3869
        %v3871 = vsel %vm3804, %v3849, 0.0
        %v3872 = vadd.f32 %v3870, %v3871
        %v3873 = vsel %vm3804, %v3850, 0.0
        %v3874 = vadd.f32 %v3872, %v3873
        %v3875 = vsel %vm3804, %v3851, 0.0
        %v3876 = vadd.f32 %v3874, %v3875
        %v3877 = vsel %vm3804, %v3852, 0.0
        %v3878 = vadd.f32 %v3876, %v3877
        %v3879 = vsel %vm3804, %v3853, 0.0
        %v3880 = vadd.f32 %v3878, %v3879
        %v3881 = vsel %vm3804, %v3854, 0.0
        %v3882 = vadd.f32 %v3880, %v3881
        %v3883 = vsel %vm3804, %v3855, 0.0
        %v3884 = vadd.f32 %v3882, %v3883
        %v3885 = vsel %vm3804, %v3856, 0.0
        %v3886 = vadd.f32 %v3884, %v3885
        %v3887 = vsel %vm3804, %v3857, 0.0
        %v3888 = vadd.f32 %v3886, %v3887
        %v3889 = vrot.slane %v3888, 4
        %v3890 = vadd.f32 %v3888, %v3889
        %v3891 = vrot.slane %v3890, 2
        %v3892 = vadd.f32 %v3890, %v3891
        %v3893 = vrot.slane %v3892, 1
        %v3894 = vadd.f32 %v3892, %v3893
        %v3895 = vsel %vm3804, %v2056, 0.0
        %v3896 = vsel %vm3804, %v2057, 0.0
        %v3897 = vadd.f32 %v3895, %v3896
        %v3898 = vsel %vm3804, %v2058, 0.0
        %v3899 = vadd.f32 %v3897, %v3898
        %v3900 = vsel %vm3804, %v2059, 0.0
        %v3901 = vadd.f32 %v3899, %v3900
        %v3902 = vsel %vm3804, %v2060, 0.0
        %v3903 = vadd.f32 %v3901, %v3902
        %v3904 = vsel %vm3804, %v2061, 0.0
        %v3905 = vadd.f32 %v3903, %v3904
        %v3906 = vsel %vm3804, %v2062, 0.0
        %v3907 = vadd.f32 %v3905, %v3906
        %v3908 = vsel %vm3804, %v2063, 0.0
        %v3909 = vadd.f32 %v3907, %v3908
        %v3910 = vsel %vm3804, %v2064, 0.0
        %v3911 = vadd.f32 %v3909, %v3910
        %v3912 = vsel %vm3804, %v2065, 0.0
        %v3913 = vadd.f32 %v3911, %v3912
        %v3914 = vsel %vm3804, %v2066, 0.0
        %v3915 = vadd.f32 %v3913, %v3914
        %v3916 = vsel %vm3804, %v2067, 0.0
        %v3917 = vadd.f32 %v3915, %v3916
        %v3918 = vsel %vm3804, %v2068, 0.0
        %v3919 = vadd.f32 %v3917, %v3918
        %v3920 = vsel %vm3804, %v2069, 0.0
        %v3921 = vadd.f32 %v3919, %v3920
        %v3922 = vsel %vm3804, %v2070, 0.0
        %v3923 = vadd.f32 %v3921, %v3922
        %v3924 = vsel %vm3804, %v2071, 0.0
        %v3925 = vadd.f32 %v3923, %v3924
        %v3926 = vrot.slane %v3925, 4
        %v3927 = vadd.f32 %v3925, %v3926
        %v3928 = vrot.slane %v3927, 2
        %v3929 = vadd.f32 %v3927, %v3928
        %v3930 = vrot.slane %v3929, 1
        %v3931 = vadd.f32 %v3929, %v3930
        %v3932 = vmul.f32 %v2056, %v2056
        %v3933 = vmul.f32 %v2057, %v2057
        %v3934 = vmul.f32 %v2058, %v2058
        %v3935 = vmul.f32 %v2059, %v2059
        %v3936 = vmul.f32 %v2060, %v2060
        %v3937 = vmul.f32 %v2061, %v2061
        %v3938 = vmul.f32 %v2062, %v2062
        %v3939 = vmul.f32 %v2063, %v2063
        %v3940 = vmul.f32 %v2064, %v2064
        %v3941 = vmul.f32 %v2065, %v2065
        %v3942 = vmul.f32 %v2066, %v2066
        %v3943 = vmul.f32 %v2067, %v2067
        %v3944 = vmul.f32 %v2068, %v2068
        %v3945 = vmul.f32 %v2069, %v2069
        %v3946 = vmul.f32 %v2070, %v2070
        %v3947 = vmul.f32 %v2071, %v2071
        %v3948 = vsel %vm3804, %v3932, 0.0
        %v3949 = vsel %vm3804, %v3933, 0.0
        %v3950 = vadd.f32 %v3948, %v3949
        %v3951 = vsel %vm3804, %v3934, 0.0
        %v3952 = vadd.f32 %v3950, %v3951
        %v3953 = vsel %vm3804, %v3935, 0.0
        %v3954 = vadd.f32 %v3952, %v3953
        %v3955 = vsel %vm3804, %v3936, 0.0
        %v3956 = vadd.f32 %v3954, %v3955
        %v3957 = vsel %vm3804, %v3937, 0.0
        %v3958 = vadd.f32 %v3956, %v3957
        %v3959 = vsel %vm3804, %v3938, 0.0
        %v3960 = vadd.f32 %v3958, %v3959
        %v3961 = vsel %vm3804, %v3939, 0.0
        %v3962 = vadd.f32 %v3960, %v3961
        %v3963 = vsel %vm3804, %v3940, 0.0
        %v3964 = vadd.f32 %v3962, %v3963
        %v3965 = vsel %vm3804, %v3941, 0.0
        %v3966 = vadd.f32 %v3964, %v3965
        %v3967 = vsel %vm3804, %v3942, 0.0
        %v3968 = vadd.f32 %v3966, %v3967
        %v3969 = vsel %vm3804, %v3943, 0.0
        %v3970 = vadd.f32 %v3968, %v3969
        %v3971 = vsel %vm3804, %v3944, 0.0
        %v3972 = vadd.f32 %v3970, %v3971
        %v3973 = vsel %vm3804, %v3945, 0.0
        %v3974 = vadd.f32 %v3972, %v3973
        %v3975 = vsel %vm3804, %v3946, 0.0
        %v3976 = vadd.f32 %v3974, %v3975
        %v3977 = vsel %vm3804, %v3947, 0.0
        %v3978 = vadd.f32 %v3976, %v3977
        %v3979 = vrot.slane %v3978, 4
        %v3980 = vadd.f32 %v3978, %v3979
        %v3981 = vrot.slane %v3980, 2
        %v3982 = vadd.f32 %v3980, %v3981
        %v3983 = vrot.slane %v3982, 1
        %v3984 = vadd.f32 %v3982, %v3983
        %v3985 = vlaneseq
        %v3986 = vshrl.u32 %v3985, 7
        %vm3987 = vcmp.eq.s32.totalorder %v3986, 0
        %v3988 = vsel %vm3987, %v3841, 0.0
        %vm3989 = vcmp.eq.s32.totalorder %v3986, 1
        %v3990 = vsel %vm3989, %v3894, 0.0
        %v3991 = vadd.f32 %v3988, %v3990
        %vm3992 = vcmp.eq.s32.totalorder %v3986, 2
        %v3993 = vsel %vm3992, %v3931, 0.0
        %v3994 = vadd.f32 %v3991, %v3993
        %vm3995 = vcmp.eq.s32.totalorder %v3986, 3
        %v3996 = vsel %vm3995, %v3984, 0.0
        %v3997 = vadd.f32 %v3994, %v3996
        %vm3998 = vcmask 60416
        %3999 = vst.msk [vmem:[%s348] sm:$0xf] %vm3998, %v3997
        %v4000 = vpack.c.bf16 %v3789, %v3788
        %v4001 = vpack.c.bf16 %v3791, %v3790
        %v4002 = vpack.c.bf16 %v3793, %v3792
        %v4003 = vpack.c.bf16 %v3795, %v3794
        %v4004 = vpack.c.bf16 %v3797, %v3796
        %v4005 = vpack.c.bf16 %v3799, %v3798
        %v4006 = vpack.c.bf16 %v3801, %v3800
        %v4007 = vpack.c.bf16 %v3803, %v3802
        %v4016 = vunpack.c.l.b16 %v4000
        %v4017 = vunpack.c.h.b16 %v4000
        %v4018 = vunpack.c.l.b16 %v4001
        %v4019 = vunpack.c.h.b16 %v4001
        %v4020 = vunpack.c.l.b16 %v4002
        %v4021 = vunpack.c.h.b16 %v4002
        %v4022 = vunpack.c.l.b16 %v4003
        %v4023 = vunpack.c.h.b16 %v4003
        %v4024 = vunpack.c.l.b16 %v4004
        %v4025 = vunpack.c.h.b16 %v4004
        %v4026 = vunpack.c.l.b16 %v4005
        %v4027 = vunpack.c.h.b16 %v4005
        %v4028 = vunpack.c.l.b16 %v4006
        %v4029 = vunpack.c.h.b16 %v4006
        %v4030 = vunpack.c.l.b16 %v4007
        %v4031 = vunpack.c.h.b16 %v4007
        %v4032 = vpack.c.b16 %v4016, %v4016
        %v4033 = vpack.c.b16 %v4017, %v4017
        %v4034 = vpack.c.b16 %v4018, %v4018
        %v4035 = vpack.c.b16 %v4019, %v4019
        %v4036 = vpack.c.b16 %v4020, %v4020
        %v4037 = vpack.c.b16 %v4021, %v4021
        %v4038 = vpack.c.b16 %v4022, %v4022
        %v4039 = vpack.c.b16 %v4023, %v4023
        %v4040 = vpack.c.b16 %v4024, %v4024
        %v4041 = vpack.c.b16 %v4025, %v4025
        %v4042 = vpack.c.b16 %v4026, %v4026
        %v4043 = vpack.c.b16 %v4027, %v4027
        %v4044 = vpack.c.b16 %v4028, %v4028
        %v4045 = vpack.c.b16 %v4029, %v4029
        %v4046 = vpack.c.b16 %v4030, %v4030
        %v4047 = vpack.c.b16 %v4031, %v4031
        %4064 = vst.msk [vmem:[%s316] sm:$0xf] %vm3998, %v4032
        %4065 = vst.msk [vmem:[%s316 + $0x4] sm:$0xf] %vm3998, %v4033
        %4066 = vst.msk [vmem:[%s316 + $0x8] sm:$0xf] %vm3998, %v4034
        %4067 = vst.msk [vmem:[%s316 + $0xc] sm:$0xf] %vm3998, %v4035
        %4068 = vst.msk [vmem:[%s316 + $0x10] sm:$0xf] %vm3998, %v4036
        %4069 = vst.msk [vmem:[%s316 + $0x14] sm:$0xf] %vm3998, %v4037
        %4070 = vst.msk [vmem:[%s316 + $0x18] sm:$0xf] %vm3998, %v4038
        %4071 = vst.msk [vmem:[%s316 + $0x1c] sm:$0xf] %vm3998, %v4039
        %4072 = vst.msk [vmem:[%s316 + $0x20] sm:$0xf] %vm3998, %v4040
        %4073 = vst.msk [vmem:[%s316 + $0x24] sm:$0xf] %vm3998, %v4041
        %4074 = vst.msk [vmem:[%s316 + $0x28] sm:$0xf] %vm3998, %v4042
        %4075 = vst.msk [vmem:[%s316 + $0x2c] sm:$0xf] %vm3998, %v4043
        %4076 = vst.msk [vmem:[%s316 + $0x30] sm:$0xf] %vm3998, %v4044
        %4077 = vst.msk [vmem:[%s316 + $0x34] sm:$0xf] %vm3998, %v4045
        %4078 = vst.msk [vmem:[%s316 + $0x38] sm:$0xf] %vm3998, %v4046
        %4079 = vst.msk [vmem:[%s316 + $0x3c] sm:$0xf] %vm3998, %v4047
        %v4080 = vpack.c.bf16 %v2057, %v2056
        %v4081 = vpack.c.bf16 %v2059, %v2058
        %v4082 = vpack.c.bf16 %v2061, %v2060
        %v4083 = vpack.c.bf16 %v2063, %v2062
        %v4084 = vpack.c.bf16 %v2065, %v2064
        %v4085 = vpack.c.bf16 %v2067, %v2066
        %v4086 = vpack.c.bf16 %v2069, %v2068
        %v4087 = vpack.c.bf16 %v2071, %v2070
        %v4096 = vunpack.c.l.b16 %v4080
        %v4097 = vunpack.c.h.b16 %v4080
        %v4098 = vunpack.c.l.b16 %v4081
        %v4099 = vunpack.c.h.b16 %v4081
        %v4100 = vunpack.c.l.b16 %v4082
        %v4101 = vunpack.c.h.b16 %v4082
        %v4102 = vunpack.c.l.b16 %v4083
        %v4103 = vunpack.c.h.b16 %v4083
        %v4104 = vunpack.c.l.b16 %v4084
        %v4105 = vunpack.c.h.b16 %v4084
        %v4106 = vunpack.c.l.b16 %v4085
        %v4107 = vunpack.c.h.b16 %v4085
        %v4108 = vunpack.c.l.b16 %v4086
        %v4109 = vunpack.c.h.b16 %v4086
        %v4110 = vunpack.c.l.b16 %v4087
        %v4111 = vunpack.c.h.b16 %v4087
        %v4112 = vpack.c.b16 %v4096, %v4096
        %v4113 = vpack.c.b16 %v4097, %v4097
        %v4114 = vpack.c.b16 %v4098, %v4098
        %v4115 = vpack.c.b16 %v4099, %v4099
        %v4116 = vpack.c.b16 %v4100, %v4100
        %v4117 = vpack.c.b16 %v4101, %v4101
        %v4118 = vpack.c.b16 %v4102, %v4102
        %v4119 = vpack.c.b16 %v4103, %v4103
        %v4120 = vpack.c.b16 %v4104, %v4104
        %v4121 = vpack.c.b16 %v4105, %v4105
        %v4122 = vpack.c.b16 %v4106, %v4106
        %v4123 = vpack.c.b16 %v4107, %v4107
        %v4124 = vpack.c.b16 %v4108, %v4108
        %v4125 = vpack.c.b16 %v4109, %v4109
        %v4126 = vpack.c.b16 %v4110, %v4110
        %v4127 = vpack.c.b16 %v4111, %v4111
        %4144 = vst.msk [vmem:[%s322] sm:$0xf] %vm3998, %v4112
        %4145 = vst.msk [vmem:[%s322 + $0x4] sm:$0xf] %vm3998, %v4113
        %4146 = vst.msk [vmem:[%s322 + $0x8] sm:$0xf] %vm3998, %v4114
        %4147 = vst.msk [vmem:[%s322 + $0xc] sm:$0xf] %vm3998, %v4115
        %4148 = vst.msk [vmem:[%s322 + $0x10] sm:$0xf] %vm3998, %v4116
        %4149 = vst.msk [vmem:[%s322 + $0x14] sm:$0xf] %vm3998, %v4117
        %4150 = vst.msk [vmem:[%s322 + $0x18] sm:$0xf] %vm3998, %v4118
        %4151 = vst.msk [vmem:[%s322 + $0x1c] sm:$0xf] %vm3998, %v4119
        %4152 = vst.msk [vmem:[%s322 + $0x20] sm:$0xf] %vm3998, %v4120
        %4153 = vst.msk [vmem:[%s322 + $0x24] sm:$0xf] %vm3998, %v4121
        %4154 = vst.msk [vmem:[%s322 + $0x28] sm:$0xf] %vm3998, %v4122
        %4155 = vst.msk [vmem:[%s322 + $0x2c] sm:$0xf] %vm3998, %v4123
        %4156 = vst.msk [vmem:[%s322 + $0x30] sm:$0xf] %vm3998, %v4124
        %4157 = vst.msk [vmem:[%s322 + $0x34] sm:$0xf] %vm3998, %v4125
        %4158 = vst.msk [vmem:[%s322 + $0x38] sm:$0xf] %vm3998, %v4126
        %4159 = vst.msk [vmem:[%s322 + $0x3c] sm:$0xf] %vm3998, %v4127
        %s4160 = sand.u32 %s164, 1
        %s4161 = sand.u32 %s164, 1
        %s4162 = smul.addr %s4161, 64
        %s4163 = scalar_lea.vmem [#allocation2], %s4162
        %s4164 = sand.u32 %s190, 1
        %s4165 = sand.u32 %s190, 1
        %s4166 = smul.addr %s4165, 64
        %s4167 = scalar_lea.vmem [#allocation3], %s4166
        %p4168 = scmp.lt.s32.totalorder %s20, 3
        %s4169 = scalar_select %p4168, %s20, 3
        %s4170 = smul.addr %s4169, 4
        %s4171 = scalar_lea.vmem %s8, %s4170
        // Predicated region
        $region45: #{double_conv_forward.3} parent=43 // pred_check
          %p4172 = pneg %p174
        $region46: #{double_conv_forward.3} parent=43 // pred_check_branch
          %4174 = sbr.rel (%p4172) target = $region48
        $region47: #{double_conv_forward.3} parent=43 // pred_region
          %s4175 = smul.u32 4, %s20
          %s4176 = smul.addr %s4175, 2
          %s4177 = smul.addr %s4176, 4
          %s4178 = scalar_lea.vmem %s6, %s4177
          // Predicated region
          $region49: #{double_conv_forward.3} parent=47 // pred_check
            _
          $region50: #{double_conv_forward.3} parent=47 // pred_check_branch
            %4180 = sbr.rel (0) target = $region52
          $region51: #{double_conv_forward.3} parent=47 // pred_region
            // Predicated region
            $region53: #{double_conv_forward.3} parent=51 // pred_check
              _
            $region54: #{double_conv_forward.3} parent=51 // pred_check_branch
              %4182 = sbr.rel target = $region56
            $region55: #{double_conv_forward.3} parent=51 // pred_region
              // Predicated region
              $region68: #{double_conv_forward.3} parent=55 // pred_check
                _
              $region69: #{double_conv_forward.3} parent=55 // pred_check_branch
                %4227 = sbr.rel (0) target = $region71
              $region70: #{double_conv_forward.3} parent=55 // pred_region
                loop: start=0, step=1, limit=1
                $region72: #{double_conv_forward.3} parent=70 // loop_pre_header
                  _
                $region73: #{double_conv_forward.3} parent=70 // loop_header
                  %s4229 = sphi 0, %s4233
                  %p4230 = scmp.ge.s32.totalorder %s4229, 1
                  %s4234 = sphi %s4163, %s4163
                  %s4235 = sphi %s4178, %s4178
                $region74: #{double_conv_forward.3} parent=70 // loop_header_branch
                  %4232 = sbr.rel (%p4230) target = $region78
                $region75: #{double_conv_forward.3} parent=70 // loop_body
                  _
                $region76: #{double_conv_forward.3} parent=70 // loop_footer
                  %s4233 = sadd.s32 1, %s4229
                $region77: #{double_conv_forward.3} parent=70 // loop_footer_branch
                  %4228 = sbr.rel target = $region73
                $region78: #{double_conv_forward.3} parent=70 // loop_exit
                  _
                loop: start=0, step=1, limit=1
                $region79: #{double_conv_forward.3} parent=70 // loop_pre_header
                  _
                $region80: #{double_conv_forward.3} parent=70 // loop_header
                  %s4238 = sphi 0, %s4242
                  %p4239 = scmp.ge.s32.totalorder %s4238, 1
                  %s4243 = sphi %s4163, %s4163
                  %s4244 = sphi %s4178, %s4178
                $region81: #{double_conv_forward.3} parent=70 // loop_header_branch
                  %4241 = sbr.rel (%p4239) target = $region85
                $region82: #{double_conv_forward.3} parent=70 // loop_body
                  %v4245 = vld [vmem:[%s4243] sm:$0xf]
                  %4246 = vst [vmem:[%s4244] sm:$0xf] %v4245
                  %v4247 = vld [vmem:[%s4243 + $0x4] sm:$0xf]
                  %4248 = vst [vmem:[%s4244 + $0x4] sm:$0xf] %v4247
                  %v4249 = vld [vmem:[%s4243 + $0x8] sm:$0xf]
                  %4250 = vst [vmem:[%s4244 + $0x8] sm:$0xf] %v4249
                  %v4251 = vld [vmem:[%s4243 + $0xc] sm:$0xf]
                  %4252 = vst [vmem:[%s4244 + $0xc] sm:$0xf] %v4251
                  %v4253 = vld [vmem:[%s4243 + $0x10] sm:$0xf]
                  %4254 = vst [vmem:[%s4244 + $0x10] sm:$0xf] %v4253
                  %v4255 = vld [vmem:[%s4243 + $0x14] sm:$0xf]
                  %4256 = vst [vmem:[%s4244 + $0x14] sm:$0xf] %v4255
                  %v4257 = vld [vmem:[%s4243 + $0x18] sm:$0xf]
                  %4258 = vst [vmem:[%s4244 + $0x18] sm:$0xf] %v4257
                  %v4259 = vld [vmem:[%s4243 + $0x1c] sm:$0xf]
                  %4260 = vst [vmem:[%s4244 + $0x1c] sm:$0xf] %v4259
                  %v4261 = vld [vmem:[%s4243 + $0x20] sm:$0xf]
                  %4262 = vst [vmem:[%s4244 + $0x80] sm:$0xf] %v4261
                  %v4263 = vld [vmem:[%s4243 + $0x24] sm:$0xf]
                  %4264 = vst [vmem:[%s4244 + $0x84] sm:$0xf] %v4263
                  %v4265 = vld [vmem:[%s4243 + $0x28] sm:$0xf]
                  %4266 = vst [vmem:[%s4244 + $0x88] sm:$0xf] %v4265
                  %v4267 = vld [vmem:[%s4243 + $0x2c] sm:$0xf]
                  %4268 = vst [vmem:[%s4244 + $0x8c] sm:$0xf] %v4267
                  %v4269 = vld [vmem:[%s4243 + $0x30] sm:$0xf]
                  %4270 = vst [vmem:[%s4244 + $0x90] sm:$0xf] %v4269
                  %v4271 = vld [vmem:[%s4243 + $0x34] sm:$0xf]
                  %4272 = vst [vmem:[%s4244 + $0x94] sm:$0xf] %v4271
                  %v4273 = vld [vmem:[%s4243 + $0x38] sm:$0xf]
                  %4274 = vst [vmem:[%s4244 + $0x98] sm:$0xf] %v4273
                  %v4275 = vld [vmem:[%s4243 + $0x3c] sm:$0xf]
                  %4276 = vst [vmem:[%s4244 + $0x9c] sm:$0xf] %v4275
                $region83: #{double_conv_forward.3} parent=70 // loop_footer
                  %s4242 = sadd.s32 1, %s4238
                $region84: #{double_conv_forward.3} parent=70 // loop_footer_branch
                  %4237 = sbr.rel target = $region80
                $region85: #{double_conv_forward.3} parent=70 // loop_exit
                  _
              $region71: #{double_conv_forward.3} parent=55 // pred_fallthru
                _
            $region56: #{double_conv_forward.3} parent=51 // pred_fallthru
              _
            // Predicated region
            $region57: #{double_conv_forward.3} parent=51 // pred_check
              _
            $region58: #{double_conv_forward.3} parent=51 // pred_check_branch
              %4184 = sbr.rel (0) target = $region60
            $region59: #{double_conv_forward.3} parent=51 // pred_region
              loop: start=0, step=1, limit=1
              $region61: #{double_conv_forward.3} parent=59 // loop_pre_header
                _
              $region62: #{double_conv_forward.3} parent=59 // loop_header
                %s4187 = sphi 0, %s4191
                %p4188 = scmp.ge.s32.totalorder %s4187, 1
                %s4192 = sphi %s4163, %s4163
                %s4193 = sphi %s4178, %s4178
              $region63: #{double_conv_forward.3} parent=59 // loop_header_branch
                %4190 = sbr.rel (%p4188) target = $region67
              $region64: #{double_conv_forward.3} parent=59 // loop_body
                %v4194 = vld [vmem:[%s4192] sm:$0xf]
                %4195 = vst [vmem:[%s4193] sm:$0xf] %v4194
                %v4196 = vld [vmem:[%s4192 + $0x4] sm:$0xf]
                %4197 = vst [vmem:[%s4193 + $0x4] sm:$0xf] %v4196
                %v4198 = vld [vmem:[%s4192 + $0x8] sm:$0xf]
                %4199 = vst [vmem:[%s4193 + $0x8] sm:$0xf] %v4198
                %v4200 = vld [vmem:[%s4192 + $0xc] sm:$0xf]
                %4201 = vst [vmem:[%s4193 + $0xc] sm:$0xf] %v4200
                %v4202 = vld [vmem:[%s4192 + $0x10] sm:$0xf]
                %4203 = vst [vmem:[%s4193 + $0x10] sm:$0xf] %v4202
                %v4204 = vld [vmem:[%s4192 + $0x14] sm:$0xf]
                %4205 = vst [vmem:[%s4193 + $0x14] sm:$0xf] %v4204
                %v4206 = vld [vmem:[%s4192 + $0x18] sm:$0xf]
                %4207 = vst [vmem:[%s4193 + $0x18] sm:$0xf] %v4206
                %v4208 = vld [vmem:[%s4192 + $0x1c] sm:$0xf]
                %4209 = vst [vmem:[%s4193 + $0x1c] sm:$0xf] %v4208
                %v4210 = vld [vmem:[%s4192 + $0x20] sm:$0xf]
                %4211 = vst [vmem:[%s4193 + $0x80] sm:$0xf] %v4210
                %v4212 = vld [vmem:[%s4192 + $0x24] sm:$0xf]
                %4213 = vst [vmem:[%s4193 + $0x84] sm:$0xf] %v4212
                %v4214 = vld [vmem:[%s4192 + $0x28] sm:$0xf]
                %4215 = vst [vmem:[%s4193 + $0x88] sm:$0xf] %v4214
                %v4216 = vld [vmem:[%s4192 + $0x2c] sm:$0xf]
                %4217 = vst [vmem:[%s4193 + $0x8c] sm:$0xf] %v4216
                %v4218 = vld [vmem:[%s4192 + $0x30] sm:$0xf]
                %4219 = vst [vmem:[%s4193 + $0x90] sm:$0xf] %v4218
                %v4220 = vld [vmem:[%s4192 + $0x34] sm:$0xf]
                %4221 = vst [vmem:[%s4193 + $0x94] sm:$0xf] %v4220
                %v4222 = vld [vmem:[%s4192 + $0x38] sm:$0xf]
                %4223 = vst [vmem:[%s4193 + $0x98] sm:$0xf] %v4222
                %v4224 = vld [vmem:[%s4192 + $0x3c] sm:$0xf]
                %4225 = vst [vmem:[%s4193 + $0x9c] sm:$0xf] %v4224
              $region65: #{double_conv_forward.3} parent=59 // loop_footer
                %s4191 = sadd.s32 1, %s4187
              $region66: #{double_conv_forward.3} parent=59 // loop_footer_branch
                %4186 = sbr.rel target = $region62
              $region67: #{double_conv_forward.3} parent=59 // loop_exit
                _
            $region60: #{double_conv_forward.3} parent=51 // pred_fallthru
              _
          $region52: #{double_conv_forward.3} parent=47 // pred_fallthru
            _
          %4277 = vnop
        $region48: #{double_conv_forward.3} parent=43 // pred_fallthru
          _
        // Predicated region
        $region86: #{double_conv_forward.3} parent=43 // pred_check
          %p4278 = pneg %p200
        $region87: #{double_conv_forward.3} parent=43 // pred_check_branch
          %4280 = sbr.rel (%p4278) target = $region89
        $region88: #{double_conv_forward.3} parent=43 // pred_region
          %s4281 = smul.u32 4, %s20
          %s4282 = smul.addr %s4281, 2
          %s4283 = smul.addr %s4282, 4
          %s4284 = scalar_lea.vmem %s7, %s4283
          // Predicated region
          $region90: #{double_conv_forward.3} parent=88 // pred_check
            _
          $region91: #{double_conv_forward.3} parent=88 // pred_check_branch
            %4286 = sbr.rel (0) target = $region93
          $region92: #{double_conv_forward.3} parent=88 // pred_region
            // Predicated region
            $region94: #{double_conv_forward.3} parent=92 // pred_check
              _
            $region95: #{double_conv_forward.3} parent=92 // pred_check_branch
              %4288 = sbr.rel target = $region97
            $region96: #{double_conv_forward.3} parent=92 // pred_region
              // Predicated region
              $region109: #{double_conv_forward.3} parent=96 // pred_check
                _
              $region110: #{double_conv_forward.3} parent=96 // pred_check_branch
                %4333 = sbr.rel (0) target = $region112
              $region111: #{double_conv_forward.3} parent=96 // pred_region
                loop: start=0, step=1, limit=1
                $region113: #{double_conv_forward.3} parent=111 // loop_pre_header
                  _
                $region114: #{double_conv_forward.3} parent=111 // loop_header
                  %s4335 = sphi 0, %s4339
                  %p4336 = scmp.ge.s32.totalorder %s4335, 1
                  %s4340 = sphi %s4167, %s4167
                  %s4341 = sphi %s4284, %s4284
                $region115: #{double_conv_forward.3} parent=111 // loop_header_branch
                  %4338 = sbr.rel (%p4336) target = $region119
                $region116: #{double_conv_forward.3} parent=111 // loop_body
                  _
                $region117: #{double_conv_forward.3} parent=111 // loop_footer
                  %s4339 = sadd.s32 1, %s4335
                $region118: #{double_conv_forward.3} parent=111 // loop_footer_branch
                  %4334 = sbr.rel target = $region114
                $region119: #{double_conv_forward.3} parent=111 // loop_exit
                  _
                loop: start=0, step=1, limit=1
                $region120: #{double_conv_forward.3} parent=111 // loop_pre_header
                  _
                $region121: #{double_conv_forward.3} parent=111 // loop_header
                  %s4344 = sphi 0, %s4348
                  %p4345 = scmp.ge.s32.totalorder %s4344, 1
                  %s4349 = sphi %s4167, %s4167
                  %s4350 = sphi %s4284, %s4284
                $region122: #{double_conv_forward.3} parent=111 // loop_header_branch
                  %4347 = sbr.rel (%p4345) target = $region126
                $region123: #{double_conv_forward.3} parent=111 // loop_body
                  %v4351 = vld [vmem:[%s4349] sm:$0xf]
                  %4352 = vst [vmem:[%s4350] sm:$0xf] %v4351
                  %v4353 = vld [vmem:[%s4349 + $0x4] sm:$0xf]
                  %4354 = vst [vmem:[%s4350 + $0x4] sm:$0xf] %v4353
                  %v4355 = vld [vmem:[%s4349 + $0x8] sm:$0xf]
                  %4356 = vst [vmem:[%s4350 + $0x8] sm:$0xf] %v4355
                  %v4357 = vld [vmem:[%s4349 + $0xc] sm:$0xf]
                  %4358 = vst [vmem:[%s4350 + $0xc] sm:$0xf] %v4357
                  %v4359 = vld [vmem:[%s4349 + $0x10] sm:$0xf]
                  %4360 = vst [vmem:[%s4350 + $0x10] sm:$0xf] %v4359
                  %v4361 = vld [vmem:[%s4349 + $0x14] sm:$0xf]
                  %4362 = vst [vmem:[%s4350 + $0x14] sm:$0xf] %v4361
                  %v4363 = vld [vmem:[%s4349 + $0x18] sm:$0xf]
                  %4364 = vst [vmem:[%s4350 + $0x18] sm:$0xf] %v4363
                  %v4365 = vld [vmem:[%s4349 + $0x1c] sm:$0xf]
                  %4366 = vst [vmem:[%s4350 + $0x1c] sm:$0xf] %v4365
                  %v4367 = vld [vmem:[%s4349 + $0x20] sm:$0xf]
                  %4368 = vst [vmem:[%s4350 + $0x80] sm:$0xf] %v4367
                  %v4369 = vld [vmem:[%s4349 + $0x24] sm:$0xf]
                  %4370 = vst [vmem:[%s4350 + $0x84] sm:$0xf] %v4369
                  %v4371 = vld [vmem:[%s4349 + $0x28] sm:$0xf]
                  %4372 = vst [vmem:[%s4350 + $0x88] sm:$0xf] %v4371
                  %v4373 = vld [vmem:[%s4349 + $0x2c] sm:$0xf]
                  %4374 = vst [vmem:[%s4350 + $0x8c] sm:$0xf] %v4373
                  %v4375 = vld [vmem:[%s4349 + $0x30] sm:$0xf]
                  %4376 = vst [vmem:[%s4350 + $0x90] sm:$0xf] %v4375
                  %v4377 = vld [vmem:[%s4349 + $0x34] sm:$0xf]
                  %4378 = vst [vmem:[%s4350 + $0x94] sm:$0xf] %v4377
                  %v4379 = vld [vmem:[%s4349 + $0x38] sm:$0xf]
                  %4380 = vst [vmem:[%s4350 + $0x98] sm:$0xf] %v4379
                  %v4381 = vld [vmem:[%s4349 + $0x3c] sm:$0xf]
                  %4382 = vst [vmem:[%s4350 + $0x9c] sm:$0xf] %v4381
                $region124: #{double_conv_forward.3} parent=111 // loop_footer
                  %s4348 = sadd.s32 1, %s4344
                $region125: #{double_conv_forward.3} parent=111 // loop_footer_branch
                  %4343 = sbr.rel target = $region121
                $region126: #{double_conv_forward.3} parent=111 // loop_exit
                  _
              $region112: #{double_conv_forward.3} parent=96 // pred_fallthru
                _
            $region97: #{double_conv_forward.3} parent=92 // pred_fallthru
              _
            // Predicated region
            $region98: #{double_conv_forward.3} parent=92 // pred_check
              _
            $region99: #{double_conv_forward.3} parent=92 // pred_check_branch
              %4290 = sbr.rel (0) target = $region101
            $region100: #{double_conv_forward.3} parent=92 // pred_region
              loop: start=0, step=1, limit=1
              $region102: #{double_conv_forward.3} parent=100 // loop_pre_header
                _
              $region103: #{double_conv_forward.3} parent=100 // loop_header
                %s4293 = sphi 0, %s4297
                %p4294 = scmp.ge.s32.totalorder %s4293, 1
                %s4298 = sphi %s4167, %s4167
                %s4299 = sphi %s4284, %s4284
              $region104: #{double_conv_forward.3} parent=100 // loop_header_branch
                %4296 = sbr.rel (%p4294) target = $region108
              $region105: #{double_conv_forward.3} parent=100 // loop_body
                %v4300 = vld [vmem:[%s4298] sm:$0xf]
                %4301 = vst [vmem:[%s4299] sm:$0xf] %v4300
                %v4302 = vld [vmem:[%s4298 + $0x4] sm:$0xf]
                %4303 = vst [vmem:[%s4299 + $0x4] sm:$0xf] %v4302
                %v4304 = vld [vmem:[%s4298 + $0x8] sm:$0xf]
                %4305 = vst [vmem:[%s4299 + $0x8] sm:$0xf] %v4304
                %v4306 = vld [vmem:[%s4298 + $0xc] sm:$0xf]
                %4307 = vst [vmem:[%s4299 + $0xc] sm:$0xf] %v4306
                %v4308 = vld [vmem:[%s4298 + $0x10] sm:$0xf]
                %4309 = vst [vmem:[%s4299 + $0x10] sm:$0xf] %v4308
                %v4310 = vld [vmem:[%s4298 + $0x14] sm:$0xf]
                %4311 = vst [vmem:[%s4299 + $0x14] sm:$0xf] %v4310
                %v4312 = vld [vmem:[%s4298 + $0x18] sm:$0xf]
                %4313 = vst [vmem:[%s4299 + $0x18] sm:$0xf] %v4312
                %v4314 = vld [vmem:[%s4298 + $0x1c] sm:$0xf]
                %4315 = vst [vmem:[%s4299 + $0x1c] sm:$0xf] %v4314
                %v4316 = vld [vmem:[%s4298 + $0x20] sm:$0xf]
                %4317 = vst [vmem:[%s4299 + $0x80] sm:$0xf] %v4316
                %v4318 = vld [vmem:[%s4298 + $0x24] sm:$0xf]
                %4319 = vst [vmem:[%s4299 + $0x84] sm:$0xf] %v4318
                %v4320 = vld [vmem:[%s4298 + $0x28] sm:$0xf]
                %4321 = vst [vmem:[%s4299 + $0x88] sm:$0xf] %v4320
                %v4322 = vld [vmem:[%s4298 + $0x2c] sm:$0xf]
                %4323 = vst [vmem:[%s4299 + $0x8c] sm:$0xf] %v4322
                %v4324 = vld [vmem:[%s4298 + $0x30] sm:$0xf]
                %4325 = vst [vmem:[%s4299 + $0x90] sm:$0xf] %v4324
                %v4326 = vld [vmem:[%s4298 + $0x34] sm:$0xf]
                %4327 = vst [vmem:[%s4299 + $0x94] sm:$0xf] %v4326
                %v4328 = vld [vmem:[%s4298 + $0x38] sm:$0xf]
                %4329 = vst [vmem:[%s4299 + $0x98] sm:$0xf] %v4328
                %v4330 = vld [vmem:[%s4298 + $0x3c] sm:$0xf]
                %4331 = vst [vmem:[%s4299 + $0x9c] sm:$0xf] %v4330
              $region106: #{double_conv_forward.3} parent=100 // loop_footer
                %s4297 = sadd.s32 1, %s4293
              $region107: #{double_conv_forward.3} parent=100 // loop_footer_branch
                %4292 = sbr.rel target = $region103
              $region108: #{double_conv_forward.3} parent=100 // loop_exit
                _
            $region101: #{double_conv_forward.3} parent=92 // pred_fallthru
              _
          $region93: #{double_conv_forward.3} parent=88 // pred_fallthru
            _
          %4383 = vnop
        $region89: #{double_conv_forward.3} parent=43 // pred_fallthru
          _
        // Predicated region
        $region127: #{double_conv_forward.3} parent=43 // pred_check
          %p4384 = pneg %p226
        $region128: #{double_conv_forward.3} parent=43 // pred_check_branch
          %4386 = sbr.rel (%p4384) target = $region130
        $region129: #{double_conv_forward.3} parent=43 // pred_region
          _
        $region130: #{double_conv_forward.3} parent=43 // pred_fallthru
          _
      $region44: #{double_conv_forward.3} parent=5 // pred_fallthru
        _
      %p4387 = scmp.le.s32.totalorder 2, %s15
      // Predicated region
      $region131: #{double_conv_forward.3} parent=5 // pred_check
        %p4388 = pneg %p4387
      $region132: #{double_conv_forward.3} parent=5 // pred_check_branch
        %4390 = sbr.rel (%p4388) target = $region134
      $region133: #{double_conv_forward.3} parent=5 // pred_region
        %s4391 = ssub.s32 %s15, 2
        // Predicated region
        $region135: #{double_conv_forward.3} parent=133 // pred_check
          %p4392 = pneg %p180
        $region136: #{double_conv_forward.3} parent=133 // pred_check_branch
          %4394 = sbr.rel (%p4392) target = $region138
        $region137: #{double_conv_forward.3} parent=133 // pred_region
          %s4395 = sand.u32 %s165, 1
          %s4396 = sand.u32 %s165, 1
          %s4397 = smul.addr %s4396, 64
          %s4398 = scalar_lea.vmem [#allocation2], %s4397
        $region138: #{double_conv_forward.3} parent=133 // pred_fallthru
          _
        // Predicated region
        $region139: #{double_conv_forward.3} parent=133 // pred_check
          %p4399 = pneg %p206
        $region140: #{double_conv_forward.3} parent=133 // pred_check_branch
          %4401 = sbr.rel (%p4399) target = $region142
        $region141: #{double_conv_forward.3} parent=133 // pred_region
          %s4402 = sand.u32 %s191, 1
          %s4403 = sand.u32 %s191, 1
          %s4404 = smul.addr %s4403, 64
          %s4405 = scalar_lea.vmem [#allocation3], %s4404
        $region142: #{double_conv_forward.3} parent=133 // pred_fallthru
          _
        // Predicated region
        $region143: #{double_conv_forward.3} parent=133 // pred_check
          %p4406 = pneg %p232
        $region144: #{double_conv_forward.3} parent=133 // pred_check_branch
          %4408 = sbr.rel (%p4406) target = $region146
        $region145: #{double_conv_forward.3} parent=133 // pred_region
          %p4409 = scmp.lt.s32.totalorder %s21, 3
          %s4410 = scalar_select %p4409, %s21, 3
          %s4411 = smul.addr %s4410, 4
          %s4412 = scalar_lea.vmem %s8, %s4411
        $region146: #{double_conv_forward.3} parent=133 // pred_fallthru
          _
      $region134: #{double_conv_forward.3} parent=5 // pred_fallthru
        _
    $region6: #{double_conv_forward.3} parent=1 // loop_footer
      %s19 = sadd.s32 1, %s15
    $region7: #{double_conv_forward.3} parent=1 // loop_footer_branch
      %14 = sbr.rel target = $region3
    $region8: #{double_conv_forward.3} parent=1 // loop_exit
      _

// kernel: double_conv_forward.4
$region0: #{double_conv_forward.4}
  #allocation0 [shape = 'u32[]', space=smem, size = 0x4, offset = 0x4, fixed_abs, tag = 'smem constant byte address 0x4 - core index']
  #allocation1 [shape = 'u32[144,128]{1,0:T(1,128)}', space=vmem, size = 0x12000, scoped, tag = 'internal scratch']
  %s0 = inlined_call_operand.vmem [shape: bf16[8,6,18,8], index: 0, kind: input, shape index: {}]
  %s1 = inlined_call_operand.vmem [shape: bf16[8,6,18,8], index: 1, kind: input, shape index: {}]
  %s2 = inlined_call_operand.vmem [shape: bf16[9,8,8], index: 2, kind: input, shape index: {}]
  %s3 = inlined_call_operand.vmem [shape: bf16[9,8,8], index: 3, kind: input, shape index: {}]
  %s4 = inlined_call_operand.vmem [shape: f32[1,8], index: 4, kind: input, shape index: {}]
  %s5 = inlined_call_operand.vmem [shape: f32[1,8], index: 5, kind: input, shape index: {}]
  %s6 = inlined_call_operand.vmem [shape: bf16[2,16,16,8], index: 6, kind: output, shape index: {0}]
  %s7 = inlined_call_operand.vmem [shape: bf16[2,16,16,8], index: 7, kind: output, shape index: {1}]
  %s8 = inlined_call_operand.vmem [shape: f32[4,4,8], index: 8, kind: output, shape index: {2}]
  %9 = xla_tuple %s6, %s7, %s8
  %s10 = sld [smem:[#allocation0]]
  $region147: #{double_conv_forward.4} parent=0
    _
  %s12 = ssub.s32 1, %s10
  %s13 = scalar_select 0, %s12, %s10
  $region1: #{double_conv_forward.4} parent=0
    #allocation2 [shape = 'u8[65536]{0}', space=vmem, size = 0x10000, scoped, tag = 'output window, operand 0']
    #allocation3 [shape = 'u8[65536]{0}', space=vmem, size = 0x10000, scoped, tag = 'output window, operand 1']
    loop: start=0, step=1, limit=6
    $region2: #{double_conv_forward.4} parent=1 // loop_pre_header
      _
    $region3: #{double_conv_forward.4} parent=1 // loop_header
      %s15 = sphi 0, %s19
      %p16 = scmp.ge.s32.totalorder %s15, 6
      %s25 = sphi 0, %s27
      %s28 = sphi 0, %s25
      %s29 = sphi 0, %s28
      %s45 = sphi 0, %s29
      %s51 = sphi 0, %s53
      %s54 = sphi 0, %s51
      %s55 = sphi 0, %s54
      %s71 = sphi 0, %s55
      %s75 = sphi 0, %s75
      %s77 = sphi 0, %s75
      %s78 = sphi 0, %s77
      %s92 = sphi 0, %s78
      %s96 = sphi 0, %s96
      %s98 = sphi 0, %s96
      %s99 = sphi 0, %s98
      %s113 = sphi 0, %s99
      %s117 = sphi 0, %s117
      %s119 = sphi 0, %s117
      %s120 = sphi 0, %s119
      %s134 = sphi 0, %s120
      %s138 = sphi 0, %s138
      %s140 = sphi 0, %s138
      %s141 = sphi 0, %s140
      %s155 = sphi 0, %s141
      %s161 = sphi 0, %s163
      %s164 = sphi 0, %s161
      %s165 = sphi 0, %s164
      %s181 = sphi 0, %s165
      %s187 = sphi 0, %s189
      %s190 = sphi 0, %s187
      %s191 = sphi 0, %s190
      %s207 = sphi 0, %s191
      %s213 = sphi 0, %s215
      %s216 = sphi 0, %s213
      %s217 = sphi 0, %s216
      %s233 = sphi 0, %s217
    $region4: #{double_conv_forward.4} parent=1 // loop_header_branch
      %18 = sbr.rel (%p16) target = $region8
    $region5: #{double_conv_forward.4} parent=1 // loop_body
      %s20 = ssub.s32 %s15, 1
      %s21 = ssub.s32 %s15, 2
      %s22 = sadd.s32 %s15, 1
      %s23 = ssub.s32 %s15, %s22
      %p24 = scmp.eq.s32.totalorder %s23, 0
      %s26 = sadd.s32 %s25, 1
      %s27 = scalar_select %p24, %s25, %s26
      %p30 = pneg %p24
      %p31 = scmp.eq.s32.totalorder %s15, 3
      %p32 = por %p30, %p31
      %p33 = scmp.ne.s32.totalorder %s25, %s28
      %p34 = scmp.eq.s32.totalorder %s15, 0
      %p35 = por %p33, %p34
      %p36 = scmp.ne.s32.totalorder %s25, %s28
      %p37 = scmp.eq.s32.totalorder %s20, 3
      %p38 = por %p36, %p37
      %p39 = scmp.ne.s32.totalorder %s28, %s29
      %p40 = scmp.eq.s32.totalorder %s20, 0
      %p41 = por %p39, %p40
      %p42 = scmp.ne.s32.totalorder %s28, %s29
      %p43 = scmp.eq.s32.totalorder %s21, 3
      %p44 = por %p42, %p43
      %p46 = scmp.ne.s32.totalorder %s29, %s45
      %p47 = scmp.eq.s32.totalorder %s21, 0
      %p48 = por %p46, %p47
      %s49 = ssub.s32 %s15, %s22
      %p50 = scmp.eq.s32.totalorder %s49, 0
      %s52 = sadd.s32 %s51, 1
      %s53 = scalar_select %p50, %s51, %s52
      %p56 = pneg %p50
      %p57 = scmp.eq.s32.totalorder %s15, 3
      %p58 = por %p56, %p57
      %p59 = scmp.ne.s32.totalorder %s51, %s54
      %p60 = scmp.eq.s32.totalorder %s15, 0
      %p61 = por %p59, %p60
      %p62 = scmp.ne.s32.totalorder %s51, %s54
      %p63 = scmp.eq.s32.totalorder %s20, 3
      %p64 = por %p62, %p63
      %p65 = scmp.ne.s32.totalorder %s54, %s55
      %p66 = scmp.eq.s32.totalorder %s20, 0
      %p67 = por %p65, %p66
      %p68 = scmp.ne.s32.totalorder %s54, %s55
      %p69 = scmp.eq.s32.totalorder %s21, 3
      %p70 = por %p68, %p69
      %p72 = scmp.ne.s32.totalorder %s55, %s71
      %p73 = scmp.eq.s32.totalorder %s21, 0
      %p74 = por %p72, %p73
      %s76 = sadd.s32 %s75, 1
      %p79 = scmp.eq.s32.totalorder %s15, 3
      %p80 = scmp.ne.s32.totalorder %s75, %s77
      %p81 = scmp.eq.s32.totalorder %s15, 0
      %p82 = por %p80, %p81
      %p83 = scmp.ne.s32.totalorder %s75, %s77
      %p84 = scmp.eq.s32.totalorder %s20, 3
      %p85 = por %p83, %p84
      %p86 = scmp.ne.s32.totalorder %s77, %s78
      %p87 = scmp.eq.s32.totalorder %s20, 0
      %p88 = por %p86, %p87
      %p89 = scmp.ne.s32.totalorder %s77, %s78
      %p90 = scmp.eq.s32.totalorder %s21, 3
      %p91 = por %p89, %p90
      %p93 = scmp.ne.s32.totalorder %s78, %s92
      %p94 = scmp.eq.s32.totalorder %s21, 0
      %p95 = por %p93, %p94
      %s97 = sadd.s32 %s96, 1
      %p100 = scmp.eq.s32.totalorder %s15, 3
      %p101 = scmp.ne.s32.totalorder %s96, %s98
      %p102 = scmp.eq.s32.totalorder %s15, 0
      %p103 = por %p101, %p102
      %p104 = scmp.ne.s32.totalorder %s96, %s98
      %p105 = scmp.eq.s32.totalorder %s20, 3
      %p106 = por %p104, %p105
      %p107 = scmp.ne.s32.totalorder %s98, %s99
      %p108 = scmp.eq.s32.totalorder %s20, 0
      %p109 = por %p107, %p108
      %p110 = scmp.ne.s32.totalorder %s98, %s99
      %p111 = scmp.eq.s32.totalorder %s21, 3
      %p112 = por %p110, %p111
      %p114 = scmp.ne.s32.totalorder %s99, %s113
      %p115 = scmp.eq.s32.totalorder %s21, 0
      %p116 = por %p114, %p115
      %s118 = sadd.s32 %s117, 1
      %p121 = scmp.eq.s32.totalorder %s15, 3
      %p122 = scmp.ne.s32.totalorder %s117, %s119
      %p123 = scmp.eq.s32.totalorder %s15, 0
      %p124 = por %p122, %p123
      %p125 = scmp.ne.s32.totalorder %s117, %s119
      %p126 = scmp.eq.s32.totalorder %s20, 3
      %p127 = por %p125, %p126
      %p128 = scmp.ne.s32.totalorder %s119, %s120
      %p129 = scmp.eq.s32.totalorder %s20, 0
      %p130 = por %p128, %p129
      %p131 = scmp.ne.s32.totalorder %s119, %s120
      %p132 = scmp.eq.s32.totalorder %s21, 3
      %p133 = por %p131, %p132
      %p135 = scmp.ne.s32.totalorder %s120, %s134
      %p136 = scmp.eq.s32.totalorder %s21, 0
      %p137 = por %p135, %p136
      %s139 = sadd.s32 %s138, 1
      %p142 = scmp.eq.s32.totalorder %s15, 3
      %p143 = scmp.ne.s32.totalorder %s138, %s140
      %p144 = scmp.eq.s32.totalorder %s15, 0
      %p145 = por %p143, %p144
      %p146 = scmp.ne.s32.totalorder %s138, %s140
      %p147 = scmp.eq.s32.totalorder %s20, 3
      %p148 = por %p146, %p147
      %p149 = scmp.ne.s32.totalorder %s140, %s141
      %p150 = scmp.eq.s32.totalorder %s20, 0
      %p151 = por %p149, %p150
      %p152 = scmp.ne.s32.totalorder %s140, %s141
      %p153 = scmp.eq.s32.totalorder %s21, 3
      %p154 = por %p152, %p153
      %p156 = scmp.ne.s32.totalorder %s141, %s155
      %p157 = scmp.eq.s32.totalorder %s21, 0
      %p158 = por %p156, %p157
      %s159 = ssub.s32 %s15, %s22
      %p160 = scmp.eq.s32.totalorder %s159, 0
      %s162 = sadd.s32 %s161, 1
      %s163 = scalar_select %p160, %s161, %s162
      %p166 = pneg %p160
      %p167 = scmp.eq.s32.totalorder %s15, 3
      %p168 = por %p166, %p167
      %p169 = scmp.ne.s32.totalorder %s161, %s164
      %p170 = scmp.eq.s32.totalorder %s15, 0
      %p171 = por %p169, %p170
      %p172 = scmp.ne.s32.totalorder %s161, %s164
      %p173 = scmp.eq.s32.totalorder %s20, 3
      %p174 = por %p172, %p173
      %p175 = scmp.ne.s32.totalorder %s164, %s165
      %p176 = scmp.eq.s32.totalorder %s20, 0
      %p177 = por %p175, %p176
      %p178 = scmp.ne.s32.totalorder %s164, %s165
      %p179 = scmp.eq.s32.totalorder %s21, 3
      %p180 = por %p178, %p179
      %p182 = scmp.ne.s32.totalorder %s165, %s181
      %p183 = scmp.eq.s32.totalorder %s21, 0
      %p184 = por %p182, %p183
      %s185 = ssub.s32 %s15, %s22
      %p186 = scmp.eq.s32.totalorder %s185, 0
      %s188 = sadd.s32 %s187, 1
      %s189 = scalar_select %p186, %s187, %s188
      %p192 = pneg %p186
      %p193 = scmp.eq.s32.totalorder %s15, 3
      %p194 = por %p192, %p193
      %p195 = scmp.ne.s32.totalorder %s187, %s190
      %p196 = scmp.eq.s32.totalorder %s15, 0
      %p197 = por %p195, %p196
      %p198 = scmp.ne.s32.totalorder %s187, %s190
      %p199 = scmp.eq.s32.totalorder %s20, 3
      %p200 = por %p198, %p199
      %p201 = scmp.ne.s32.totalorder %s190, %s191
      %p202 = scmp.eq.s32.totalorder %s20, 0
      %p203 = por %p201, %p202
      %p204 = scmp.ne.s32.totalorder %s190, %s191
      %p205 = scmp.eq.s32.totalorder %s21, 3
      %p206 = por %p204, %p205
      %p208 = scmp.ne.s32.totalorder %s191, %s207
      %p209 = scmp.eq.s32.totalorder %s21, 0
      %p210 = por %p208, %p209
      %s211 = ssub.s32 %s15, %s22
      %p212 = scmp.eq.s32.totalorder %s211, 0
      %s214 = sadd.s32 %s213, 1
      %s215 = scalar_select %p212, %s213, %s214
      %p218 = pneg %p212
      %p219 = scmp.eq.s32.totalorder %s15, 3
      %p220 = por %p218, %p219
      %p221 = scmp.ne.s32.totalorder %s213, %s216
      %p222 = scmp.eq.s32.totalorder %s15, 0
      %p223 = por %p221, %p222
      %p224 = scmp.ne.s32.totalorder %s213, %s216
      %p225 = scmp.eq.s32.totalorder %s20, 3
      %p226 = por %p224, %p225
      %p227 = scmp.ne.s32.totalorder %s216, %s217
      %p228 = scmp.eq.s32.totalorder %s20, 0
      %p229 = por %p227, %p228
      %p230 = scmp.ne.s32.totalorder %s216, %s217
      %p231 = scmp.eq.s32.totalorder %s21, 3
      %p232 = por %p230, %p231
      %p234 = scmp.ne.s32.totalorder %s217, %s233
      %p235 = scmp.eq.s32.totalorder %s21, 0
      %p236 = por %p234, %p235
      %p237 = scmp.le.s32.totalorder 1, %s15
      %p238 = scmp.lt.s32.totalorder %s15, 5
      %p239 = pnand %p237, %p238
      %p240 = pneg %p239
      // Predicated region
      $region9: #{double_conv_forward.4} parent=5 // pred_check
        _
      $region10: #{double_conv_forward.4} parent=5 // pred_check_branch
        %242 = sbr.rel (%p239) target = $region12
      $region11: #{double_conv_forward.4} parent=5 // pred_region
        %s243 = ssub.s32 %s15, 1
        // Predicated region
        $region13: #{double_conv_forward.4} parent=11 // pred_check
          %p244 = pneg %p88
        $region14: #{double_conv_forward.4} parent=11 // pred_check_branch
          %246 = sbr.rel (%p244) target = $region16
        $region15: #{double_conv_forward.4} parent=11 // pred_region
          _
        $region16: #{double_conv_forward.4} parent=11 // pred_fallthru
          _
        // Predicated region
        $region17: #{double_conv_forward.4} parent=11 // pred_check
          %p247 = pneg %p109
        $region18: #{double_conv_forward.4} parent=11 // pred_check_branch
          %249 = sbr.rel (%p247) target = $region20
        $region19: #{double_conv_forward.4} parent=11 // pred_region
          _
        $region20: #{double_conv_forward.4} parent=11 // pred_fallthru
          _
        // Predicated region
        $region21: #{double_conv_forward.4} parent=11 // pred_check
          %p250 = pneg %p130
        $region22: #{double_conv_forward.4} parent=11 // pred_check_branch
          %252 = sbr.rel (%p250) target = $region24
        $region23: #{double_conv_forward.4} parent=11 // pred_region
          _
        $region24: #{double_conv_forward.4} parent=11 // pred_fallthru
          _
        // Predicated region
        $region25: #{double_conv_forward.4} parent=11 // pred_check
          %p253 = pneg %p151
        $region26: #{double_conv_forward.4} parent=11 // pred_check_branch
          %255 = sbr.rel (%p253) target = $region28
        $region27: #{double_conv_forward.4} parent=11 // pred_region
          _
        $region28: #{double_conv_forward.4} parent=11 // pred_fallthru
          _
      $region12: #{double_conv_forward.4} parent=5 // pred_fallthru
        _
      %p256 = scmp.lt.s32.totalorder %s15, 4
      // Predicated region
      $region29: #{double_conv_forward.4} parent=5 // pred_check
        %p257 = pneg %p256
      $region30: #{double_conv_forward.4} parent=5 // pred_check_branch
        %259 = sbr.rel (%p257) target = $region32
      $region31: #{double_conv_forward.4} parent=5 // pred_region
        // Predicated region
        $region33: #{double_conv_forward.4} parent=31 // pred_check
          %p260 = pneg %p35
        $region34: #{double_conv_forward.4} parent=31 // pred_check_branch
          %262 = sbr.rel (%p260) target = $region36
        $region35: #{double_conv_forward.4} parent=31 // pred_region
          %s263 = smul.u32 2, %s15
          %p264 = scmp.lt.s32.totalorder %s263, 7
          %s265 = scalar_select %p264, %s263, 7
          %s266 = smul.addr %s265, 18
          %s267 = smul.addr %s266, 4
          %s268 = scalar_lea.vmem %s0, %s267
          %s269 = smul.u32 2, %s15
        $region36: #{double_conv_forward.4} parent=31 // pred_fallthru
          _
        // Predicated region
        $region37: #{double_conv_forward.4} parent=31 // pred_check
          %p270 = pneg %p61
        $region38: #{double_conv_forward.4} parent=31 // pred_check_branch
          %272 = sbr.rel (%p270) target = $region40
        $region39: #{double_conv_forward.4} parent=31 // pred_region
          %s273 = smul.u32 2, %s15
          %p274 = scmp.lt.s32.totalorder %s273, 7
          %s275 = scalar_select %p274, %s273, 7
          %s276 = smul.addr %s275, 18
          %s277 = smul.addr %s276, 4
          %s278 = scalar_lea.vmem %s1, %s277
          %s279 = smul.u32 2, %s15
        $region40: #{double_conv_forward.4} parent=31 // pred_fallthru
          _
      $region32: #{double_conv_forward.4} parent=5 // pred_fallthru
        _
      %p280 = scmp.le.s32.totalorder 1, %s15
      %p281 = scmp.lt.s32.totalorder %s15, 5
      %p282 = pnand %p280, %p281
      %p283 = pneg %p282
      // Predicated region
      $region41: #{double_conv_forward.4} parent=5 // pred_check
        _
      $region42: #{double_conv_forward.4} parent=5 // pred_check_branch
        %285 = sbr.rel (%p282) target = $region44
      $region43: #{double_conv_forward.4} parent=5 // pred_region
        %s286 = ssub.s32 %s15, 1
        %s287 = smul.u32 2, %s20
        %p288 = scmp.lt.s32.totalorder %s287, 7
        %s289 = scalar_select %p288, %s287, 7
        %s290 = smul.addr %s289, 18
        %s291 = smul.addr %s290, 4
        %s292 = scalar_lea.vmem %s0, %s291
        %p293 = pneg %p41
        %p294 = pneg %p38
        %s295 = smul.u32 2, %s20
        %p296 = scmp.lt.s32.totalorder %s295, 7
        %s297 = scalar_select %p296, %s295, 7
        %s298 = smul.addr %s297, 18
        %s299 = smul.addr %s298, 4
        %s300 = scalar_lea.vmem %s1, %s299
        %p301 = pneg %p67
        %p302 = pneg %p64
        %p303 = pneg %p88
        %p304 = pneg %p85
        %p305 = pneg %p109
        %p306 = pneg %p106
        %p307 = pneg %p130
        %p308 = pneg %p127
        %p309 = pneg %p151
        %p310 = pneg %p148
        %p311 = pneg %p177
        %p312 = pneg %p174
        %s313 = sand.u32 %s164, 1
        %s314 = sand.u32 %s164, 1
        %s315 = smul.addr %s314, 64
        %s316 = scalar_lea.vmem [#allocation2], %s315
        %p317 = pneg %p203
        %p318 = pneg %p200
        %s319 = sand.u32 %s190, 1
        %s320 = sand.u32 %s190, 1
        %s321 = smul.addr %s320, 64
        %s322 = scalar_lea.vmem [#allocation3], %s321
        %p323 = pneg %p229
        %p324 = pneg %p226
        %p325 = scmp.lt.s32.totalorder %s20, 3
        %s326 = scalar_select %p325, %s20, 3
        %s327 = smul.addr %s326, 4
        %s328 = scalar_lea.vmem %s8, %s327
        %s329 = smul.u32 2, %s20
        %p330 = scmp.lt.s32.totalorder %s329, 7
        %s331 = scalar_select %p330, %s329, 7
        %s332 = smul.addr %s331, 18
        %s333 = smul.addr %s332, 4
        %s334 = scalar_lea.vmem %s0, %s333
        %s335 = smul.u32 2, %s20
        %s336 = smul.u32 2, %s20
        %p337 = scmp.lt.s32.totalorder %s336, 7
        %s338 = scalar_select %p337, %s336, 7
        %s339 = smul.addr %s338, 18
        %s340 = smul.addr %s339, 4
        %s341 = scalar_lea.vmem %s1, %s340
        %s342 = smul.u32 2, %s20
        %s343 = smul.u32 4, %s20
        %s344 = smul.u32 4, %s20
        %p345 = scmp.lt.s32.totalorder %s20, 3
        %s346 = scalar_select %p345, %s20, 3
        %s347 = smul.addr %s346, 4
        %s348 = scalar_lea.vmem %s8, %s347
        %v350 = vld [vmem:[%s341] sm:$0xf]
        %v351 = vld [vmem:[%s341 + $0x4] sm:$0xf]
        %v352 = vld [vmem:[%s341 + $0x8] sm:$0x1]
        %v353 = vld [vmem:[%s341 + $0xc] sm:$0xf]
        %v354 = vld [vmem:[%s341 + $0x10] sm:$0xf]
        %v355 = vld [vmem:[%s341 + $0x14] sm:$0x1]
        %v356 = vld [vmem:[%s341 + $0x18] sm:$0xf]
        %v357 = vld [vmem:[%s341 + $0x1c] sm:$0xf]
        %v358 = vld [vmem:[%s341 + $0x20] sm:$0x1]
        %v359 = vld [vmem:[%s341 + $0x24] sm:$0xf]
        %v360 = vld [vmem:[%s341 + $0x28] sm:$0xf]
        %v361 = vld [vmem:[%s341 + $0x2c] sm:$0x1]
        %v362 = vld [vmem:[%s341 + $0x30] sm:$0xf]
        %v363 = vld [vmem:[%s341 + $0x34] sm:$0xf]
        %v364 = vld [vmem:[%s341 + $0x38] sm:$0x1]
        %v365 = vld [vmem:[%s341 + $0x3c] sm:$0xf]
        %v366 = vld [vmem:[%s341 + $0x40] sm:$0xf]
        %v367 = vld [vmem:[%s341 + $0x44] sm:$0x1]
        %v368 = vld [vmem:[%s341 + $0x48] sm:$0xf]
        %v369 = vld [vmem:[%s341 + $0x4c] sm:$0xf]
        %v370 = vld [vmem:[%s341 + $0x50] sm:$0x1]
        %v371 = vld [vmem:[%s341 + $0x54] sm:$0xf]
        %v372 = vld [vmem:[%s341 + $0x58] sm:$0xf]
        %v373 = vld [vmem:[%s341 + $0x5c] sm:$0x1]
        %v374 = vld [vmem:[%s341 + $0x60] sm:$0xf]
        %v375 = vld [vmem:[%s341 + $0x64] sm:$0xf]
        %v376 = vld [vmem:[%s341 + $0x68] sm:$0x1]
        %v377 = vld [vmem:[%s341 + $0x6c] sm:$0xf]
        %v378 = vld [vmem:[%s341 + $0x70] sm:$0xf]
        %v379 = vld [vmem:[%s341 + $0x74] sm:$0x1]
        %v380 = vld [vmem:[%s341 + $0x78] sm:$0xf]
        %v381 = vld [vmem:[%s341 + $0x7c] sm:$0xf]
        %v382 = vld [vmem:[%s341 + $0x80] sm:$0x1]
        %v383 = vld [vmem:[%s341 + $0x84] sm:$0xf]
        %v384 = vld [vmem:[%s341 + $0x88] sm:$0xf]
        %v385 = vld [vmem:[%s341 + $0x8c] sm:$0x1]
        %v386 = vld [vmem:[%s3] sm:$0xf]
        %vm387 = vsmask.f32 3328
        %vm388 = vsmask.f32 7440
        %vm389 = vmor %vm387, %vm388
        %v391 = vshrl.u32 %v350, 16
        %v393 = vrot.slane %v391, 4
        %v394 = vshll.u32 %v350, 16
        %v396 = vrot.slane %v394, 5
        %v397 = vor.u32 %v393, %v396
        %v398 = vrot.slane %v397, 4
        %v400 = vshll.u32 %v351, 16
        %v402 = vrot.slane %v400, 5
        %v403 = vsel %vm389, %v398, %v402
        %v404 = vshrl.u32 %v351, 16
        %v406 = vrot.slane %v404, 4
        %v407 = vor.u32 %v406, %v402
        %v408 = vrot.slane %v407, 4
        %v410 = vshll.u32 %v352, 16
        %v412 = vrot.slane %v410, 5
        %v413 = vsel %vm389, %v408, %v412
        %v415 = vshrl.u32 %v353, 16
        %v417 = vrot.slane %v415, 4
        %v418 = vshll.u32 %v353, 16
        %v420 = vrot.slane %v418, 5
        %v421 = vor.u32 %v417, %v420
        %v422 = vrot.slane %v421, 4
        %v424 = vshll.u32 %v354, 16
        %v426 = vrot.slane %v424, 5
        %v427 = vsel %vm389, %v422, %v426
        %v428 = vshrl.u32 %v354, 16
        %v430 = vrot.slane %v428, 4
        %v431 = vor.u32 %v430, %v426
        %v432 = vrot.slane %v431, 4
        %v434 = vshll.u32 %v355, 16
        %v436 = vrot.slane %v434, 5
        %v437 = vsel %vm389, %v432, %v436
        %v439 = vshrl.u32 %v356, 16
        %v441 = vrot.slane %v439, 4
        %v442 = vshll.u32 %v356, 16
        %v444 = vrot.slane %v442, 5
        %v445 = vor.u32 %v441, %v444
        %v446 = vrot.slane %v445, 4
        %v448 = vshll.u32 %v357, 16
        %v450 = vrot.slane %v448, 5
        %v451 = vsel %vm389, %v446, %v450
        %v452 = vshrl.u32 %v357, 16
        %v454 = vrot.slane %v452, 4
        %v455 = vor.u32 %v454, %v450
        %v456 = vrot.slane %v455, 4
        %v458 = vshll.u32 %v358, 16
        %v460 = vrot.slane %v458, 5
        %v461 = vsel %vm389, %v456, %v460
        %v463 = vshrl.u32 %v359, 16
        %v465 = vrot.slane %v463, 4
        %v466 = vshll.u32 %v359, 16
        %v468 = vrot.slane %v466, 5
        %v469 = vor.u32 %v465, %v468
        %v470 = vrot.slane %v469, 4
        %v472 = vshll.u32 %v360, 16
        %v474 = vrot.slane %v472, 5
        %v475 = vsel %vm389, %v470, %v474
        %v476 = vshrl.u32 %v360, 16
        %v478 = vrot.slane %v476, 4
        %v479 = vor.u32 %v478, %v474
        %v480 = vrot.slane %v479, 4
        %v482 = vshll.u32 %v361, 16
        %v484 = vrot.slane %v482, 5
        %v485 = vsel %vm389, %v480, %v484
        %v487 = vshrl.u32 %v368, 16
        %v489 = vrot.slane %v487, 4
        %v490 = vshll.u32 %v368, 16
        %v492 = vrot.slane %v490, 5
        %v493 = vor.u32 %v489, %v492
        %v494 = vrot.slane %v493, 4
        %v496 = vshll.u32 %v369, 16
        %v498 = vrot.slane %v496, 5
        %v499 = vsel %vm389, %v494, %v498
        %v500 = vshrl.u32 %v369, 16
        %v502 = vrot.slane %v500, 4
        %v503 = vor.u32 %v502, %v498
        %v504 = vrot.slane %v503, 4
        %v506 = vshll.u32 %v370, 16
        %v508 = vrot.slane %v506, 5
        %v509 = vsel %vm389, %v504, %v508
        %v511 = vshrl.u32 %v371, 16
        %v513 = vrot.slane %v511, 4
        %v514 = vshll.u32 %v371, 16
        %v516 = vrot.slane %v514, 5
        %v517 = vor.u32 %v513, %v516
        %v518 = vrot.slane %v517, 4
        %v520 = vshll.u32 %v372, 16
        %v522 = vrot.slane %v520, 5
        %v523 = vsel %vm389, %v518, %v522
        %v524 = vshrl.u32 %v372, 16
        %v526 = vrot.slane %v524, 4
        %v527 = vor.u32 %v526, %v522
        %v528 = vrot.slane %v527, 4
        %v530 = vshll.u32 %v373, 16
        %v532 = vrot.slane %v530, 5
        %v533 = vsel %vm389, %v528, %v532
        %v535 = vshrl.u32 %v374, 16
        %v537 = vrot.slane %v535, 4
        %v538 = vshll.u32 %v374, 16
        %v540 = vrot.slane %v538, 5
        %v541 = vor.u32 %v537, %v540
        %v542 = vrot.slane %v541, 4
        %v544 = vshll.u32 %v375, 16
        %v546 = vrot.slane %v544, 5
        %v547 = vsel %vm389, %v542, %v546
        %v548 = vshrl.u32 %v375, 16
        %v550 = vrot.slane %v548, 4
        %v551 = vor.u32 %v550, %v546
        %v552 = vrot.slane %v551, 4
        %v554 = vshll.u32 %v376, 16
        %v556 = vrot.slane %v554, 5
        %v557 = vsel %vm389, %v552, %v556
        %v559 = vshrl.u32 %v377, 16
        %v561 = vrot.slane %v559, 4
        %v562 = vshll.u32 %v377, 16
        %v564 = vrot.slane %v562, 5
        %v565 = vor.u32 %v561, %v564
        %v566 = vrot.slane %v565, 4
        %v568 = vshll.u32 %v378, 16
        %v570 = vrot.slane %v568, 5
        %v571 = vsel %vm389, %v566, %v570
        %v572 = vshrl.u32 %v378, 16
        %v574 = vrot.slane %v572, 4
        %v575 = vor.u32 %v574, %v570
        %v576 = vrot.slane %v575, 4
        %v578 = vshll.u32 %v379, 16
        %v580 = vrot.slane %v578, 5
        %v581 = vsel %vm389, %v576, %v580
        %s582 = scalar_lea.vmem %s3, 4
        %v583 = vld [vmem:[%s582] sm:$0xf]
        %v584 = vunpack.c.l.b16 %v403
        %v585 = vunpack.c.l.b16 %v413
        %v586 = vunpack.c.l.b16 %v427
        %v587 = vunpack.c.l.b16 %v437
        %v588 = vunpack.c.l.b16 %v451
        %v589 = vunpack.c.l.b16 %v461
        %v590 = vunpack.c.l.b16 %v475
        %v591 = vunpack.c.l.b16 %v485
        %v592 = vunpack.c.l.b16 %v499
        %v593 = vunpack.c.l.b16 %v509
        %v594 = vunpack.c.l.b16 %v523
        %v595 = vunpack.c.l.b16 %v533
        %v596 = vunpack.c.l.b16 %v547
        %v597 = vunpack.c.l.b16 %v557
        %v598 = vunpack.c.l.b16 %v571
        %v599 = vunpack.c.l.b16 %v581
        %v600 = vpack.c.b16 %v585, %v584
        %v601 = vpack.c.b16 %v587, %v586
        %v602 = vpack.c.b16 %v589, %v588
        %v603 = vpack.c.b16 %v591, %v590
        %v604 = vpack.c.b16 %v593, %v592
        %v605 = vpack.c.b16 %v595, %v594
        %v606 = vpack.c.b16 %v597, %v596
        %v607 = vpack.c.b16 %v599, %v598
        %vm608 = vcmask 64512
        %v610 = vsel %vm608, %v600, 0
        %v613 = vsel %vm608, %v601, 0
        %v616 = vsel %vm608, %v602, 0
        %v619 = vsel %vm608, %v603, 0
        %v622 = vsel %vm608, %v604, 0
        %v625 = vsel %vm608, %v605, 0
        %v628 = vsel %vm608, %v606, 0
        %v631 = vsel %vm608, %v607, 0
        %vm633 = vcmask 1043456
        %v635 = vsel %vm633, %v583, 0
        %637 = vmatprep.subr.bf16.mxu0 0
        %638 = vmatpush1.bf16.msra.mxu0 %v635
        %639 = vmatprep.subr.bf16.mxu0 0
        %640 = vmatpush1.bf16.msra.mxu0 0
        %641 = vmatprep.subr.bf16.mxu0 0
        %642 = vmatpush1.bf16.msra.mxu0 0
        %643 = vmatprep.subr.bf16.mxu0 0
        %644 = vmatpush1.bf16.msra.mxu0 0
        %645 = vmatprep.subr.bf16.mxu0 0
        %646 = vmatpush1.bf16.msra.mxu0 0
        %647 = vmatprep.subr.bf16.mxu0 0
        %648 = vmatpush1.bf16.msra.mxu0 0
        %649 = vmatprep.subr.bf16.mxu0 0
        %650 = vmatpush1.bf16.msra.mxu0 0
        %651 = vmatprep.subr.bf16.mxu0 0
        %652 = vmatpush1.bf16.msra.mxu0 0
        %653 = vmatprep.subr.bf16.mxu0 0
        %654 = vmatpush1.bf16.msra.mxu0 0
        %655 = vmatprep.subr.bf16.mxu0 0
        %656 = vmatpush1.bf16.msra.mxu0 0
        %657 = vmatprep.subr.bf16.mxu0 0
        %658 = vmatpush1.bf16.msra.mxu0 0
        %659 = vmatprep.subr.bf16.mxu0 0
        %660 = vmatpush1.bf16.msra.mxu0 0
        %661 = vmatprep.subr.bf16.mxu0 0
        %662 = vmatpush1.bf16.msra.mxu0 0
        %663 = vmatprep.subr.bf16.mxu0 0
        %664 = vmatpush1.bf16.msra.mxu0 0
        %665 = vmatprep.subr.bf16.mxu0 0
        %666 = vmatpush1.bf16.msra.mxu0 0
        %667 = vmatprep.subr.bf16.mxu0 0
        %668 = vmatpush1.bf16.msra.mxu0 0
        %669 = vmatprep.mubr.bf16.mxu0 0
        %670 = vmatmul.mubr.bf16.gmra.mrb[0].mxu0 %v610
        %v671 = vpop.f32.mrb[0].mxu0
        %v672 = vadd.f32 0.0, %v671
        %v673 = vpop.f32.mrb[0].mxu0
        %v674 = vpop.f32.mrb[0].mxu0
        %v675 = vadd.f32 0.0, %v674
        %v676 = vpop.f32.mrb[0].mxu0
        %677 = vmatprep.mubr.bf16.mxu0 0
        %678 = vmatmul.mubr.bf16.gmra.mrb[0].mxu0 %v613
        %v679 = vpop.f32.mrb[0].mxu0
        %v680 = vadd.f32 0.0, %v679
        %v681 = vpop.f32.mrb[0].mxu0
        %v682 = vpop.f32.mrb[0].mxu0
        %v683 = vadd.f32 0.0, %v682
        %v684 = vpop.f32.mrb[0].mxu0
        %685 = vmatprep.mubr.bf16.mxu0 0
        %686 = vmatmul.mubr.bf16.gmra.mrb[0].mxu0 %v616
        %v687 = vpop.f32.mrb[0].mxu0
        %v688 = vadd.f32 0.0, %v687
        %v689 = vpop.f32.mrb[0].mxu0
        %v690 = vpop.f32.mrb[0].mxu0
        %v691 = vadd.f32 0.0, %v690
        %v692 = vpop.f32.mrb[0].mxu0
        %693 = vmatprep.mubr.bf16.mxu0 0
        %694 = vmatmul.mubr.bf16.gmra.mrb[0].mxu0 %v619
        %v695 = vpop.f32.mrb[0].mxu0
        %v696 = vadd.f32 0.0, %v695
        %v697 = vpop.f32.mrb[0].mxu0
        %v698 = vpop.f32.mrb[0].mxu0
        %v699 = vadd.f32 0.0, %v698
        %v700 = vpop.f32.mrb[0].mxu0
        %701 = vmatprep.mubr.bf16.mxu0 0
        %702 = vmatmul.mubr.bf16.gmra.mrb[0].mxu0 %v622
        %v703 = vpop.f32.mrb[0].mxu0
        %v704 = vadd.f32 0.0, %v703
        %v705 = vpop.f32.mrb[0].mxu0
        %v706 = vpop.f32.mrb[0].mxu0
        %v707 = vadd.f32 0.0, %v706
        %v708 = vpop.f32.mrb[0].mxu0
        %709 = vmatprep.mubr.bf16.mxu0 0
        %710 = vmatmul.mubr.bf16.gmra.mrb[0].mxu0 %v625
        %v711 = vpop.f32.mrb[0].mxu0
        %v712 = vadd.f32 0.0, %v711
        %v713 = vpop.f32.mrb[0].mxu0
        %v714 = vpop.f32.mrb[0].mxu0
        %v715 = vadd.f32 0.0, %v714
        %v716 = vpop.f32.mrb[0].mxu0
        %717 = vmatprep.mubr.bf16.mxu0 0
        %718 = vmatmul.mubr.bf16.gmra.mrb[0].mxu0 %v628
        %v719 = vpop.f32.mrb[0].mxu0
        %v720 = vadd.f32 0.0, %v719
        %v721 = vpop.f32.mrb[0].mxu0
        %v722 = vpop.f32.mrb[0].mxu0
        %v723 = vadd.f32 0.0, %v722
        %v724 = vpop.f32.mrb[0].mxu0
        %725 = vmatprep.mubr.bf16.mxu0 0
        %726 = vmatmul.mubr.bf16.gmra.mrb[0].mxu0 %v631
        %v727 = vpop.f32.mrb[0].mxu0
        %v728 = vadd.f32 0.0, %v727
        %v729 = vpop.f32.mrb[0].mxu0
        %v730 = vpop.f32.mrb[0].mxu0
        %v731 = vadd.f32 0.0, %v730
        %v732 = vpop.f32.mrb[0].mxu0
        %733 = vdwg.mxu0
        %v750 = vunpack.c.l.b16 %v350
        %v751 = vunpack.c.l.b16 %v351
        %v752 = vunpack.c.l.b16 %v353
        %v753 = vunpack.c.l.b16 %v354
        %v754 = vunpack.c.l.b16 %v356
        %v755 = vunpack.c.l.b16 %v357
        %v756 = vunpack.c.l.b16 %v359
        %v757 = vunpack.c.l.b16 %v360
        %v758 = vunpack.c.l.b16 %v368
        %v759 = vunpack.c.l.b16 %v369
        %v760 = vunpack.c.l.b16 %v371
        %v761 = vunpack.c.l.b16 %v372
        %v762 = vunpack.c.l.b16 %v374
        %v763 = vunpack.c.l.b16 %v375
        %v764 = vunpack.c.l.b16 %v377
        %v765 = vunpack.c.l.b16 %v378
        %v766 = vpack.c.b16 %v751, %v750
        %v767 = vpack.c.b16 %v753, %v752
        %v768 = vpack.c.b16 %v755, %v754
        %v769 = vpack.c.b16 %v757, %v756
        %v770 = vpack.c.b16 %v759, %v758
        %v771 = vpack.c.b16 %v761, %v760
        %v772 = vpack.c.b16 %v763, %v762
        %v773 = vpack.c.b16 %v765, %v764
        %v775 = vsel %vm608, %v766, 0
        %v778 = vsel %vm608, %v767, 0
        %v781 = vsel %vm608, %v768, 0
        %v784 = vsel %vm608, %v769, 0
        %v787 = vsel %vm608, %v770, 0
        %v790 = vsel %vm608, %v771, 0
        %v793 = vsel %vm608, %v772, 0
        %v796 = vsel %vm608, %v773, 0
        %v799 = vsel %vm633, %v386, 0
        %801 = vmatprep.subr.bf16.mxu0 0
        %802 = vmatpush1.bf16.msra.mxu0 %v799
        %803 = vmatprep.subr.bf16.mxu0 0
        %804 = vmatpush1.bf16.msra.mxu0 0
        %805 = vmatprep.subr.bf16.mxu0 0
        %806 = vmatpush1.bf16.msra.mxu0 0
        %807 = vmatprep.subr.bf16.mxu0 0
        %808 = vmatpush1.bf16.msra.mxu0 0
        %809 = vmatprep.subr.bf16.mxu0 0
        %810 = vmatpush1.bf16.msra.mxu0 0
        %811 = vmatprep.subr.bf16.mxu0 0
        %812 = vmatpush1.bf16.msra.mxu0 0
        %813 = vmatprep.subr.bf16.mxu0 0
        %814 = vmatpush1.bf16.msra.mxu0 0
        %815 = vmatprep.subr.bf16.mxu0 0
        %816 = vmatpush1.bf16.msra.mxu0 0
        %817 = vmatprep.subr.bf16.mxu0 0
        %818 = vmatpush1.bf16.msra.mxu0 0
        %819 = vmatprep.subr.bf16.mxu0 0
        %820 = vmatpush1.bf16.msra.mxu0 0
        %821 = vmatprep.subr.bf16.mxu0 0
        %822 = vmatpush1.bf16.msra.mxu0 0
        %823 = vmatprep.subr.bf16.mxu0 0
        %824 = vmatpush1.bf16.msra.mxu0 0
        %825 = vmatprep.subr.bf16.mxu0 0
        %826 = vmatpush1.bf16.msra.mxu0 0
        %827 = vmatprep.subr.bf16.mxu0 0
        %828 = vmatpush1.bf16.msra.mxu0 0
        %829 = vmatprep.subr.bf16.mxu0 0
        %830 = vmatpush1.bf16.msra.mxu0 0
        %831 = vmatprep.subr.bf16.mxu0 0
        %832 = vmatpush1.bf16.msra.mxu0 0
        %833 = vmatprep.mubr.bf16.mxu0 0
        %834 = vmatmul.mubr.bf16.gmra.mrb[0].mxu0 %v775
        %v835 = vpop.f32.mrb[0].mxu0
        %v836 = vadd.f32 %v672, %v835
        %v837 = vpop.f32.mrb[0].mxu0
        %v838 = vpop.f32.mrb[0].mxu0
        %v839 = vadd.f32 %v675, %v838
        %v840 = vpop.f32.mrb[0].mxu0
        %841 = vmatprep.mubr.bf16.mxu0 0
        %842 = vmatmul.mubr.bf16.gmra.mrb[0].mxu0 %v778
        %v843 = vpop.f32.mrb[0].mxu0
        %v844 = vadd.f32 %v680, %v843
        %v845 = vpop.f32.mrb[0].mxu0
        %v846 = vpop.f32.mrb[0].mxu0
        %v847 = vadd.f32 %v683, %v846
        %v848 = vpop.f32.mrb[0].mxu0
        %849 = vmatprep.mubr.bf16.mxu0 0
        %850 = vmatmul.mubr.bf16.gmra.mrb[0].mxu0 %v781
        %v851 = vpop.f32.mrb[0].mxu0
        %v852 = vadd.f32 %v688, %v851
        %v853 = vpop.f32.mrb[0].mxu0
        %v854 = vpop.f32.mrb[0].mxu0
        %v855 = vadd.f32 %v691, %v854
        %v856 = vpop.f32.mrb[0].mxu0
        %857 = vmatprep.mubr.bf16.mxu0 0
        %858 = vmatmul.mubr.bf16.gmra.mrb[0].mxu0 %v784
        %v859 = vpop.f32.mrb[0].mxu0
        %v860 = vadd.f32 %v696, %v859
        %v861 = vpop.f32.mrb[0].mxu0
        %v862 = vpop.f32.mrb[0].mxu0
        %v863 = vadd.f32 %v699, %v862
        %v864 = vpop.f32.mrb[0].mxu0
        %865 = vmatprep.mubr.bf16.mxu0 0
        %866 = vmatmul.mubr.bf16.gmra.mrb[0].mxu0 %v787
        %v867 = vpop.f32.mrb[0].mxu0
        %v868 = vadd.f32 %v704, %v867
        %v869 = vpop.f32.mrb[0].mxu0
        %v870 = vpop.f32.mrb[0].mxu0
        %v871 = vadd.f32 %v707, %v870
        %v872 = vpop.f32.mrb[0].mxu0
        %873 = vmatprep.mubr.bf16.mxu0 0
        %874 = vmatmul.mubr.bf16.gmra.mrb[0].mxu0 %v790
        %v875 = vpop.f32.mrb[0].mxu0
        %v876 = vadd.f32 %v712, %v875
        %v877 = vpop.f32.mrb[0].mxu0
        %v878 = vpop.f32.mrb[0].mxu0
        %v879 = vadd.f32 %v715, %v878
        %v880 = vpop.f32.mrb[0].mxu0
        %881 = vmatprep.mubr.bf16.mxu0 0
        %882 = vmatmul.mubr.bf16.gmra.mrb[0].mxu0 %v793
        %v883 = vpop.f32.mrb[0].mxu0
        %v884 = vadd.f32 %v720, %v883
        %v885 = vpop.f32.mrb[0].mxu0
        %v886 = vpop.f32.mrb[0].mxu0
        %v887 = vadd.f32 %v723, %v886
        %v888 = vpop.f32.mrb[0].mxu0
        %889 = vmatprep.mubr.bf16.mxu0 0
        %890 = vmatmul.mubr.bf16.gmra.mrb[0].mxu0 %v796
        %v891 = vpop.f32.mrb[0].mxu0
        %v892 = vadd.f32 %v728, %v891
        %v893 = vpop.f32.mrb[0].mxu0
        %v894 = vpop.f32.mrb[0].mxu0
        %v895 = vadd.f32 %v731, %v894
        %v896 = vpop.f32.mrb[0].mxu0
        %897 = vdwg.mxu0
        %vm906 = vcmask 1042432
        %vm907 = vcmask 1046532
        %vm908 = vmor %vm906, %vm907
        %v909 = vrot.slane %v350, 5
        %v910 = vrot.slane %v909, 4
        %v911 = vrot.slane %v351, 5
        %v912 = vsel %vm908, %v910, %v911
        %v913 = vrot.slane %v911, 4
        %v914 = vrot.slane %v352, 5
        %v915 = vsel %vm908, %v913, %v914
        %v916 = vrot.slane %v353, 5
        %v917 = vrot.slane %v916, 4
        %v918 = vrot.slane %v354, 5
        %v919 = vsel %vm908, %v917, %v918
        %v920 = vrot.slane %v918, 4
        %v921 = vrot.slane %v355, 5
        %v922 = vsel %vm908, %v920, %v921
        %v923 = vrot.slane %v356, 5
        %v924 = vrot.slane %v923, 4
        %v925 = vrot.slane %v357, 5
        %v926 = vsel %vm908, %v924, %v925
        %v927 = vrot.slane %v925, 4
        %v928 = vrot.slane %v358, 5
        %v929 = vsel %vm908, %v927, %v928
        %v930 = vrot.slane %v359, 5
        %v931 = vrot.slane %v930, 4
        %v932 = vrot.slane %v360, 5
        %v933 = vsel %vm908, %v931, %v932
        %v934 = vrot.slane %v932, 4
        %v935 = vrot.slane %v361, 5
        %v936 = vsel %vm908, %v934, %v935
        %v937 = vrot.slane %v368, 5
        %v938 = vrot.slane %v937, 4
        %v939 = vrot.slane %v369, 5
        %v940 = vsel %vm908, %v938, %v939
        %v941 = vrot.slane %v939, 4
        %v942 = vrot.slane %v370, 5
        %v943 = vsel %vm908, %v941, %v942
        %v944 = vrot.slane %v371, 5
        %v945 = vrot.slane %v944, 4
        %v946 = vrot.slane %v372, 5
        %v947 = vsel %vm908, %v945, %v946
        %v948 = vrot.slane %v946, 4
        %v949 = vrot.slane %v373, 5
        %v950 = vsel %vm908, %v948, %v949
        %v951 = vrot.slane %v374, 5
        %v952 = vrot.slane %v951, 4
        %v953 = vrot.slane %v375, 5
        %v954 = vsel %vm908, %v952, %v953
        %v955 = vrot.slane %v953, 4
        %v956 = vrot.slane %v376, 5
        %v957 = vsel %vm908, %v955, %v956
        %v958 = vrot.slane %v377, 5
        %v959 = vrot.slane %v958, 4
        %v960 = vrot.slane %v378, 5
        %v961 = vsel %vm908, %v959, %v960
        %v962 = vrot.slane %v960, 4
        %v963 = vrot.slane %v379, 5
        %v964 = vsel %vm908, %v962, %v963
        %s965 = scalar_lea.vmem %s3, 8
        %v966 = vld [vmem:[%s965] sm:$0xf]
        %v967 = vunpack.c.l.b16 %v912
        %v968 = vunpack.c.l.b16 %v915
        %v969 = vunpack.c.l.b16 %v919
        %v970 = vunpack.c.l.b16 %v922
        %v971 = vunpack.c.l.b16 %v926
        %v972 = vunpack.c.l.b16 %v929
        %v973 = vunpack.c.l.b16 %v933
        %v974 = vunpack.c.l.b16 %v936
        %v975 = vunpack.c.l.b16 %v940
        %v976 = vunpack.c.l.b16 %v943
        %v977 = vunpack.c.l.b16 %v947
        %v978 = vunpack.c.l.b16 %v950
        %v979 = vunpack.c.l.b16 %v954
        %v980 = vunpack.c.l.b16 %v957
        %v981 = vunpack.c.l.b16 %v961
        %v982 = vunpack.c.l.b16 %v964
        %v983 = vpack.c.b16 %v968, %v967
        %v984 = vpack.c.b16 %v970, %v969
        %v985 = vpack.c.b16 %v972, %v971
        %v986 = vpack.c.b16 %v974, %v973
        %v987 = vpack.c.b16 %v976, %v975
        %v988 = vpack.c.b16 %v978, %v977
        %v989 = vpack.c.b16 %v980, %v979
        %v990 = vpack.c.b16 %v982, %v981
        %v992 = vsel %vm608, %v983, 0
        %v995 = vsel %vm608, %v984, 0
        %v998 = vsel %vm608, %v985, 0
        %v1001 = vsel %vm608, %v986, 0
        %v1004 = vsel %vm608, %v987, 0
        %v1007 = vsel %vm608, %v988, 0
        %v1010 = vsel %vm608, %v989, 0
        %v1013 = vsel %vm608, %v990, 0
        %v1016 = vsel %vm633, %v966, 0
        %1018 = vmatprep.subr.bf16.mxu0 0
        %1019 = vmatpush1.bf16.msra.mxu0 %v1016
        %1020 = vmatprep.subr.bf16.mxu0 0
        %1021 = vmatpush1.bf16.msra.mxu0 0
        %1022 = vmatprep.subr.bf16.mxu0 0
        %1023 = vmatpush1.bf16.msra.mxu0 0
        %1024 = vmatprep.subr.bf16.mxu0 0
        %1025 = vmatpush1.bf16.msra.mxu0 0
        %1026 = vmatprep.subr.bf16.mxu0 0
        %1027 = vmatpush1.bf16.msra.mxu0 0
        %1028 = vmatprep.subr.bf16.mxu0 0
        %1029 = vmatpush1.bf16.msra.mxu0 0
        %1030 = vmatprep.subr.bf16.mxu0 0
        %1031 = vmatpush1.bf16.msra.mxu0 0
        %1032 = vmatprep.subr.bf16.mxu0 0
        %1033 = vmatpush1.bf16.msra.mxu0 0
        %1034 = vmatprep.subr.bf16.mxu0 0
        %1035 = vmatpush1.bf16.msra.mxu0 0
        %1036 = vmatprep.subr.bf16.mxu0 0
        %1037 = vmatpush1.bf16.msra.mxu0 0
        %1038 = vmatprep.subr.bf16.mxu0 0
        %1039 = vmatpush1.bf16.msra.mxu0 0
        %1040 = vmatprep.subr.bf16.mxu0 0
        %1041 = vmatpush1.bf16.msra.mxu0 0
        %1042 = vmatprep.subr.bf16.mxu0 0
        %1043 = vmatpush1.bf16.msra.mxu0 0
        %1044 = vmatprep.subr.bf16.mxu0 0
        %1045 = vmatpush1.bf16.msra.mxu0 0
        %1046 = vmatprep.subr.bf16.mxu0 0
        %1047 = vmatpush1.bf16.msra.mxu0 0
        %1048 = vmatprep.subr.bf16.mxu0 0
        %1049 = vmatpush1.bf16.msra.mxu0 0
        %1050 = vmatprep.mubr.bf16.mxu0 0
        %1051 = vmatmul.mubr.bf16.gmra.mrb[0].mxu0 %v992
        %v1052 = vpop.f32.mrb[0].mxu0
        %v1053 = vadd.f32 0.0, %v1052
        %v1054 = vpop.f32.mrb[0].mxu0
        %v1055 = vpop.f32.mrb[0].mxu0
        %v1056 = vadd.f32 0.0, %v1055
        %v1057 = vpop.f32.mrb[0].mxu0
        %1058 = vmatprep.mubr.bf16.mxu0 0
        %1059 = vmatmul.mubr.bf16.gmra.mrb[0].mxu0 %v995
        %v1060 = vpop.f32.mrb[0].mxu0
        %v1061 = vadd.f32 0.0, %v1060
        %v1062 = vpop.f32.mrb[0].mxu0
        %v1063 = vpop.f32.mrb[0].mxu0
        %v1064 = vadd.f32 0.0, %v1063
        %v1065 = vpop.f32.mrb[0].mxu0
        %1066 = vmatprep.mubr.bf16.mxu0 0
        %1067 = vmatmul.mubr.bf16.gmra.mrb[0].mxu0 %v998
        %v1068 = vpop.f32.mrb[0].mxu0
        %v1069 = vadd.f32 0.0, %v1068
        %v1070 = vpop.f32.mrb[0].mxu0
        %v1071 = vpop.f32.mrb[0].mxu0
        %v1072 = vadd.f32 0.0, %v1071
        %v1073 = vpop.f32.mrb[0].mxu0
        %1074 = vmatprep.mubr.bf16.mxu0 0
        %1075 = vmatmul.mubr.bf16.gmra.mrb[0].mxu0 %v1001
        %v1076 = vpop.f32.mrb[0].mxu0
        %v1077 = vadd.f32 0.0, %v1076
        %v1078 = vpop.f32.mrb[0].mxu0
        %v1079 = vpop.f32.mrb[0].mxu0
        %v1080 = vadd.f32 0.0, %v1079
        %v1081 = vpop.f32.mrb[0].mxu0
        %1082 = vmatprep.mubr.bf16.mxu0 0
        %1083 = vmatmul.mubr.bf16.gmra.mrb[0].mxu0 %v1004
        %v1084 = vpop.f32.mrb[0].mxu0
        %v1085 = vadd.f32 0.0, %v1084
        %v1086 = vpop.f32.mrb[0].mxu0
        %v1087 = vpop.f32.mrb[0].mxu0
        %v1088 = vadd.f32 0.0, %v1087
        %v1089 = vpop.f32.mrb[0].mxu0
        %1090 = vmatprep.mubr.bf16.mxu0 0
        %1091 = vmatmul.mubr.bf16.gmra.mrb[0].mxu0 %v1007
        %v1092 = vpop.f32.mrb[0].mxu0
        %v1093 = vadd.f32 0.0, %v1092
        %v1094 = vpop.f32.mrb[0].mxu0
        %v1095 = vpop.f32.mrb[0].mxu0
        %v1096 = vadd.f32 0.0, %v1095
        %v1097 = vpop.f32.mrb[0].mxu0
        %1098 = vmatprep.mubr.bf16.mxu0 0
        %1099 = vmatmul.mubr.bf16.gmra.mrb[0].mxu0 %v1010
        %v1100 = vpop.f32.mrb[0].mxu0
        %v1101 = vadd.f32 0.0, %v1100
        %v1102 = vpop.f32.mrb[0].mxu0
        %v1103 = vpop.f32.mrb[0].mxu0
        %v1104 = vadd.f32 0.0, %v1103
        %v1105 = vpop.f32.mrb[0].mxu0
        %1106 = vmatprep.mubr.bf16.mxu0 0
        %1107 = vmatmul.mubr.bf16.gmra.mrb[0].mxu0 %v1013
        %v1108 = vpop.f32.mrb[0].mxu0
        %v1109 = vadd.f32 0.0, %v1108
        %v1110 = vpop.f32.mrb[0].mxu0
        %v1111 = vpop.f32.mrb[0].mxu0
        %v1112 = vadd.f32 0.0, %v1111
        %v1113 = vpop.f32.mrb[0].mxu0
        %1114 = vdwg.mxu0
        %v1115 = vadd.f32 %v836, %v1053
        %v1116 = vadd.f32 %v839, %v1056
        %v1117 = vadd.f32 %v844, %v1061
        %v1118 = vadd.f32 %v847, %v1064
        %v1119 = vadd.f32 %v852, %v1069
        %v1120 = vadd.f32 %v855, %v1072
        %v1121 = vadd.f32 %v860, %v1077
        %v1122 = vadd.f32 %v863, %v1080
        %v1123 = vadd.f32 %v868, %v1085
        %v1124 = vadd.f32 %v871, %v1088
        %v1125 = vadd.f32 %v876, %v1093
        %v1126 = vadd.f32 %v879, %v1096
        %v1127 = vadd.f32 %v884, %v1101
        %v1128 = vadd.f32 %v887, %v1104
        %v1129 = vadd.f32 %v892, %v1109
        %v1130 = vadd.f32 %v895, %v1112
        %s1131 = scalar_lea.vmem %s3, 12
        %v1132 = vld [vmem:[%s1131] sm:$0xf]
        %v1137 = vunpack.c.l.b16 %v362
        %v1138 = vunpack.c.l.b16 %v363
        %v1139 = vunpack.c.l.b16 %v380
        %v1140 = vunpack.c.l.b16 %v381
        %v1141 = vpack.c.b16 %v1138, %v1137
        %v1142 = vpack.c.b16 %v1140, %v1139
        %v1144 = vsel %vm608, %v1141, 0
        %v1147 = vsel %vm608, %v1142, 0
        %v1150 = vsel %vm633, %v1132, 0
        %1152 = vmatprep.subr.bf16.mxu0 0
        %1153 = vmatpush1.bf16.msra.mxu0 %v1150
        %1154 = vmatprep.subr.bf16.mxu0 0
        %1155 = vmatpush1.bf16.msra.mxu0 0
        %1156 = vmatprep.subr.bf16.mxu0 0
        %1157 = vmatpush1.bf16.msra.mxu0 0
        %1158 = vmatprep.subr.bf16.mxu0 0
        %1159 = vmatpush1.bf16.msra.mxu0 0
        %1160 = vmatprep.subr.bf16.mxu0 0
        %1161 = vmatpush1.bf16.msra.mxu0 0
        %1162 = vmatprep.subr.bf16.mxu0 0
        %1163 = vmatpush1.bf16.msra.mxu0 0
        %1164 = vmatprep.subr.bf16.mxu0 0
        %1165 = vmatpush1.bf16.msra.mxu0 0
        %1166 = vmatprep.subr.bf16.mxu0 0
        %1167 = vmatpush1.bf16.msra.mxu0 0
        %1168 = vmatprep.subr.bf16.mxu0 0
        %1169 = vmatpush1.bf16.msra.mxu0 0
        %1170 = vmatprep.subr.bf16.mxu0 0
        %1171 = vmatpush1.bf16.msra.mxu0 0
        %1172 = vmatprep.subr.bf16.mxu0 0
        %1173 = vmatpush1.bf16.msra.mxu0 0
        %1174 = vmatprep.subr.bf16.mxu0 0
        %1175 = vmatpush1.bf16.msra.mxu0 0
        %1176 = vmatprep.subr.bf16.mxu0 0
        %1177 = vmatpush1.bf16.msra.mxu0 0
        %1178 = vmatprep.subr.bf16.mxu0 0
        %1179 = vmatpush1.bf16.msra.mxu0 0
        %1180 = vmatprep.subr.bf16.mxu0 0
        %1181 = vmatpush1.bf16.msra.mxu0 0
        %1182 = vmatprep.subr.bf16.mxu0 0
        %1183 = vmatpush1.bf16.msra.mxu0 0
        %1184 = vmatprep.mubr.bf16.mxu0 0
        %1185 = vmatmul.mubr.bf16.gmra.mrb[0].mxu0 %v778
        %v1186 = vpop.f32.mrb[0].mxu0
        %v1187 = vadd.f32 0.0, %v1186
        %v1188 = vpop.f32.mrb[0].mxu0
        %v1189 = vpop.f32.mrb[0].mxu0
        %v1190 = vadd.f32 0.0, %v1189
        %v1191 = vpop.f32.mrb[0].mxu0
        %1192 = vmatprep.mubr.bf16.mxu0 0
        %1193 = vmatmul.mubr.bf16.gmra.mrb[0].mxu0 %v781
        %v1194 = vpop.f32.mrb[0].mxu0
        %v1195 = vadd.f32 0.0, %v1194
        %v1196 = vpop.f32.mrb[0].mxu0
        %v1197 = vpop.f32.mrb[0].mxu0
        %v1198 = vadd.f32 0.0, %v1197
        %v1199 = vpop.f32.mrb[0].mxu0
        %1200 = vmatprep.mubr.bf16.mxu0 0
        %1201 = vmatmul.mubr.bf16.gmra.mrb[0].mxu0 %v784
        %v1202 = vpop.f32.mrb[0].mxu0
        %v1203 = vadd.f32 0.0, %v1202
        %v1204 = vpop.f32.mrb[0].mxu0
        %v1205 = vpop.f32.mrb[0].mxu0
        %v1206 = vadd.f32 0.0, %v1205
        %v1207 = vpop.f32.mrb[0].mxu0
        %1208 = vmatprep.mubr.bf16.mxu0 0
        %1209 = vmatmul.mubr.bf16.gmra.mrb[0].mxu0 %v1144
        %v1210 = vpop.f32.mrb[0].mxu0
        %v1211 = vadd.f32 0.0, %v1210
        %v1212 = vpop.f32.mrb[0].mxu0
        %v1213 = vpop.f32.mrb[0].mxu0
        %v1214 = vadd.f32 0.0, %v1213
        %v1215 = vpop.f32.mrb[0].mxu0
        %1216 = vmatprep.mubr.bf16.mxu0 0
        %1217 = vmatmul.mubr.bf16.gmra.mrb[0].mxu0 %v790
        %v1218 = vpop.f32.mrb[0].mxu0
        %v1219 = vadd.f32 0.0, %v1218
        %v1220 = vpop.f32.mrb[0].mxu0
        %v1221 = vpop.f32.mrb[0].mxu0
        %v1222 = vadd.f32 0.0, %v1221
        %v1223 = vpop.f32.mrb[0].mxu0
        %1224 = vmatprep.mubr.bf16.mxu0 0
        %1225 = vmatmul.mubr.bf16.gmra.mrb[0].mxu0 %v793
        %v1226 = vpop.f32.mrb[0].mxu0
        %v1227 = vadd.f32 0.0, %v1226
        %v1228 = vpop.f32.mrb[0].mxu0
        %v1229 = vpop.f32.mrb[0].mxu0
        %v1230 = vadd.f32 0.0, %v1229
        %v1231 = vpop.f32.mrb[0].mxu0
        %1232 = vmatprep.mubr.bf16.mxu0 0
        %1233 = vmatmul.mubr.bf16.gmra.mrb[0].mxu0 %v796
        %v1234 = vpop.f32.mrb[0].mxu0
        %v1235 = vadd.f32 0.0, %v1234
        %v1236 = vpop.f32.mrb[0].mxu0
        %v1237 = vpop.f32.mrb[0].mxu0
        %v1238 = vadd.f32 0.0, %v1237
        %v1239 = vpop.f32.mrb[0].mxu0
        %1240 = vmatprep.mubr.bf16.mxu0 0
        %1241 = vmatmul.mubr.bf16.gmra.mrb[0].mxu0 %v1147
        %v1242 = vpop.f32.mrb[0].mxu0
        %v1243 = vadd.f32 0.0, %v1242
        %v1244 = vpop.f32.mrb[0].mxu0
        %v1245 = vpop.f32.mrb[0].mxu0
        %v1246 = vadd.f32 0.0, %v1245
        %v1247 = vpop.f32.mrb[0].mxu0
        %1248 = vdwg.mxu0
        %v1249 = vadd.f32 %v1115, %v1187
        %v1250 = vadd.f32 %v1116, %v1190
        %v1251 = vadd.f32 %v1117, %v1195
        %v1252 = vadd.f32 %v1118, %v1198
        %v1253 = vadd.f32 %v1119, %v1203
        %v1254 = vadd.f32 %v1120, %v1206
        %v1255 = vadd.f32 %v1121, %v1211
        %v1256 = vadd.f32 %v1122, %v1214
        %v1257 = vadd.f32 %v1123, %v1219
        %v1258 = vadd.f32 %v1124, %v1222
        %v1259 = vadd.f32 %v1125, %v1227
        %v1260 = vadd.f32 %v1126, %v1230
        %v1261 = vadd.f32 %v1127, %v1235
        %v1262 = vadd.f32 %v1128, %v1238
        %v1263 = vadd.f32 %v1129, %v1243
        %v1264 = vadd.f32 %v1130, %v1246
        %v1266 = vshrl.u32 %v362, 16
        %v1268 = vrot.slane %v1266, 4
        %v1269 = vshll.u32 %v362, 16
        %v1271 = vrot.slane %v1269, 5
        %v1272 = vor.u32 %v1268, %v1271
        %v1273 = vrot.slane %v1272, 4
        %v1275 = vshll.u32 %v363, 16
        %v1277 = vrot.slane %v1275, 5
        %v1278 = vsel %vm389, %v1273, %v1277
        %v1279 = vshrl.u32 %v363, 16
        %v1281 = vrot.slane %v1279, 4
        %v1282 = vor.u32 %v1281, %v1277
        %v1283 = vrot.slane %v1282, 4
        %v1285 = vshll.u32 %v364, 16
        %v1287 = vrot.slane %v1285, 5
        %v1288 = vsel %vm389, %v1283, %v1287
        %v1290 = vshrl.u32 %v380, 16
        %v1292 = vrot.slane %v1290, 4
        %v1293 = vshll.u32 %v380, 16
        %v1295 = vrot.slane %v1293, 5
        %v1296 = vor.u32 %v1292, %v1295
        %v1297 = vrot.slane %v1296, 4
        %v1299 = vshll.u32 %v381, 16
        %v1301 = vrot.slane %v1299, 5
        %v1302 = vsel %vm389, %v1297, %v1301
        %v1303 = vshrl.u32 %v381, 16
        %v1305 = vrot.slane %v1303, 4
        %v1306 = vor.u32 %v1305, %v1301
        %v1307 = vrot.slane %v1306, 4
        %v1309 = vshll.u32 %v382, 16
        %v1311 = vrot.slane %v1309, 5
        %v1312 = vsel %vm389, %v1307, %v1311
        %s1313 = scalar_lea.vmem %s3, 16
        %v1314 = vld [vmem:[%s1313] sm:$0xf]
        %v1315 = vunpack.c.l.b16 %v1278
        %v1316 = vunpack.c.l.b16 %v1288
        %v1317 = vunpack.c.l.b16 %v1302
        %v1318 = vunpack.c.l.b16 %v1312
        %v1319 = vpack.c.b16 %v1316, %v1315
        %v1320 = vpack.c.b16 %v1318, %v1317
        %v1322 = vsel %vm608, %v1319, 0
        %v1325 = vsel %vm608, %v1320, 0
        %v1328 = vsel %vm633, %v1314, 0
        %1330 = vmatprep.subr.bf16.mxu0 0
        %1331 = vmatpush1.bf16.msra.mxu0 %v1328
        %1332 = vmatprep.subr.bf16.mxu0 0
        %1333 = vmatpush1.bf16.msra.mxu0 0
        %1334 = vmatprep.subr.bf16.mxu0 0
        %1335 = vmatpush1.bf16.msra.mxu0 0
        %1336 = vmatprep.subr.bf16.mxu0 0
        %1337 = vmatpush1.bf16.msra.mxu0 0
        %1338 = vmatprep.subr.bf16.mxu0 0
        %1339 = vmatpush1.bf16.msra.mxu0 0
        %1340 = vmatprep.subr.bf16.mxu0 0
        %1341 = vmatpush1.bf16.msra.mxu0 0
        %1342 = vmatprep.subr.bf16.mxu0 0
        %1343 = vmatpush1.bf16.msra.mxu0 0
        %1344 = vmatprep.subr.bf16.mxu0 0
        %1345 = vmatpush1.bf16.msra.mxu0 0
        %1346 = vmatprep.subr.bf16.mxu0 0
        %1347 = vmatpush1.bf16.msra.mxu0 0
        %1348 = vmatprep.subr.bf16.mxu0 0
        %1349 = vmatpush1.bf16.msra.mxu0 0
        %1350 = vmatprep.subr.bf16.mxu0 0
        %1351 = vmatpush1.bf16.msra.mxu0 0
        %1352 = vmatprep.subr.bf16.mxu0 0
        %1353 = vmatpush1.bf16.msra.mxu0 0
        %1354 = vmatprep.subr.bf16.mxu0 0
        %1355 = vmatpush1.bf16.msra.mxu0 0
        %1356 = vmatprep.subr.bf16.mxu0 0
        %1357 = vmatpush1.bf16.msra.mxu0 0
        %1358 = vmatprep.subr.bf16.mxu0 0
        %1359 = vmatpush1.bf16.msra.mxu0 0
        %1360 = vmatprep.subr.bf16.mxu0 0
        %1361 = vmatpush1.bf16.msra.mxu0 0
        %1362 = vmatprep.mubr.bf16.mxu0 0
        %1363 = vmatmul.mubr.bf16.gmra.mrb[0].mxu0 %v613
        %v1364 = vpop.f32.mrb[0].mxu0
        %v1365 = vadd.f32 0.0, %v1364
        %v1366 = vpop.f32.mrb[0].mxu0
        %v1367 = vpop.f32.mrb[0].mxu0
        %v1368 = vadd.f32 0.0, %v1367
        %v1369 = vpop.f32.mrb[0].mxu0
        %1370 = vmatprep.mubr.bf16.mxu0 0
        %1371 = vmatmul.mubr.bf16.gmra.mrb[0].mxu0 %v616
        %v1372 = vpop.f32.mrb[0].mxu0
        %v1373 = vadd.f32 0.0, %v1372
        %v1374 = vpop.f32.mrb[0].mxu0
        %v1375 = vpop.f32.mrb[0].mxu0
        %v1376 = vadd.f32 0.0, %v1375
        %v1377 = vpop.f32.mrb[0].mxu0
        %1378 = vmatprep.mubr.bf16.mxu0 0
        %1379 = vmatmul.mubr.bf16.gmra.mrb[0].mxu0 %v619
        %v1380 = vpop.f32.mrb[0].mxu0
        %v1381 = vadd.f32 0.0, %v1380
        %v1382 = vpop.f32.mrb[0].mxu0
        %v1383 = vpop.f32.mrb[0].mxu0
        %v1384 = vadd.f32 0.0, %v1383
        %v1385 = vpop.f32.mrb[0].mxu0
        %1386 = vmatprep.mubr.bf16.mxu0 0
        %1387 = vmatmul.mubr.bf16.gmra.mrb[0].mxu0 %v1322
        %v1388 = vpop.f32.mrb[0].mxu0
        %v1389 = vadd.f32 0.0, %v1388
        %v1390 = vpop.f32.mrb[0].mxu0
        %v1391 = vpop.f32.mrb[0].mxu0
        %v1392 = vadd.f32 0.0, %v1391
        %v1393 = vpop.f32.mrb[0].mxu0
        %1394 = vmatprep.mubr.bf16.mxu0 0
        %1395 = vmatmul.mubr.bf16.gmra.mrb[0].mxu0 %v625
        %v1396 = vpop.f32.mrb[0].mxu0
        %v1397 = vadd.f32 0.0, %v1396
        %v1398 = vpop.f32.mrb[0].mxu0
        %v1399 = vpop.f32.mrb[0].mxu0
        %v1400 = vadd.f32 0.0, %v1399
        %v1401 = vpop.f32.mrb[0].mxu0
        %1402 = vmatprep.mubr.bf16.mxu0 0
        %1403 = vmatmul.mubr.bf16.gmra.mrb[0].mxu0 %v628
        %v1404 = vpop.f32.mrb[0].mxu0
        %v1405 = vadd.f32 0.0, %v1404
        %v1406 = vpop.f32.mrb[0].mxu0
        %v1407 = vpop.f32.mrb[0].mxu0
        %v1408 = vadd.f32 0.0, %v1407
        %v1409 = vpop.f32.mrb[0].mxu0
        %1410 = vmatprep.mubr.bf16.mxu0 0
        %1411 = vmatmul.mubr.bf16.gmra.mrb[0].mxu0 %v631
        %v1412 = vpop.f32.mrb[0].mxu0
        %v1413 = vadd.f32 0.0, %v1412
        %v1414 = vpop.f32.mrb[0].mxu0
        %v1415 = vpop.f32.mrb[0].mxu0
        %v1416 = vadd.f32 0.0, %v1415
        %v1417 = vpop.f32.mrb[0].mxu0
        %1418 = vmatprep.mubr.bf16.mxu0 0
        %1419 = vmatmul.mubr.bf16.gmra.mrb[0].mxu0 %v1325
        %v1420 = vpop.f32.mrb[0].mxu0
        %v1421 = vadd.f32 0.0, %v1420
        %v1422 = vpop.f32.mrb[0].mxu0
        %v1423 = vpop.f32.mrb[0].mxu0
        %v1424 = vadd.f32 0.0, %v1423
        %v1425 = vpop.f32.mrb[0].mxu0
        %1426 = vdwg.mxu0
        %v1427 = vadd.f32 %v1249, %v1365
        %v1428 = vadd.f32 %v1250, %v1368
        %v1429 = vadd.f32 %v1251, %v1373
        %v1430 = vadd.f32 %v1252, %v1376
        %v1431 = vadd.f32 %v1253, %v1381
        %v1432 = vadd.f32 %v1254, %v1384
        %v1433 = vadd.f32 %v1255, %v1389
        %v1434 = vadd.f32 %v1256, %v1392
        %v1435 = vadd.f32 %v1257, %v1397
        %v1436 = vadd.f32 %v1258, %v1400
        %v1437 = vadd.f32 %v1259, %v1405
        %v1438 = vadd.f32 %v1260, %v1408
        %v1439 = vadd.f32 %v1261, %v1413
        %v1440 = vadd.f32 %v1262, %v1416
        %v1441 = vadd.f32 %v1263, %v1421
        %v1442 = vadd.f32 %v1264, %v1424
        %v1445 = vrot.slane %v362, 5
        %v1446 = vrot.slane %v1445, 4
        %v1447 = vrot.slane %v363, 5
        %v1448 = vsel %vm908, %v1446, %v1447
        %v1449 = vrot.slane %v1447, 4
        %v1450 = vrot.slane %v364, 5
        %v1451 = vsel %vm908, %v1449, %v1450
        %v1452 = vrot.slane %v380, 5
        %v1453 = vrot.slane %v1452, 4
        %v1454 = vrot.slane %v381, 5
        %v1455 = vsel %vm908, %v1453, %v1454
        %v1456 = vrot.slane %v1454, 4
        %v1457 = vrot.slane %v382, 5
        %v1458 = vsel %vm908, %v1456, %v1457
        %s1459 = scalar_lea.vmem %s3, 20
        %v1460 = vld [vmem:[%s1459] sm:$0xf]
        %v1461 = vunpack.c.l.b16 %v1448
        %v1462 = vunpack.c.l.b16 %v1451
        %v1463 = vunpack.c.l.b16 %v1455
        %v1464 = vunpack.c.l.b16 %v1458
        %v1465 = vpack.c.b16 %v1462, %v1461
        %v1466 = vpack.c.b16 %v1464, %v1463
        %v1468 = vsel %vm608, %v1465, 0
        %v1471 = vsel %vm608, %v1466, 0
        %v1474 = vsel %vm633, %v1460, 0
        %1476 = vmatprep.subr.bf16.mxu0 0
        %1477 = vmatpush1.bf16.msra.mxu0 %v1474
        %1478 = vmatprep.subr.bf16.mxu0 0
        %1479 = vmatpush1.bf16.msra.mxu0 0
        %1480 = vmatprep.subr.bf16.mxu0 0
        %1481 = vmatpush1.bf16.msra.mxu0 0
        %1482 = vmatprep.subr.bf16.mxu0 0
        %1483 = vmatpush1.bf16.msra.mxu0 0
        %1484 = vmatprep.subr.bf16.mxu0 0
        %1485 = vmatpush1.bf16.msra.mxu0 0
        %1486 = vmatprep.subr.bf16.mxu0 0
        %1487 = vmatpush1.bf16.msra.mxu0 0
        %1488 = vmatprep.subr.bf16.mxu0 0
        %1489 = vmatpush1.bf16.msra.mxu0 0
        %1490 = vmatprep.subr.bf16.mxu0 0
        %1491 = vmatpush1.bf16.msra.mxu0 0
        %1492 = vmatprep.subr.bf16.mxu0 0
        %1493 = vmatpush1.bf16.msra.mxu0 0
        %1494 = vmatprep.subr.bf16.mxu0 0
        %1495 = vmatpush1.bf16.msra.mxu0 0
        %1496 = vmatprep.subr.bf16.mxu0 0
        %1497 = vmatpush1.bf16.msra.mxu0 0
        %1498 = vmatprep.subr.bf16.mxu0 0
        %1499 = vmatpush1.bf16.msra.mxu0 0
        %1500 = vmatprep.subr.bf16.mxu0 0
        %1501 = vmatpush1.bf16.msra.mxu0 0
        %1502 = vmatprep.subr.bf16.mxu0 0
        %1503 = vmatpush1.bf16.msra.mxu0 0
        %1504 = vmatprep.subr.bf16.mxu0 0
        %1505 = vmatpush1.bf16.msra.mxu0 0
        %1506 = vmatprep.subr.bf16.mxu0 0
        %1507 = vmatpush1.bf16.msra.mxu0 0
        %1508 = vmatprep.mubr.bf16.mxu0 0
        %1509 = vmatmul.mubr.bf16.gmra.mrb[0].mxu0 %v995
        %v1510 = vpop.f32.mrb[0].mxu0
        %v1511 = vadd.f32 0.0, %v1510
        %v1512 = vpop.f32.mrb[0].mxu0
        %v1513 = vpop.f32.mrb[0].mxu0
        %v1514 = vadd.f32 0.0, %v1513
        %v1515 = vpop.f32.mrb[0].mxu0
        %1516 = vmatprep.mubr.bf16.mxu0 0
        %1517 = vmatmul.mubr.bf16.gmra.mrb[0].mxu0 %v998
        %v1518 = vpop.f32.mrb[0].mxu0
        %v1519 = vadd.f32 0.0, %v1518
        %v1520 = vpop.f32.mrb[0].mxu0
        %v1521 = vpop.f32.mrb[0].mxu0
        %v1522 = vadd.f32 0.0, %v1521
        %v1523 = vpop.f32.mrb[0].mxu0
        %1524 = vmatprep.mubr.bf16.mxu0 0
        %1525 = vmatmul.mubr.bf16.gmra.mrb[0].mxu0 %v1001
        %v1526 = vpop.f32.mrb[0].mxu0
        %v1527 = vadd.f32 0.0, %v1526
        %v1528 = vpop.f32.mrb[0].mxu0
        %v1529 = vpop.f32.mrb[0].mxu0
        %v1530 = vadd.f32 0.0, %v1529
        %v1531 = vpop.f32.mrb[0].mxu0
        %1532 = vmatprep.mubr.bf16.mxu0 0
        %1533 = vmatmul.mubr.bf16.gmra.mrb[0].mxu0 %v1468
        %v1534 = vpop.f32.mrb[0].mxu0
        %v1535 = vadd.f32 0.0, %v1534
        %v1536 = vpop.f32.mrb[0].mxu0
        %v1537 = vpop.f32.mrb[0].mxu0
        %v1538 = vadd.f32 0.0, %v1537
        %v1539 = vpop.f32.mrb[0].mxu0
        %1540 = vmatprep.mubr.bf16.mxu0 0
        %1541 = vmatmul.mubr.bf16.gmra.mrb[0].mxu0 %v1007
        %v1542 = vpop.f32.mrb[0].mxu0
        %v1543 = vadd.f32 0.0, %v1542
        %v1544 = vpop.f32.mrb[0].mxu0
        %v1545 = vpop.f32.mrb[0].mxu0
        %v1546 = vadd.f32 0.0, %v1545
        %v1547 = vpop.f32.mrb[0].mxu0
        %1548 = vmatprep.mubr.bf16.mxu0 0
        %1549 = vmatmul.mubr.bf16.gmra.mrb[0].mxu0 %v1010
        %v1550 = vpop.f32.mrb[0].mxu0
        %v1551 = vadd.f32 0.0, %v1550
        %v1552 = vpop.f32.mrb[0].mxu0
        %v1553 = vpop.f32.mrb[0].mxu0
        %v1554 = vadd.f32 0.0, %v1553
        %v1555 = vpop.f32.mrb[0].mxu0
        %1556 = vmatprep.mubr.bf16.mxu0 0
        %1557 = vmatmul.mubr.bf16.gmra.mrb[0].mxu0 %v1013
        %v1558 = vpop.f32.mrb[0].mxu0
        %v1559 = vadd.f32 0.0, %v1558
        %v1560 = vpop.f32.mrb[0].mxu0
        %v1561 = vpop.f32.mrb[0].mxu0
        %v1562 = vadd.f32 0.0, %v1561
        %v1563 = vpop.f32.mrb[0].mxu0
        %1564 = vmatprep.mubr.bf16.mxu0 0
        %1565 = vmatmul.mubr.bf16.gmra.mrb[0].mxu0 %v1471
        %v1566 = vpop.f32.mrb[0].mxu0
        %v1567 = vadd.f32 0.0, %v1566
        %v1568 = vpop.f32.mrb[0].mxu0
        %v1569 = vpop.f32.mrb[0].mxu0
        %v1570 = vadd.f32 0.0, %v1569
        %v1571 = vpop.f32.mrb[0].mxu0
        %1572 = vdwg.mxu0
        %v1573 = vadd.f32 %v1427, %v1511
        %v1574 = vadd.f32 %v1428, %v1514
        %v1575 = vadd.f32 %v1429, %v1519
        %v1576 = vadd.f32 %v1430, %v1522
        %v1577 = vadd.f32 %v1431, %v1527
        %v1578 = vadd.f32 %v1432, %v1530
        %v1579 = vadd.f32 %v1433, %v1535
        %v1580 = vadd.f32 %v1434, %v1538
        %v1581 = vadd.f32 %v1435, %v1543
        %v1582 = vadd.f32 %v1436, %v1546
        %v1583 = vadd.f32 %v1437, %v1551
        %v1584 = vadd.f32 %v1438, %v1554
        %v1585 = vadd.f32 %v1439, %v1559
        %v1586 = vadd.f32 %v1440, %v1562
        %v1587 = vadd.f32 %v1441, %v1567
        %v1588 = vadd.f32 %v1442, %v1570
        %s1589 = scalar_lea.vmem %s3, 24
        %v1590 = vld [vmem:[%s1589] sm:$0xf]
        %v1595 = vunpack.c.l.b16 %v365
        %v1596 = vunpack.c.l.b16 %v366
        %v1597 = vunpack.c.l.b16 %v383
        %v1598 = vunpack.c.l.b16 %v384
        %v1599 = vpack.c.b16 %v1596, %v1595
        %v1600 = vpack.c.b16 %v1598, %v1597
        %v1602 = vsel %vm608, %v1599, 0
        %v1605 = vsel %vm608, %v1600, 0
        %v1608 = vsel %vm633, %v1590, 0
        %1610 = vmatprep.subr.bf16.mxu0 0
        %1611 = vmatpush1.bf16.msra.mxu0 %v1608
        %1612 = vmatprep.subr.bf16.mxu0 0
        %1613 = vmatpush1.bf16.msra.mxu0 0
        %1614 = vmatprep.subr.bf16.mxu0 0
        %1615 = vmatpush1.bf16.msra.mxu0 0
        %1616 = vmatprep.subr.bf16.mxu0 0
        %1617 = vmatpush1.bf16.msra.mxu0 0
        %1618 = vmatprep.subr.bf16.mxu0 0
        %1619 = vmatpush1.bf16.msra.mxu0 0
        %1620 = vmatprep.subr.bf16.mxu0 0
        %1621 = vmatpush1.bf16.msra.mxu0 0
        %1622 = vmatprep.subr.bf16.mxu0 0
        %1623 = vmatpush1.bf16.msra.mxu0 0
        %1624 = vmatprep.subr.bf16.mxu0 0
        %1625 = vmatpush1.bf16.msra.mxu0 0
        %1626 = vmatprep.subr.bf16.mxu0 0
        %1627 = vmatpush1.bf16.msra.mxu0 0
        %1628 = vmatprep.subr.bf16.mxu0 0
        %1629 = vmatpush1.bf16.msra.mxu0 0
        %1630 = vmatprep.subr.bf16.mxu0 0
        %1631 = vmatpush1.bf16.msra.mxu0 0
        %1632 = vmatprep.subr.bf16.mxu0 0
        %1633 = vmatpush1.bf16.msra.mxu0 0
        %1634 = vmatprep.subr.bf16.mxu0 0
        %1635 = vmatpush1.bf16.msra.mxu0 0
        %1636 = vmatprep.subr.bf16.mxu0 0
        %1637 = vmatpush1.bf16.msra.mxu0 0
        %1638 = vmatprep.subr.bf16.mxu0 0
        %1639 = vmatpush1.bf16.msra.mxu0 0
        %1640 = vmatprep.subr.bf16.mxu0 0
        %1641 = vmatpush1.bf16.msra.mxu0 0
        %1642 = vmatprep.mubr.bf16.mxu0 0
        %1643 = vmatmul.mubr.bf16.gmra.mrb[0].mxu0 %v781
        %v1644 = vpop.f32.mrb[0].mxu0
        %v1645 = vadd.f32 0.0, %v1644
        %v1646 = vpop.f32.mrb[0].mxu0
        %v1647 = vpop.f32.mrb[0].mxu0
        %v1648 = vadd.f32 0.0, %v1647
        %v1649 = vpop.f32.mrb[0].mxu0
        %1650 = vmatprep.mubr.bf16.mxu0 0
        %1651 = vmatmul.mubr.bf16.gmra.mrb[0].mxu0 %v784
        %v1652 = vpop.f32.mrb[0].mxu0
        %v1653 = vadd.f32 0.0, %v1652
        %v1654 = vpop.f32.mrb[0].mxu0
        %v1655 = vpop.f32.mrb[0].mxu0
        %v1656 = vadd.f32 0.0, %v1655
        %v1657 = vpop.f32.mrb[0].mxu0
        %1658 = vmatprep.mubr.bf16.mxu0 0
        %1659 = vmatmul.mubr.bf16.gmra.mrb[0].mxu0 %v1144
        %v1660 = vpop.f32.mrb[0].mxu0
        %v1661 = vadd.f32 0.0, %v1660
        %v1662 = vpop.f32.mrb[0].mxu0
        %v1663 = vpop.f32.mrb[0].mxu0
        %v1664 = vadd.f32 0.0, %v1663
        %v1665 = vpop.f32.mrb[0].mxu0
        %1666 = vmatprep.mubr.bf16.mxu0 0
        %1667 = vmatmul.mubr.bf16.gmra.mrb[0].mxu0 %v1602
        %v1668 = vpop.f32.mrb[0].mxu0
        %v1669 = vadd.f32 0.0, %v1668
        %v1670 = vpop.f32.mrb[0].mxu0
        %v1671 = vpop.f32.mrb[0].mxu0
        %v1672 = vadd.f32 0.0, %v1671
        %v1673 = vpop.f32.mrb[0].mxu0
        %1674 = vmatprep.mubr.bf16.mxu0 0
        %1675 = vmatmul.mubr.bf16.gmra.mrb[0].mxu0 %v793
        %v1676 = vpop.f32.mrb[0].mxu0
        %v1677 = vadd.f32 0.0, %v1676
        %v1678 = vpop.f32.mrb[0].mxu0
        %v1679 = vpop.f32.mrb[0].mxu0
        %v1680 = vadd.f32 0.0, %v1679
        %v1681 = vpop.f32.mrb[0].mxu0
        %1682 = vmatprep.mubr.bf16.mxu0 0
        %1683 = vmatmul.mubr.bf16.gmra.mrb[0].mxu0 %v796
        %v1684 = vpop.f32.mrb[0].mxu0
        %v1685 = vadd.f32 0.0, %v1684
        %v1686 = vpop.f32.mrb[0].mxu0
        %v1687 = vpop.f32.mrb[0].mxu0
        %v1688 = vadd.f32 0.0, %v1687
        %v1689 = vpop.f32.mrb[0].mxu0
        %1690 = vmatprep.mubr.bf16.mxu0 0
        %1691 = vmatmul.mubr.bf16.gmra.mrb[0].mxu0 %v1147
        %v1692 = vpop.f32.mrb[0].mxu0
        %v1693 = vadd.f32 0.0, %v1692
        %v1694 = vpop.f32.mrb[0].mxu0
        %v1695 = vpop.f32.mrb[0].mxu0
        %v1696 = vadd.f32 0.0, %v1695
        %v1697 = vpop.f32.mrb[0].mxu0
        %1698 = vmatprep.mubr.bf16.mxu0 0
        %1699 = vmatmul.mubr.bf16.gmra.mrb[0].mxu0 %v1605
        %v1700 = vpop.f32.mrb[0].mxu0
        %v1701 = vadd.f32 0.0, %v1700
        %v1702 = vpop.f32.mrb[0].mxu0
        %v1703 = vpop.f32.mrb[0].mxu0
        %v1704 = vadd.f32 0.0, %v1703
        %v1705 = vpop.f32.mrb[0].mxu0
        %1706 = vdwg.mxu0
        %v1707 = vadd.f32 %v1573, %v1645
        %v1708 = vadd.f32 %v1574, %v1648
        %v1709 = vadd.f32 %v1575, %v1653
        %v1710 = vadd.f32 %v1576, %v1656
        %v1711 = vadd.f32 %v1577, %v1661
        %v1712 = vadd.f32 %v1578, %v1664
        %v1713 = vadd.f32 %v1579, %v1669
        %v1714 = vadd.f32 %v1580, %v1672
        %v1715 = vadd.f32 %v1581, %v1677
        %v1716 = vadd.f32 %v1582, %v1680
        %v1717 = vadd.f32 %v1583, %v1685
        %v1718 = vadd.f32 %v1584, %v1688
        %v1719 = vadd.f32 %v1585, %v1693
        %v1720 = vadd.f32 %v1586, %v1696
        %v1721 = vadd.f32 %v1587, %v1701
        %v1722 = vadd.f32 %v1588, %v1704
        %v1724 = vshrl.u32 %v365, 16
        %v1726 = vrot.slane %v1724, 4
        %v1727 = vshll.u32 %v365, 16
        %v1729 = vrot.slane %v1727, 5
        %v1730 = vor.u32 %v1726, %v1729
        %v1731 = vrot.slane %v1730, 4
        %v1733 = vshll.u32 %v366, 16
        %v1735 = vrot.slane %v1733, 5
        %v1736 = vsel %vm389, %v1731, %v1735
        %v1737 = vshrl.u32 %v366, 16
        %v1739 = vrot.slane %v1737, 4
        %v1740 = vor.u32 %v1739, %v1735
        %v1741 = vrot.slane %v1740, 4
        %v1743 = vshll.u32 %v367, 16
        %v1745 = vrot.slane %v1743, 5
        %v1746 = vsel %vm389, %v1741, %v1745
        %v1748 = vshrl.u32 %v383, 16
        %v1750 = vrot.slane %v1748, 4
        %v1751 = vshll.u32 %v383, 16
        %v1753 = vrot.slane %v1751, 5
        %v1754 = vor.u32 %v1750, %v1753
        %v1755 = vrot.slane %v1754, 4
        %v1757 = vshll.u32 %v384, 16
        %v1759 = vrot.slane %v1757, 5
        %v1760 = vsel %vm389, %v1755, %v1759
        %v1761 = vshrl.u32 %v384, 16
        %v1763 = vrot.slane %v1761, 4
        %v1764 = vor.u32 %v1763, %v1759
        %v1765 = vrot.slane %v1764, 4
        %v1767 = vshll.u32 %v385, 16
        %v1769 = vrot.slane %v1767, 5
        %v1770 = vsel %vm389, %v1765, %v1769
        %s1771 = scalar_lea.vmem %s3, 28
        %v1772 = vld [vmem:[%s1771] sm:$0xf]
        %v1773 = vunpack.c.l.b16 %v1736
        %v1774 = vunpack.c.l.b16 %v1746
        %v1775 = vunpack.c.l.b16 %v1760
        %v1776 = vunpack.c.l.b16 %v1770
        %v1777 = vpack.c.b16 %v1774, %v1773
        %v1778 = vpack.c.b16 %v1776, %v1775
        %v1780 = vsel %vm608, %v1777, 0
        %v1783 = vsel %vm608, %v1778, 0
        %v1786 = vsel %vm633, %v1772, 0
        %1788 = vmatprep.subr.bf16.mxu0 0
        %1789 = vmatpush1.bf16.msra.mxu0 %v1786
        %1790 = vmatprep.subr.bf16.mxu0 0
        %1791 = vmatpush1.bf16.msra.mxu0 0
        %1792 = vmatprep.subr.bf16.mxu0 0
        %1793 = vmatpush1.bf16.msra.mxu0 0
        %1794 = vmatprep.subr.bf16.mxu0 0
        %1795 = vmatpush1.bf16.msra.mxu0 0
        %1796 = vmatprep.subr.bf16.mxu0 0
        %1797 = vmatpush1.bf16.msra.mxu0 0
        %1798 = vmatprep.subr.bf16.mxu0 0
        %1799 = vmatpush1.bf16.msra.mxu0 0
        %1800 = vmatprep.subr.bf16.mxu0 0
        %1801 = vmatpush1.bf16.msra.mxu0 0
        %1802 = vmatprep.subr.bf16.mxu0 0
        %1803 = vmatpush1.bf16.msra.mxu0 0
        %1804 = vmatprep.subr.bf16.mxu0 0
        %1805 = vmatpush1.bf16.msra.mxu0 0
        %1806 = vmatprep.subr.bf16.mxu0 0
        %1807 = vmatpush1.bf16.msra.mxu0 0
        %1808 = vmatprep.subr.bf16.mxu0 0
        %1809 = vmatpush1.bf16.msra.mxu0 0
        %1810 = vmatprep.subr.bf16.mxu0 0
        %1811 = vmatpush1.bf16.msra.mxu0 0
        %1812 = vmatprep.subr.bf16.mxu0 0
        %1813 = vmatpush1.bf16.msra.mxu0 0
        %1814 = vmatprep.subr.bf16.mxu0 0
        %1815 = vmatpush1.bf16.msra.mxu0 0
        %1816 = vmatprep.subr.bf16.mxu0 0
        %1817 = vmatpush1.bf16.msra.mxu0 0
        %1818 = vmatprep.subr.bf16.mxu0 0
        %1819 = vmatpush1.bf16.msra.mxu0 0
        %1820 = vmatprep.mubr.bf16.mxu0 0
        %1821 = vmatmul.mubr.bf16.gmra.mrb[0].mxu0 %v616
        %v1822 = vpop.f32.mrb[0].mxu0
        %v1823 = vadd.f32 0.0, %v1822
        %v1824 = vpop.f32.mrb[0].mxu0
        %v1825 = vpop.f32.mrb[0].mxu0
        %v1826 = vadd.f32 0.0, %v1825
        %v1827 = vpop.f32.mrb[0].mxu0
        %1828 = vmatprep.mubr.bf16.mxu0 0
        %1829 = vmatmul.mubr.bf16.gmra.mrb[0].mxu0 %v619
        %v1830 = vpop.f32.mrb[0].mxu0
        %v1831 = vadd.f32 0.0, %v1830
        %v1832 = vpop.f32.mrb[0].mxu0
        %v1833 = vpop.f32.mrb[0].mxu0
        %v1834 = vadd.f32 0.0, %v1833
        %v1835 = vpop.f32.mrb[0].mxu0
        %1836 = vmatprep.mubr.bf16.mxu0 0
        %1837 = vmatmul.mubr.bf16.gmra.mrb[0].mxu0 %v1322
        %v1838 = vpop.f32.mrb[0].mxu0
        %v1839 = vadd.f32 0.0, %v1838
        %v1840 = vpop.f32.mrb[0].mxu0
        %v1841 = vpop.f32.mrb[0].mxu0
        %v1842 = vadd.f32 0.0, %v1841
        %v1843 = vpop.f32.mrb[0].mxu0
        %1844 = vmatprep.mubr.bf16.mxu0 0
        %1845 = vmatmul.mubr.bf16.gmra.mrb[0].mxu0 %v1780
        %v1846 = vpop.f32.mrb[0].mxu0
        %v1847 = vadd.f32 0.0, %v1846
        %v1848 = vpop.f32.mrb[0].mxu0
        %v1849 = vpop.f32.mrb[0].mxu0
        %v1850 = vadd.f32 0.0, %v1849
        %v1851 = vpop.f32.mrb[0].mxu0
        %1852 = vmatprep.mubr.bf16.mxu0 0
        %1853 = vmatmul.mubr.bf16.gmra.mrb[0].mxu0 %v628
        %v1854 = vpop.f32.mrb[0].mxu0
        %v1855 = vadd.f32 0.0, %v1854
        %v1856 = vpop.f32.mrb[0].mxu0
        %v1857 = vpop.f32.mrb[0].mxu0
        %v1858 = vadd.f32 0.0, %v1857
        %v1859 = vpop.f32.mrb[0].mxu0
        %1860 = vmatprep.mubr.bf16.mxu0 0
        %1861 = vmatmul.mubr.bf16.gmra.mrb[0].mxu0 %v631
        %v1862 = vpop.f32.mrb[0].mxu0
        %v1863 = vadd.f32 0.0, %v1862
        %v1864 = vpop.f32.mrb[0].mxu0
        %v1865 = vpop.f32.mrb[0].mxu0
        %v1866 = vadd.f32 0.0, %v1865
        %v1867 = vpop.f32.mrb[0].mxu0
        %1868 = vmatprep.mubr.bf16.mxu0 0
        %1869 = vmatmul.mubr.bf16.gmra.mrb[0].mxu0 %v1325
        %v1870 = vpop.f32.mrb[0].mxu0
        %v1871 = vadd.f32 0.0, %v1870
        %v1872 = vpop.f32.mrb[0].mxu0
        %v1873 = vpop.f32.mrb[0].mxu0
        %v1874 = vadd.f32 0.0, %v1873
        %v1875 = vpop.f32.mrb[0].mxu0
        %1876 = vmatprep.mubr.bf16.mxu0 0
        %1877 = vmatmul.mubr.bf16.gmra.mrb[0].mxu0 %v1783
        %v1878 = vpop.f32.mrb[0].mxu0
        %v1879 = vadd.f32 0.0, %v1878
        %v1880 = vpop.f32.mrb[0].mxu0
        %v1881 = vpop.f32.mrb[0].mxu0
        %v1882 = vadd.f32 0.0, %v1881
        %v1883 = vpop.f32.mrb[0].mxu0
        %1884 = vdwg.mxu0
        %v1885 = vadd.f32 %v1707, %v1823
        %v1886 = vadd.f32 %v1708, %v1826
        %v1887 = vadd.f32 %v1709, %v1831
        %v1888 = vadd.f32 %v1710, %v1834
        %v1889 = vadd.f32 %v1711, %v1839
        %v1890 = vadd.f32 %v1712, %v1842
        %v1891 = vadd.f32 %v1713, %v1847
        %v1892 = vadd.f32 %v1714, %v1850
        %v1893 = vadd.f32 %v1715, %v1855
        %v1894 = vadd.f32 %v1716, %v1858
        %v1895 = vadd.f32 %v1717, %v1863
        %v1896 = vadd.f32 %v1718, %v1866
        %v1897 = vadd.f32 %v1719, %v1871
        %v1898 = vadd.f32 %v1720, %v1874
        %v1899 = vadd.f32 %v1721, %v1879
        %v1900 = vadd.f32 %v1722, %v1882
        %v1903 = vrot.slane %v365, 5
        %v1904 = vrot.slane %v1903, 4
        %v1905 = vrot.slane %v366, 5
        %v1906 = vsel %vm908, %v1904, %v1905
        %v1907 = vrot.slane %v1905, 4
        %v1908 = vrot.slane %v367, 5
        %v1909 = vsel %vm908, %v1907, %v1908
        %v1910 = vrot.slane %v383, 5
        %v1911 = vrot.slane %v1910, 4
        %v1912 = vrot.slane %v384, 5
        %v1913 = vsel %vm908, %v1911, %v1912
        %v1914 = vrot.slane %v1912, 4
        %v1915 = vrot.slane %v385, 5
        %v1916 = vsel %vm908, %v1914, %v1915
        %s1917 = scalar_lea.vmem %s3, 32
        %v1918 = vld [vmem:[%s1917] sm:$0xf]
        %v1919 = vunpack.c.l.b16 %v1906
        %v1920 = vunpack.c.l.b16 %v1909
        %v1921 = vunpack.c.l.b16 %v1913
        %v1922 = vunpack.c.l.b16 %v1916
        %v1923 = vpack.c.b16 %v1920, %v1919
        %v1924 = vpack.c.b16 %v1922, %v1921
        %v1926 = vsel %vm608, %v1923, 0
        %v1929 = vsel %vm608, %v1924, 0
        %v1932 = vsel %vm633, %v1918, 0
        %1934 = vmatprep.subr.bf16.mxu0 0
        %1935 = vmatpush1.bf16.msra.mxu0 %v1932
        %1936 = vmatprep.subr.bf16.mxu0 0
        %1937 = vmatpush1.bf16.msra.mxu0 0
        %1938 = vmatprep.subr.bf16.mxu0 0
        %1939 = vmatpush1.bf16.msra.mxu0 0
        %1940 = vmatprep.subr.bf16.mxu0 0
        %1941 = vmatpush1.bf16.msra.mxu0 0
        %1942 = vmatprep.subr.bf16.mxu0 0
        %1943 = vmatpush1.bf16.msra.mxu0 0
        %1944 = vmatprep.subr.bf16.mxu0 0
        %1945 = vmatpush1.bf16.msra.mxu0 0
        %1946 = vmatprep.subr.bf16.mxu0 0
        %1947 = vmatpush1.bf16.msra.mxu0 0
        %1948 = vmatprep.subr.bf16.mxu0 0
        %1949 = vmatpush1.bf16.msra.mxu0 0
        %1950 = vmatprep.subr.bf16.mxu0 0
        %1951 = vmatpush1.bf16.msra.mxu0 0
        %1952 = vmatprep.subr.bf16.mxu0 0
        %1953 = vmatpush1.bf16.msra.mxu0 0
        %1954 = vmatprep.subr.bf16.mxu0 0
        %1955 = vmatpush1.bf16.msra.mxu0 0
        %1956 = vmatprep.subr.bf16.mxu0 0
        %1957 = vmatpush1.bf16.msra.mxu0 0
        %1958 = vmatprep.subr.bf16.mxu0 0
        %1959 = vmatpush1.bf16.msra.mxu0 0
        %1960 = vmatprep.subr.bf16.mxu0 0
        %1961 = vmatpush1.bf16.msra.mxu0 0
        %1962 = vmatprep.subr.bf16.mxu0 0
        %1963 = vmatpush1.bf16.msra.mxu0 0
        %1964 = vmatprep.subr.bf16.mxu0 0
        %1965 = vmatpush1.bf16.msra.mxu0 0
        %1966 = vmatprep.mubr.bf16.mxu0 0
        %1967 = vmatmul.mubr.bf16.gmra.mrb[0].mxu0 %v998
        %v1968 = vpop.f32.mrb[0].mxu0
        %v1969 = vadd.f32 0.0, %v1968
        %v1970 = vpop.f32.mrb[0].mxu0
        %v1971 = vpop.f32.mrb[0].mxu0
        %v1972 = vadd.f32 0.0, %v1971
        %v1973 = vpop.f32.mrb[0].mxu0
        %1974 = vmatprep.mubr.bf16.mxu0 0
        %1975 = vmatmul.mubr.bf16.gmra.mrb[0].mxu0 %v1001
        %v1976 = vpop.f32.mrb[0].mxu0
        %v1977 = vadd.f32 0.0, %v1976
        %v1978 = vpop.f32.mrb[0].mxu0
        %v1979 = vpop.f32.mrb[0].mxu0
        %v1980 = vadd.f32 0.0, %v1979
        %v1981 = vpop.f32.mrb[0].mxu0
        %1982 = vmatprep.mubr.bf16.mxu0 0
        %1983 = vmatmul.mubr.bf16.gmra.mrb[0].mxu0 %v1468
        %v1984 = vpop.f32.mrb[0].mxu0
        %v1985 = vadd.f32 0.0, %v1984
        %v1986 = vpop.f32.mrb[0].mxu0
        %v1987 = vpop.f32.mrb[0].mxu0
        %v1988 = vadd.f32 0.0, %v1987
        %v1989 = vpop.f32.mrb[0].mxu0
        %1990 = vmatprep.mubr.bf16.mxu0 0
        %1991 = vmatmul.mubr.bf16.gmra.mrb[0].mxu0 %v1926
        %v1992 = vpop.f32.mrb[0].mxu0
        %v1993 = vadd.f32 0.0, %v1992
        %v1994 = vpop.f32.mrb[0].mxu0
        %v1995 = vpop.f32.mrb[0].mxu0
        %v1996 = vadd.f32 0.0, %v1995
        %v1997 = vpop.f32.mrb[0].mxu0
        %1998 = vmatprep.mubr.bf16.mxu0 0
        %1999 = vmatmul.mubr.bf16.gmra.mrb[0].mxu0 %v1010
        %v2000 = vpop.f32.mrb[0].mxu0
        %v2001 = vadd.f32 0.0, %v2000
        %v2002 = vpop.f32.mrb[0].mxu0
        %v2003 = vpop.f32.mrb[0].mxu0
        %v2004 = vadd.f32 0.0, %v2003
        %v2005 = vpop.f32.mrb[0].mxu0
        %2006 = vmatprep.mubr.bf16.mxu0 0
        %2007 = vmatmul.mubr.bf16.gmra.mrb[0].mxu0 %v1013
        %v2008 = vpop.f32.mrb[0].mxu0
        %v2009 = vadd.f32 0.0, %v2008
        %v2010 = vpop.f32.mrb[0].mxu0
        %v2011 = vpop.f32.mrb[0].mxu0
        %v2012 = vadd.f32 0.0, %v2011
        %v2013 = vpop.f32.mrb[0].mxu0
        %2014 = vmatprep.mubr.bf16.mxu0 0
        %2015 = vmatmul.mubr.bf16.gmra.mrb[0].mxu0 %v1471
        %v2016 = vpop.f32.mrb[0].mxu0
        %v2017 = vadd.f32 0.0, %v2016
        %v2018 = vpop.f32.mrb[0].mxu0
        %v2019 = vpop.f32.mrb[0].mxu0
        %v2020 = vadd.f32 0.0, %v2019
        %v2021 = vpop.f32.mrb[0].mxu0
        %2022 = vmatprep.mubr.bf16.mxu0 0
        %2023 = vmatmul.mubr.bf16.gmra.mrb[0].mxu0 %v1929
        %v2024 = vpop.f32.mrb[0].mxu0
        %v2025 = vadd.f32 0.0, %v2024
        %v2026 = vpop.f32.mrb[0].mxu0
        %v2027 = vpop.f32.mrb[0].mxu0
        %v2028 = vadd.f32 0.0, %v2027
        %v2029 = vpop.f32.mrb[0].mxu0
        %2030 = vdwg.mxu0
        %v2031 = vadd.f32 %v1885, %v1969
        %v2032 = vadd.f32 %v1886, %v1972
        %v2033 = vadd.f32 %v1887, %v1977
        %v2034 = vadd.f32 %v1888, %v1980
        %v2035 = vadd.f32 %v1889, %v1985
        %v2036 = vadd.f32 %v1890, %v1988
        %v2037 = vadd.f32 %v1891, %v1993
        %v2038 = vadd.f32 %v1892, %v1996
        %v2039 = vadd.f32 %v1893, %v2001
        %v2040 = vadd.f32 %v1894, %v2004
        %v2041 = vadd.f32 %v1895, %v2009
        %v2042 = vadd.f32 %v1896, %v2012
        %v2043 = vadd.f32 %v1897, %v2017
        %v2044 = vadd.f32 %v1898, %v2020
        %v2045 = vadd.f32 %v1899, %v2025
        %v2046 = vadd.f32 %v1900, %v2028
        %v2047 = vld [vmem:[%s5] sm:$0x1]
        %v2049 = vlaneseq
        %v2050 = vshrl.u32 %v2049, 7
        %v2051 = vsub.s32 0, %v2050
        %v2052 = vrot.slane %v2047, %v2051
        %v2054 = vadd.f32 %v2031, %v2052
        %v2055 = vadd.f32 %v2032, %v2052
        %v2056 = vadd.f32 %v2033, %v2052
        %v2057 = vadd.f32 %v2034, %v2052
        %v2058 = vadd.f32 %v2035, %v2052
        %v2059 = vadd.f32 %v2036, %v2052
        %v2060 = vadd.f32 %v2037, %v2052
        %v2061 = vadd.f32 %v2038, %v2052
        %v2062 = vadd.f32 %v2039, %v2052
        %v2063 = vadd.f32 %v2040, %v2052
        %v2064 = vadd.f32 %v2041, %v2052
        %v2065 = vadd.f32 %v2042, %v2052
        %v2066 = vadd.f32 %v2043, %v2052
        %v2067 = vadd.f32 %v2044, %v2052
        %v2068 = vadd.f32 %v2045, %v2052
        %v2069 = vadd.f32 %v2046, %v2052
        %v2070 = vld [vmem:[%s334] sm:$0xf]
        %v2071 = vld [vmem:[%s334 + $0x4] sm:$0xf]
        %v2072 = vld [vmem:[%s334 + $0x8] sm:$0x1]
        %v2073 = vld [vmem:[%s334 + $0xc] sm:$0xf]
        %v2074 = vld [vmem:[%s334 + $0x10] sm:$0xf]
        %v2075 = vld [vmem:[%s334 + $0x14] sm:$0x1]
        %v2076 = vld [vmem:[%s334 + $0x18] sm:$0xf]
        %v2077 = vld [vmem:[%s334 + $0x1c] sm:$0xf]
        %v2078 = vld [vmem:[%s334 + $0x20] sm:$0x1]
        %v2079 = vld [vmem:[%s334 + $0x24] sm:$0xf]
        %v2080 = vld [vmem:[%s334 + $0x28] sm:$0xf]
        %v2081 = vld [vmem:[%s334 + $0x2c] sm:$0x1]
        %v2082 = vld [vmem:[%s334 + $0x30] sm:$0xf]
        %v2083 = vld [vmem:[%s334 + $0x34] sm:$0xf]
        %v2084 = vld [vmem:[%s334 + $0x38] sm:$0x1]
        %v2085 = vld [vmem:[%s334 + $0x3c] sm:$0xf]
        %v2086 = vld [vmem:[%s334 + $0x40] sm:$0xf]
        %v2087 = vld [vmem:[%s334 + $0x44] sm:$0x1]
        %v2088 = vld [vmem:[%s334 + $0x48] sm:$0xf]
        %v2089 = vld [vmem:[%s334 + $0x4c] sm:$0xf]
        %v2090 = vld [vmem:[%s334 + $0x50] sm:$0x1]
        %v2091 = vld [vmem:[%s334 + $0x54] sm:$0xf]
        %v2092 = vld [vmem:[%s334 + $0x58] sm:$0xf]
        %v2093 = vld [vmem:[%s334 + $0x5c] sm:$0x1]
        %v2094 = vld [vmem:[%s334 + $0x60] sm:$0xf]
        %v2095 = vld [vmem:[%s334 + $0x64] sm:$0xf]
        %v2096 = vld [vmem:[%s334 + $0x68] sm:$0x1]
        %v2097 = vld [vmem:[%s334 + $0x6c] sm:$0xf]
        %v2098 = vld [vmem:[%s334 + $0x70] sm:$0xf]
        %v2099 = vld [vmem:[%s334 + $0x74] sm:$0x1]
        %v2100 = vld [vmem:[%s334 + $0x78] sm:$0xf]
        %v2101 = vld [vmem:[%s334 + $0x7c] sm:$0xf]
        %v2102 = vld [vmem:[%s334 + $0x80] sm:$0x1]
        %v2103 = vld [vmem:[%s334 + $0x84] sm:$0xf]
        %v2104 = vld [vmem:[%s334 + $0x88] sm:$0xf]
        %v2105 = vld [vmem:[%s334 + $0x8c] sm:$0x1]
        %v2106 = vld [vmem:[%s2] sm:$0xf]
        %v2108 = vshrl.u32 %v2070, 16
        %v2110 = vrot.slane %v2108, 4
        %v2111 = vshll.u32 %v2070, 16
        %v2113 = vrot.slane %v2111, 5
        %v2114 = vor.u32 %v2110, %v2113
        %v2115 = vrot.slane %v2114, 4
        %v2117 = vshll.u32 %v2071, 16
        %v2119 = vrot.slane %v2117, 5
        %v2120 = vsel %vm389, %v2115, %v2119
        %v2121 = vshrl.u32 %v2071, 16
        %v2123 = vrot.slane %v2121, 4
        %v2124 = vor.u32 %v2123, %v2119
        %v2125 = vrot.slane %v2124, 4
        %v2127 = vshll.u32 %v2072, 16
        %v2129 = vrot.slane %v2127, 5
        %v2130 = vsel %vm389, %v2125, %v2129
        %v2132 = vshrl.u32 %v2073, 16
        %v2134 = vrot.slane %v2132, 4
        %v2135 = vshll.u32 %v2073, 16
        %v2137 = vrot.slane %v2135, 5
        %v2138 = vor.u32 %v2134, %v2137
        %v2139 = vrot.slane %v2138, 4
        %v2141 = vshll.u32 %v2074, 16
        %v2143 = vrot.slane %v2141, 5
        %v2144 = vsel %vm389, %v2139, %v2143
        %v2145 = vshrl.u32 %v2074, 16
        %v2147 = vrot.slane %v2145, 4
        %v2148 = vor.u32 %v2147, %v2143
        %v2149 = vrot.slane %v2148, 4
        %v2151 = vshll.u32 %v2075, 16
        %v2153 = vrot.slane %v2151, 5
        %v2154 = vsel %vm389, %v2149, %v2153
        %v2156 = vshrl.u32 %v2076, 16
        %v2158 = vrot.slane %v2156, 4
        %v2159 = vshll.u32 %v2076, 16
        %v2161 = vrot.slane %v2159, 5
        %v2162 = vor.u32 %v2158, %v2161
        %v2163 = vrot.slane %v2162, 4
        %v2165 = vshll.u32 %v2077, 16
        %v2167 = vrot.slane %v2165, 5
        %v2168 = vsel %vm389, %v2163, %v2167
        %v2169 = vshrl.u32 %v2077, 16
        %v2171 = vrot.slane %v2169, 4
        %v2172 = vor.u32 %v2171, %v2167
        %v2173 = vrot.slane %v2172, 4
        %v2175 = vshll.u32 %v2078, 16
        %v2177 = vrot.slane %v2175, 5
        %v2178 = vsel %vm389, %v2173, %v2177
        %v2180 = vshrl.u32 %v2079, 16
        %v2182 = vrot.slane %v2180, 4
        %v2183 = vshll.u32 %v2079, 16
        %v2185 = vrot.slane %v2183, 5
        %v2186 = vor.u32 %v2182, %v2185
        %v2187 = vrot.slane %v2186, 4
        %v2189 = vshll.u32 %v2080, 16
        %v2191 = vrot.slane %v2189, 5
        %v2192 = vsel %vm389, %v2187, %v2191
        %v2193 = vshrl.u32 %v2080, 16
        %v2195 = vrot.slane %v2193, 4
        %v2196 = vor.u32 %v2195, %v2191
        %v2197 = vrot.slane %v2196, 4
        %v2199 = vshll.u32 %v2081, 16
        %v2201 = vrot.slane %v2199, 5
        %v2202 = vsel %vm389, %v2197, %v2201
        %v2204 = vshrl.u32 %v2088, 16
        %v2206 = vrot.slane %v2204, 4
        %v2207 = vshll.u32 %v2088, 16
        %v2209 = vrot.slane %v2207, 5
        %v2210 = vor.u32 %v2206, %v2209
        %v2211 = vrot.slane %v2210, 4
        %v2213 = vshll.u32 %v2089, 16
        %v2215 = vrot.slane %v2213, 5
        %v2216 = vsel %vm389, %v2211, %v2215
        %v2217 = vshrl.u32 %v2089, 16
        %v2219 = vrot.slane %v2217, 4
        %v2220 = vor.u32 %v2219, %v2215
        %v2221 = vrot.slane %v2220, 4
        %v2223 = vshll.u32 %v2090, 16
        %v2225 = vrot.slane %v2223, 5
        %v2226 = vsel %vm389, %v2221, %v2225
        %v2228 = vshrl.u32 %v2091, 16
        %v2230 = vrot.slane %v2228, 4
        %v2231 = vshll.u32 %v2091, 16
        %v2233 = vrot.slane %v2231, 5
        %v2234 = vor.u32 %v2230, %v2233
        %v2235 = vrot.slane %v2234, 4
        %v2237 = vshll.u32 %v2092, 16
        %v2239 = vrot.slane %v2237, 5
        %v2240 = vsel %vm389, %v2235, %v2239
        %v2241 = vshrl.u32 %v2092, 16
        %v2243 = vrot.slane %v2241, 4
        %v2244 = vor.u32 %v2243, %v2239
        %v2245 = vrot.slane %v2244, 4
        %v2247 = vshll.u32 %v2093, 16
        %v2249 = vrot.slane %v2247, 5
        %v2250 = vsel %vm389, %v2245, %v2249
        %v2252 = vshrl.u32 %v2094, 16
        %v2254 = vrot.slane %v2252, 4
        %v2255 = vshll.u32 %v2094, 16
        %v2257 = vrot.slane %v2255, 5
        %v2258 = vor.u32 %v2254, %v2257
        %v2259 = vrot.slane %v2258, 4
        %v2261 = vshll.u32 %v2095, 16
        %v2263 = vrot.slane %v2261, 5
        %v2264 = vsel %vm389, %v2259, %v2263
        %v2265 = vshrl.u32 %v2095, 16
        %v2267 = vrot.slane %v2265, 4
        %v2268 = vor.u32 %v2267, %v2263
        %v2269 = vrot.slane %v2268, 4
        %v2271 = vshll.u32 %v2096, 16
        %v2273 = vrot.slane %v2271, 5
        %v2274 = vsel %vm389, %v2269, %v2273
        %v2276 = vshrl.u32 %v2097, 16
        %v2278 = vrot.slane %v2276, 4
        %v2279 = vshll.u32 %v2097, 16
        %v2281 = vrot.slane %v2279, 5
        %v2282 = vor.u32 %v2278, %v2281
        %v2283 = vrot.slane %v2282, 4
        %v2285 = vshll.u32 %v2098, 16
        %v2287 = vrot.slane %v2285, 5
        %v2288 = vsel %vm389, %v2283, %v2287
        %v2289 = vshrl.u32 %v2098, 16
        %v2291 = vrot.slane %v2289, 4
        %v2292 = vor.u32 %v2291, %v2287
        %v2293 = vrot.slane %v2292, 4
        %v2295 = vshll.u32 %v2099, 16
        %v2297 = vrot.slane %v2295, 5
        %v2298 = vsel %vm389, %v2293, %v2297
        %s2299 = scalar_lea.vmem %s2, 4
        %v2300 = vld [vmem:[%s2299] sm:$0xf]
        %v2301 = vunpack.c.l.b16 %v2120
        %v2302 = vunpack.c.l.b16 %v2130
        %v2303 = vunpack.c.l.b16 %v2144
        %v2304 = vunpack.c.l.b16 %v2154
        %v2305 = vunpack.c.l.b16 %v2168
        %v2306 = vunpack.c.l.b16 %v2178
        %v2307 = vunpack.c.l.b16 %v2192
        %v2308 = vunpack.c.l.b16 %v2202
        %v2309 = vunpack.c.l.b16 %v2216
        %v2310 = vunpack.c.l.b16 %v2226
        %v2311 = vunpack.c.l.b16 %v2240
        %v2312 = vunpack.c.l.b16 %v2250
        %v2313 = vunpack.c.l.b16 %v2264
        %v2314 = vunpack.c.l.b16 %v2274
        %v2315 = vunpack.c.l.b16 %v2288
        %v2316 = vunpack.c.l.b16 %v2298
        %v2317 = vpack.c.b16 %v2302, %v2301
        %v2318 = vpack.c.b16 %v2304, %v2303
        %v2319 = vpack.c.b16 %v2306, %v2305
        %v2320 = vpack.c.b16 %v2308, %v2307
        %v2321 = vpack.c.b16 %v2310, %v2309
        %v2322 = vpack.c.b16 %v2312, %v2311
        %v2323 = vpack.c.b16 %v2314, %v2313
        %v2324 = vpack.c.b16 %v2316, %v2315
        %v2326 = vsel %vm608, %v2317, 0
        %v2329 = vsel %vm608, %v2318, 0
        %v2332 = vsel %vm608, %v2319, 0
        %v2335 = vsel %vm608, %v2320, 0
        %v2338 = vsel %vm608, %v2321, 0
        %v2341 = vsel %vm608, %v2322, 0
        %v2344 = vsel %vm608, %v2323, 0
        %v2347 = vsel %vm608, %v2324, 0
        %v2350 = vsel %vm633, %v2300, 0
        %2352 = vmatprep.subr.bf16.mxu0 0
        %2353 = vmatpush1.bf16.msra.mxu0 %v2350
        %2354 = vmatprep.subr.bf16.mxu0 0
        %2355 = vmatpush1.bf16.msra.mxu0 0
        %2356 = vmatprep.subr.bf16.mxu0 0
        %2357 = vmatpush1.bf16.msra.mxu0 0
        %2358 = vmatprep.subr.bf16.mxu0 0
        %2359 = vmatpush1.bf16.msra.mxu0 0
        %2360 = vmatprep.subr.bf16.mxu0 0
        %2361 = vmatpush1.bf16.msra.mxu0 0
        %2362 = vmatprep.subr.bf16.mxu0 0
        %2363 = vmatpush1.bf16.msra.mxu0 0
        %2364 = vmatprep.subr.bf16.mxu0 0
        %2365 = vmatpush1.bf16.msra.mxu0 0
        %2366 = vmatprep.subr.bf16.mxu0 0
        %2367 = vmatpush1.bf16.msra.mxu0 0
        %2368 = vmatprep.subr.bf16.mxu0 0
        %2369 = vmatpush1.bf16.msra.mxu0 0
        %2370 = vmatprep.subr.bf16.mxu0 0
        %2371 = vmatpush1.bf16.msra.mxu0 0
        %2372 = vmatprep.subr.bf16.mxu0 0
        %2373 = vmatpush1.bf16.msra.mxu0 0
        %2374 = vmatprep.subr.bf16.mxu0 0
        %2375 = vmatpush1.bf16.msra.mxu0 0
        %2376 = vmatprep.subr.bf16.mxu0 0
        %2377 = vmatpush1.bf16.msra.mxu0 0
        %2378 = vmatprep.subr.bf16.mxu0 0
        %2379 = vmatpush1.bf16.msra.mxu0 0
        %2380 = vmatprep.subr.bf16.mxu0 0
        %2381 = vmatpush1.bf16.msra.mxu0 0
        %2382 = vmatprep.subr.bf16.mxu0 0
        %2383 = vmatpush1.bf16.msra.mxu0 0
        %2384 = vmatprep.mubr.bf16.mxu0 0
        %2385 = vmatmul.mubr.bf16.gmra.mrb[0].mxu0 %v2326
        %v2386 = vpop.f32.mrb[0].mxu0
        %v2387 = vadd.f32 0.0, %v2386
        %v2388 = vpop.f32.mrb[0].mxu0
        %v2389 = vpop.f32.mrb[0].mxu0
        %v2390 = vadd.f32 0.0, %v2389
        %v2391 = vpop.f32.mrb[0].mxu0
        %2392 = vmatprep.mubr.bf16.mxu0 0
        %2393 = vmatmul.mubr.bf16.gmra.mrb[0].mxu0 %v2329
        %v2394 = vpop.f32.mrb[0].mxu0
        %v2395 = vadd.f32 0.0, %v2394
        %v2396 = vpop.f32.mrb[0].mxu0
        %v2397 = vpop.f32.mrb[0].mxu0
        %v2398 = vadd.f32 0.0, %v2397
        %v2399 = vpop.f32.mrb[0].mxu0
        %2400 = vmatprep.mubr.bf16.mxu0 0
        %2401 = vmatmul.mubr.bf16.gmra.mrb[0].mxu0 %v2332
        %v2402 = vpop.f32.mrb[0].mxu0
        %v2403 = vadd.f32 0.0, %v2402
        %v2404 = vpop.f32.mrb[0].mxu0
        %v2405 = vpop.f32.mrb[0].mxu0
        %v2406 = vadd.f32 0.0, %v2405
        %v2407 = vpop.f32.mrb[0].mxu0
        %2408 = vmatprep.mubr.bf16.mxu0 0
        %2409 = vmatmul.mubr.bf16.gmra.mrb[0].mxu0 %v2335
        %v2410 = vpop.f32.mrb[0].mxu0
        %v2411 = vadd.f32 0.0, %v2410
        %v2412 = vpop.f32.mrb[0].mxu0
        %v2413 = vpop.f32.mrb[0].mxu0
        %v2414 = vadd.f32 0.0, %v2413
        %v2415 = vpop.f32.mrb[0].mxu0
        %2416 = vmatprep.mubr.bf16.mxu0 0
        %2417 = vmatmul.mubr.bf16.gmra.mrb[0].mxu0 %v2338
        %v2418 = vpop.f32.mrb[0].mxu0
        %v2419 = vadd.f32 0.0, %v2418
        %v2420 = vpop.f32.mrb[0].mxu0
        %v2421 = vpop.f32.mrb[0].mxu0
        %v2422 = vadd.f32 0.0, %v2421
        %v2423 = vpop.f32.mrb[0].mxu0
        %2424 = vmatprep.mubr.bf16.mxu0 0
        %2425 = vmatmul.mubr.bf16.gmra.mrb[0].mxu0 %v2341
        %v2426 = vpop.f32.mrb[0].mxu0
        %v2427 = vadd.f32 0.0, %v2426
        %v2428 = vpop.f32.mrb[0].mxu0
        %v2429 = vpop.f32.mrb[0].mxu0
        %v2430 = vadd.f32 0.0, %v2429
        %v2431 = vpop.f32.mrb[0].mxu0
        %2432 = vmatprep.mubr.bf16.mxu0 0
        %2433 = vmatmul.mubr.bf16.gmra.mrb[0].mxu0 %v2344
        %v2434 = vpop.f32.mrb[0].mxu0
        %v2435 = vadd.f32 0.0, %v2434
        %v2436 = vpop.f32.mrb[0].mxu0
        %v2437 = vpop.f32.mrb[0].mxu0
        %v2438 = vadd.f32 0.0, %v2437
        %v2439 = vpop.f32.mrb[0].mxu0
        %2440 = vmatprep.mubr.bf16.mxu0 0
        %2441 = vmatmul.mubr.bf16.gmra.mrb[0].mxu0 %v2347
        %v2442 = vpop.f32.mrb[0].mxu0
        %v2443 = vadd.f32 0.0, %v2442
        %v2444 = vpop.f32.mrb[0].mxu0
        %v2445 = vpop.f32.mrb[0].mxu0
        %v2446 = vadd.f32 0.0, %v2445
        %v2447 = vpop.f32.mrb[0].mxu0
        %2448 = vdwg.mxu0
        %v2465 = vunpack.c.l.b16 %v2070
        %v2466 = vunpack.c.l.b16 %v2071
        %v2467 = vunpack.c.l.b16 %v2073
        %v2468 = vunpack.c.l.b16 %v2074
        %v2469 = vunpack.c.l.b16 %v2076
        %v2470 = vunpack.c.l.b16 %v2077
        %v2471 = vunpack.c.l.b16 %v2079
        %v2472 = vunpack.c.l.b16 %v2080
        %v2473 = vunpack.c.l.b16 %v2088
        %v2474 = vunpack.c.l.b16 %v2089
        %v2475 = vunpack.c.l.b16 %v2091
        %v2476 = vunpack.c.l.b16 %v2092
        %v2477 = vunpack.c.l.b16 %v2094
        %v2478 = vunpack.c.l.b16 %v2095
        %v2479 = vunpack.c.l.b16 %v2097
        %v2480 = vunpack.c.l.b16 %v2098
        %v2481 = vpack.c.b16 %v2466, %v2465
        %v2482 = vpack.c.b16 %v2468, %v2467
        %v2483 = vpack.c.b16 %v2470, %v2469
        %v2484 = vpack.c.b16 %v2472, %v2471
        %v2485 = vpack.c.b16 %v2474, %v2473
        %v2486 = vpack.c.b16 %v2476, %v2475
        %v2487 = vpack.c.b16 %v2478, %v2477
        %v2488 = vpack.c.b16 %v2480, %v2479
        %v2490 = vsel %vm608, %v2481, 0
        %v2493 = vsel %vm608, %v2482, 0
        %v2496 = vsel %vm608, %v2483, 0
        %v2499 = vsel %vm608, %v2484, 0
        %v2502 = vsel %vm608, %v2485, 0
        %v2505 = vsel %vm608, %v2486, 0
        %v2508 = vsel %vm608, %v2487, 0
        %v2511 = vsel %vm608, %v2488, 0
        %v2514 = vsel %vm633, %v2106, 0
        %2516 = vmatprep.subr.bf16.mxu0 0
        %2517 = vmatpush1.bf16.msra.mxu0 %v2514
        %2518 = vmatprep.subr.bf16.mxu0 0
        %2519 = vmatpush1.bf16.msra.mxu0 0
        %2520 = vmatprep.subr.bf16.mxu0 0
        %2521 = vmatpush1.bf16.msra.mxu0 0
        %2522 = vmatprep.subr.bf16.mxu0 0
        %2523 = vmatpush1.bf16.msra.mxu0 0
        %2524 = vmatprep.subr.bf16.mxu0 0
        %2525 = vmatpush1.bf16.msra.mxu0 0
        %2526 = vmatprep.subr.bf16.mxu0 0
        %2527 = vmatpush1.bf16.msra.mxu0 0
        %2528 = vmatprep.subr.bf16.mxu0 0
        %2529 = vmatpush1.bf16.msra.mxu0 0
        %2530 = vmatprep.subr.bf16.mxu0 0
        %2531 = vmatpush1.bf16.msra.mxu0 0
        %2532 = vmatprep.subr.bf16.mxu0 0
        %2533 = vmatpush1.bf16.msra.mxu0 0
        %2534 = vmatprep.subr.bf16.mxu0 0
        %2535 = vmatpush1.bf16.msra.mxu0 0
        %2536 = vmatprep.subr.bf16.mxu0 0
        %2537 = vmatpush1.bf16.msra.mxu0 0
        %2538 = vmatprep.subr.bf16.mxu0 0
        %2539 = vmatpush1.bf16.msra.mxu0 0
        %2540 = vmatprep.subr.bf16.mxu0 0
        %2541 = vmatpush1.bf16.msra.mxu0 0
        %2542 = vmatprep.subr.bf16.mxu0 0
        %2543 = vmatpush1.bf16.msra.mxu0 0
        %2544 = vmatprep.subr.bf16.mxu0 0
        %2545 = vmatpush1.bf16.msra.mxu0 0
        %2546 = vmatprep.subr.bf16.mxu0 0
        %2547 = vmatpush1.bf16.msra.mxu0 0
        %2548 = vmatprep.mubr.bf16.mxu0 0
        %2549 = vmatmul.mubr.bf16.gmra.mrb[0].mxu0 %v2490
        %v2550 = vpop.f32.mrb[0].mxu0
        %v2551 = vadd.f32 %v2387, %v2550
        %v2552 = vpop.f32.mrb[0].mxu0
        %v2553 = vpop.f32.mrb[0].mxu0
        %v2554 = vadd.f32 %v2390, %v2553
        %v2555 = vpop.f32.mrb[0].mxu0
        %2556 = vmatprep.mubr.bf16.mxu0 0
        %2557 = vmatmul.mubr.bf16.gmra.mrb[0].mxu0 %v2493
        %v2558 = vpop.f32.mrb[0].mxu0
        %v2559 = vadd.f32 %v2395, %v2558
        %v2560 = vpop.f32.mrb[0].mxu0
        %v2561 = vpop.f32.mrb[0].mxu0
        %v2562 = vadd.f32 %v2398, %v2561
        %v2563 = vpop.f32.mrb[0].mxu0
        %2564 = vmatprep.mubr.bf16.mxu0 0
        %2565 = vmatmul.mubr.bf16.gmra.mrb[0].mxu0 %v2496
        %v2566 = vpop.f32.mrb[0].mxu0
        %v2567 = vadd.f32 %v2403, %v2566
        %v2568 = vpop.f32.mrb[0].mxu0
        %v2569 = vpop.f32.mrb[0].mxu0
        %v2570 = vadd.f32 %v2406, %v2569
        %v2571 = vpop.f32.mrb[0].mxu0
        %2572 = vmatprep.mubr.bf16.mxu0 0
        %2573 = vmatmul.mubr.bf16.gmra.mrb[0].mxu0 %v2499
        %v2574 = vpop.f32.mrb[0].mxu0
        %v2575 = vadd.f32 %v2411, %v2574
        %v2576 = vpop.f32.mrb[0].mxu0
        %v2577 = vpop.f32.mrb[0].mxu0
        %v2578 = vadd.f32 %v2414, %v2577
        %v2579 = vpop.f32.mrb[0].mxu0
        %2580 = vmatprep.mubr.bf16.mxu0 0
        %2581 = vmatmul.mubr.bf16.gmra.mrb[0].mxu0 %v2502
        %v2582 = vpop.f32.mrb[0].mxu0
        %v2583 = vadd.f32 %v2419, %v2582
        %v2584 = vpop.f32.mrb[0].mxu0
        %v2585 = vpop.f32.mrb[0].mxu0
        %v2586 = vadd.f32 %v2422, %v2585
        %v2587 = vpop.f32.mrb[0].mxu0
        %2588 = vmatprep.mubr.bf16.mxu0 0
        %2589 = vmatmul.mubr.bf16.gmra.mrb[0].mxu0 %v2505
        %v2590 = vpop.f32.mrb[0].mxu0
        %v2591 = vadd.f32 %v2427, %v2590
        %v2592 = vpop.f32.mrb[0].mxu0
        %v2593 = vpop.f32.mrb[0].mxu0
        %v2594 = vadd.f32 %v2430, %v2593
        %v2595 = vpop.f32.mrb[0].mxu0
        %2596 = vmatprep.mubr.bf16.mxu0 0
        %2597 = vmatmul.mubr.bf16.gmra.mrb[0].mxu0 %v2508
        %v2598 = vpop.f32.mrb[0].mxu0
        %v2599 = vadd.f32 %v2435, %v2598
        %v2600 = vpop.f32.mrb[0].mxu0
        %v2601 = vpop.f32.mrb[0].mxu0
        %v2602 = vadd.f32 %v2438, %v2601
        %v2603 = vpop.f32.mrb[0].mxu0
        %2604 = vmatprep.mubr.bf16.mxu0 0
        %2605 = vmatmul.mubr.bf16.gmra.mrb[0].mxu0 %v2511
        %v2606 = vpop.f32.mrb[0].mxu0
        %v2607 = vadd.f32 %v2443, %v2606
        %v2608 = vpop.f32.mrb[0].mxu0
        %v2609 = vpop.f32.mrb[0].mxu0
        %v2610 = vadd.f32 %v2446, %v2609
        %v2611 = vpop.f32.mrb[0].mxu0
        %2612 = vdwg.mxu0
        %v2621 = vrot.slane %v2070, 5
        %v2622 = vrot.slane %v2621, 4
        %v2623 = vrot.slane %v2071, 5
        %v2624 = vsel %vm908, %v2622, %v2623
        %v2625 = vrot.slane %v2623, 4
        %v2626 = vrot.slane %v2072, 5
        %v2627 = vsel %vm908, %v2625, %v2626
        %v2628 = vrot.slane %v2073, 5
        %v2629 = vrot.slane %v2628, 4
        %v2630 = vrot.slane %v2074, 5
        %v2631 = vsel %vm908, %v2629, %v2630
        %v2632 = vrot.slane %v2630, 4
        %v2633 = vrot.slane %v2075, 5
        %v2634 = vsel %vm908, %v2632, %v2633
        %v2635 = vrot.slane %v2076, 5
        %v2636 = vrot.slane %v2635, 4
        %v2637 = vrot.slane %v2077, 5
        %v2638 = vsel %vm908, %v2636, %v2637
        %v2639 = vrot.slane %v2637, 4
        %v2640 = vrot.slane %v2078, 5
        %v2641 = vsel %vm908, %v2639, %v2640
        %v2642 = vrot.slane %v2079, 5
        %v2643 = vrot.slane %v2642, 4
        %v2644 = vrot.slane %v2080, 5
        %v2645 = vsel %vm908, %v2643, %v2644
        %v2646 = vrot.slane %v2644, 4
        %v2647 = vrot.slane %v2081, 5
        %v2648 = vsel %vm908, %v2646, %v2647
        %v2649 = vrot.slane %v2088, 5
        %v2650 = vrot.slane %v2649, 4
        %v2651 = vrot.slane %v2089, 5
        %v2652 = vsel %vm908, %v2650, %v2651
        %v2653 = vrot.slane %v2651, 4
        %v2654 = vrot.slane %v2090, 5
        %v2655 = vsel %vm908, %v2653, %v2654
        %v2656 = vrot.slane %v2091, 5
        %v2657 = vrot.slane %v2656, 4
        %v2658 = vrot.slane %v2092, 5
        %v2659 = vsel %vm908, %v2657, %v2658
        %v2660 = vrot.slane %v2658, 4
        %v2661 = vrot.slane %v2093, 5
        %v2662 = vsel %vm908, %v2660, %v2661
        %v2663 = vrot.slane %v2094, 5
        %v2664 = vrot.slane %v2663, 4
        %v2665 = vrot.slane %v2095, 5
        %v2666 = vsel %vm908, %v2664, %v2665
        %v2667 = vrot.slane %v2665, 4
        %v2668 = vrot.slane %v2096, 5
        %v2669 = vsel %vm908, %v2667, %v2668
        %v2670 = vrot.slane %v2097, 5
        %v2671 = vrot.slane %v2670, 4
        %v2672 = vrot.slane %v2098, 5
        %v2673 = vsel %vm908, %v2671, %v2672
        %v2674 = vrot.slane %v2672, 4
        %v2675 = vrot.slane %v2099, 5
        %v2676 = vsel %vm908, %v2674, %v2675
        %s2677 = scalar_lea.vmem %s2, 8
        %v2678 = vld [vmem:[%s2677] sm:$0xf]
        %v2679 = vunpack.c.l.b16 %v2624
        %v2680 = vunpack.c.l.b16 %v2627
        %v2681 = vunpack.c.l.b16 %v2631
        %v2682 = vunpack.c.l.b16 %v2634
        %v2683 = vunpack.c.l.b16 %v2638
        %v2684 = vunpack.c.l.b16 %v2641
        %v2685 = vunpack.c.l.b16 %v2645
        %v2686 = vunpack.c.l.b16 %v2648
        %v2687 = vunpack.c.l.b16 %v2652
        %v2688 = vunpack.c.l.b16 %v2655
        %v2689 = vunpack.c.l.b16 %v2659
        %v2690 = vunpack.c.l.b16 %v2662
        %v2691 = vunpack.c.l.b16 %v2666
        %v2692 = vunpack.c.l.b16 %v2669
        %v2693 = vunpack.c.l.b16 %v2673
        %v2694 = vunpack.c.l.b16 %v2676
        %v2695 = vpack.c.b16 %v2680, %v2679
        %v2696 = vpack.c.b16 %v2682, %v2681
        %v2697 = vpack.c.b16 %v2684, %v2683
        %v2698 = vpack.c.b16 %v2686, %v2685
        %v2699 = vpack.c.b16 %v2688, %v2687
        %v2700 = vpack.c.b16 %v2690, %v2689
        %v2701 = vpack.c.b16 %v2692, %v2691
        %v2702 = vpack.c.b16 %v2694, %v2693
        %v2704 = vsel %vm608, %v2695, 0
        %v2707 = vsel %vm608, %v2696, 0
        %v2710 = vsel %vm608, %v2697, 0
        %v2713 = vsel %vm608, %v2698, 0
        %v2716 = vsel %vm608, %v2699, 0
        %v2719 = vsel %vm608, %v2700, 0
        %v2722 = vsel %vm608, %v2701, 0
        %v2725 = vsel %vm608, %v2702, 0
        %v2728 = vsel %vm633, %v2678, 0
        %2730 = vmatprep.subr.bf16.mxu0 0
        %2731 = vmatpush1.bf16.msra.mxu0 %v2728
        %2732 = vmatprep.subr.bf16.mxu0 0
        %2733 = vmatpush1.bf16.msra.mxu0 0
        %2734 = vmatprep.subr.bf16.mxu0 0
        %2735 = vmatpush1.bf16.msra.mxu0 0
        %2736 = vmatprep.subr.bf16.mxu0 0
        %2737 = vmatpush1.bf16.msra.mxu0 0
        %2738 = vmatprep.subr.bf16.mxu0 0
        %2739 = vmatpush1.bf16.msra.mxu0 0
        %2740 = vmatprep.subr.bf16.mxu0 0
        %2741 = vmatpush1.bf16.msra.mxu0 0
        %2742 = vmatprep.subr.bf16.mxu0 0
        %2743 = vmatpush1.bf16.msra.mxu0 0
        %2744 = vmatprep.subr.bf16.mxu0 0
        %2745 = vmatpush1.bf16.msra.mxu0 0
        %2746 = vmatprep.subr.bf16.mxu0 0
        %2747 = vmatpush1.bf16.msra.mxu0 0
        %2748 = vmatprep.subr.bf16.mxu0 0
        %2749 = vmatpush1.bf16.msra.mxu0 0
        %2750 = vmatprep.subr.bf16.mxu0 0
        %2751 = vmatpush1.bf16.msra.mxu0 0
        %2752 = vmatprep.subr.bf16.mxu0 0
        %2753 = vmatpush1.bf16.msra.mxu0 0
        %2754 = vmatprep.subr.bf16.mxu0 0
        %2755 = vmatpush1.bf16.msra.mxu0 0
        %2756 = vmatprep.subr.bf16.mxu0 0
        %2757 = vmatpush1.bf16.msra.mxu0 0
        %2758 = vmatprep.subr.bf16.mxu0 0
        %2759 = vmatpush1.bf16.msra.mxu0 0
        %2760 = vmatprep.subr.bf16.mxu0 0
        %2761 = vmatpush1.bf16.msra.mxu0 0
        %2762 = vmatprep.mubr.bf16.mxu0 0
        %2763 = vmatmul.mubr.bf16.gmra.mrb[0].mxu0 %v2704
        %v2764 = vpop.f32.mrb[0].mxu0
        %v2765 = vadd.f32 0.0, %v2764
        %v2766 = vpop.f32.mrb[0].mxu0
        %v2767 = vpop.f32.mrb[0].mxu0
        %v2768 = vadd.f32 0.0, %v2767
        %v2769 = vpop.f32.mrb[0].mxu0
        %2770 = vmatprep.mubr.bf16.mxu0 0
        %2771 = vmatmul.mubr.bf16.gmra.mrb[0].mxu0 %v2707
        %v2772 = vpop.f32.mrb[0].mxu0
        %v2773 = vadd.f32 0.0, %v2772
        %v2774 = vpop.f32.mrb[0].mxu0
        %v2775 = vpop.f32.mrb[0].mxu0
        %v2776 = vadd.f32 0.0, %v2775
        %v2777 = vpop.f32.mrb[0].mxu0
        %2778 = vmatprep.mubr.bf16.mxu0 0
        %2779 = vmatmul.mubr.bf16.gmra.mrb[0].mxu0 %v2710
        %v2780 = vpop.f32.mrb[0].mxu0
        %v2781 = vadd.f32 0.0, %v2780
        %v2782 = vpop.f32.mrb[0].mxu0
        %v2783 = vpop.f32.mrb[0].mxu0
        %v2784 = vadd.f32 0.0, %v2783
        %v2785 = vpop.f32.mrb[0].mxu0
        %2786 = vmatprep.mubr.bf16.mxu0 0
        %2787 = vmatmul.mubr.bf16.gmra.mrb[0].mxu0 %v2713
        %v2788 = vpop.f32.mrb[0].mxu0
        %v2789 = vadd.f32 0.0, %v2788
        %v2790 = vpop.f32.mrb[0].mxu0
        %v2791 = vpop.f32.mrb[0].mxu0
        %v2792 = vadd.f32 0.0, %v2791
        %v2793 = vpop.f32.mrb[0].mxu0
        %2794 = vmatprep.mubr.bf16.mxu0 0
        %2795 = vmatmul.mubr.bf16.gmra.mrb[0].mxu0 %v2716
        %v2796 = vpop.f32.mrb[0].mxu0
        %v2797 = vadd.f32 0.0, %v2796
        %v2798 = vpop.f32.mrb[0].mxu0
        %v2799 = vpop.f32.mrb[0].mxu0
        %v2800 = vadd.f32 0.0, %v2799
        %v2801 = vpop.f32.mrb[0].mxu0
        %2802 = vmatprep.mubr.bf16.mxu0 0
        %2803 = vmatmul.mubr.bf16.gmra.mrb[0].mxu0 %v2719
        %v2804 = vpop.f32.mrb[0].mxu0
        %v2805 = vadd.f32 0.0, %v2804
        %v2806 = vpop.f32.mrb[0].mxu0
        %v2807 = vpop.f32.mrb[0].mxu0
        %v2808 = vadd.f32 0.0, %v2807
        %v2809 = vpop.f32.mrb[0].mxu0
        %2810 = vmatprep.mubr.bf16.mxu0 0
        %2811 = vmatmul.mubr.bf16.gmra.mrb[0].mxu0 %v2722
        %v2812 = vpop.f32.mrb[0].mxu0
        %v2813 = vadd.f32 0.0, %v2812
        %v2814 = vpop.f32.mrb[0].mxu0
        %v2815 = vpop.f32.mrb[0].mxu0
        %v2816 = vadd.f32 0.0, %v2815
        %v2817 = vpop.f32.mrb[0].mxu0
        %2818 = vmatprep.mubr.bf16.mxu0 0
        %2819 = vmatmul.mubr.bf16.gmra.mrb[0].mxu0 %v2725
        %v2820 = vpop.f32.mrb[0].mxu0
        %v2821 = vadd.f32 0.0, %v2820
        %v2822 = vpop.f32.mrb[0].mxu0
        %v2823 = vpop.f32.mrb[0].mxu0
        %v2824 = vadd.f32 0.0, %v2823
        %v2825 = vpop.f32.mrb[0].mxu0
        %2826 = vdwg.mxu0
        %v2827 = vadd.f32 %v2551, %v2765
        %v2828 = vadd.f32 %v2554, %v2768
        %v2829 = vadd.f32 %v2559, %v2773
        %v2830 = vadd.f32 %v2562, %v2776
        %v2831 = vadd.f32 %v2567, %v2781
        %v2832 = vadd.f32 %v2570, %v2784
        %v2833 = vadd.f32 %v2575, %v2789
        %v2834 = vadd.f32 %v2578, %v2792
        %v2835 = vadd.f32 %v2583, %v2797
        %v2836 = vadd.f32 %v2586, %v2800
        %v2837 = vadd.f32 %v2591, %v2805
        %v2838 = vadd.f32 %v2594, %v2808
        %v2839 = vadd.f32 %v2599, %v2813
        %v2840 = vadd.f32 %v2602, %v2816
        %v2841 = vadd.f32 %v2607, %v2821
        %v2842 = vadd.f32 %v2610, %v2824
        %s2843 = scalar_lea.vmem %s2, 12
        %v2844 = vld [vmem:[%s2843] sm:$0xf]
        %v2849 = vunpack.c.l.b16 %v2082
        %v2850 = vunpack.c.l.b16 %v2083
        %v2851 = vunpack.c.l.b16 %v2100
        %v2852 = vunpack.c.l.b16 %v2101
        %v2853 = vpack.c.b16 %v2850, %v2849
        %v2854 = vpack.c.b16 %v2852, %v2851
        %v2856 = vsel %vm608, %v2853, 0
        %v2859 = vsel %vm608, %v2854, 0
        %v2862 = vsel %vm633, %v2844, 0
        %2864 = vmatprep.subr.bf16.mxu0 0
        %2865 = vmatpush1.bf16.msra.mxu0 %v2862
        %2866 = vmatprep.subr.bf16.mxu0 0
        %2867 = vmatpush1.bf16.msra.mxu0 0
        %2868 = vmatprep.subr.bf16.mxu0 0
        %2869 = vmatpush1.bf16.msra.mxu0 0
        %2870 = vmatprep.subr.bf16.mxu0 0
        %2871 = vmatpush1.bf16.msra.mxu0 0
        %2872 = vmatprep.subr.bf16.mxu0 0
        %2873 = vmatpush1.bf16.msra.mxu0 0
        %2874 = vmatprep.subr.bf16.mxu0 0
        %2875 = vmatpush1.bf16.msra.mxu0 0
        %2876 = vmatprep.subr.bf16.mxu0 0
        %2877 = vmatpush1.bf16.msra.mxu0 0
        %2878 = vmatprep.subr.bf16.mxu0 0
        %2879 = vmatpush1.bf16.msra.mxu0 0
        %2880 = vmatprep.subr.bf16.mxu0 0
        %2881 = vmatpush1.bf16.msra.mxu0 0
        %2882 = vmatprep.subr.bf16.mxu0 0
        %2883 = vmatpush1.bf16.msra.mxu0 0
        %2884 = vmatprep.subr.bf16.mxu0 0
        %2885 = vmatpush1.bf16.msra.mxu0 0
        %2886 = vmatprep.subr.bf16.mxu0 0
        %2887 = vmatpush1.bf16.msra.mxu0 0
        %2888 = vmatprep.subr.bf16.mxu0 0
        %2889 = vmatpush1.bf16.msra.mxu0 0
        %2890 = vmatprep.subr.bf16.mxu0 0
        %2891 = vmatpush1.bf16.msra.mxu0 0
        %2892 = vmatprep.subr.bf16.mxu0 0
        %2893 = vmatpush1.bf16.msra.mxu0 0
        %2894 = vmatprep.subr.bf16.mxu0 0
        %2895 = vmatpush1.bf16.msra.mxu0 0
        %2896 = vmatprep.mubr.bf16.mxu0 0
        %2897 = vmatmul.mubr.bf16.gmra.mrb[0].mxu0 %v2493
        %v2898 = vpop.f32.mrb[0].mxu0
        %v2899 = vadd.f32 0.0, %v2898
        %v2900 = vpop.f32.mrb[0].mxu0
        %v2901 = vpop.f32.mrb[0].mxu0
        %v2902 = vadd.f32 0.0, %v2901
        %v2903 = vpop.f32.mrb[0].mxu0
        %2904 = vmatprep.mubr.bf16.mxu0 0
        %2905 = vmatmul.mubr.bf16.gmra.mrb[0].mxu0 %v2496
        %v2906 = vpop.f32.mrb[0].mxu0
        %v2907 = vadd.f32 0.0, %v2906
        %v2908 = vpop.f32.mrb[0].mxu0
        %v2909 = vpop.f32.mrb[0].mxu0
        %v2910 = vadd.f32 0.0, %v2909
        %v2911 = vpop.f32.mrb[0].mxu0
        %2912 = vmatprep.mubr.bf16.mxu0 0
        %2913 = vmatmul.mubr.bf16.gmra.mrb[0].mxu0 %v2499
        %v2914 = vpop.f32.mrb[0].mxu0
        %v2915 = vadd.f32 0.0, %v2914
        %v2916 = vpop.f32.mrb[0].mxu0
        %v2917 = vpop.f32.mrb[0].mxu0
        %v2918 = vadd.f32 0.0, %v2917
        %v2919 = vpop.f32.mrb[0].mxu0
        %2920 = vmatprep.mubr.bf16.mxu0 0
        %2921 = vmatmul.mubr.bf16.gmra.mrb[0].mxu0 %v2856
        %v2922 = vpop.f32.mrb[0].mxu0
        %v2923 = vadd.f32 0.0, %v2922
        %v2924 = vpop.f32.mrb[0].mxu0
        %v2925 = vpop.f32.mrb[0].mxu0
        %v2926 = vadd.f32 0.0, %v2925
        %v2927 = vpop.f32.mrb[0].mxu0
        %2928 = vmatprep.mubr.bf16.mxu0 0
        %2929 = vmatmul.mubr.bf16.gmra.mrb[0].mxu0 %v2505
        %v2930 = vpop.f32.mrb[0].mxu0
        %v2931 = vadd.f32 0.0, %v2930
        %v2932 = vpop.f32.mrb[0].mxu0
        %v2933 = vpop.f32.mrb[0].mxu0
        %v2934 = vadd.f32 0.0, %v2933
        %v2935 = vpop.f32.mrb[0].mxu0
        %2936 = vmatprep.mubr.bf16.mxu0 0
        %2937 = vmatmul.mubr.bf16.gmra.mrb[0].mxu0 %v2508
        %v2938 = vpop.f32.mrb[0].mxu0
        %v2939 = vadd.f32 0.0, %v2938
        %v2940 = vpop.f32.mrb[0].mxu0
        %v2941 = vpop.f32.mrb[0].mxu0
        %v2942 = vadd.f32 0.0, %v2941
        %v2943 = vpop.f32.mrb[0].mxu0
        %2944 = vmatprep.mubr.bf16.mxu0 0
        %2945 = vmatmul.mubr.bf16.gmra.mrb[0].mxu0 %v2511
        %v2946 = vpop.f32.mrb[0].mxu0
        %v2947 = vadd.f32 0.0, %v2946
        %v2948 = vpop.f32.mrb[0].mxu0
        %v2949 = vpop.f32.mrb[0].mxu0
        %v2950 = vadd.f32 0.0, %v2949
        %v2951 = vpop.f32.mrb[0].mxu0
        %2952 = vmatprep.mubr.bf16.mxu0 0
        %2953 = vmatmul.mubr.bf16.gmra.mrb[0].mxu0 %v2859
        %v2954 = vpop.f32.mrb[0].mxu0
        %v2955 = vadd.f32 0.0, %v2954
        %v2956 = vpop.f32.mrb[0].mxu0
        %v2957 = vpop.f32.mrb[0].mxu0
        %v2958 = vadd.f32 0.0, %v2957
        %v2959 = vpop.f32.mrb[0].mxu0
        %2960 = vdwg.mxu0
        %v2961 = vadd.f32 %v2827, %v2899
        %v2962 = vadd.f32 %v2828, %v2902
        %v2963 = vadd.f32 %v2829, %v2907
        %v2964 = vadd.f32 %v2830, %v2910
        %v2965 = vadd.f32 %v2831, %v2915
        %v2966 = vadd.f32 %v2832, %v2918
        %v2967 = vadd.f32 %v2833, %v2923
        %v2968 = vadd.f32 %v2834, %v2926
        %v2969 = vadd.f32 %v2835, %v2931
        %v2970 = vadd.f32 %v2836, %v2934
        %v2971 = vadd.f32 %v2837, %v2939
        %v2972 = vadd.f32 %v2838, %v2942
        %v2973 = vadd.f32 %v2839, %v2947
        %v2974 = vadd.f32 %v2840, %v2950
        %v2975 = vadd.f32 %v2841, %v2955
        %v2976 = vadd.f32 %v2842, %v2958
        %v2978 = vshrl.u32 %v2082, 16
        %v2980 = vrot.slane %v2978, 4
        %v2981 = vshll.u32 %v2082, 16
        %v2983 = vrot.slane %v2981, 5
        %v2984 = vor.u32 %v2980, %v2983
        %v2985 = vrot.slane %v2984, 4
        %v2987 = vshll.u32 %v2083, 16
        %v2989 = vrot.slane %v2987, 5
        %v2990 = vsel %vm389, %v2985, %v2989
        %v2991 = vshrl.u32 %v2083, 16
        %v2993 = vrot.slane %v2991, 4
        %v2994 = vor.u32 %v2993, %v2989
        %v2995 = vrot.slane %v2994, 4
        %v2997 = vshll.u32 %v2084, 16
        %v2999 = vrot.slane %v2997, 5
        %v3000 = vsel %vm389, %v2995, %v2999
        %v3002 = vshrl.u32 %v2100, 16
        %v3004 = vrot.slane %v3002, 4
        %v3005 = vshll.u32 %v2100, 16
        %v3007 = vrot.slane %v3005, 5
        %v3008 = vor.u32 %v3004, %v3007
        %v3009 = vrot.slane %v3008, 4
        %v3011 = vshll.u32 %v2101, 16
        %v3013 = vrot.slane %v3011, 5
        %v3014 = vsel %vm389, %v3009, %v3013
        %v3015 = vshrl.u32 %v2101, 16
        %v3017 = vrot.slane %v3015, 4
        %v3018 = vor.u32 %v3017, %v3013
        %v3019 = vrot.slane %v3018, 4
        %v3021 = vshll.u32 %v2102, 16
        %v3023 = vrot.slane %v3021, 5
        %v3024 = vsel %vm389, %v3019, %v3023
        %s3025 = scalar_lea.vmem %s2, 16
        %v3026 = vld [vmem:[%s3025] sm:$0xf]
        %v3027 = vunpack.c.l.b16 %v2990
        %v3028 = vunpack.c.l.b16 %v3000
        %v3029 = vunpack.c.l.b16 %v3014
        %v3030 = vunpack.c.l.b16 %v3024
        %v3031 = vpack.c.b16 %v3028, %v3027
        %v3032 = vpack.c.b16 %v3030, %v3029
        %v3034 = vsel %vm608, %v3031, 0
        %v3037 = vsel %vm608, %v3032, 0
        %v3040 = vsel %vm633, %v3026, 0
        %3042 = vmatprep.subr.bf16.mxu0 0
        %3043 = vmatpush1.bf16.msra.mxu0 %v3040
        %3044 = vmatprep.subr.bf16.mxu0 0
        %3045 = vmatpush1.bf16.msra.mxu0 0
        %3046 = vmatprep.subr.bf16.mxu0 0
        %3047 = vmatpush1.bf16.msra.mxu0 0
        %3048 = vmatprep.subr.bf16.mxu0 0
        %3049 = vmatpush1.bf16.msra.mxu0 0
        %3050 = vmatprep.subr.bf16.mxu0 0
        %3051 = vmatpush1.bf16.msra.mxu0 0
        %3052 = vmatprep.subr.bf16.mxu0 0
        %3053 = vmatpush1.bf16.msra.mxu0 0
        %3054 = vmatprep.subr.bf16.mxu0 0
        %3055 = vmatpush1.bf16.msra.mxu0 0
        %3056 = vmatprep.subr.bf16.mxu0 0
        %3057 = vmatpush1.bf16.msra.mxu0 0
        %3058 = vmatprep.subr.bf16.mxu0 0
        %3059 = vmatpush1.bf16.msra.mxu0 0
        %3060 = vmatprep.subr.bf16.mxu0 0
        %3061 = vmatpush1.bf16.msra.mxu0 0
        %3062 = vmatprep.subr.bf16.mxu0 0
        %3063 = vmatpush1.bf16.msra.mxu0 0
        %3064 = vmatprep.subr.bf16.mxu0 0
        %3065 = vmatpush1.bf16.msra.mxu0 0
        %3066 = vmatprep.subr.bf16.mxu0 0
        %3067 = vmatpush1.bf16.msra.mxu0 0
        %3068 = vmatprep.subr.bf16.mxu0 0
        %3069 = vmatpush1.bf16.msra.mxu0 0
        %3070 = vmatprep.subr.bf16.mxu0 0
        %3071 = vmatpush1.bf16.msra.mxu0 0
        %3072 = vmatprep.subr.bf16.mxu0 0
        %3073 = vmatpush1.bf16.msra.mxu0 0
        %3074 = vmatprep.mubr.bf16.mxu0 0
        %3075 = vmatmul.mubr.bf16.gmra.mrb[0].mxu0 %v2329
        %v3076 = vpop.f32.mrb[0].mxu0
        %v3077 = vadd.f32 0.0, %v3076
        %v3078 = vpop.f32.mrb[0].mxu0
        %v3079 = vpop.f32.mrb[0].mxu0
        %v3080 = vadd.f32 0.0, %v3079
        %v3081 = vpop.f32.mrb[0].mxu0
        %3082 = vmatprep.mubr.bf16.mxu0 0
        %3083 = vmatmul.mubr.bf16.gmra.mrb[0].mxu0 %v2332
        %v3084 = vpop.f32.mrb[0].mxu0
        %v3085 = vadd.f32 0.0, %v3084
        %v3086 = vpop.f32.mrb[0].mxu0
        %v3087 = vpop.f32.mrb[0].mxu0
        %v3088 = vadd.f32 0.0, %v3087
        %v3089 = vpop.f32.mrb[0].mxu0
        %3090 = vmatprep.mubr.bf16.mxu0 0
        %3091 = vmatmul.mubr.bf16.gmra.mrb[0].mxu0 %v2335
        %v3092 = vpop.f32.mrb[0].mxu0
        %v3093 = vadd.f32 0.0, %v3092
        %v3094 = vpop.f32.mrb[0].mxu0
        %v3095 = vpop.f32.mrb[0].mxu0
        %v3096 = vadd.f32 0.0, %v3095
        %v3097 = vpop.f32.mrb[0].mxu0
        %3098 = vmatprep.mubr.bf16.mxu0 0
        %3099 = vmatmul.mubr.bf16.gmra.mrb[0].mxu0 %v3034
        %v3100 = vpop.f32.mrb[0].mxu0
        %v3101 = vadd.f32 0.0, %v3100
        %v3102 = vpop.f32.mrb[0].mxu0
        %v3103 = vpop.f32.mrb[0].mxu0
        %v3104 = vadd.f32 0.0, %v3103
        %v3105 = vpop.f32.mrb[0].mxu0
        %3106 = vmatprep.mubr.bf16.mxu0 0
        %3107 = vmatmul.mubr.bf16.gmra.mrb[0].mxu0 %v2341
        %v3108 = vpop.f32.mrb[0].mxu0
        %v3109 = vadd.f32 0.0, %v3108
        %v3110 = vpop.f32.mrb[0].mxu0
        %v3111 = vpop.f32.mrb[0].mxu0
        %v3112 = vadd.f32 0.0, %v3111
        %v3113 = vpop.f32.mrb[0].mxu0
        %3114 = vmatprep.mubr.bf16.mxu0 0
        %3115 = vmatmul.mubr.bf16.gmra.mrb[0].mxu0 %v2344
        %v3116 = vpop.f32.mrb[0].mxu0
        %v3117 = vadd.f32 0.0, %v3116
        %v3118 = vpop.f32.mrb[0].mxu0
        %v3119 = vpop.f32.mrb[0].mxu0
        %v3120 = vadd.f32 0.0, %v3119
        %v3121 = vpop.f32.mrb[0].mxu0
        %3122 = vmatprep.mubr.bf16.mxu0 0
        %3123 = vmatmul.mubr.bf16.gmra.mrb[0].mxu0 %v2347
        %v3124 = vpop.f32.mrb[0].mxu0
        %v3125 = vadd.f32 0.0, %v3124
        %v3126 = vpop.f32.mrb[0].mxu0
        %v3127 = vpop.f32.mrb[0].mxu0
        %v3128 = vadd.f32 0.0, %v3127
        %v3129 = vpop.f32.mrb[0].mxu0
        %3130 = vmatprep.mubr.bf16.mxu0 0
        %3131 = vmatmul.mubr.bf16.gmra.mrb[0].mxu0 %v3037
        %v3132 = vpop.f32.mrb[0].mxu0
        %v3133 = vadd.f32 0.0, %v3132
        %v3134 = vpop.f32.mrb[0].mxu0
        %v3135 = vpop.f32.mrb[0].mxu0
        %v3136 = vadd.f32 0.0, %v3135
        %v3137 = vpop.f32.mrb[0].mxu0
        %3138 = vdwg.mxu0
        %v3139 = vadd.f32 %v2961, %v3077
        %v3140 = vadd.f32 %v2962, %v3080
        %v3141 = vadd.f32 %v2963, %v3085
        %v3142 = vadd.f32 %v2964, %v3088
        %v3143 = vadd.f32 %v2965, %v3093
        %v3144 = vadd.f32 %v2966, %v3096
        %v3145 = vadd.f32 %v2967, %v3101
        %v3146 = vadd.f32 %v2968, %v3104
        %v3147 = vadd.f32 %v2969, %v3109
        %v3148 = vadd.f32 %v2970, %v3112
        %v3149 = vadd.f32 %v2971, %v3117
        %v3150 = vadd.f32 %v2972, %v3120
        %v3151 = vadd.f32 %v2973, %v3125
        %v3152 = vadd.f32 %v2974, %v3128
        %v3153 = vadd.f32 %v2975, %v3133
        %v3154 = vadd.f32 %v2976, %v3136
        %v3157 = vrot.slane %v2082, 5
        %v3158 = vrot.slane %v3157, 4
        %v3159 = vrot.slane %v2083, 5
        %v3160 = vsel %vm908, %v3158, %v3159
        %v3161 = vrot.slane %v3159, 4
        %v3162 = vrot.slane %v2084, 5
        %v3163 = vsel %vm908, %v3161, %v3162
        %v3164 = vrot.slane %v2100, 5
        %v3165 = vrot.slane %v3164, 4
        %v3166 = vrot.slane %v2101, 5
        %v3167 = vsel %vm908, %v3165, %v3166
        %v3168 = vrot.slane %v3166, 4
        %v3169 = vrot.slane %v2102, 5
        %v3170 = vsel %vm908, %v3168, %v3169
        %s3171 = scalar_lea.vmem %s2, 20
        %v3172 = vld [vmem:[%s3171] sm:$0xf]
        %v3173 = vunpack.c.l.b16 %v3160
        %v3174 = vunpack.c.l.b16 %v3163
        %v3175 = vunpack.c.l.b16 %v3167
        %v3176 = vunpack.c.l.b16 %v3170
        %v3177 = vpack.c.b16 %v3174, %v3173
        %v3178 = vpack.c.b16 %v3176, %v3175
        %v3180 = vsel %vm608, %v3177, 0
        %v3183 = vsel %vm608, %v3178, 0
        %v3186 = vsel %vm633, %v3172, 0
        %3188 = vmatprep.subr.bf16.mxu0 0
        %3189 = vmatpush1.bf16.msra.mxu0 %v3186
        %3190 = vmatprep.subr.bf16.mxu0 0
        %3191 = vmatpush1.bf16.msra.mxu0 0
        %3192 = vmatprep.subr.bf16.mxu0 0
        %3193 = vmatpush1.bf16.msra.mxu0 0
        %3194 = vmatprep.subr.bf16.mxu0 0
        %3195 = vmatpush1.bf16.msra.mxu0 0
        %3196 = vmatprep.subr.bf16.mxu0 0
        %3197 = vmatpush1.bf16.msra.mxu0 0
        %3198 = vmatprep.subr.bf16.mxu0 0
        %3199 = vmatpush1.bf16.msra.mxu0 0
        %3200 = vmatprep.subr.bf16.mxu0 0
        %3201 = vmatpush1.bf16.msra.mxu0 0
        %3202 = vmatprep.subr.bf16.mxu0 0
        %3203 = vmatpush1.bf16.msra.mxu0 0
        %3204 = vmatprep.subr.bf16.mxu0 0
        %3205 = vmatpush1.bf16.msra.mxu0 0
        %3206 = vmatprep.subr.bf16.mxu0 0
        %3207 = vmatpush1.bf16.msra.mxu0 0
        %3208 = vmatprep.subr.bf16.mxu0 0
        %3209 = vmatpush1.bf16.msra.mxu0 0
        %3210 = vmatprep.subr.bf16.mxu0 0
        %3211 = vmatpush1.bf16.msra.mxu0 0
        %3212 = vmatprep.subr.bf16.mxu0 0
        %3213 = vmatpush1.bf16.msra.mxu0 0
        %3214 = vmatprep.subr.bf16.mxu0 0
        %3215 = vmatpush1.bf16.msra.mxu0 0
        %3216 = vmatprep.subr.bf16.mxu0 0
        %3217 = vmatpush1.bf16.msra.mxu0 0
        %3218 = vmatprep.subr.bf16.mxu0 0
        %3219 = vmatpush1.bf16.msra.mxu0 0
        %3220 = vmatprep.mubr.bf16.mxu0 0
        %3221 = vmatmul.mubr.bf16.gmra.mrb[0].mxu0 %v2707
        %v3222 = vpop.f32.mrb[0].mxu0
        %v3223 = vadd.f32 0.0, %v3222
        %v3224 = vpop.f32.mrb[0].mxu0
        %v3225 = vpop.f32.mrb[0].mxu0
        %v3226 = vadd.f32 0.0, %v3225
        %v3227 = vpop.f32.mrb[0].mxu0
        %3228 = vmatprep.mubr.bf16.mxu0 0
        %3229 = vmatmul.mubr.bf16.gmra.mrb[0].mxu0 %v2710
        %v3230 = vpop.f32.mrb[0].mxu0
        %v3231 = vadd.f32 0.0, %v3230
        %v3232 = vpop.f32.mrb[0].mxu0
        %v3233 = vpop.f32.mrb[0].mxu0
        %v3234 = vadd.f32 0.0, %v3233
        %v3235 = vpop.f32.mrb[0].mxu0
        %3236 = vmatprep.mubr.bf16.mxu0 0
        %3237 = vmatmul.mubr.bf16.gmra.mrb[0].mxu0 %v2713
        %v3238 = vpop.f32.mrb[0].mxu0
        %v3239 = vadd.f32 0.0, %v3238
        %v3240 = vpop.f32.mrb[0].mxu0
        %v3241 = vpop.f32.mrb[0].mxu0
        %v3242 = vadd.f32 0.0, %v3241
        %v3243 = vpop.f32.mrb[0].mxu0
        %3244 = vmatprep.mubr.bf16.mxu0 0
        %3245 = vmatmul.mubr.bf16.gmra.mrb[0].mxu0 %v3180
        %v3246 = vpop.f32.mrb[0].mxu0
        %v3247 = vadd.f32 0.0, %v3246
        %v3248 = vpop.f32.mrb[0].mxu0
        %v3249 = vpop.f32.mrb[0].mxu0
        %v3250 = vadd.f32 0.0, %v3249
        %v3251 = vpop.f32.mrb[0].mxu0
        %3252 = vmatprep.mubr.bf16.mxu0 0
        %3253 = vmatmul.mubr.bf16.gmra.mrb[0].mxu0 %v2719
        %v3254 = vpop.f32.mrb[0].mxu0
        %v3255 = vadd.f32 0.0, %v3254
        %v3256 = vpop.f32.mrb[0].mxu0
        %v3257 = vpop.f32.mrb[0].mxu0
        %v3258 = vadd.f32 0.0, %v3257
        %v3259 = vpop.f32.mrb[0].mxu0
        %3260 = vmatprep.mubr.bf16.mxu0 0
        %3261 = vmatmul.mubr.bf16.gmra.mrb[0].mxu0 %v2722
        %v3262 = vpop.f32.mrb[0].mxu0
        %v3263 = vadd.f32 0.0, %v3262
        %v3264 = vpop.f32.mrb[0].mxu0
        %v3265 = vpop.f32.mrb[0].mxu0
        %v3266 = vadd.f32 0.0, %v3265
        %v3267 = vpop.f32.mrb[0].mxu0
        %3268 = vmatprep.mubr.bf16.mxu0 0
        %3269 = vmatmul.mubr.bf16.gmra.mrb[0].mxu0 %v2725
        %v3270 = vpop.f32.mrb[0].mxu0
        %v3271 = vadd.f32 0.0, %v3270
        %v3272 = vpop.f32.mrb[0].mxu0
        %v3273 = vpop.f32.mrb[0].mxu0
        %v3274 = vadd.f32 0.0, %v3273
        %v3275 = vpop.f32.mrb[0].mxu0
        %3276 = vmatprep.mubr.bf16.mxu0 0
        %3277 = vmatmul.mubr.bf16.gmra.mrb[0].mxu0 %v3183
        %v3278 = vpop.f32.mrb[0].mxu0
        %v3279 = vadd.f32 0.0, %v3278
        %v3280 = vpop.f32.mrb[0].mxu0
        %v3281 = vpop.f32.mrb[0].mxu0
        %v3282 = vadd.f32 0.0, %v3281
        %v3283 = vpop.f32.mrb[0].mxu0
        %3284 = vdwg.mxu0
        %v3285 = vadd.f32 %v3139, %v3223
        %v3286 = vadd.f32 %v3140, %v3226
        %v3287 = vadd.f32 %v3141, %v3231
        %v3288 = vadd.f32 %v3142, %v3234
        %v3289 = vadd.f32 %v3143, %v3239
        %v3290 = vadd.f32 %v3144, %v3242
        %v3291 = vadd.f32 %v3145, %v3247
        %v3292 = vadd.f32 %v3146, %v3250
        %v3293 = vadd.f32 %v3147, %v3255
        %v3294 = vadd.f32 %v3148, %v3258
        %v3295 = vadd.f32 %v3149, %v3263
        %v3296 = vadd.f32 %v3150, %v3266
        %v3297 = vadd.f32 %v3151, %v3271
        %v3298 = vadd.f32 %v3152, %v3274
        %v3299 = vadd.f32 %v3153, %v3279
        %v3300 = vadd.f32 %v3154, %v3282
        %s3301 = scalar_lea.vmem %s2, 24
        %v3302 = vld [vmem:[%s3301] sm:$0xf]
        %v3307 = vunpack.c.l.b16 %v2085
        %v3308 = vunpack.c.l.b16 %v2086
        %v3309 = vunpack.c.l.b16 %v2103
        %v3310 = vunpack.c.l.b16 %v2104
        %v3311 = vpack.c.b16 %v3308, %v3307
        %v3312 = vpack.c.b16 %v3310, %v3309
        %v3314 = vsel %vm608, %v3311, 0
        %v3317 = vsel %vm608, %v3312, 0
        %v3320 = vsel %vm633, %v3302, 0
        %3322 = vmatprep.subr.bf16.mxu0 0
        %3323 = vmatpush1.bf16.msra.mxu0 %v3320
        %3324 = vmatprep.subr.bf16.mxu0 0
        %3325 = vmatpush1.bf16.msra.mxu0 0
        %3326 = vmatprep.subr.bf16.mxu0 0
        %3327 = vmatpush1.bf16.msra.mxu0 0
        %3328 = vmatprep.subr.bf16.mxu0 0
        %3329 = vmatpush1.bf16.msra.mxu0 0
        %3330 = vmatprep.subr.bf16.mxu0 0
        %3331 = vmatpush1.bf16.msra.mxu0 0
        %3332 = vmatprep.subr.bf16.mxu0 0
        %3333 = vmatpush1.bf16.msra.mxu0 0
        %3334 = vmatprep.subr.bf16.mxu0 0
        %3335 = vmatpush1.bf16.msra.mxu0 0
        %3336 = vmatprep.subr.bf16.mxu0 0
        %3337 = vmatpush1.bf16.msra.mxu0 0
        %3338 = vmatprep.subr.bf16.mxu0 0
        %3339 = vmatpush1.bf16.msra.mxu0 0
        %3340 = vmatprep.subr.bf16.mxu0 0
        %3341 = vmatpush1.bf16.msra.mxu0 0
        %3342 = vmatprep.subr.bf16.mxu0 0
        %3343 = vmatpush1.bf16.msra.mxu0 0
        %3344 = vmatprep.subr.bf16.mxu0 0
        %3345 = vmatpush1.bf16.msra.mxu0 0
        %3346 = vmatprep.subr.bf16.mxu0 0
        %3347 = vmatpush1.bf16.msra.mxu0 0
        %3348 = vmatprep.subr.bf16.mxu0 0
        %3349 = vmatpush1.bf16.msra.mxu0 0
        %3350 = vmatprep.subr.bf16.mxu0 0
        %3351 = vmatpush1.bf16.msra.mxu0 0
        %3352 = vmatprep.subr.bf16.mxu0 0
        %3353 = vmatpush1.bf16.msra.mxu0 0
        %3354 = vmatprep.mubr.bf16.mxu0 0
        %3355 = vmatmul.mubr.bf16.gmra.mrb[0].mxu0 %v2496
        %v3356 = vpop.f32.mrb[0].mxu0
        %v3357 = vadd.f32 0.0, %v3356
        %v3358 = vpop.f32.mrb[0].mxu0
        %v3359 = vpop.f32.mrb[0].mxu0
        %v3360 = vadd.f32 0.0, %v3359
        %v3361 = vpop.f32.mrb[0].mxu0
        %3362 = vmatprep.mubr.bf16.mxu0 0
        %3363 = vmatmul.mubr.bf16.gmra.mrb[0].mxu0 %v2499
        %v3364 = vpop.f32.mrb[0].mxu0
        %v3365 = vadd.f32 0.0, %v3364
        %v3366 = vpop.f32.mrb[0].mxu0
        %v3367 = vpop.f32.mrb[0].mxu0
        %v3368 = vadd.f32 0.0, %v3367
        %v3369 = vpop.f32.mrb[0].mxu0
        %3370 = vmatprep.mubr.bf16.mxu0 0
        %3371 = vmatmul.mubr.bf16.gmra.mrb[0].mxu0 %v2856
        %v3372 = vpop.f32.mrb[0].mxu0
        %v3373 = vadd.f32 0.0, %v3372
        %v3374 = vpop.f32.mrb[0].mxu0
        %v3375 = vpop.f32.mrb[0].mxu0
        %v3376 = vadd.f32 0.0, %v3375
        %v3377 = vpop.f32.mrb[0].mxu0
        %3378 = vmatprep.mubr.bf16.mxu0 0
        %3379 = vmatmul.mubr.bf16.gmra.mrb[0].mxu0 %v3314
        %v3380 = vpop.f32.mrb[0].mxu0
        %v3381 = vadd.f32 0.0, %v3380
        %v3382 = vpop.f32.mrb[0].mxu0
        %v3383 = vpop.f32.mrb[0].mxu0
        %v3384 = vadd.f32 0.0, %v3383
        %v3385 = vpop.f32.mrb[0].mxu0
        %3386 = vmatprep.mubr.bf16.mxu0 0
        %3387 = vmatmul.mubr.bf16.gmra.mrb[0].mxu0 %v2508
        %v3388 = vpop.f32.mrb[0].mxu0
        %v3389 = vadd.f32 0.0, %v3388
        %v3390 = vpop.f32.mrb[0].mxu0
        %v3391 = vpop.f32.mrb[0].mxu0
        %v3392 = vadd.f32 0.0, %v3391
        %v3393 = vpop.f32.mrb[0].mxu0
        %3394 = vmatprep.mubr.bf16.mxu0 0
        %3395 = vmatmul.mubr.bf16.gmra.mrb[0].mxu0 %v2511
        %v3396 = vpop.f32.mrb[0].mxu0
        %v3397 = vadd.f32 0.0, %v3396
        %v3398 = vpop.f32.mrb[0].mxu0
        %v3399 = vpop.f32.mrb[0].mxu0
        %v3400 = vadd.f32 0.0, %v3399
        %v3401 = vpop.f32.mrb[0].mxu0
        %3402 = vmatprep.mubr.bf16.mxu0 0
        %3403 = vmatmul.mubr.bf16.gmra.mrb[0].mxu0 %v2859
        %v3404 = vpop.f32.mrb[0].mxu0
        %v3405 = vadd.f32 0.0, %v3404
        %v3406 = vpop.f32.mrb[0].mxu0
        %v3407 = vpop.f32.mrb[0].mxu0
        %v3408 = vadd.f32 0.0, %v3407
        %v3409 = vpop.f32.mrb[0].mxu0
        %3410 = vmatprep.mubr.bf16.mxu0 0
        %3411 = vmatmul.mubr.bf16.gmra.mrb[0].mxu0 %v3317
        %v3412 = vpop.f32.mrb[0].mxu0
        %v3413 = vadd.f32 0.0, %v3412
        %v3414 = vpop.f32.mrb[0].mxu0
        %v3415 = vpop.f32.mrb[0].mxu0
        %v3416 = vadd.f32 0.0, %v3415
        %v3417 = vpop.f32.mrb[0].mxu0
        %3418 = vdwg.mxu0
        %v3419 = vadd.f32 %v3285, %v3357
        %v3420 = vadd.f32 %v3286, %v3360
        %v3421 = vadd.f32 %v3287, %v3365
        %v3422 = vadd.f32 %v3288, %v3368
        %v3423 = vadd.f32 %v3289, %v3373
        %v3424 = vadd.f32 %v3290, %v3376
        %v3425 = vadd.f32 %v3291, %v3381
        %v3426 = vadd.f32 %v3292, %v3384
        %v3427 = vadd.f32 %v3293, %v3389
        %v3428 = vadd.f32 %v3294, %v3392
        %v3429 = vadd.f32 %v3295, %v3397
        %v3430 = vadd.f32 %v3296, %v3400
        %v3431 = vadd.f32 %v3297, %v3405
        %v3432 = vadd.f32 %v3298, %v3408
        %v3433 = vadd.f32 %v3299, %v3413
        %v3434 = vadd.f32 %v3300, %v3416
        %v3436 = vshrl.u32 %v2085, 16
        %v3438 = vrot.slane %v3436, 4
        %v3439 = vshll.u32 %v2085, 16
        %v3441 = vrot.slane %v3439, 5
        %v3442 = vor.u32 %v3438, %v3441
        %v3443 = vrot.slane %v3442, 4
        %v3445 = vshll.u32 %v2086, 16
        %v3447 = vrot.slane %v3445, 5
        %v3448 = vsel %vm389, %v3443, %v3447
        %v3449 = vshrl.u32 %v2086, 16
        %v3451 = vrot.slane %v3449, 4
        %v3452 = vor.u32 %v3451, %v3447
        %v3453 = vrot.slane %v3452, 4
        %v3455 = vshll.u32 %v2087, 16
        %v3457 = vrot.slane %v3455, 5
        %v3458 = vsel %vm389, %v3453, %v3457
        %v3460 = vshrl.u32 %v2103, 16
        %v3462 = vrot.slane %v3460, 4
        %v3463 = vshll.u32 %v2103, 16
        %v3465 = vrot.slane %v3463, 5
        %v3466 = vor.u32 %v3462, %v3465
        %v3467 = vrot.slane %v3466, 4
        %v3469 = vshll.u32 %v2104, 16
        %v3471 = vrot.slane %v3469, 5
        %v3472 = vsel %vm389, %v3467, %v3471
        %v3473 = vshrl.u32 %v2104, 16
        %v3475 = vrot.slane %v3473, 4
        %v3476 = vor.u32 %v3475, %v3471
        %v3477 = vrot.slane %v3476, 4
        %v3479 = vshll.u32 %v2105, 16
        %v3481 = vrot.slane %v3479, 5
        %v3482 = vsel %vm389, %v3477, %v3481
        %s3483 = scalar_lea.vmem %s2, 28
        %v3484 = vld [vmem:[%s3483] sm:$0xf]
        %v3485 = vunpack.c.l.b16 %v3448
        %v3486 = vunpack.c.l.b16 %v3458
        %v3487 = vunpack.c.l.b16 %v3472
        %v3488 = vunpack.c.l.b16 %v3482
        %v3489 = vpack.c.b16 %v3486, %v3485
        %v3490 = vpack.c.b16 %v3488, %v3487
        %v3492 = vsel %vm608, %v3489, 0
        %v3495 = vsel %vm608, %v3490, 0
        %v3498 = vsel %vm633, %v3484, 0
        %3500 = vmatprep.subr.bf16.mxu0 0
        %3501 = vmatpush1.bf16.msra.mxu0 %v3498
        %3502 = vmatprep.subr.bf16.mxu0 0
        %3503 = vmatpush1.bf16.msra.mxu0 0
        %3504 = vmatprep.subr.bf16.mxu0 0
        %3505 = vmatpush1.bf16.msra.mxu0 0
        %3506 = vmatprep.subr.bf16.mxu0 0
        %3507 = vmatpush1.bf16.msra.mxu0 0
        %3508 = vmatprep.subr.bf16.mxu0 0
        %3509 = vmatpush1.bf16.msra.mxu0 0
        %3510 = vmatprep.subr.bf16.mxu0 0
        %3511 = vmatpush1.bf16.msra.mxu0 0
        %3512 = vmatprep.subr.bf16.mxu0 0
        %3513 = vmatpush1.bf16.msra.mxu0 0
        %3514 = vmatprep.subr.bf16.mxu0 0
        %3515 = vmatpush1.bf16.msra.mxu0 0
        %3516 = vmatprep.subr.bf16.mxu0 0
        %3517 = vmatpush1.bf16.msra.mxu0 0
        %3518 = vmatprep.subr.bf16.mxu0 0
        %3519 = vmatpush1.bf16.msra.mxu0 0
        %3520 = vmatprep.subr.bf16.mxu0 0
        %3521 = vmatpush1.bf16.msra.mxu0 0
        %3522 = vmatprep.subr.bf16.mxu0 0
        %3523 = vmatpush1.bf16.msra.mxu0 0
        %3524 = vmatprep.subr.bf16.mxu0 0
        %3525 = vmatpush1.bf16.msra.mxu0 0
        %3526 = vmatprep.subr.bf16.mxu0 0
        %3527 = vmatpush1.bf16.msra.mxu0 0
        %3528 = vmatprep.subr.bf16.mxu0 0
        %3529 = vmatpush1.bf16.msra.mxu0 0
        %3530 = vmatprep.subr.bf16.mxu0 0
        %3531 = vmatpush1.bf16.msra.mxu0 0
        %3532 = vmatprep.mubr.bf16.mxu0 0
        %3533 = vmatmul.mubr.bf16.gmra.mrb[0].mxu0 %v2332
        %v3534 = vpop.f32.mrb[0].mxu0
        %v3535 = vadd.f32 0.0, %v3534
        %v3536 = vpop.f32.mrb[0].mxu0
        %v3537 = vpop.f32.mrb[0].mxu0
        %v3538 = vadd.f32 0.0, %v3537
        %v3539 = vpop.f32.mrb[0].mxu0
        %3540 = vmatprep.mubr.bf16.mxu0 0
        %3541 = vmatmul.mubr.bf16.gmra.mrb[0].mxu0 %v2335
        %v3542 = vpop.f32.mrb[0].mxu0
        %v3543 = vadd.f32 0.0, %v3542
        %v3544 = vpop.f32.mrb[0].mxu0
        %v3545 = vpop.f32.mrb[0].mxu0
        %v3546 = vadd.f32 0.0, %v3545
        %v3547 = vpop.f32.mrb[0].mxu0
        %3548 = vmatprep.mubr.bf16.mxu0 0
        %3549 = vmatmul.mubr.bf16.gmra.mrb[0].mxu0 %v3034
        %v3550 = vpop.f32.mrb[0].mxu0
        %v3551 = vadd.f32 0.0, %v3550
        %v3552 = vpop.f32.mrb[0].mxu0
        %v3553 = vpop.f32.mrb[0].mxu0
        %v3554 = vadd.f32 0.0, %v3553
        %v3555 = vpop.f32.mrb[0].mxu0
        %3556 = vmatprep.mubr.bf16.mxu0 0
        %3557 = vmatmul.mubr.bf16.gmra.mrb[0].mxu0 %v3492
        %v3558 = vpop.f32.mrb[0].mxu0
        %v3559 = vadd.f32 0.0, %v3558
        %v3560 = vpop.f32.mrb[0].mxu0
        %v3561 = vpop.f32.mrb[0].mxu0
        %v3562 = vadd.f32 0.0, %v3561
        %v3563 = vpop.f32.mrb[0].mxu0
        %3564 = vmatprep.mubr.bf16.mxu0 0
        %3565 = vmatmul.mubr.bf16.gmra.mrb[0].mxu0 %v2344
        %v3566 = vpop.f32.mrb[0].mxu0
        %v3567 = vadd.f32 0.0, %v3566
        %v3568 = vpop.f32.mrb[0].mxu0
        %v3569 = vpop.f32.mrb[0].mxu0
        %v3570 = vadd.f32 0.0, %v3569
        %v3571 = vpop.f32.mrb[0].mxu0
        %3572 = vmatprep.mubr.bf16.mxu0 0
        %3573 = vmatmul.mubr.bf16.gmra.mrb[0].mxu0 %v2347
        %v3574 = vpop.f32.mrb[0].mxu0
        %v3575 = vadd.f32 0.0, %v3574
        %v3576 = vpop.f32.mrb[0].mxu0
        %v3577 = vpop.f32.mrb[0].mxu0
        %v3578 = vadd.f32 0.0, %v3577
        %v3579 = vpop.f32.mrb[0].mxu0
        %3580 = vmatprep.mubr.bf16.mxu0 0
        %3581 = vmatmul.mubr.bf16.gmra.mrb[0].mxu0 %v3037
        %v3582 = vpop.f32.mrb[0].mxu0
        %v3583 = vadd.f32 0.0, %v3582
        %v3584 = vpop.f32.mrb[0].mxu0
        %v3585 = vpop.f32.mrb[0].mxu0
        %v3586 = vadd.f32 0.0, %v3585
        %v3587 = vpop.f32.mrb[0].mxu0
        %3588 = vmatprep.mubr.bf16.mxu0 0
        %3589 = vmatmul.mubr.bf16.gmra.mrb[0].mxu0 %v3495
        %v3590 = vpop.f32.mrb[0].mxu0
        %v3591 = vadd.f32 0.0, %v3590
        %v3592 = vpop.f32.mrb[0].mxu0
        %v3593 = vpop.f32.mrb[0].mxu0
        %v3594 = vadd.f32 0.0, %v3593
        %v3595 = vpop.f32.mrb[0].mxu0
        %3596 = vdwg.mxu0
        %v3597 = vadd.f32 %v3419, %v3535
        %v3598 = vadd.f32 %v3420, %v3538
        %v3599 = vadd.f32 %v3421, %v3543
        %v3600 = vadd.f32 %v3422, %v3546
        %v3601 = vadd.f32 %v3423, %v3551
        %v3602 = vadd.f32 %v3424, %v3554
        %v3603 = vadd.f32 %v3425, %v3559
        %v3604 = vadd.f32 %v3426, %v3562
        %v3605 = vadd.f32 %v3427, %v3567
        %v3606 = vadd.f32 %v3428, %v3570
        %v3607 = vadd.f32 %v3429, %v3575
        %v3608 = vadd.f32 %v3430, %v3578
        %v3609 = vadd.f32 %v3431, %v3583
        %v3610 = vadd.f32 %v3432, %v3586
        %v3611 = vadd.f32 %v3433, %v3591
        %v3612 = vadd.f32 %v3434, %v3594
        %v3615 = vrot.slane %v2085, 5
        %v3616 = vrot.slane %v3615, 4
        %v3617 = vrot.slane %v2086, 5
        %v3618 = vsel %vm908, %v3616, %v3617
        %v3619 = vrot.slane %v3617, 4
        %v3620 = vrot.slane %v2087, 5
        %v3621 = vsel %vm908, %v3619, %v3620
        %v3622 = vrot.slane %v2103, 5
        %v3623 = vrot.slane %v3622, 4
        %v3624 = vrot.slane %v2104, 5
        %v3625 = vsel %vm908, %v3623, %v3624
        %v3626 = vrot.slane %v3624, 4
        %v3627 = vrot.slane %v2105, 5
        %v3628 = vsel %vm908, %v3626, %v3627
        %s3629 = scalar_lea.vmem %s2, 32
        %v3630 = vld [vmem:[%s3629] sm:$0xf]
        %v3631 = vunpack.c.l.b16 %v3618
        %v3632 = vunpack.c.l.b16 %v3621
        %v3633 = vunpack.c.l.b16 %v3625
        %v3634 = vunpack.c.l.b16 %v3628
        %v3635 = vpack.c.b16 %v3632, %v3631
        %v3636 = vpack.c.b16 %v3634, %v3633
        %v3638 = vsel %vm608, %v3635, 0
        %v3641 = vsel %vm608, %v3636, 0
        %v3644 = vsel %vm633, %v3630, 0
        %3646 = vmatprep.subr.bf16.mxu0 0
        %3647 = vmatpush1.bf16.msra.mxu0 %v3644
        %3648 = vmatprep.subr.bf16.mxu0 0
        %3649 = vmatpush1.bf16.msra.mxu0 0
        %3650 = vmatprep.subr.bf16.mxu0 0
        %3651 = vmatpush1.bf16.msra.mxu0 0
        %3652 = vmatprep.subr.bf16.mxu0 0
        %3653 = vmatpush1.bf16.msra.mxu0 0
        %3654 = vmatprep.subr.bf16.mxu0 0
        %3655 = vmatpush1.bf16.msra.mxu0 0
        %3656 = vmatprep.subr.bf16.mxu0 0
        %3657 = vmatpush1.bf16.msra.mxu0 0
        %3658 = vmatprep.subr.bf16.mxu0 0
        %3659 = vmatpush1.bf16.msra.mxu0 0
        %3660 = vmatprep.subr.bf16.mxu0 0
        %3661 = vmatpush1.bf16.msra.mxu0 0
        %3662 = vmatprep.subr.bf16.mxu0 0
        %3663 = vmatpush1.bf16.msra.mxu0 0
        %3664 = vmatprep.subr.bf16.mxu0 0
        %3665 = vmatpush1.bf16.msra.mxu0 0
        %3666 = vmatprep.subr.bf16.mxu0 0
        %3667 = vmatpush1.bf16.msra.mxu0 0
        %3668 = vmatprep.subr.bf16.mxu0 0
        %3669 = vmatpush1.bf16.msra.mxu0 0
        %3670 = vmatprep.subr.bf16.mxu0 0
        %3671 = vmatpush1.bf16.msra.mxu0 0
        %3672 = vmatprep.subr.bf16.mxu0 0
        %3673 = vmatpush1.bf16.msra.mxu0 0
        %3674 = vmatprep.subr.bf16.mxu0 0
        %3675 = vmatpush1.bf16.msra.mxu0 0
        %3676 = vmatprep.subr.bf16.mxu0 0
        %3677 = vmatpush1.bf16.msra.mxu0 0
        %3678 = vmatprep.mubr.bf16.mxu0 0
        %3679 = vmatmul.mubr.bf16.gmra.mrb[0].mxu0 %v2710
        %v3680 = vpop.f32.mrb[0].mxu0
        %v3681 = vadd.f32 0.0, %v3680
        %v3682 = vpop.f32.mrb[0].mxu0
        %v3683 = vpop.f32.mrb[0].mxu0
        %v3684 = vadd.f32 0.0, %v3683
        %v3685 = vpop.f32.mrb[0].mxu0
        %3686 = vmatprep.mubr.bf16.mxu0 0
        %3687 = vmatmul.mubr.bf16.gmra.mrb[0].mxu0 %v2713
        %v3688 = vpop.f32.mrb[0].mxu0
        %v3689 = vadd.f32 0.0, %v3688
        %v3690 = vpop.f32.mrb[0].mxu0
        %v3691 = vpop.f32.mrb[0].mxu0
        %v3692 = vadd.f32 0.0, %v3691
        %v3693 = vpop.f32.mrb[0].mxu0
        %3694 = vmatprep.mubr.bf16.mxu0 0
        %3695 = vmatmul.mubr.bf16.gmra.mrb[0].mxu0 %v3180
        %v3696 = vpop.f32.mrb[0].mxu0
        %v3697 = vadd.f32 0.0, %v3696
        %v3698 = vpop.f32.mrb[0].mxu0
        %v3699 = vpop.f32.mrb[0].mxu0
        %v3700 = vadd.f32 0.0, %v3699
        %v3701 = vpop.f32.mrb[0].mxu0
        %3702 = vmatprep.mubr.bf16.mxu0 0
        %3703 = vmatmul.mubr.bf16.gmra.mrb[0].mxu0 %v3638
        %v3704 = vpop.f32.mrb[0].mxu0
        %v3705 = vadd.f32 0.0, %v3704
        %v3706 = vpop.f32.mrb[0].mxu0
        %v3707 = vpop.f32.mrb[0].mxu0
        %v3708 = vadd.f32 0.0, %v3707
        %v3709 = vpop.f32.mrb[0].mxu0
        %3710 = vmatprep.mubr.bf16.mxu0 0
        %3711 = vmatmul.mubr.bf16.gmra.mrb[0].mxu0 %v2722
        %v3712 = vpop.f32.mrb[0].mxu0
        %v3713 = vadd.f32 0.0, %v3712
        %v3714 = vpop.f32.mrb[0].mxu0
        %v3715 = vpop.f32.mrb[0].mxu0
        %v3716 = vadd.f32 0.0, %v3715
        %v3717 = vpop.f32.mrb[0].mxu0
        %3718 = vmatprep.mubr.bf16.mxu0 0
        %3719 = vmatmul.mubr.bf16.gmra.mrb[0].mxu0 %v2725
        %v3720 = vpop.f32.mrb[0].mxu0
        %v3721 = vadd.f32 0.0, %v3720
        %v3722 = vpop.f32.mrb[0].mxu0
        %v3723 = vpop.f32.mrb[0].mxu0
        %v3724 = vadd.f32 0.0, %v3723
        %v3725 = vpop.f32.mrb[0].mxu0
        %3726 = vmatprep.mubr.bf16.mxu0 0
        %3727 = vmatmul.mubr.bf16.gmra.mrb[0].mxu0 %v3183
        %v3728 = vpop.f32.mrb[0].mxu0
        %v3729 = vadd.f32 0.0, %v3728
        %v3730 = vpop.f32.mrb[0].mxu0
        %v3731 = vpop.f32.mrb[0].mxu0
        %v3732 = vadd.f32 0.0, %v3731
        %v3733 = vpop.f32.mrb[0].mxu0
        %3734 = vmatprep.mubr.bf16.mxu0 0
        %3735 = vmatmul.mubr.bf16.gmra.mrb[0].mxu0 %v3641
        %v3736 = vpop.f32.mrb[0].mxu0
        %v3737 = vadd.f32 0.0, %v3736
        %v3738 = vpop.f32.mrb[0].mxu0
        %v3739 = vpop.f32.mrb[0].mxu0
        %v3740 = vadd.f32 0.0, %v3739
        %v3741 = vpop.f32.mrb[0].mxu0
        %3742 = vdwg.mxu0
        %v3743 = vadd.f32 %v3597, %v3681
        %v3744 = vadd.f32 %v3598, %v3684
        %v3745 = vadd.f32 %v3599, %v3689
        %v3746 = vadd.f32 %v3600, %v3692
        %v3747 = vadd.f32 %v3601, %v3697
        %v3748 = vadd.f32 %v3602, %v3700
        %v3749 = vadd.f32 %v3603, %v3705
        %v3750 = vadd.f32 %v3604, %v3708
        %v3751 = vadd.f32 %v3605, %v3713
        %v3752 = vadd.f32 %v3606, %v3716
        %v3753 = vadd.f32 %v3607, %v3721
        %v3754 = vadd.f32 %v3608, %v3724
        %v3755 = vadd.f32 %v3609, %v3729
        %v3756 = vadd.f32 %v3610, %v3732
        %v3757 = vadd.f32 %v3611, %v3737
        %v3758 = vadd.f32 %v3612, %v3740
        %v3759 = vld [vmem:[%s4] sm:$0x1]
        %v3761 = vlaneseq
        %v3762 = vshrl.u32 %v3761, 7
        %v3763 = vsub.s32 0, %v3762
        %v3764 = vrot.slane %v3759, %v3763
        %v3766 = vadd.f32 %v3743, %v3764
        %v3767 = vadd.f32 %v3744, %v3764
        %v3768 = vadd.f32 %v3745, %v3764
        %v3769 = vadd.f32 %v3746, %v3764
        %v3770 = vadd.f32 %v3747, %v3764
        %v3771 = vadd.f32 %v3748, %v3764
        %v3772 = vadd.f32 %v3749, %v3764
        %v3773 = vadd.f32 %v3750, %v3764
        %v3774 = vadd.f32 %v3751, %v3764
        %v3775 = vadd.f32 %v3752, %v3764
        %v3776 = vadd.f32 %v3753, %v3764
        %v3777 = vadd.f32 %v3754, %v3764
        %v3778 = vadd.f32 %v3755, %v3764
        %v3779 = vadd.f32 %v3756, %v3764
        %v3780 = vadd.f32 %v3757, %v3764
        %v3781 = vadd.f32 %v3758, %v3764
        %v3782 = vadd.f32 %v3766, %v2054
        %v3783 = vadd.f32 %v3767, %v2055
        %v3784 = vadd.f32 %v3768, %v2056
        %v3785 = vadd.f32 %v3769, %v2057
        %v3786 = vadd.f32 %v3770, %v2058
        %v3787 = vadd.f32 %v3771, %v2059
        %v3788 = vadd.f32 %v3772, %v2060
        %v3789 = vadd.f32 %v3773, %v2061
        %v3790 = vadd.f32 %v3774, %v2062
        %v3791 = vadd.f32 %v3775, %v2063
        %v3792 = vadd.f32 %v3776, %v2064
        %v3793 = vadd.f32 %v3777, %v2065
        %v3794 = vadd.f32 %v3778, %v2066
        %v3795 = vadd.f32 %v3779, %v2067
        %v3796 = vadd.f32 %v3780, %v2068
        %v3797 = vadd.f32 %v3781, %v2069
        %v3798 = vsel %vm608, %v3782, 0.0
        %v3799 = vsel %vm608, %v3783, 0.0
        %v3800 = vadd.f32 %v3798, %v3799
        %v3801 = vsel %vm608, %v3784, 0.0
        %v3802 = vadd.f32 %v3800, %v3801
        %v3803 = vsel %vm608, %v3785, 0.0
        %v3804 = vadd.f32 %v3802, %v3803
        %v3805 = vsel %vm608, %v3786, 0.0
        %v3806 = vadd.f32 %v3804, %v3805
        %v3807 = vsel %vm608, %v3787, 0.0
        %v3808 = vadd.f32 %v3806, %v3807
        %v3809 = vsel %vm608, %v3788, 0.0
        %v3810 = vadd.f32 %v3808, %v3809
        %v3811 = vsel %vm608, %v3789, 0.0
        %v3812 = vadd.f32 %v3810, %v3811
        %v3813 = vsel %vm608, %v3790, 0.0
        %v3814 = vadd.f32 %v3812, %v3813
        %v3815 = vsel %vm608, %v3791, 0.0
        %v3816 = vadd.f32 %v3814, %v3815
        %v3817 = vsel %vm608, %v3792, 0.0
        %v3818 = vadd.f32 %v3816, %v3817
        %v3819 = vsel %vm608, %v3793, 0.0
        %v3820 = vadd.f32 %v3818, %v3819
        %v3821 = vsel %vm608, %v3794, 0.0
        %v3822 = vadd.f32 %v3820, %v3821
        %v3823 = vsel %vm608, %v3795, 0.0
        %v3824 = vadd.f32 %v3822, %v3823
        %v3825 = vsel %vm608, %v3796, 0.0
        %v3826 = vadd.f32 %v3824, %v3825
        %v3827 = vsel %vm608, %v3797, 0.0
        %v3828 = vadd.f32 %v3826, %v3827
        %v3829 = vrot.slane %v3828, 4
        %v3830 = vadd.f32 %v3828, %v3829
        %v3831 = vrot.slane %v3830, 2
        %v3832 = vadd.f32 %v3830, %v3831
        %v3833 = vrot.slane %v3832, 1
        %v3834 = vadd.f32 %v3832, %v3833
        %v3835 = vmul.f32 %v3782, %v3782
        %v3836 = vmul.f32 %v3783, %v3783
        %v3837 = vmul.f32 %v3784, %v3784
        %v3838 = vmul.f32 %v3785, %v3785
        %v3839 = vmul.f32 %v3786, %v3786
        %v3840 = vmul.f32 %v3787, %v3787
        %v3841 = vmul.f32 %v3788, %v3788
        %v3842 = vmul.f32 %v3789, %v3789
        %v3843 = vmul.f32 %v3790, %v3790
        %v3844 = vmul.f32 %v3791, %v3791
        %v3845 = vmul.f32 %v3792, %v3792
        %v3846 = vmul.f32 %v3793, %v3793
        %v3847 = vmul.f32 %v3794, %v3794
        %v3848 = vmul.f32 %v3795, %v3795
        %v3849 = vmul.f32 %v3796, %v3796
        %v3850 = vmul.f32 %v3797, %v3797
        %v3851 = vsel %vm608, %v3835, 0.0
        %v3852 = vsel %vm608, %v3836, 0.0
        %v3853 = vadd.f32 %v3851, %v3852
        %v3854 = vsel %vm608, %v3837, 0.0
        %v3855 = vadd.f32 %v3853, %v3854
        %v3856 = vsel %vm608, %v3838, 0.0
        %v3857 = vadd.f32 %v3855, %v3856
        %v3858 = vsel %vm608, %v3839, 0.0
        %v3859 = vadd.f32 %v3857, %v3858
        %v3860 = vsel %vm608, %v3840, 0.0
        %v3861 = vadd.f32 %v3859, %v3860
        %v3862 = vsel %vm608, %v3841, 0.0
        %v3863 = vadd.f32 %v3861, %v3862
        %v3864 = vsel %vm608, %v3842, 0.0
        %v3865 = vadd.f32 %v3863, %v3864
        %v3866 = vsel %vm608, %v3843, 0.0
        %v3867 = vadd.f32 %v3865, %v3866
        %v3868 = vsel %vm608, %v3844, 0.0
        %v3869 = vadd.f32 %v3867, %v3868
        %v3870 = vsel %vm608, %v3845, 0.0
        %v3871 = vadd.f32 %v3869, %v3870
        %v3872 = vsel %vm608, %v3846, 0.0
        %v3873 = vadd.f32 %v3871, %v3872
        %v3874 = vsel %vm608, %v3847, 0.0
        %v3875 = vadd.f32 %v3873, %v3874
        %v3876 = vsel %vm608, %v3848, 0.0
        %v3877 = vadd.f32 %v3875, %v3876
        %v3878 = vsel %vm608, %v3849, 0.0
        %v3879 = vadd.f32 %v3877, %v3878
        %v3880 = vsel %vm608, %v3850, 0.0
        %v3881 = vadd.f32 %v3879, %v3880
        %v3882 = vrot.slane %v3881, 4
        %v3883 = vadd.f32 %v3881, %v3882
        %v3884 = vrot.slane %v3883, 2
        %v3885 = vadd.f32 %v3883, %v3884
        %v3886 = vrot.slane %v3885, 1
        %v3887 = vadd.f32 %v3885, %v3886
        %v3888 = vsel %vm608, %v2054, 0.0
        %v3889 = vsel %vm608, %v2055, 0.0
        %v3890 = vadd.f32 %v3888, %v3889
        %v3891 = vsel %vm608, %v2056, 0.0
        %v3892 = vadd.f32 %v3890, %v3891
        %v3893 = vsel %vm608, %v2057, 0.0
        %v3894 = vadd.f32 %v3892, %v3893
        %v3895 = vsel %vm608, %v2058, 0.0
        %v3896 = vadd.f32 %v3894, %v3895
        %v3897 = vsel %vm608, %v2059, 0.0
        %v3898 = vadd.f32 %v3896, %v3897
        %v3899 = vsel %vm608, %v2060, 0.0
        %v3900 = vadd.f32 %v3898, %v3899
        %v3901 = vsel %vm608, %v2061, 0.0
        %v3902 = vadd.f32 %v3900, %v3901
        %v3903 = vsel %vm608, %v2062, 0.0
        %v3904 = vadd.f32 %v3902, %v3903
        %v3905 = vsel %vm608, %v2063, 0.0
        %v3906 = vadd.f32 %v3904, %v3905
        %v3907 = vsel %vm608, %v2064, 0.0
        %v3908 = vadd.f32 %v3906, %v3907
        %v3909 = vsel %vm608, %v2065, 0.0
        %v3910 = vadd.f32 %v3908, %v3909
        %v3911 = vsel %vm608, %v2066, 0.0
        %v3912 = vadd.f32 %v3910, %v3911
        %v3913 = vsel %vm608, %v2067, 0.0
        %v3914 = vadd.f32 %v3912, %v3913
        %v3915 = vsel %vm608, %v2068, 0.0
        %v3916 = vadd.f32 %v3914, %v3915
        %v3917 = vsel %vm608, %v2069, 0.0
        %v3918 = vadd.f32 %v3916, %v3917
        %v3919 = vrot.slane %v3918, 4
        %v3920 = vadd.f32 %v3918, %v3919
        %v3921 = vrot.slane %v3920, 2
        %v3922 = vadd.f32 %v3920, %v3921
        %v3923 = vrot.slane %v3922, 1
        %v3924 = vadd.f32 %v3922, %v3923
        %v3925 = vmul.f32 %v2054, %v2054
        %v3926 = vmul.f32 %v2055, %v2055
        %v3927 = vmul.f32 %v2056, %v2056
        %v3928 = vmul.f32 %v2057, %v2057
        %v3929 = vmul.f32 %v2058, %v2058
        %v3930 = vmul.f32 %v2059, %v2059
        %v3931 = vmul.f32 %v2060, %v2060
        %v3932 = vmul.f32 %v2061, %v2061
        %v3933 = vmul.f32 %v2062, %v2062
        %v3934 = vmul.f32 %v2063, %v2063
        %v3935 = vmul.f32 %v2064, %v2064
        %v3936 = vmul.f32 %v2065, %v2065
        %v3937 = vmul.f32 %v2066, %v2066
        %v3938 = vmul.f32 %v2067, %v2067
        %v3939 = vmul.f32 %v2068, %v2068
        %v3940 = vmul.f32 %v2069, %v2069
        %v3941 = vsel %vm608, %v3925, 0.0
        %v3942 = vsel %vm608, %v3926, 0.0
        %v3943 = vadd.f32 %v3941, %v3942
        %v3944 = vsel %vm608, %v3927, 0.0
        %v3945 = vadd.f32 %v3943, %v3944
        %v3946 = vsel %vm608, %v3928, 0.0
        %v3947 = vadd.f32 %v3945, %v3946
        %v3948 = vsel %vm608, %v3929, 0.0
        %v3949 = vadd.f32 %v3947, %v3948
        %v3950 = vsel %vm608, %v3930, 0.0
        %v3951 = vadd.f32 %v3949, %v3950
        %v3952 = vsel %vm608, %v3931, 0.0
        %v3953 = vadd.f32 %v3951, %v3952
        %v3954 = vsel %vm608, %v3932, 0.0
        %v3955 = vadd.f32 %v3953, %v3954
        %v3956 = vsel %vm608, %v3933, 0.0
        %v3957 = vadd.f32 %v3955, %v3956
        %v3958 = vsel %vm608, %v3934, 0.0
        %v3959 = vadd.f32 %v3957, %v3958
        %v3960 = vsel %vm608, %v3935, 0.0
        %v3961 = vadd.f32 %v3959, %v3960
        %v3962 = vsel %vm608, %v3936, 0.0
        %v3963 = vadd.f32 %v3961, %v3962
        %v3964 = vsel %vm608, %v3937, 0.0
        %v3965 = vadd.f32 %v3963, %v3964
        %v3966 = vsel %vm608, %v3938, 0.0
        %v3967 = vadd.f32 %v3965, %v3966
        %v3968 = vsel %vm608, %v3939, 0.0
        %v3969 = vadd.f32 %v3967, %v3968
        %v3970 = vsel %vm608, %v3940, 0.0
        %v3971 = vadd.f32 %v3969, %v3970
        %v3972 = vrot.slane %v3971, 4
        %v3973 = vadd.f32 %v3971, %v3972
        %v3974 = vrot.slane %v3973, 2
        %v3975 = vadd.f32 %v3973, %v3974
        %v3976 = vrot.slane %v3975, 1
        %v3977 = vadd.f32 %v3975, %v3976
        %v3978 = vlaneseq
        %v3979 = vshrl.u32 %v3978, 7
        %vm3980 = vcmp.eq.s32.totalorder %v3979, 0
        %v3981 = vsel %vm3980, %v3834, 0.0
        %vm3982 = vcmp.eq.s32.totalorder %v3979, 1
        %v3983 = vsel %vm3982, %v3887, 0.0
        %v3984 = vadd.f32 %v3981, %v3983
        %vm3985 = vcmp.eq.s32.totalorder %v3979, 2
        %v3986 = vsel %vm3985, %v3924, 0.0
        %v3987 = vadd.f32 %v3984, %v3986
        %vm3988 = vcmp.eq.s32.totalorder %v3979, 3
        %v3989 = vsel %vm3988, %v3977, 0.0
        %v3990 = vadd.f32 %v3987, %v3989
        %vm3991 = vcmask 60416
        %3992 = vst.msk [vmem:[%s348] sm:$0xf] %vm3991, %v3990
        %v3993 = vpack.c.bf16 %v3783, %v3782
        %v3994 = vpack.c.bf16 %v3785, %v3784
        %v3995 = vpack.c.bf16 %v3787, %v3786
        %v3996 = vpack.c.bf16 %v3789, %v3788
        %v3997 = vpack.c.bf16 %v3791, %v3790
        %v3998 = vpack.c.bf16 %v3793, %v3792
        %v3999 = vpack.c.bf16 %v3795, %v3794
        %v4000 = vpack.c.bf16 %v3797, %v3796
        %v4009 = vunpack.c.l.b16 %v3993
        %v4010 = vunpack.c.h.b16 %v3993
        %v4011 = vunpack.c.l.b16 %v3994
        %v4012 = vunpack.c.h.b16 %v3994
        %v4013 = vunpack.c.l.b16 %v3995
        %v4014 = vunpack.c.h.b16 %v3995
        %v4015 = vunpack.c.l.b16 %v3996
        %v4016 = vunpack.c.h.b16 %v3996
        %v4017 = vunpack.c.l.b16 %v3997
        %v4018 = vunpack.c.h.b16 %v3997
        %v4019 = vunpack.c.l.b16 %v3998
        %v4020 = vunpack.c.h.b16 %v3998
        %v4021 = vunpack.c.l.b16 %v3999
        %v4022 = vunpack.c.h.b16 %v3999
        %v4023 = vunpack.c.l.b16 %v4000
        %v4024 = vunpack.c.h.b16 %v4000
        %v4025 = vpack.c.b16 %v4009, %v4009
        %v4026 = vpack.c.b16 %v4010, %v4010
        %v4027 = vpack.c.b16 %v4011, %v4011
        %v4028 = vpack.c.b16 %v4012, %v4012
        %v4029 = vpack.c.b16 %v4013, %v4013
        %v4030 = vpack.c.b16 %v4014, %v4014
        %v4031 = vpack.c.b16 %v4015, %v4015
        %v4032 = vpack.c.b16 %v4016, %v4016
        %v4033 = vpack.c.b16 %v4017, %v4017
        %v4034 = vpack.c.b16 %v4018, %v4018
        %v4035 = vpack.c.b16 %v4019, %v4019
        %v4036 = vpack.c.b16 %v4020, %v4020
        %v4037 = vpack.c.b16 %v4021, %v4021
        %v4038 = vpack.c.b16 %v4022, %v4022
        %v4039 = vpack.c.b16 %v4023, %v4023
        %v4040 = vpack.c.b16 %v4024, %v4024
        %4057 = vst.msk [vmem:[%s316] sm:$0xf] %vm3991, %v4025
        %4058 = vst.msk [vmem:[%s316 + $0x4] sm:$0xf] %vm3991, %v4026
        %4059 = vst.msk [vmem:[%s316 + $0x8] sm:$0xf] %vm3991, %v4027
        %4060 = vst.msk [vmem:[%s316 + $0xc] sm:$0xf] %vm3991, %v4028
        %4061 = vst.msk [vmem:[%s316 + $0x10] sm:$0xf] %vm3991, %v4029
        %4062 = vst.msk [vmem:[%s316 + $0x14] sm:$0xf] %vm3991, %v4030
        %4063 = vst.msk [vmem:[%s316 + $0x18] sm:$0xf] %vm3991, %v4031
        %4064 = vst.msk [vmem:[%s316 + $0x1c] sm:$0xf] %vm3991, %v4032
        %4065 = vst.msk [vmem:[%s316 + $0x20] sm:$0xf] %vm3991, %v4033
        %4066 = vst.msk [vmem:[%s316 + $0x24] sm:$0xf] %vm3991, %v4034
        %4067 = vst.msk [vmem:[%s316 + $0x28] sm:$0xf] %vm3991, %v4035
        %4068 = vst.msk [vmem:[%s316 + $0x2c] sm:$0xf] %vm3991, %v4036
        %4069 = vst.msk [vmem:[%s316 + $0x30] sm:$0xf] %vm3991, %v4037
        %4070 = vst.msk [vmem:[%s316 + $0x34] sm:$0xf] %vm3991, %v4038
        %4071 = vst.msk [vmem:[%s316 + $0x38] sm:$0xf] %vm3991, %v4039
        %4072 = vst.msk [vmem:[%s316 + $0x3c] sm:$0xf] %vm3991, %v4040
        %v4073 = vpack.c.bf16 %v2055, %v2054
        %v4074 = vpack.c.bf16 %v2057, %v2056
        %v4075 = vpack.c.bf16 %v2059, %v2058
        %v4076 = vpack.c.bf16 %v2061, %v2060
        %v4077 = vpack.c.bf16 %v2063, %v2062
        %v4078 = vpack.c.bf16 %v2065, %v2064
        %v4079 = vpack.c.bf16 %v2067, %v2066
        %v4080 = vpack.c.bf16 %v2069, %v2068
        %v4089 = vunpack.c.l.b16 %v4073
        %v4090 = vunpack.c.h.b16 %v4073
        %v4091 = vunpack.c.l.b16 %v4074
        %v4092 = vunpack.c.h.b16 %v4074
        %v4093 = vunpack.c.l.b16 %v4075
        %v4094 = vunpack.c.h.b16 %v4075
        %v4095 = vunpack.c.l.b16 %v4076
        %v4096 = vunpack.c.h.b16 %v4076
        %v4097 = vunpack.c.l.b16 %v4077
        %v4098 = vunpack.c.h.b16 %v4077
        %v4099 = vunpack.c.l.b16 %v4078
        %v4100 = vunpack.c.h.b16 %v4078
        %v4101 = vunpack.c.l.b16 %v4079
        %v4102 = vunpack.c.h.b16 %v4079
        %v4103 = vunpack.c.l.b16 %v4080
        %v4104 = vunpack.c.h.b16 %v4080
        %v4105 = vpack.c.b16 %v4089, %v4089
        %v4106 = vpack.c.b16 %v4090, %v4090
        %v4107 = vpack.c.b16 %v4091, %v4091
        %v4108 = vpack.c.b16 %v4092, %v4092
        %v4109 = vpack.c.b16 %v4093, %v4093
        %v4110 = vpack.c.b16 %v4094, %v4094
        %v4111 = vpack.c.b16 %v4095, %v4095
        %v4112 = vpack.c.b16 %v4096, %v4096
        %v4113 = vpack.c.b16 %v4097, %v4097
        %v4114 = vpack.c.b16 %v4098, %v4098
        %v4115 = vpack.c.b16 %v4099, %v4099
        %v4116 = vpack.c.b16 %v4100, %v4100
        %v4117 = vpack.c.b16 %v4101, %v4101
        %v4118 = vpack.c.b16 %v4102, %v4102
        %v4119 = vpack.c.b16 %v4103, %v4103
        %v4120 = vpack.c.b16 %v4104, %v4104
        %4137 = vst.msk [vmem:[%s322] sm:$0xf] %vm3991, %v4105
        %4138 = vst.msk [vmem:[%s322 + $0x4] sm:$0xf] %vm3991, %v4106
        %4139 = vst.msk [vmem:[%s322 + $0x8] sm:$0xf] %vm3991, %v4107
        %4140 = vst.msk [vmem:[%s322 + $0xc] sm:$0xf] %vm3991, %v4108
        %4141 = vst.msk [vmem:[%s322 + $0x10] sm:$0xf] %vm3991, %v4109
        %4142 = vst.msk [vmem:[%s322 + $0x14] sm:$0xf] %vm3991, %v4110
        %4143 = vst.msk [vmem:[%s322 + $0x18] sm:$0xf] %vm3991, %v4111
        %4144 = vst.msk [vmem:[%s322 + $0x1c] sm:$0xf] %vm3991, %v4112
        %4145 = vst.msk [vmem:[%s322 + $0x20] sm:$0xf] %vm3991, %v4113
        %4146 = vst.msk [vmem:[%s322 + $0x24] sm:$0xf] %vm3991, %v4114
        %4147 = vst.msk [vmem:[%s322 + $0x28] sm:$0xf] %vm3991, %v4115
        %4148 = vst.msk [vmem:[%s322 + $0x2c] sm:$0xf] %vm3991, %v4116
        %4149 = vst.msk [vmem:[%s322 + $0x30] sm:$0xf] %vm3991, %v4117
        %4150 = vst.msk [vmem:[%s322 + $0x34] sm:$0xf] %vm3991, %v4118
        %4151 = vst.msk [vmem:[%s322 + $0x38] sm:$0xf] %vm3991, %v4119
        %4152 = vst.msk [vmem:[%s322 + $0x3c] sm:$0xf] %vm3991, %v4120
        %s4153 = sand.u32 %s164, 1
        %s4154 = sand.u32 %s164, 1
        %s4155 = smul.addr %s4154, 64
        %s4156 = scalar_lea.vmem [#allocation2], %s4155
        %s4157 = sand.u32 %s190, 1
        %s4158 = sand.u32 %s190, 1
        %s4159 = smul.addr %s4158, 64
        %s4160 = scalar_lea.vmem [#allocation3], %s4159
        %p4161 = scmp.lt.s32.totalorder %s20, 3
        %s4162 = scalar_select %p4161, %s20, 3
        %s4163 = smul.addr %s4162, 4
        %s4164 = scalar_lea.vmem %s8, %s4163
        // Predicated region
        $region45: #{double_conv_forward.4} parent=43 // pred_check
          %p4165 = pneg %p174
        $region46: #{double_conv_forward.4} parent=43 // pred_check_branch
          %4167 = sbr.rel (%p4165) target = $region48
        $region47: #{double_conv_forward.4} parent=43 // pred_region
          %s4168 = smul.u32 4, %s20
          %s4169 = smul.addr %s4168, 2
          %s4170 = smul.addr %s4169, 4
          %s4171 = scalar_lea.vmem %s6, %s4170
          // Predicated region
          $region49: #{double_conv_forward.4} parent=47 // pred_check
            _
          $region50: #{double_conv_forward.4} parent=47 // pred_check_branch
            %4173 = sbr.rel (0) target = $region52
          $region51: #{double_conv_forward.4} parent=47 // pred_region
            // Predicated region
            $region53: #{double_conv_forward.4} parent=51 // pred_check
              _
            $region54: #{double_conv_forward.4} parent=51 // pred_check_branch
              %4175 = sbr.rel target = $region56
            $region55: #{double_conv_forward.4} parent=51 // pred_region
              // Predicated region
              $region68: #{double_conv_forward.4} parent=55 // pred_check
                _
              $region69: #{double_conv_forward.4} parent=55 // pred_check_branch
                %4220 = sbr.rel (0) target = $region71
              $region70: #{double_conv_forward.4} parent=55 // pred_region
                loop: start=0, step=1, limit=1
                $region72: #{double_conv_forward.4} parent=70 // loop_pre_header
                  _
                $region73: #{double_conv_forward.4} parent=70 // loop_header
                  %s4222 = sphi 0, %s4226
                  %p4223 = scmp.ge.s32.totalorder %s4222, 1
                  %s4227 = sphi %s4156, %s4156
                  %s4228 = sphi %s4171, %s4171
                $region74: #{double_conv_forward.4} parent=70 // loop_header_branch
                  %4225 = sbr.rel (%p4223) target = $region78
                $region75: #{double_conv_forward.4} parent=70 // loop_body
                  _
                $region76: #{double_conv_forward.4} parent=70 // loop_footer
                  %s4226 = sadd.s32 1, %s4222
                $region77: #{double_conv_forward.4} parent=70 // loop_footer_branch
                  %4221 = sbr.rel target = $region73
                $region78: #{double_conv_forward.4} parent=70 // loop_exit
                  _
                loop: start=0, step=1, limit=1
                $region79: #{double_conv_forward.4} parent=70 // loop_pre_header
                  _
                $region80: #{double_conv_forward.4} parent=70 // loop_header
                  %s4231 = sphi 0, %s4235
                  %p4232 = scmp.ge.s32.totalorder %s4231, 1
                  %s4236 = sphi %s4156, %s4156
                  %s4237 = sphi %s4171, %s4171
                $region81: #{double_conv_forward.4} parent=70 // loop_header_branch
                  %4234 = sbr.rel (%p4232) target = $region85
                $region82: #{double_conv_forward.4} parent=70 // loop_body
                  %v4238 = vld [vmem:[%s4236] sm:$0xf]
                  %4239 = vst [vmem:[%s4237] sm:$0xf] %v4238
                  %v4240 = vld [vmem:[%s4236 + $0x4] sm:$0xf]
                  %4241 = vst [vmem:[%s4237 + $0x4] sm:$0xf] %v4240
                  %v4242 = vld [vmem:[%s4236 + $0x8] sm:$0xf]
                  %4243 = vst [vmem:[%s4237 + $0x8] sm:$0xf] %v4242
                  %v4244 = vld [vmem:[%s4236 + $0xc] sm:$0xf]
                  %4245 = vst [vmem:[%s4237 + $0xc] sm:$0xf] %v4244
                  %v4246 = vld [vmem:[%s4236 + $0x10] sm:$0xf]
                  %4247 = vst [vmem:[%s4237 + $0x10] sm:$0xf] %v4246
                  %v4248 = vld [vmem:[%s4236 + $0x14] sm:$0xf]
                  %4249 = vst [vmem:[%s4237 + $0x14] sm:$0xf] %v4248
                  %v4250 = vld [vmem:[%s4236 + $0x18] sm:$0xf]
                  %4251 = vst [vmem:[%s4237 + $0x18] sm:$0xf] %v4250
                  %v4252 = vld [vmem:[%s4236 + $0x1c] sm:$0xf]
                  %4253 = vst [vmem:[%s4237 + $0x1c] sm:$0xf] %v4252
                  %v4254 = vld [vmem:[%s4236 + $0x20] sm:$0xf]
                  %4255 = vst [vmem:[%s4237 + $0x80] sm:$0xf] %v4254
                  %v4256 = vld [vmem:[%s4236 + $0x24] sm:$0xf]
                  %4257 = vst [vmem:[%s4237 + $0x84] sm:$0xf] %v4256
                  %v4258 = vld [vmem:[%s4236 + $0x28] sm:$0xf]
                  %4259 = vst [vmem:[%s4237 + $0x88] sm:$0xf] %v4258
                  %v4260 = vld [vmem:[%s4236 + $0x2c] sm:$0xf]
                  %4261 = vst [vmem:[%s4237 + $0x8c] sm:$0xf] %v4260
                  %v4262 = vld [vmem:[%s4236 + $0x30] sm:$0xf]
                  %4263 = vst [vmem:[%s4237 + $0x90] sm:$0xf] %v4262
                  %v4264 = vld [vmem:[%s4236 + $0x34] sm:$0xf]
                  %4265 = vst [vmem:[%s4237 + $0x94] sm:$0xf] %v4264
                  %v4266 = vld [vmem:[%s4236 + $0x38] sm:$0xf]
                  %4267 = vst [vmem:[%s4237 + $0x98] sm:$0xf] %v4266
                  %v4268 = vld [vmem:[%s4236 + $0x3c] sm:$0xf]
                  %4269 = vst [vmem:[%s4237 + $0x9c] sm:$0xf] %v4268
                $region83: #{double_conv_forward.4} parent=70 // loop_footer
                  %s4235 = sadd.s32 1, %s4231
                $region84: #{double_conv_forward.4} parent=70 // loop_footer_branch
                  %4230 = sbr.rel target = $region80
                $region85: #{double_conv_forward.4} parent=70 // loop_exit
                  _
              $region71: #{double_conv_forward.4} parent=55 // pred_fallthru
                _
            $region56: #{double_conv_forward.4} parent=51 // pred_fallthru
              _
            // Predicated region
            $region57: #{double_conv_forward.4} parent=51 // pred_check
              _
            $region58: #{double_conv_forward.4} parent=51 // pred_check_branch
              %4177 = sbr.rel (0) target = $region60
            $region59: #{double_conv_forward.4} parent=51 // pred_region
              loop: start=0, step=1, limit=1
              $region61: #{double_conv_forward.4} parent=59 // loop_pre_header
                _
              $region62: #{double_conv_forward.4} parent=59 // loop_header
                %s4180 = sphi 0, %s4184
                %p4181 = scmp.ge.s32.totalorder %s4180, 1
                %s4185 = sphi %s4156, %s4156
                %s4186 = sphi %s4171, %s4171
              $region63: #{double_conv_forward.4} parent=59 // loop_header_branch
                %4183 = sbr.rel (%p4181) target = $region67
              $region64: #{double_conv_forward.4} parent=59 // loop_body
                %v4187 = vld [vmem:[%s4185] sm:$0xf]
                %4188 = vst [vmem:[%s4186] sm:$0xf] %v4187
                %v4189 = vld [vmem:[%s4185 + $0x4] sm:$0xf]
                %4190 = vst [vmem:[%s4186 + $0x4] sm:$0xf] %v4189
                %v4191 = vld [vmem:[%s4185 + $0x8] sm:$0xf]
                %4192 = vst [vmem:[%s4186 + $0x8] sm:$0xf] %v4191
                %v4193 = vld [vmem:[%s4185 + $0xc] sm:$0xf]
                %4194 = vst [vmem:[%s4186 + $0xc] sm:$0xf] %v4193
                %v4195 = vld [vmem:[%s4185 + $0x10] sm:$0xf]
                %4196 = vst [vmem:[%s4186 + $0x10] sm:$0xf] %v4195
                %v4197 = vld [vmem:[%s4185 + $0x14] sm:$0xf]
                %4198 = vst [vmem:[%s4186 + $0x14] sm:$0xf] %v4197
                %v4199 = vld [vmem:[%s4185 + $0x18] sm:$0xf]
                %4200 = vst [vmem:[%s4186 + $0x18] sm:$0xf] %v4199
                %v4201 = vld [vmem:[%s4185 + $0x1c] sm:$0xf]
                %4202 = vst [vmem:[%s4186 + $0x1c] sm:$0xf] %v4201
                %v4203 = vld [vmem:[%s4185 + $0x20] sm:$0xf]
                %4204 = vst [vmem:[%s4186 + $0x80] sm:$0xf] %v4203
                %v4205 = vld [vmem:[%s4185 + $0x24] sm:$0xf]
                %4206 = vst [vmem:[%s4186 + $0x84] sm:$0xf] %v4205
                %v4207 = vld [vmem:[%s4185 + $0x28] sm:$0xf]
                %4208 = vst [vmem:[%s4186 + $0x88] sm:$0xf] %v4207
                %v4209 = vld [vmem:[%s4185 + $0x2c] sm:$0xf]
                %4210 = vst [vmem:[%s4186 + $0x8c] sm:$0xf] %v4209
                %v4211 = vld [vmem:[%s4185 + $0x30] sm:$0xf]
                %4212 = vst [vmem:[%s4186 + $0x90] sm:$0xf] %v4211
                %v4213 = vld [vmem:[%s4185 + $0x34] sm:$0xf]
                %4214 = vst [vmem:[%s4186 + $0x94] sm:$0xf] %v4213
                %v4215 = vld [vmem:[%s4185 + $0x38] sm:$0xf]
                %4216 = vst [vmem:[%s4186 + $0x98] sm:$0xf] %v4215
                %v4217 = vld [vmem:[%s4185 + $0x3c] sm:$0xf]
                %4218 = vst [vmem:[%s4186 + $0x9c] sm:$0xf] %v4217
              $region65: #{double_conv_forward.4} parent=59 // loop_footer
                %s4184 = sadd.s32 1, %s4180
              $region66: #{double_conv_forward.4} parent=59 // loop_footer_branch
                %4179 = sbr.rel target = $region62
              $region67: #{double_conv_forward.4} parent=59 // loop_exit
                _
            $region60: #{double_conv_forward.4} parent=51 // pred_fallthru
              _
          $region52: #{double_conv_forward.4} parent=47 // pred_fallthru
            _
          %4270 = vnop
        $region48: #{double_conv_forward.4} parent=43 // pred_fallthru
          _
        // Predicated region
        $region86: #{double_conv_forward.4} parent=43 // pred_check
          %p4271 = pneg %p200
        $region87: #{double_conv_forward.4} parent=43 // pred_check_branch
          %4273 = sbr.rel (%p4271) target = $region89
        $region88: #{double_conv_forward.4} parent=43 // pred_region
          %s4274 = smul.u32 4, %s20
          %s4275 = smul.addr %s4274, 2
          %s4276 = smul.addr %s4275, 4
          %s4277 = scalar_lea.vmem %s7, %s4276
          // Predicated region
          $region90: #{double_conv_forward.4} parent=88 // pred_check
            _
          $region91: #{double_conv_forward.4} parent=88 // pred_check_branch
            %4279 = sbr.rel (0) target = $region93
          $region92: #{double_conv_forward.4} parent=88 // pred_region
            // Predicated region
            $region94: #{double_conv_forward.4} parent=92 // pred_check
              _
            $region95: #{double_conv_forward.4} parent=92 // pred_check_branch
              %4281 = sbr.rel target = $region97
            $region96: #{double_conv_forward.4} parent=92 // pred_region
              // Predicated region
              $region109: #{double_conv_forward.4} parent=96 // pred_check
                _
              $region110: #{double_conv_forward.4} parent=96 // pred_check_branch
                %4326 = sbr.rel (0) target = $region112
              $region111: #{double_conv_forward.4} parent=96 // pred_region
                loop: start=0, step=1, limit=1
                $region113: #{double_conv_forward.4} parent=111 // loop_pre_header
                  _
                $region114: #{double_conv_forward.4} parent=111 // loop_header
                  %s4328 = sphi 0, %s4332
                  %p4329 = scmp.ge.s32.totalorder %s4328, 1
                  %s4333 = sphi %s4160, %s4160
                  %s4334 = sphi %s4277, %s4277
                $region115: #{double_conv_forward.4} parent=111 // loop_header_branch
                  %4331 = sbr.rel (%p4329) target = $region119
                $region116: #{double_conv_forward.4} parent=111 // loop_body
                  _
                $region117: #{double_conv_forward.4} parent=111 // loop_footer
                  %s4332 = sadd.s32 1, %s4328
                $region118: #{double_conv_forward.4} parent=111 // loop_footer_branch
                  %4327 = sbr.rel target = $region114
                $region119: #{double_conv_forward.4} parent=111 // loop_exit
                  _
                loop: start=0, step=1, limit=1
                $region120: #{double_conv_forward.4} parent=111 // loop_pre_header
                  _
                $region121: #{double_conv_forward.4} parent=111 // loop_header
                  %s4337 = sphi 0, %s4341
                  %p4338 = scmp.ge.s32.totalorder %s4337, 1
                  %s4342 = sphi %s4160, %s4160
                  %s4343 = sphi %s4277, %s4277
                $region122: #{double_conv_forward.4} parent=111 // loop_header_branch
                  %4340 = sbr.rel (%p4338) target = $region126
                $region123: #{double_conv_forward.4} parent=111 // loop_body
                  %v4344 = vld [vmem:[%s4342] sm:$0xf]
                  %4345 = vst [vmem:[%s4343] sm:$0xf] %v4344
                  %v4346 = vld [vmem:[%s4342 + $0x4] sm:$0xf]
                  %4347 = vst [vmem:[%s4343 + $0x4] sm:$0xf] %v4346
                  %v4348 = vld [vmem:[%s4342 + $0x8] sm:$0xf]
                  %4349 = vst [vmem:[%s4343 + $0x8] sm:$0xf] %v4348
                  %v4350 = vld [vmem:[%s4342 + $0xc] sm:$0xf]
                  %4351 = vst [vmem:[%s4343 + $0xc] sm:$0xf] %v4350
                  %v4352 = vld [vmem:[%s4342 + $0x10] sm:$0xf]
                  %4353 = vst [vmem:[%s4343 + $0x10] sm:$0xf] %v4352
                  %v4354 = vld [vmem:[%s4342 + $0x14] sm:$0xf]
                  %4355 = vst [vmem:[%s4343 + $0x14] sm:$0xf] %v4354
                  %v4356 = vld [vmem:[%s4342 + $0x18] sm:$0xf]
                  %4357 = vst [vmem:[%s4343 + $0x18] sm:$0xf] %v4356
                  %v4358 = vld [vmem:[%s4342 + $0x1c] sm:$0xf]
                  %4359 = vst [vmem:[%s4343 + $0x1c] sm:$0xf] %v4358
                  %v4360 = vld [vmem:[%s4342 + $0x20] sm:$0xf]
                  %4361 = vst [vmem:[%s4343 + $0x80] sm:$0xf] %v4360
                  %v4362 = vld [vmem:[%s4342 + $0x24] sm:$0xf]
                  %4363 = vst [vmem:[%s4343 + $0x84] sm:$0xf] %v4362
                  %v4364 = vld [vmem:[%s4342 + $0x28] sm:$0xf]
                  %4365 = vst [vmem:[%s4343 + $0x88] sm:$0xf] %v4364
                  %v4366 = vld [vmem:[%s4342 + $0x2c] sm:$0xf]
                  %4367 = vst [vmem:[%s4343 + $0x8c] sm:$0xf] %v4366
                  %v4368 = vld [vmem:[%s4342 + $0x30] sm:$0xf]
                  %4369 = vst [vmem:[%s4343 + $0x90] sm:$0xf] %v4368
                  %v4370 = vld [vmem:[%s4342 + $0x34] sm:$0xf]
                  %4371 = vst [vmem:[%s4343 + $0x94] sm:$0xf] %v4370
                  %v4372 = vld [vmem:[%s4342 + $0x38] sm:$0xf]
                  %4373 = vst [vmem:[%s4343 + $0x98] sm:$0xf] %v4372
                  %v4374 = vld [vmem:[%s4342 + $0x3c] sm:$0xf]
                  %4375 = vst [vmem:[%s4343 + $0x9c] sm:$0xf] %v4374
                $region124: #{double_conv_forward.4} parent=111 // loop_footer
                  %s4341 = sadd.s32 1, %s4337
                $region125: #{double_conv_forward.4} parent=111 // loop_footer_branch
                  %4336 = sbr.rel target = $region121
                $region126: #{double_conv_forward.4} parent=111 // loop_exit
                  _
              $region112: #{double_conv_forward.4} parent=96 // pred_fallthru
                _
            $region97: #{double_conv_forward.4} parent=92 // pred_fallthru
              _
            // Predicated region
            $region98: #{double_conv_forward.4} parent=92 // pred_check
              _
            $region99: #{double_conv_forward.4} parent=92 // pred_check_branch
              %4283 = sbr.rel (0) target = $region101
            $region100: #{double_conv_forward.4} parent=92 // pred_region
              loop: start=0, step=1, limit=1
              $region102: #{double_conv_forward.4} parent=100 // loop_pre_header
                _
              $region103: #{double_conv_forward.4} parent=100 // loop_header
                %s4286 = sphi 0, %s4290
                %p4287 = scmp.ge.s32.totalorder %s4286, 1
                %s4291 = sphi %s4160, %s4160
                %s4292 = sphi %s4277, %s4277
              $region104: #{double_conv_forward.4} parent=100 // loop_header_branch
                %4289 = sbr.rel (%p4287) target = $region108
              $region105: #{double_conv_forward.4} parent=100 // loop_body
                %v4293 = vld [vmem:[%s4291] sm:$0xf]
                %4294 = vst [vmem:[%s4292] sm:$0xf] %v4293
                %v4295 = vld [vmem:[%s4291 + $0x4] sm:$0xf]
                %4296 = vst [vmem:[%s4292 + $0x4] sm:$0xf] %v4295
                %v4297 = vld [vmem:[%s4291 + $0x8] sm:$0xf]
                %4298 = vst [vmem:[%s4292 + $0x8] sm:$0xf] %v4297
                %v4299 = vld [vmem:[%s4291 + $0xc] sm:$0xf]
                %4300 = vst [vmem:[%s4292 + $0xc] sm:$0xf] %v4299
                %v4301 = vld [vmem:[%s4291 + $0x10] sm:$0xf]
                %4302 = vst [vmem:[%s4292 + $0x10] sm:$0xf] %v4301
                %v4303 = vld [vmem:[%s4291 + $0x14] sm:$0xf]
                %4304 = vst [vmem:[%s4292 + $0x14] sm:$0xf] %v4303
                %v4305 = vld [vmem:[%s4291 + $0x18] sm:$0xf]
                %4306 = vst [vmem:[%s4292 + $0x18] sm:$0xf] %v4305
                %v4307 = vld [vmem:[%s4291 + $0x1c] sm:$0xf]
                %4308 = vst [vmem:[%s4292 + $0x1c] sm:$0xf] %v4307
                %v4309 = vld [vmem:[%s4291 + $0x20] sm:$0xf]
                %4310 = vst [vmem:[%s4292 + $0x80] sm:$0xf] %v4309
                %v4311 = vld [vmem:[%s4291 + $0x24] sm:$0xf]
                %4312 = vst [vmem:[%s4292 + $0x84] sm:$0xf] %v4311
                %v4313 = vld [vmem:[%s4291 + $0x28] sm:$0xf]
                %4314 = vst [vmem:[%s4292 + $0x88] sm:$0xf] %v4313
                %v4315 = vld [vmem:[%s4291 + $0x2c] sm:$0xf]
                %4316 = vst [vmem:[%s4292 + $0x8c] sm:$0xf] %v4315
                %v4317 = vld [vmem:[%s4291 + $0x30] sm:$0xf]
                %4318 = vst [vmem:[%s4292 + $0x90] sm:$0xf] %v4317
                %v4319 = vld [vmem:[%s4291 + $0x34] sm:$0xf]
                %4320 = vst [vmem:[%s4292 + $0x94] sm:$0xf] %v4319
                %v4321 = vld [vmem:[%s4291 + $0x38] sm:$0xf]
                %4322 = vst [vmem:[%s4292 + $0x98] sm:$0xf] %v4321
                %v4323 = vld [vmem:[%s4291 + $0x3c] sm:$0xf]
                %4324 = vst [vmem:[%s4292 + $0x9c] sm:$0xf] %v4323
              $region106: #{double_conv_forward.4} parent=100 // loop_footer
                %s4290 = sadd.s32 1, %s4286
              $region107: #{double_conv_forward.4} parent=100 // loop_footer_branch
                %4285 = sbr.rel target = $region103
              $region108: #{double_conv_forward.4} parent=100 // loop_exit
                _
            $region101: #{double_conv_forward.4} parent=92 // pred_fallthru
              _
          $region93: #{double_conv_forward.4} parent=88 // pred_fallthru
            _
          %4376 = vnop
        $region89: #{double_conv_forward.4} parent=43 // pred_fallthru
          _
        // Predicated region
        $region127: #{double_conv_forward.4} parent=43 // pred_check
          %p4377 = pneg %p226
        $region128: #{double_conv_forward.4} parent=43 // pred_check_branch
          %4379 = sbr.rel (%p4377) target = $region130
        $region129: #{double_conv_forward.4} parent=43 // pred_region
          _
        $region130: #{double_conv_forward.4} parent=43 // pred_fallthru
          _
      $region44: #{double_conv_forward.4} parent=5 // pred_fallthru
        _
      %p4380 = scmp.le.s32.totalorder 2, %s15
      // Predicated region
      $region131: #{double_conv_forward.4} parent=5 // pred_check
        %p4381 = pneg %p4380
      $region132: #{double_conv_forward.4} parent=5 // pred_check_branch
        %4383 = sbr.rel (%p4381) target = $region134
      $region133: #{double_conv_forward.4} parent=5 // pred_region
        %s4384 = ssub.s32 %s15, 2
        // Predicated region
        $region135: #{double_conv_forward.4} parent=133 // pred_check
          %p4385 = pneg %p180
        $region136: #{double_conv_forward.4} parent=133 // pred_check_branch
          %4387 = sbr.rel (%p4385) target = $region138
        $region137: #{double_conv_forward.4} parent=133 // pred_region
          %s4388 = sand.u32 %s165, 1
          %s4389 = sand.u32 %s165, 1
          %s4390 = smul.addr %s4389, 64
          %s4391 = scalar_lea.vmem [#allocation2], %s4390
        $region138: #{double_conv_forward.4} parent=133 // pred_fallthru
          _
        // Predicated region
        $region139: #{double_conv_forward.4} parent=133 // pred_check
          %p4392 = pneg %p206
        $region140: #{double_conv_forward.4} parent=133 // pred_check_branch
          %4394 = sbr.rel (%p4392) target = $region142
        $region141: #{double_conv_forward.4} parent=133 // pred_region
          %s4395 = sand.u32 %s191, 1
          %s4396 = sand.u32 %s191, 1
          %s4397 = smul.addr %s4396, 64
          %s4398 = scalar_lea.vmem [#allocation3], %s4397
        $region142: #{double_conv_forward.4} parent=133 // pred_fallthru
          _
        // Predicated region
        $region143: #{double_conv_forward.4} parent=133 // pred_check
          %p4399 = pneg %p232
        $region144: #{double_conv_forward.4} parent=133 // pred_check_branch
          %4401 = sbr.rel (%p4399) target = $region146
        $region145: #{double_conv_forward.4} parent=133 // pred_region
          %p4402 = scmp.lt.s32.totalorder %s21, 3
          %s4403 = scalar_select %p4402, %s21, 3
          %s4404 = smul.addr %s4403, 4
          %s4405 = scalar_lea.vmem %s8, %s4404
        $region146: #{double_conv_forward.4} parent=133 // pred_fallthru
          _
      $region134: #{double_conv_forward.4} parent=5 // pred_fallthru
        _
    $region6: #{double_conv_forward.4} parent=1 // loop_footer
      %s19 = sadd.s32 1, %s15
    $region7: #{double_conv_forward.4} parent=1 // loop_footer_branch
      %14 = sbr.rel target = $region3
    $region8: #{double_conv_forward.4} parent=1 // loop_exit
      _

</llo_original>
